<compile_context>
chip_gen: v5e
topology: v5e:2x2
jax: 0.10.0
libtpu: 0.0.40
codegen_flags: <defaults>
</compile_context>

<pallas_src>
import functools

import numpy as np
import jax
import jax.numpy as jnp
from jax import lax
from jax.experimental import pallas as pl
from jax.experimental.pallas import tpu as pltpu


# ---------------------------------------------------------------------------
# In-kernel helpers (flat (H*W, C) activations, channels on the lane dim)
# ---------------------------------------------------------------------------
def _conv3x3_relu(pad_scr, HW, W, w_flat, b, mask_lr):
    """3x3 'same' conv + bias + ReLU as a single im2col matmul.

    pad_scr : VMEM ref (HW + 2*(W+1), Cin); rows [W+1, W+1+HW) hold the image
              in flat row-major (h*W + w) order.
    w_flat  : (9*Cin, Cout), row index (dh*3+dw)*Cin + cin.
    b       : (1, Cout)
    mask_lr : (HW, 2) f32; col 0 = 1.0 where w>0, col 1 = 1.0 where w<W-1.
    """
    Cin = pad_scr.shape[1]
    P = W + 1
    zero_pad = jnp.zeros((P, Cin), jnp.float32)
    pad_scr[0:P, :] = zero_pad                       # top halo
    pad_scr[P + HW:P + HW + P, :] = zero_pad         # bottom halo
    ml = mask_lr[:, 0:1]                             # (HW, 1)
    mr = mask_lr[:, 1:2]
    taps = []
    for oh in (-1, 0, 1):
        for ow in (-1, 0, 1):
            s = oh * W + ow
            t = pad_scr[P + s:P + s + HW, :]         # flat shift by s (zero halo)
            if ow == -1:
                t = t * ml                           # kill wrap-around at w == 0
            elif ow == 1:
                t = t * mr                           # kill wrap-around at w == W-1
            taps.append(t)
    patches = jnp.concatenate(taps, axis=1)          # (HW, 9*Cin) im2col
    y = jnp.dot(patches, w_flat, preferred_element_type=jnp.float32,
                precision=lax.Precision.HIGHEST)
    return jnp.maximum(y + b, 0.0)                   # bias + ReLU


def _maxpool2x2_into(y, pool_scr, dst_ref, dst_off, H, W):
    """2x2 stride-2 max pool of flat (H*W, C) `y`; writes the pooled
    (H//2*W//2, C) map into dst_ref starting at row dst_off."""
    HW = H * W
    C = y.shape[1]
    Wq = W // 2
    pool_scr[0:HW, :] = y
    pool_scr[HW:HW + W, :] = jnp.zeros((W, C), jnp.float32)
    mv = jnp.maximum(y, pool_scr[W:W + HW, :])       # vertical pair max
    pool_scr[0:HW, :] = mv
    mh = jnp.maximum(mv, pool_scr[1:1 + HW, :])      # + horizontal pair max
    pool_scr[0:HW, :] = mh
    for hp in range(H // 2):                         # compact rows (2hp, even w)
        piece = pool_scr[pl.ds(2 * hp * W, Wq, stride=2), :]   # (Wq, C)
        dst_ref[dst_off + hp * Wq:dst_off + (hp + 1) * Wq, :] = piece


# ---------------------------------------------------------------------------
# Fused forward kernel: conv1+pool -> conv2 -> conv3+pool -> fc1 -> fc2
# ---------------------------------------------------------------------------
def _gridworld_kernel(x_ref, m1_ref, m2_ref,
                      w1_ref, b1_ref, w2_ref, b2_ref, w3_ref, b3_ref,
                      fc1w_ref, fc1b_ref, fc2w_ref, fc2b_ref,
                      o_ref,
                      pad1, pad2, pad3, pool1, pool3, flat_scr,
                      *, H, W):
    HW = H * W
    H2, W2 = H // 2, W // 2
    HW2 = H2 * W2
    n_pix = (H // 4) * (W // 4)
    P1, P2 = W + 1, W2 + 1

    # conv1 + ReLU + 2x2 max pool (pooled map lands in conv2's halo buffer)
    pad1[P1:P1 + HW, :] = x_ref[0]                               # (HW, C0)
    y = _conv3x3_relu(pad1, HW, W, w1_ref[...], b1_ref[...], m1_ref[...])
    _maxpool2x2_into(y, pool1, pad2, P2, H, W)

    # conv2 + ReLU
    y = _conv3x3_relu(pad2, HW2, W2, w2_ref[...], b2_ref[...], m2_ref[...])

    # conv3 + ReLU + 2x2 max pool
    pad3[P2:P2 + HW2, :] = y
    y = _conv3x3_relu(pad3, HW2, W2, w3_ref[...], b3_ref[...], m2_ref[...])
    _maxpool2x2_into(y, pool3, flat_scr, 0, H2, W2)              # (n_pix, hs2)

    # flatten in HWC order -> fc1 -> ReLU -> fc2
    yf = flat_scr[...]
    xv = jnp.concatenate([yf[p:p + 1, :] for p in range(n_pix)], axis=1)  # (1, mid)
    h = jnp.maximum(
        jnp.dot(xv, fc1w_ref[...], preferred_element_type=jnp.float32,
                precision=lax.Precision.HIGHEST) + fc1b_ref[...], 0.0)
    out = (jnp.dot(h, fc2w_ref[...], preferred_element_type=jnp.float32,
                   precision=lax.Precision.HIGHEST) + fc2b_ref[...])
    o_ref[0] = out.astype(o_ref.dtype)


# ---------------------------------------------------------------------------
# Wrapper
# ---------------------------------------------------------------------------
def _make_wmask(H, W):
    w = np.arange(H * W) % W
    return np.stack([(w != 0), (w != W - 1)], axis=1).astype(np.float32)  # (HW, 2)


def gridworld_forward(kparams, obs_nchw, state=None):
    """GridWorldNetwork.forward (preprocess=None), obs in NCHW like PyTorch."""
    # TODO(synk): kwargs['preprocess'] is an arbitrary user callable; assumed identity here.
    x = jnp.transpose(obs_nchw, (0, 2, 3, 1)).astype(jnp.float32)     # NHWC
    B, H, W, C = x.shape
    x = x.reshape(B, H * W, C)                                        # flat pixels, C on lanes
    hs0 = kparams["w1"].shape[1]
    hs1 = kparams["w2"].shape[1]
    hs2 = kparams["w3"].shape[1]
    hs3 = kparams["fc1_w"].shape[1]
    mid = kparams["fc1_w"].shape[0]
    nout = kparams["fc2_w"].shape[1]
    HW = H * W
    H2, W2 = H // 2, W // 2
    HW2 = H2 * W2
    n_pix = (H // 4) * (W // 4)

    m1 = jnp.asarray(_make_wmask(H, W))        # (HW, 2)
    m2 = jnp.asarray(_make_wmask(H2, W2))      # (HW2, 2)

    kern = functools.partial(_gridworld_kernel, H=H, W=W)
    rep2 = lambda b: (0, 0)

    out = pl.pallas_call(
        kern,
        out_shape=jax.ShapeDtypeStruct((B, 1, nout), jnp.float32),
        grid=(B,),
        in_specs=[
            pl.BlockSpec((1, HW, C), lambda b: (b, 0, 0)),
            pl.BlockSpec((HW, 2), rep2),
            pl.BlockSpec((HW2, 2), rep2),
            pl.BlockSpec((9 * C, hs0), rep2),
            pl.BlockSpec((1, hs0), rep2),
            pl.BlockSpec((9 * hs0, hs1), rep2),
            pl.BlockSpec((1, hs1), rep2),
            pl.BlockSpec((9 * hs1, hs2), rep2),
            pl.BlockSpec((1, hs2), rep2),
            pl.BlockSpec((mid, hs3), rep2),
            pl.BlockSpec((1, hs3), rep2),
            pl.BlockSpec((hs3, nout), rep2),
            pl.BlockSpec((1, nout), rep2),
        ],
        out_specs=pl.BlockSpec((1, 1, nout), lambda b: (b, 0, 0)),
        scratch_shapes=[
            pltpu.VMEM((HW + 2 * (W + 1), C), jnp.float32),       # pad1 (conv1 halo)
            pltpu.VMEM((HW2 + 2 * (W2 + 1), hs0), jnp.float32),   # pad2 (conv2 halo)
            pltpu.VMEM((HW2 + 2 * (W2 + 1), hs1), jnp.float32),   # pad3 (conv3 halo)
            pltpu.VMEM((HW + W, hs0), jnp.float32),               # pool1 workspace
            pltpu.VMEM((HW2 + W2, hs2), jnp.float32),             # pool3 workspace
            pltpu.VMEM((n_pix, hs2), jnp.float32),                # final pooled map
        ],
        compiler_params=pltpu.CompilerParams(
            dimension_semantics=("parallel",)),
    )(x, m1, m2,
      kparams["w1"], kparams["b1"], kparams["w2"], kparams["b2"],
      kparams["w3"], kparams["b3"], kparams["fc1_w"], kparams["fc1_b"],
      kparams["fc2_w"], kparams["fc2_b"])
    return out.reshape(B, nout), state


gridworld_forward_jit = jax.jit(gridworld_forward)


# ---------------------------------------------------------------------------
# Deterministic parameter init (PyTorch layouts) + conversion to kernel layouts
# ---------------------------------------------------------------------------
def init_torch_params(key, hs, num_outputs, H=20, W=20, C=3):
    def u(k, shape, fan_in):
        bound = 1.0 / np.sqrt(fan_in)
        return jax.random.uniform(k, shape, jnp.float32, -bound, bound)

    ks = jax.random.split(key, 10)
    mid = hs[2] * (H // 4) * (W // 4)
    return {
        "conv1_w": u(ks[0], (hs[0], C, 3, 3), C * 9),
        "conv1_b": u(ks[1], (hs[0],), C * 9),
        "conv2_w": u(ks[2], (hs[1], hs[0], 3, 3), hs[0] * 9),
        "conv2_b": u(ks[3], (hs[1],), hs[0] * 9),
        "conv3_w": u(ks[4], (hs[2], hs[1], 3, 3), hs[1] * 9),
        "conv3_b": u(ks[5], (hs[2],), hs[1] * 9),
        "fc1_w": u(ks[6], (hs[3], mid), mid),
        "fc1_b": u(ks[7], (hs[3],), mid),
        "fc2_w": u(ks[8], (num_outputs, hs[3]), hs[3]),
        "fc2_b": u(ks[9], (num_outputs,), hs[3]),
    }


def convert_params(tp, hs, H=20, W=20):
    """PyTorch layouts (OIHW convs, (out,in) linears, CHW flatten) -> kernel layouts."""
    hq, wq = H // 4, W // 4
    mid = hs[2] * hq * wq

    def im2col_w(w):  # (Cout, Cin, 3, 3) -> (9*Cin, Cout), row = (dh*3+dw)*Cin + cin
        cout, cin = w.shape[0], w.shape[1]
        return jnp.transpose(w, (2, 3, 1, 0)).reshape(9 * cin, cout)

    # fc1 expects CHW-flattened input in PyTorch; kernel flattens HWC -> permute rows.
    fc1_w_hwc = (tp["fc1_w"].reshape(hs[3], hs[2], hq, wq)
                 .transpose(2, 3, 1, 0).reshape(mid, hs[3]))
    return {
        "w1": im2col_w(tp["conv1_w"]),
        "b1": tp["conv1_b"].reshape(1, -1),
        "w2": im2col_w(tp["conv2_w"]),
        "b2": tp["conv2_b"].reshape(1, -1),
        "w3": im2col_w(tp["conv3_w"]),
        "b3": tp["conv3_b"].reshape(1, -1),
        "fc1_w": fc1_w_hwc,                          # (mid, hs3), HWC-ordered rows
        "fc1_b": tp["fc1_b"].reshape(1, -1),
        "fc2_w": tp["fc2_w"].T,                      # (hs3, num_outputs)
        "fc2_b": tp["fc2_b"].reshape(1, -1),
    }


# ---------------------------------------------------------------------------
# Pure-JAX reference with exact PyTorch semantics (NCHW, CHW flatten)
# ---------------------------------------------------------------------------
def reference_forward(tp, obs_nchw):
    def conv(x, w, b):
        y = lax.conv_general_dilated(
            x, w, (1, 1), ((1, 1), (1, 1)),
            dimension_numbers=("NCHW", "OIHW", "NCHW"),
            precision=lax.Precision.HIGHEST)
        return y + b[None, :, None, None]

    def maxpool2(x):
        return lax.reduce_window(x, -jnp.inf, lax.max,
                                 (1, 1, 2, 2), (1, 1, 2, 2), "VALID")

    x = maxpool2(jax.nn.relu(conv(obs_nchw, tp["conv1_w"], tp["conv1_b"])))
    x = jax.nn.relu(conv(x, tp["conv2_w"], tp["conv2_b"]))
    x = maxpool2(jax.nn.relu(conv(x, tp["conv3_w"], tp["conv3_b"])))
    x = x.reshape(x.shape[0], -1)
    x = jax.nn.relu(x @ tp["fc1_w"].T + tp["fc1_b"])
    return x @ tp["fc2_w"].T + tp["fc2_b"]


# ---------------------------------------------------------------------------
if __name__ == "__main__":
    key = jax.random.PRNGKey(0)
    kp, kx = jax.random.split(key)

    hidden_sizes = (8, 8, 8, 32)   # hs[0..3]
    num_outputs = 5
    B = 2                          # module hard-codes H = W = 20, C(stack) = 3

    torch_params = init_torch_params(kp, hidden_sizes, num_outputs)
    kernel_params = convert_params(torch_params, hidden_sizes)

    obs = jax.random.normal(kx, (B, 3, 20, 20), jnp.float32)   # NCHW, like PyTorch

    logits, state = gridworld_forward_jit(kernel_params, obs, None)
    logits = jax.block_until_ready(logits)

    assert logits.shape == (B, num_outputs)
    assert state is None

    ref = reference_forward(torch_params, obs)
    np.testing.assert_allclose(np.asarray(logits), np.asarray(ref),
                               rtol=1e-4, atol=1e-4)

    print("KERNEL_OK")
</pallas_src>

<mosaic_0001>
module attributes {stable_mosaic.version = 11 : i64} {
  func.func @_gridworld_kernel(%arg0: i32, %arg1: memref<1x400x3xf32, #tpu.memory_space<vmem>>, %arg2: memref<400x2xf32, #tpu.memory_space<vmem>>, %arg3: memref<100x2xf32, #tpu.memory_space<vmem>>, %arg4: memref<27x8xf32, #tpu.memory_space<vmem>>, %arg5: memref<1x8xf32, #tpu.memory_space<vmem>>, %arg6: memref<72x8xf32, #tpu.memory_space<vmem>>, %arg7: memref<1x8xf32, #tpu.memory_space<vmem>>, %arg8: memref<72x8xf32, #tpu.memory_space<vmem>>, %arg9: memref<1x8xf32, #tpu.memory_space<vmem>>, %arg10: memref<200x32xf32, #tpu.memory_space<vmem>>, %arg11: memref<1x32xf32, #tpu.memory_space<vmem>>, %arg12: memref<32x5xf32, #tpu.memory_space<vmem>>, %arg13: memref<1x5xf32, #tpu.memory_space<vmem>>, %arg14: memref<1x1x5xf32, #tpu.memory_space<vmem>>, %arg15: memref<442x3xf32, #tpu.memory_space<vmem>>, %arg16: memref<122x8xf32, #tpu.memory_space<vmem>>, %arg17: memref<122x8xf32, #tpu.memory_space<vmem>>, %arg18: memref<420x8xf32, #tpu.memory_space<vmem>>, %arg19: memref<110x8xf32, #tpu.memory_space<vmem>>, %arg20: memref<25x8xf32, #tpu.memory_space<vmem>>) attributes {dimension_semantics = [#tpu.dimension_semantics<parallel>], iteration_bounds = array<i64: 2>, scalar_prefetch = 0 : i64, scratch_operands = 6 : i64, tpu.core_type = #tpu.core_type<tc>, window_params = [{transform_indices = @transform_0, window_bounds = array<i64: 1, 400, 3>}, {pipeline_mode = #tpu.pipeline_mode<synchronous>, transform_indices = @transform_1, window_bounds = array<i64: 400, 2>}, {pipeline_mode = #tpu.pipeline_mode<synchronous>, transform_indices = @transform_2, window_bounds = array<i64: 100, 2>}, {pipeline_mode = #tpu.pipeline_mode<synchronous>, transform_indices = @transform_3, window_bounds = array<i64: 27, 8>}, {pipeline_mode = #tpu.pipeline_mode<synchronous>, transform_indices = @transform_4, window_bounds = array<i64: 1, 8>}, {pipeline_mode = #tpu.pipeline_mode<synchronous>, transform_indices = @transform_5, window_bounds = array<i64: 72, 8>}, {pipeline_mode = #tpu.pipeline_mode<synchronous>, transform_indices = @transform_6, window_bounds = array<i64: 1, 8>}, {pipeline_mode = #tpu.pipeline_mode<synchronous>, transform_indices = @transform_7, window_bounds = array<i64: 72, 8>}, {pipeline_mode = #tpu.pipeline_mode<synchronous>, transform_indices = @transform_8, window_bounds = array<i64: 1, 8>}, {pipeline_mode = #tpu.pipeline_mode<synchronous>, transform_indices = @transform_9, window_bounds = array<i64: 200, 32>}, {pipeline_mode = #tpu.pipeline_mode<synchronous>, transform_indices = @transform_10, window_bounds = array<i64: 1, 32>}, {pipeline_mode = #tpu.pipeline_mode<synchronous>, transform_indices = @transform_11, window_bounds = array<i64: 32, 5>}, {pipeline_mode = #tpu.pipeline_mode<synchronous>, transform_indices = @transform_12, window_bounds = array<i64: 1, 5>}, {transform_indices = @transform_13, window_bounds = array<i64: 1, 1, 5>}]} {
    %c0 = arith.constant 0 : index
    %c0_0 = arith.constant 0 : index
    %c0_1 = arith.constant 0 : index
    %0 = vector.load %arg1[%c0, %c0_0, %c0_1] : memref<1x400x3xf32, #tpu.memory_space<vmem>>, vector<1x400x3xf32>
    %1 = vector.shape_cast %0 : vector<1x400x3xf32> to vector<400x3xf32>
    %c21 = arith.constant 21 : index
    %c0_2 = arith.constant 0 : index
    %2 = vector.load %arg15[%c21, %c0_2] : memref<442x3xf32, #tpu.memory_space<vmem>>, vector<400x3xf32>
    tpu.vector_store %arg15[%c21, %c0_2], %1 {strides = array<i32>} : memref<442x3xf32, #tpu.memory_space<vmem>>, vector<400x3xf32>,
    %c0_3 = arith.constant 0 : index
    %c0_4 = arith.constant 0 : index
    %3 = vector.load %arg4[%c0_3, %c0_4] : memref<27x8xf32, #tpu.memory_space<vmem>>, vector<27x8xf32>
    %c0_5 = arith.constant 0 : index
    %c0_6 = arith.constant 0 : index
    %4 = vector.load %arg5[%c0_5, %c0_6] : memref<1x8xf32, #tpu.memory_space<vmem>>, vector<1x8xf32>
    %c0_7 = arith.constant 0 : index
    %c0_8 = arith.constant 0 : index
    %5 = vector.load %arg2[%c0_7, %c0_8] : memref<400x2xf32, #tpu.memory_space<vmem>>, vector<400x2xf32>
    %cst = arith.constant 0.000000e+00 : f32
    %6 = vector.broadcast %cst : f32 to vector<21x3xf32>
    %c0_9 = arith.constant 0 : index
    %c0_10 = arith.constant 0 : index
    %7 = vector.load %arg15[%c0_9, %c0_10] : memref<442x3xf32, #tpu.memory_space<vmem>>, vector<21x3xf32>
    tpu.vector_store %arg15[%c0_9, %c0_10], %6 {strides = array<i32>} : memref<442x3xf32, #tpu.memory_space<vmem>>, vector<21x3xf32>,
    %c421 = arith.constant 421 : index
    %c0_11 = arith.constant 0 : index
    %8 = vector.load %arg15[%c421, %c0_11] : memref<442x3xf32, #tpu.memory_space<vmem>>, vector<21x3xf32>
    tpu.vector_store %arg15[%c421, %c0_11], %6 {strides = array<i32>} : memref<442x3xf32, #tpu.memory_space<vmem>>, vector<21x3xf32>,
    %9 = vector.extract_strided_slice %5 {offsets = [0, 0], sizes = [400, 1], strides = [1, 1]} : vector<400x2xf32> to vector<400x1xf32>
    %10 = vector.extract_strided_slice %5 {offsets = [0, 1], sizes = [400, 1], strides = [1, 1]} : vector<400x2xf32> to vector<400x1xf32>
    %c0_12 = arith.constant 0 : index
    %c0_13 = arith.constant 0 : index
    %11 = vector.load %arg15[%c0_12, %c0_13] : memref<442x3xf32, #tpu.memory_space<vmem>>, vector<400x3xf32>
    %12 = vector.broadcast %9 : vector<400x1xf32> to vector<400x3xf32>
    %13 = arith.mulf %11, %12 : vector<400x3xf32>
    %c1 = arith.constant 1 : index
    %c0_14 = arith.constant 0 : index
    %14 = vector.load %arg15[%c1, %c0_14] : memref<442x3xf32, #tpu.memory_space<vmem>>, vector<400x3xf32>
    %c2 = arith.constant 2 : index
    %c0_15 = arith.constant 0 : index
    %15 = vector.load %arg15[%c2, %c0_15] : memref<442x3xf32, #tpu.memory_space<vmem>>, vector<400x3xf32>
    %16 = vector.broadcast %10 : vector<400x1xf32> to vector<400x3xf32>
    %17 = arith.mulf %15, %16 : vector<400x3xf32>
    %c20 = arith.constant 20 : index
    %c0_16 = arith.constant 0 : index
    %18 = vector.load %arg15[%c20, %c0_16] : memref<442x3xf32, #tpu.memory_space<vmem>>, vector<400x3xf32>
    %19 = vector.broadcast %9 : vector<400x1xf32> to vector<400x3xf32>
    %20 = arith.mulf %18, %19 : vector<400x3xf32>
    %c21_17 = arith.constant 21 : index
    %c0_18 = arith.constant 0 : index
    %21 = vector.load %arg15[%c21_17, %c0_18] : memref<442x3xf32, #tpu.memory_space<vmem>>, vector<400x3xf32>
    %c22 = arith.constant 22 : index
    %c0_19 = arith.constant 0 : index
    %22 = vector.load %arg15[%c22, %c0_19] : memref<442x3xf32, #tpu.memory_space<vmem>>, vector<400x3xf32>
    %23 = vector.broadcast %10 : vector<400x1xf32> to vector<400x3xf32>
    %24 = arith.mulf %22, %23 : vector<400x3xf32>
    %c40 = arith.constant 40 : index
    %c0_20 = arith.constant 0 : index
    %25 = vector.load %arg15[%c40, %c0_20] : memref<442x3xf32, #tpu.memory_space<vmem>>, vector<400x3xf32>
    %26 = vector.broadcast %9 : vector<400x1xf32> to vector<400x3xf32>
    %27 = arith.mulf %25, %26 : vector<400x3xf32>
    %c41 = arith.constant 41 : index
    %c0_21 = arith.constant 0 : index
    %28 = vector.load %arg15[%c41, %c0_21] : memref<442x3xf32, #tpu.memory_space<vmem>>, vector<400x3xf32>
    %c42 = arith.constant 42 : index
    %c0_22 = arith.constant 0 : index
    %29 = vector.load %arg15[%c42, %c0_22] : memref<442x3xf32, #tpu.memory_space<vmem>>, vector<400x3xf32>
    %30 = vector.broadcast %10 : vector<400x1xf32> to vector<400x3xf32>
    %31 = arith.mulf %29, %30 : vector<400x3xf32>
    %32 = tpu.concatenate %13, %14, %17, %20, %21, %24, %27, %28, %31 in 1 : vector<400x3xf32>, vector<400x3xf32>, vector<400x3xf32>, vector<400x3xf32>, vector<400x3xf32>, vector<400x3xf32>, vector<400x3xf32>, vector<400x3xf32>, vector<400x3xf32> -> vector<400x27xf32>
    %cst_23 = arith.constant dense<0.000000e+00> : vector<400x8xf32>
    %33 = tpu.matmul %32, %3, %cst_23 {dimension_numbers = #tpu.dot_dimension_numbers<[1], [0], [0], [1], [0, 0, 1, 1], [], []>, precision = #tpu.contract_precision<fp32>} : vector<400x27xf32>, vector<27x8xf32>, vector<400x8xf32> -> vector<400x8xf32>
    %34 = vector.broadcast %4 : vector<1x8xf32> to vector<400x8xf32>
    %35 = arith.addf %33, %34 : vector<400x8xf32>
    %cst_24 = arith.constant 0.000000e+00 : f32
    %36 = vector.broadcast %cst_24 : f32 to vector<400x8xf32>
    %37 = arith.maximumf %35, %36 : vector<400x8xf32>
    %c0_25 = arith.constant 0 : index
    %c0_26 = arith.constant 0 : index
    %38 = vector.load %arg18[%c0_25, %c0_26] : memref<420x8xf32, #tpu.memory_space<vmem>>, vector<400x8xf32>
    tpu.vector_store %arg18[%c0_25, %c0_26], %37 {strides = array<i32>} : memref<420x8xf32, #tpu.memory_space<vmem>>, vector<400x8xf32>,
    %cst_27 = arith.constant 0.000000e+00 : f32
    %39 = vector.broadcast %cst_27 : f32 to vector<20x8xf32>
    %c400 = arith.constant 400 : index
    %c0_28 = arith.constant 0 : index
    %40 = vector.load %arg18[%c400, %c0_28] : memref<420x8xf32, #tpu.memory_space<vmem>>, vector<20x8xf32>
    tpu.vector_store %arg18[%c400, %c0_28], %39 {strides = array<i32>} : memref<420x8xf32, #tpu.memory_space<vmem>>, vector<20x8xf32>,
    %c20_29 = arith.constant 20 : index
    %c0_30 = arith.constant 0 : index
    %41 = vector.load %arg18[%c20_29, %c0_30] : memref<420x8xf32, #tpu.memory_space<vmem>>, vector<400x8xf32>
    %42 = arith.maximumf %37, %41 : vector<400x8xf32>
    %c0_31 = arith.constant 0 : index
    %c0_32 = arith.constant 0 : index
    %43 = vector.load %arg18[%c0_31, %c0_32] : memref<420x8xf32, #tpu.memory_space<vmem>>, vector<400x8xf32>
    tpu.vector_store %arg18[%c0_31, %c0_32], %42 {strides = array<i32>} : memref<420x8xf32, #tpu.memory_space<vmem>>, vector<400x8xf32>,
    %c1_33 = arith.constant 1 : index
    %c0_34 = arith.constant 0 : index
    %44 = vector.load %arg18[%c1_33, %c0_34] : memref<420x8xf32, #tpu.memory_space<vmem>>, vector<400x8xf32>
    %45 = arith.maximumf %42, %44 : vector<400x8xf32>
    %c0_35 = arith.constant 0 : index
    %c0_36 = arith.constant 0 : index
    %46 = vector.load %arg18[%c0_35, %c0_36] : memref<420x8xf32, #tpu.memory_space<vmem>>, vector<400x8xf32>
    tpu.vector_store %arg18[%c0_35, %c0_36], %45 {strides = array<i32>} : memref<420x8xf32, #tpu.memory_space<vmem>>, vector<400x8xf32>,
    %c0_37 = arith.constant 0 : index
    %c0_38 = arith.constant 0 : index
    %47 = tpu.strided_load %arg18[%c0_37, %c0_38] {strides = array<i32: 2, 1>} : memref<420x8xf32, #tpu.memory_space<vmem>>, vector<10x8xf32>
    %c11 = arith.constant 11 : index
    %c0_39 = arith.constant 0 : index
    %48 = vector.load %arg16[%c11, %c0_39] : memref<122x8xf32, #tpu.memory_space<vmem>>, vector<10x8xf32>
    tpu.vector_store %arg16[%c11, %c0_39], %47 {strides = array<i32>} : memref<122x8xf32, #tpu.memory_space<vmem>>, vector<10x8xf32>,
    %c40_40 = arith.constant 40 : index
    %c0_41 = arith.constant 0 : index
    %49 = tpu.strided_load %arg18[%c40_40, %c0_41] {strides = array<i32: 2, 1>} : memref<420x8xf32, #tpu.memory_space<vmem>>, vector<10x8xf32>
    %c21_42 = arith.constant 21 : index
    %c0_43 = arith.constant 0 : index
    %50 = vector.load %arg16[%c21_42, %c0_43] : memref<122x8xf32, #tpu.memory_space<vmem>>, vector<10x8xf32>
    tpu.vector_store %arg16[%c21_42, %c0_43], %49 {strides = array<i32>} : memref<122x8xf32, #tpu.memory_space<vmem>>, vector<10x8xf32>,
    %c80 = arith.constant 80 : index
    %c0_44 = arith.constant 0 : index
    %51 = tpu.strided_load %arg18[%c80, %c0_44] {strides = array<i32: 2, 1>} : memref<420x8xf32, #tpu.memory_space<vmem>>, vector<10x8xf32>
    %c31 = arith.constant 31 : index
    %c0_45 = arith.constant 0 : index
    %52 = vector.load %arg16[%c31, %c0_45] : memref<122x8xf32, #tpu.memory_space<vmem>>, vector<10x8xf32>
    tpu.vector_store %arg16[%c31, %c0_45], %51 {strides = array<i32>} : memref<122x8xf32, #tpu.memory_space<vmem>>, vector<10x8xf32>,
    %c120 = arith.constant 120 : index
    %c0_46 = arith.constant 0 : index
    %53 = tpu.strided_load %arg18[%c120, %c0_46] {strides = array<i32: 2, 1>} : memref<420x8xf32, #tpu.memory_space<vmem>>, vector<10x8xf32>
    %c41_47 = arith.constant 41 : index
    %c0_48 = arith.constant 0 : index
    %54 = vector.load %arg16[%c41_47, %c0_48] : memref<122x8xf32, #tpu.memory_space<vmem>>, vector<10x8xf32>
    tpu.vector_store %arg16[%c41_47, %c0_48], %53 {strides = array<i32>} : memref<122x8xf32, #tpu.memory_space<vmem>>, vector<10x8xf32>,
    %c160 = arith.constant 160 : index
    %c0_49 = arith.constant 0 : index
    %55 = tpu.strided_load %arg18[%c160, %c0_49] {strides = array<i32: 2, 1>} : memref<420x8xf32, #tpu.memory_space<vmem>>, vector<10x8xf32>
    %c51 = arith.constant 51 : index
    %c0_50 = arith.constant 0 : index
    %56 = vector.load %arg16[%c51, %c0_50] : memref<122x8xf32, #tpu.memory_space<vmem>>, vector<10x8xf32>
    tpu.vector_store %arg16[%c51, %c0_50], %55 {strides = array<i32>} : memref<122x8xf32, #tpu.memory_space<vmem>>, vector<10x8xf32>,
    %c200 = arith.constant 200 : index
    %c0_51 = arith.constant 0 : index
    %57 = tpu.strided_load %arg18[%c200, %c0_51] {strides = array<i32: 2, 1>} : memref<420x8xf32, #tpu.memory_space<vmem>>, vector<10x8xf32>
    %c61 = arith.constant 61 : index
    %c0_52 = arith.constant 0 : index
    %58 = vector.load %arg16[%c61, %c0_52] : memref<122x8xf32, #tpu.memory_space<vmem>>, vector<10x8xf32>
    tpu.vector_store %arg16[%c61, %c0_52], %57 {strides = array<i32>} : memref<122x8xf32, #tpu.memory_space<vmem>>, vector<10x8xf32>,
    %c240 = arith.constant 240 : index
    %c0_53 = arith.constant 0 : index
    %59 = tpu.strided_load %arg18[%c240, %c0_53] {strides = array<i32: 2, 1>} : memref<420x8xf32, #tpu.memory_space<vmem>>, vector<10x8xf32>
    %c71 = arith.constant 71 : index
    %c0_54 = arith.constant 0 : index
    %60 = vector.load %arg16[%c71, %c0_54] : memref<122x8xf32, #tpu.memory_space<vmem>>, vector<10x8xf32>
    tpu.vector_store %arg16[%c71, %c0_54], %59 {strides = array<i32>} : memref<122x8xf32, #tpu.memory_space<vmem>>, vector<10x8xf32>,
    %c280 = arith.constant 280 : index
    %c0_55 = arith.constant 0 : index
    %61 = tpu.strided_load %arg18[%c280, %c0_55] {strides = array<i32: 2, 1>} : memref<420x8xf32, #tpu.memory_space<vmem>>, vector<10x8xf32>
    %c81 = arith.constant 81 : index
    %c0_56 = arith.constant 0 : index
    %62 = vector.load %arg16[%c81, %c0_56] : memref<122x8xf32, #tpu.memory_space<vmem>>, vector<10x8xf32>
    tpu.vector_store %arg16[%c81, %c0_56], %61 {strides = array<i32>} : memref<122x8xf32, #tpu.memory_space<vmem>>, vector<10x8xf32>,
    %c320 = arith.constant 320 : index
    %c0_57 = arith.constant 0 : index
    %63 = tpu.strided_load %arg18[%c320, %c0_57] {strides = array<i32: 2, 1>} : memref<420x8xf32, #tpu.memory_space<vmem>>, vector<10x8xf32>
    %c91 = arith.constant 91 : index
    %c0_58 = arith.constant 0 : index
    %64 = vector.load %arg16[%c91, %c0_58] : memref<122x8xf32, #tpu.memory_space<vmem>>, vector<10x8xf32>
    tpu.vector_store %arg16[%c91, %c0_58], %63 {strides = array<i32>} : memref<122x8xf32, #tpu.memory_space<vmem>>, vector<10x8xf32>,
    %c360 = arith.constant 360 : index
    %c0_59 = arith.constant 0 : index
    %65 = tpu.strided_load %arg18[%c360, %c0_59] {strides = array<i32: 2, 1>} : memref<420x8xf32, #tpu.memory_space<vmem>>, vector<10x8xf32>
    %c101 = arith.constant 101 : index
    %c0_60 = arith.constant 0 : index
    %66 = vector.load %arg16[%c101, %c0_60] : memref<122x8xf32, #tpu.memory_space<vmem>>, vector<10x8xf32>
    tpu.vector_store %arg16[%c101, %c0_60], %65 {strides = array<i32>} : memref<122x8xf32, #tpu.memory_space<vmem>>, vector<10x8xf32>,
    %c0_61 = arith.constant 0 : index
    %c0_62 = arith.constant 0 : index
    %67 = vector.load %arg6[%c0_61, %c0_62] : memref<72x8xf32, #tpu.memory_space<vmem>>, vector<72x8xf32>
    %c0_63 = arith.constant 0 : index
    %c0_64 = arith.constant 0 : index
    %68 = vector.load %arg7[%c0_63, %c0_64] : memref<1x8xf32, #tpu.memory_space<vmem>>, vector<1x8xf32>
    %c0_65 = arith.constant 0 : index
    %c0_66 = arith.constant 0 : index
    %69 = vector.load %arg3[%c0_65, %c0_66] : memref<100x2xf32, #tpu.memory_space<vmem>>, vector<100x2xf32>
    %cst_67 = arith.constant 0.000000e+00 : f32
    %70 = vector.broadcast %cst_67 : f32 to vector<11x8xf32>
    %c0_68 = arith.constant 0 : index
    %c0_69 = arith.constant 0 : index
    %71 = vector.load %arg16[%c0_68, %c0_69] : memref<122x8xf32, #tpu.memory_space<vmem>>, vector<11x8xf32>
    tpu.vector_store %arg16[%c0_68, %c0_69], %70 {strides = array<i32>} : memref<122x8xf32, #tpu.memory_space<vmem>>, vector<11x8xf32>,
    %c111 = arith.constant 111 : index
    %c0_70 = arith.constant 0 : index
    %72 = vector.load %arg16[%c111, %c0_70] : memref<122x8xf32, #tpu.memory_space<vmem>>, vector<11x8xf32>
    tpu.vector_store %arg16[%c111, %c0_70], %70 {strides = array<i32>} : memref<122x8xf32, #tpu.memory_space<vmem>>, vector<11x8xf32>,
    %73 = vector.extract_strided_slice %69 {offsets = [0, 0], sizes = [100, 1], strides = [1, 1]} : vector<100x2xf32> to vector<100x1xf32>
    %74 = vector.extract_strided_slice %69 {offsets = [0, 1], sizes = [100, 1], strides = [1, 1]} : vector<100x2xf32> to vector<100x1xf32>
    %c0_71 = arith.constant 0 : index
    %c0_72 = arith.constant 0 : index
    %75 = vector.load %arg16[%c0_71, %c0_72] : memref<122x8xf32, #tpu.memory_space<vmem>>, vector<100x8xf32>
    %76 = vector.broadcast %73 : vector<100x1xf32> to vector<100x8xf32>
    %77 = arith.mulf %75, %76 : vector<100x8xf32>
    %c1_73 = arith.constant 1 : index
    %c0_74 = arith.constant 0 : index
    %78 = vector.load %arg16[%c1_73, %c0_74] : memref<122x8xf32, #tpu.memory_space<vmem>>, vector<100x8xf32>
    %c2_75 = arith.constant 2 : index
    %c0_76 = arith.constant 0 : index
    %79 = vector.load %arg16[%c2_75, %c0_76] : memref<122x8xf32, #tpu.memory_space<vmem>>, vector<100x8xf32>
    %80 = vector.broadcast %74 : vector<100x1xf32> to vector<100x8xf32>
    %81 = arith.mulf %79, %80 : vector<100x8xf32>
    %c10 = arith.constant 10 : index
    %c0_77 = arith.constant 0 : index
    %82 = vector.load %arg16[%c10, %c0_77] : memref<122x8xf32, #tpu.memory_space<vmem>>, vector<100x8xf32>
    %83 = vector.broadcast %73 : vector<100x1xf32> to vector<100x8xf32>
    %84 = arith.mulf %82, %83 : vector<100x8xf32>
    %c11_78 = arith.constant 11 : index
    %c0_79 = arith.constant 0 : index
    %85 = vector.load %arg16[%c11_78, %c0_79] : memref<122x8xf32, #tpu.memory_space<vmem>>, vector<100x8xf32>
    %c12 = arith.constant 12 : index
    %c0_80 = arith.constant 0 : index
    %86 = vector.load %arg16[%c12, %c0_80] : memref<122x8xf32, #tpu.memory_space<vmem>>, vector<100x8xf32>
    %87 = vector.broadcast %74 : vector<100x1xf32> to vector<100x8xf32>
    %88 = arith.mulf %86, %87 : vector<100x8xf32>
    %c20_81 = arith.constant 20 : index
    %c0_82 = arith.constant 0 : index
    %89 = vector.load %arg16[%c20_81, %c0_82] : memref<122x8xf32, #tpu.memory_space<vmem>>, vector<100x8xf32>
    %90 = vector.broadcast %73 : vector<100x1xf32> to vector<100x8xf32>
    %91 = arith.mulf %89, %90 : vector<100x8xf32>
    %c21_83 = arith.constant 21 : index
    %c0_84 = arith.constant 0 : index
    %92 = vector.load %arg16[%c21_83, %c0_84] : memref<122x8xf32, #tpu.memory_space<vmem>>, vector<100x8xf32>
    %c22_85 = arith.constant 22 : index
    %c0_86 = arith.constant 0 : index
    %93 = vector.load %arg16[%c22_85, %c0_86] : memref<122x8xf32, #tpu.memory_space<vmem>>, vector<100x8xf32>
    %94 = vector.broadcast %74 : vector<100x1xf32> to vector<100x8xf32>
    %95 = arith.mulf %93, %94 : vector<100x8xf32>
    %96 = tpu.concatenate %77, %78, %81, %84, %85, %88, %91, %92, %95 in 1 : vector<100x8xf32>, vector<100x8xf32>, vector<100x8xf32>, vector<100x8xf32>, vector<100x8xf32>, vector<100x8xf32>, vector<100x8xf32>, vector<100x8xf32>, vector<100x8xf32> -> vector<100x72xf32>
    %cst_87 = arith.constant dense<0.000000e+00> : vector<100x8xf32>
    %97 = tpu.matmul %96, %67, %cst_87 {dimension_numbers = #tpu.dot_dimension_numbers<[1], [0], [0], [1], [0, 0, 1, 1], [], []>, precision = #tpu.contract_precision<fp32>} : vector<100x72xf32>, vector<72x8xf32>, vector<100x8xf32> -> vector<100x8xf32>
    %98 = vector.broadcast %68 : vector<1x8xf32> to vector<100x8xf32>
    %99 = arith.addf %97, %98 : vector<100x8xf32>
    %cst_88 = arith.constant 0.000000e+00 : f32
    %100 = vector.broadcast %cst_88 : f32 to vector<100x8xf32>
    %101 = arith.maximumf %99, %100 : vector<100x8xf32>
    %c11_89 = arith.constant 11 : index
    %c0_90 = arith.constant 0 : index
    %102 = vector.load %arg17[%c11_89, %c0_90] : memref<122x8xf32, #tpu.memory_space<vmem>>, vector<100x8xf32>
    tpu.vector_store %arg17[%c11_89, %c0_90], %101 {strides = array<i32>} : memref<122x8xf32, #tpu.memory_space<vmem>>, vector<100x8xf32>,
    %c0_91 = arith.constant 0 : index
    %c0_92 = arith.constant 0 : index
    %103 = vector.load %arg8[%c0_91, %c0_92] : memref<72x8xf32, #tpu.memory_space<vmem>>, vector<72x8xf32>
    %c0_93 = arith.constant 0 : index
    %c0_94 = arith.constant 0 : index
    %104 = vector.load %arg9[%c0_93, %c0_94] : memref<1x8xf32, #tpu.memory_space<vmem>>, vector<1x8xf32>
    %c0_95 = arith.constant 0 : index
    %c0_96 = arith.constant 0 : index
    %105 = vector.load %arg3[%c0_95, %c0_96] : memref<100x2xf32, #tpu.memory_space<vmem>>, vector<100x2xf32>
    %cst_97 = arith.constant 0.000000e+00 : f32
    %106 = vector.broadcast %cst_97 : f32 to vector<11x8xf32>
    %c0_98 = arith.constant 0 : index
    %c0_99 = arith.constant 0 : index
    %107 = vector.load %arg17[%c0_98, %c0_99] : memref<122x8xf32, #tpu.memory_space<vmem>>, vector<11x8xf32>
    tpu.vector_store %arg17[%c0_98, %c0_99], %106 {strides = array<i32>} : memref<122x8xf32, #tpu.memory_space<vmem>>, vector<11x8xf32>,
    %c111_100 = arith.constant 111 : index
    %c0_101 = arith.constant 0 : index
    %108 = vector.load %arg17[%c111_100, %c0_101] : memref<122x8xf32, #tpu.memory_space<vmem>>, vector<11x8xf32>
    tpu.vector_store %arg17[%c111_100, %c0_101], %106 {strides = array<i32>} : memref<122x8xf32, #tpu.memory_space<vmem>>, vector<11x8xf32>,
    %109 = vector.extract_strided_slice %105 {offsets = [0, 0], sizes = [100, 1], strides = [1, 1]} : vector<100x2xf32> to vector<100x1xf32>
    %110 = vector.extract_strided_slice %105 {offsets = [0, 1], sizes = [100, 1], strides = [1, 1]} : vector<100x2xf32> to vector<100x1xf32>
    %c0_102 = arith.constant 0 : index
    %c0_103 = arith.constant 0 : index
    %111 = vector.load %arg17[%c0_102, %c0_103] : memref<122x8xf32, #tpu.memory_space<vmem>>, vector<100x8xf32>
    %112 = vector.broadcast %109 : vector<100x1xf32> to vector<100x8xf32>
    %113 = arith.mulf %111, %112 : vector<100x8xf32>
    %c1_104 = arith.constant 1 : index
    %c0_105 = arith.constant 0 : index
    %114 = vector.load %arg17[%c1_104, %c0_105] : memref<122x8xf32, #tpu.memory_space<vmem>>, vector<100x8xf32>
    %c2_106 = arith.constant 2 : index
    %c0_107 = arith.constant 0 : index
    %115 = vector.load %arg17[%c2_106, %c0_107] : memref<122x8xf32, #tpu.memory_space<vmem>>, vector<100x8xf32>
    %116 = vector.broadcast %110 : vector<100x1xf32> to vector<100x8xf32>
    %117 = arith.mulf %115, %116 : vector<100x8xf32>
    %c10_108 = arith.constant 10 : index
    %c0_109 = arith.constant 0 : index
    %118 = vector.load %arg17[%c10_108, %c0_109] : memref<122x8xf32, #tpu.memory_space<vmem>>, vector<100x8xf32>
    %119 = vector.broadcast %109 : vector<100x1xf32> to vector<100x8xf32>
    %120 = arith.mulf %118, %119 : vector<100x8xf32>
    %c11_110 = arith.constant 11 : index
    %c0_111 = arith.constant 0 : index
    %121 = vector.load %arg17[%c11_110, %c0_111] : memref<122x8xf32, #tpu.memory_space<vmem>>, vector<100x8xf32>
    %c12_112 = arith.constant 12 : index
    %c0_113 = arith.constant 0 : index
    %122 = vector.load %arg17[%c12_112, %c0_113] : memref<122x8xf32, #tpu.memory_space<vmem>>, vector<100x8xf32>
    %123 = vector.broadcast %110 : vector<100x1xf32> to vector<100x8xf32>
    %124 = arith.mulf %122, %123 : vector<100x8xf32>
    %c20_114 = arith.constant 20 : index
    %c0_115 = arith.constant 0 : index
    %125 = vector.load %arg17[%c20_114, %c0_115] : memref<122x8xf32, #tpu.memory_space<vmem>>, vector<100x8xf32>
    %126 = vector.broadcast %109 : vector<100x1xf32> to vector<100x8xf32>
    %127 = arith.mulf %125, %126 : vector<100x8xf32>
    %c21_116 = arith.constant 21 : index
    %c0_117 = arith.constant 0 : index
    %128 = vector.load %arg17[%c21_116, %c0_117] : memref<122x8xf32, #tpu.memory_space<vmem>>, vector<100x8xf32>
    %c22_118 = arith.constant 22 : index
    %c0_119 = arith.constant 0 : index
    %129 = vector.load %arg17[%c22_118, %c0_119] : memref<122x8xf32, #tpu.memory_space<vmem>>, vector<100x8xf32>
    %130 = vector.broadcast %110 : vector<100x1xf32> to vector<100x8xf32>
    %131 = arith.mulf %129, %130 : vector<100x8xf32>
    %132 = tpu.concatenate %113, %114, %117, %120, %121, %124, %127, %128, %131 in 1 : vector<100x8xf32>, vector<100x8xf32>, vector<100x8xf32>, vector<100x8xf32>, vector<100x8xf32>, vector<100x8xf32>, vector<100x8xf32>, vector<100x8xf32>, vector<100x8xf32> -> vector<100x72xf32>
    %cst_120 = arith.constant dense<0.000000e+00> : vector<100x8xf32>
    %133 = tpu.matmul %132, %103, %cst_120 {dimension_numbers = #tpu.dot_dimension_numbers<[1], [0], [0], [1], [0, 0, 1, 1], [], []>, precision = #tpu.contract_precision<fp32>} : vector<100x72xf32>, vector<72x8xf32>, vector<100x8xf32> -> vector<100x8xf32>
    %134 = vector.broadcast %104 : vector<1x8xf32> to vector<100x8xf32>
    %135 = arith.addf %133, %134 : vector<100x8xf32>
    %cst_121 = arith.constant 0.000000e+00 : f32
    %136 = vector.broadcast %cst_121 : f32 to vector<100x8xf32>
    %137 = arith.maximumf %135, %136 : vector<100x8xf32>
    %c0_122 = arith.constant 0 : index
    %c0_123 = arith.constant 0 : index
    %138 = vector.load %arg19[%c0_122, %c0_123] : memref<110x8xf32, #tpu.memory_space<vmem>>, vector<100x8xf32>
    tpu.vector_store %arg19[%c0_122, %c0_123], %137 {strides = array<i32>} : memref<110x8xf32, #tpu.memory_space<vmem>>, vector<100x8xf32>,
    %cst_124 = arith.constant 0.000000e+00 : f32
    %139 = vector.broadcast %cst_124 : f32 to vector<10x8xf32>
    %c100 = arith.constant 100 : index
    %c0_125 = arith.constant 0 : index
    %140 = vector.load %arg19[%c100, %c0_125] : memref<110x8xf32, #tpu.memory_space<vmem>>, vector<10x8xf32>
    tpu.vector_store %arg19[%c100, %c0_125], %139 {strides = array<i32>} : memref<110x8xf32, #tpu.memory_space<vmem>>, vector<10x8xf32>,
    %c10_126 = arith.constant 10 : index
    %c0_127 = arith.constant 0 : index
    %141 = vector.load %arg19[%c10_126, %c0_127] : memref<110x8xf32, #tpu.memory_space<vmem>>, vector<100x8xf32>
    %142 = arith.maximumf %137, %141 : vector<100x8xf32>
    %c0_128 = arith.constant 0 : index
    %c0_129 = arith.constant 0 : index
    %143 = vector.load %arg19[%c0_128, %c0_129] : memref<110x8xf32, #tpu.memory_space<vmem>>, vector<100x8xf32>
    tpu.vector_store %arg19[%c0_128, %c0_129], %142 {strides = array<i32>} : memref<110x8xf32, #tpu.memory_space<vmem>>, vector<100x8xf32>,
    %c1_130 = arith.constant 1 : index
    %c0_131 = arith.constant 0 : index
    %144 = vector.load %arg19[%c1_130, %c0_131] : memref<110x8xf32, #tpu.memory_space<vmem>>, vector<100x8xf32>
    %145 = arith.maximumf %142, %144 : vector<100x8xf32>
    %c0_132 = arith.constant 0 : index
    %c0_133 = arith.constant 0 : index
    %146 = vector.load %arg19[%c0_132, %c0_133] : memref<110x8xf32, #tpu.memory_space<vmem>>, vector<100x8xf32>
    tpu.vector_store %arg19[%c0_132, %c0_133], %145 {strides = array<i32>} : memref<110x8xf32, #tpu.memory_space<vmem>>, vector<100x8xf32>,
    %c0_134 = arith.constant 0 : index
    %c0_135 = arith.constant 0 : index
    %147 = tpu.strided_load %arg19[%c0_134, %c0_135] {strides = array<i32: 2, 1>} : memref<110x8xf32, #tpu.memory_space<vmem>>, vector<5x8xf32>
    %c0_136 = arith.constant 0 : index
    %c0_137 = arith.constant 0 : index
    %148 = vector.load %arg20[%c0_136, %c0_137] : memref<25x8xf32, #tpu.memory_space<vmem>>, vector<5x8xf32>
    tpu.vector_store %arg20[%c0_136, %c0_137], %147 {strides = array<i32>} : memref<25x8xf32, #tpu.memory_space<vmem>>, vector<5x8xf32>,
    %c20_138 = arith.constant 20 : index
    %c0_139 = arith.constant 0 : index
    %149 = tpu.strided_load %arg19[%c20_138, %c0_139] {strides = array<i32: 2, 1>} : memref<110x8xf32, #tpu.memory_space<vmem>>, vector<5x8xf32>
    %c5 = arith.constant 5 : index
    %c0_140 = arith.constant 0 : index
    %150 = vector.load %arg20[%c5, %c0_140] : memref<25x8xf32, #tpu.memory_space<vmem>>, vector<5x8xf32>
    tpu.vector_store %arg20[%c5, %c0_140], %149 {strides = array<i32>} : memref<25x8xf32, #tpu.memory_space<vmem>>, vector<5x8xf32>,
    %c40_141 = arith.constant 40 : index
    %c0_142 = arith.constant 0 : index
    %151 = tpu.strided_load %arg19[%c40_141, %c0_142] {strides = array<i32: 2, 1>} : memref<110x8xf32, #tpu.memory_space<vmem>>, vector<5x8xf32>
    %c10_143 = arith.constant 10 : index
    %c0_144 = arith.constant 0 : index
    %152 = vector.load %arg20[%c10_143, %c0_144] : memref<25x8xf32, #tpu.memory_space<vmem>>, vector<5x8xf32>
    tpu.vector_store %arg20[%c10_143, %c0_144], %151 {strides = array<i32>} : memref<25x8xf32, #tpu.memory_space<vmem>>, vector<5x8xf32>,
    %c60 = arith.constant 60 : index
    %c0_145 = arith.constant 0 : index
    %153 = tpu.strided_load %arg19[%c60, %c0_145] {strides = array<i32: 2, 1>} : memref<110x8xf32, #tpu.memory_space<vmem>>, vector<5x8xf32>
    %c15 = arith.constant 15 : index
    %c0_146 = arith.constant 0 : index
    %154 = vector.load %arg20[%c15, %c0_146] : memref<25x8xf32, #tpu.memory_space<vmem>>, vector<5x8xf32>
    tpu.vector_store %arg20[%c15, %c0_146], %153 {strides = array<i32>} : memref<25x8xf32, #tpu.memory_space<vmem>>, vector<5x8xf32>,
    %c80_147 = arith.constant 80 : index
    %c0_148 = arith.constant 0 : index
    %155 = tpu.strided_load %arg19[%c80_147, %c0_148] {strides = array<i32: 2, 1>} : memref<110x8xf32, #tpu.memory_space<vmem>>, vector<5x8xf32>
    %c20_149 = arith.constant 20 : index
    %c0_150 = arith.constant 0 : index
    %156 = vector.load %arg20[%c20_149, %c0_150] : memref<25x8xf32, #tpu.memory_space<vmem>>, vector<5x8xf32>
    tpu.vector_store %arg20[%c20_149, %c0_150], %155 {strides = array<i32>} : memref<25x8xf32, #tpu.memory_space<vmem>>, vector<5x8xf32>,
    %c0_151 = arith.constant 0 : index
    %c0_152 = arith.constant 0 : index
    %157 = vector.load %arg20[%c0_151, %c0_152] : memref<25x8xf32, #tpu.memory_space<vmem>>, vector<25x8xf32>
    %158 = vector.extract_strided_slice %157 {offsets = [0, 0], sizes = [1, 8], strides = [1, 1]} : vector<25x8xf32> to vector<1x8xf32>
    %159 = vector.extract_strided_slice %157 {offsets = [1, 0], sizes = [1, 8], strides = [1, 1]} : vector<25x8xf32> to vector<1x8xf32>
    %160 = vector.extract_strided_slice %157 {offsets = [2, 0], sizes = [1, 8], strides = [1, 1]} : vector<25x8xf32> to vector<1x8xf32>
    %161 = vector.extract_strided_slice %157 {offsets = [3, 0], sizes = [1, 8], strides = [1, 1]} : vector<25x8xf32> to vector<1x8xf32>
    %162 = vector.extract_strided_slice %157 {offsets = [4, 0], sizes = [1, 8], strides = [1, 1]} : vector<25x8xf32> to vector<1x8xf32>
    %163 = vector.extract_strided_slice %157 {offsets = [5, 0], sizes = [1, 8], strides = [1, 1]} : vector<25x8xf32> to vector<1x8xf32>
    %164 = vector.extract_strided_slice %157 {offsets = [6, 0], sizes = [1, 8], strides = [1, 1]} : vector<25x8xf32> to vector<1x8xf32>
    %165 = vector.extract_strided_slice %157 {offsets = [7, 0], sizes = [1, 8], strides = [1, 1]} : vector<25x8xf32> to vector<1x8xf32>
    %166 = vector.extract_strided_slice %157 {offsets = [8, 0], sizes = [1, 8], strides = [1, 1]} : vector<25x8xf32> to vector<1x8xf32>
    %167 = vector.extract_strided_slice %157 {offsets = [9, 0], sizes = [1, 8], strides = [1, 1]} : vector<25x8xf32> to vector<1x8xf32>
    %168 = vector.extract_strided_slice %157 {offsets = [10, 0], sizes = [1, 8], strides = [1, 1]} : vector<25x8xf32> to vector<1x8xf32>
    %169 = vector.extract_strided_slice %157 {offsets = [11, 0], sizes = [1, 8], strides = [1, 1]} : vector<25x8xf32> to vector<1x8xf32>
    %170 = vector.extract_strided_slice %157 {offsets = [12, 0], sizes = [1, 8], strides = [1, 1]} : vector<25x8xf32> to vector<1x8xf32>
    %171 = vector.extract_strided_slice %157 {offsets = [13, 0], sizes = [1, 8], strides = [1, 1]} : vector<25x8xf32> to vector<1x8xf32>
    %172 = vector.extract_strided_slice %157 {offsets = [14, 0], sizes = [1, 8], strides = [1, 1]} : vector<25x8xf32> to vector<1x8xf32>
    %173 = vector.extract_strided_slice %157 {offsets = [15, 0], sizes = [1, 8], strides = [1, 1]} : vector<25x8xf32> to vector<1x8xf32>
    %174 = vector.extract_strided_slice %157 {offsets = [16, 0], sizes = [1, 8], strides = [1, 1]} : vector<25x8xf32> to vector<1x8xf32>
    %175 = vector.extract_strided_slice %157 {offsets = [17, 0], sizes = [1, 8], strides = [1, 1]} : vector<25x8xf32> to vector<1x8xf32>
    %176 = vector.extract_strided_slice %157 {offsets = [18, 0], sizes = [1, 8], strides = [1, 1]} : vector<25x8xf32> to vector<1x8xf32>
    %177 = vector.extract_strided_slice %157 {offsets = [19, 0], sizes = [1, 8], strides = [1, 1]} : vector<25x8xf32> to vector<1x8xf32>
    %178 = vector.extract_strided_slice %157 {offsets = [20, 0], sizes = [1, 8], strides = [1, 1]} : vector<25x8xf32> to vector<1x8xf32>
    %179 = vector.extract_strided_slice %157 {offsets = [21, 0], sizes = [1, 8], strides = [1, 1]} : vector<25x8xf32> to vector<1x8xf32>
    %180 = vector.extract_strided_slice %157 {offsets = [22, 0], sizes = [1, 8], strides = [1, 1]} : vector<25x8xf32> to vector<1x8xf32>
    %181 = vector.extract_strided_slice %157 {offsets = [23, 0], sizes = [1, 8], strides = [1, 1]} : vector<25x8xf32> to vector<1x8xf32>
    %182 = vector.extract_strided_slice %157 {offsets = [24, 0], sizes = [1, 8], strides = [1, 1]} : vector<25x8xf32> to vector<1x8xf32>
    %183 = tpu.concatenate %158, %159, %160, %161, %162, %163, %164, %165, %166, %167, %168, %169, %170, %171, %172, %173 in 1 : vector<1x8xf32>, vector<1x8xf32>, vector<1x8xf32>, vector<1x8xf32>, vector<1x8xf32>, vector<1x8xf32>, vector<1x8xf32>, vector<1x8xf32>, vector<1x8xf32>, vector<1x8xf32>, vector<1x8xf32>, vector<1x8xf32>, vector<1x8xf32>, vector<1x8xf32>, vector<1x8xf32>, vector<1x8xf32> -> vector<1x128xf32>
    %184 = tpu.concatenate %174, %175, %176, %177, %178, %179, %180, %181, %182 in 1 : vector<1x8xf32>, vector<1x8xf32>, vector<1x8xf32>, vector<1x8xf32>, vector<1x8xf32>, vector<1x8xf32>, vector<1x8xf32>, vector<1x8xf32>, vector<1x8xf32> -> vector<1x72xf32>
    %185 = tpu.concatenate %183, %184 in 1 : vector<1x128xf32>, vector<1x72xf32> -> vector<1x200xf32>
    %c0_153 = arith.constant 0 : index
    %c0_154 = arith.constant 0 : index
    %186 = vector.load %arg10[%c0_153, %c0_154] : memref<200x32xf32, #tpu.memory_space<vmem>>, vector<200x32xf32>
    %cst_155 = arith.constant dense<0.000000e+00> : vector<1x32xf32>
    %187 = tpu.matmul %185, %186, %cst_155 {dimension_numbers = #tpu.dot_dimension_numbers<[1], [0], [0], [1], [0, 0, 1, 1], [], []>, precision = #tpu.contract_precision<fp32>} : vector<1x200xf32>, vector<200x32xf32>, vector<1x32xf32> -> vector<1x32xf32>
    %c0_156 = arith.constant 0 : index
    %c0_157 = arith.constant 0 : index
    %188 = vector.load %arg11[%c0_156, %c0_157] : memref<1x32xf32, #tpu.memory_space<vmem>>, vector<1x32xf32>
    %189 = arith.addf %187, %188 : vector<1x32xf32>
    %cst_158 = arith.constant 0.000000e+00 : f32
    %190 = vector.broadcast %cst_158 : f32 to vector<1x32xf32>
    %191 = arith.maximumf %189, %190 : vector<1x32xf32>
    %c0_159 = arith.constant 0 : index
    %c0_160 = arith.constant 0 : index
    %192 = vector.load %arg12[%c0_159, %c0_160] : memref<32x5xf32, #tpu.memory_space<vmem>>, vector<32x5xf32>
    %cst_161 = arith.constant dense<0.000000e+00> : vector<1x5xf32>
    %193 = tpu.matmul %191, %192, %cst_161 {dimension_numbers = #tpu.dot_dimension_numbers<[1], [0], [0], [1], [0, 0, 1, 1], [], []>, precision = #tpu.contract_precision<fp32>} : vector<1x32xf32>, vector<32x5xf32>, vector<1x5xf32> -> vector<1x5xf32>
    %c0_162 = arith.constant 0 : index
    %c0_163 = arith.constant 0 : index
    %194 = vector.load %arg13[%c0_162, %c0_163] : memref<1x5xf32, #tpu.memory_space<vmem>>, vector<1x5xf32>
    %195 = arith.addf %193, %194 : vector<1x5xf32>
    %c0_164 = arith.constant 0 : index
    %c0_165 = arith.constant 0 : index
    %c0_166 = arith.constant 0 : index
    %196 = vector.load %arg14[%c0_164, %c0_165, %c0_166] : memref<1x1x5xf32, #tpu.memory_space<vmem>>, vector<1x1x5xf32>
    %197 = vector.shape_cast %196 : vector<1x1x5xf32> to vector<1x5xf32>
    %198 = vector.shape_cast %195 : vector<1x5xf32> to vector<1x1x5xf32>
    tpu.vector_store %arg14[%c0_164, %c0_165, %c0_166], %198 {strides = array<i32>} : memref<1x1x5xf32, #tpu.memory_space<vmem>>, vector<1x1x5xf32>,
    return
  }
  func.func @transform_0(%arg0: i32) -> (i32, i32, i32) {
    %c0_i32 = arith.constant 0 : i32
    %c0_i32_0 = arith.constant 0 : i32
    %c0_i32_1 = arith.constant 0 : i32
    return %arg0, %c0_i32, %c0_i32_0 : i32, i32, i32
  }
  func.func @transform_1(%arg0: i32) -> (i32, i32) {
    %c0_i32 = arith.constant 0 : i32
    %c0_i32_0 = arith.constant 0 : i32
    %c0_i32_1 = arith.constant 0 : i32
    return %c0_i32, %c0_i32_0 : i32, i32
  }
  func.func @transform_2(%arg0: i32) -> (i32, i32) {
    %c0_i32 = arith.constant 0 : i32
    %c0_i32_0 = arith.constant 0 : i32
    %c0_i32_1 = arith.constant 0 : i32
    return %c0_i32, %c0_i32_0 : i32, i32
  }
  func.func @transform_3(%arg0: i32) -> (i32, i32) {
    %c0_i32 = arith.constant 0 : i32
    %c0_i32_0 = arith.constant 0 : i32
    %c0_i32_1 = arith.constant 0 : i32
    return %c0_i32, %c0_i32_0 : i32, i32
  }
  func.func @transform_4(%arg0: i32) -> (i32, i32) {
    %c0_i32 = arith.constant 0 : i32
    %c0_i32_0 = arith.constant 0 : i32
    %c0_i32_1 = arith.constant 0 : i32
    return %c0_i32, %c0_i32_0 : i32, i32
  }
  func.func @transform_5(%arg0: i32) -> (i32, i32) {
    %c0_i32 = arith.constant 0 : i32
    %c0_i32_0 = arith.constant 0 : i32
    %c0_i32_1 = arith.constant 0 : i32
    return %c0_i32, %c0_i32_0 : i32, i32
  }
  func.func @transform_6(%arg0: i32) -> (i32, i32) {
    %c0_i32 = arith.constant 0 : i32
    %c0_i32_0 = arith.constant 0 : i32
    %c0_i32_1 = arith.constant 0 : i32
    return %c0_i32, %c0_i32_0 : i32, i32
  }
  func.func @transform_7(%arg0: i32) -> (i32, i32) {
    %c0_i32 = arith.constant 0 : i32
    %c0_i32_0 = arith.constant 0 : i32
    %c0_i32_1 = arith.constant 0 : i32
    return %c0_i32, %c0_i32_0 : i32, i32
  }
  func.func @transform_8(%arg0: i32) -> (i32, i32) {
    %c0_i32 = arith.constant 0 : i32
    %c0_i32_0 = arith.constant 0 : i32
    %c0_i32_1 = arith.constant 0 : i32
    return %c0_i32, %c0_i32_0 : i32, i32
  }
  func.func @transform_9(%arg0: i32) -> (i32, i32) {
    %c0_i32 = arith.constant 0 : i32
    %c0_i32_0 = arith.constant 0 : i32
    %c0_i32_1 = arith.constant 0 : i32
    return %c0_i32, %c0_i32_0 : i32, i32
  }
  func.func @transform_10(%arg0: i32) -> (i32, i32) {
    %c0_i32 = arith.constant 0 : i32
    %c0_i32_0 = arith.constant 0 : i32
    %c0_i32_1 = arith.constant 0 : i32
    return %c0_i32, %c0_i32_0 : i32, i32
  }
  func.func @transform_11(%arg0: i32) -> (i32, i32) {
    %c0_i32 = arith.constant 0 : i32
    %c0_i32_0 = arith.constant 0 : i32
    %c0_i32_1 = arith.constant 0 : i32
    return %c0_i32, %c0_i32_0 : i32, i32
  }
  func.func @transform_12(%arg0: i32) -> (i32, i32) {
    %c0_i32 = arith.constant 0 : i32
    %c0_i32_0 = arith.constant 0 : i32
    %c0_i32_1 = arith.constant 0 : i32
    return %c0_i32, %c0_i32_0 : i32, i32
  }
  func.func @transform_13(%arg0: i32) -> (i32, i32, i32) {
    %c0_i32 = arith.constant 0 : i32
    %c0_i32_0 = arith.constant 0 : i32
    %c0_i32_1 = arith.constant 0 : i32
    return %arg0, %c0_i32, %c0_i32_0 : i32, i32, i32
  }
}

</mosaic_0001>

<llo_original>
// kernel: gridworld_forward.1
$region0: #{gridworld_forward.1}
  #allocation0 [shape = 'u32[]', space=smem, size = 0x4, offset = 0x4, fixed_abs, tag = 'smem constant byte address 0x4 - core index']
  #allocation1 [shape = 'u32[72,128]{1,0:T(1,128)}', space=vmem, size = 0x9000, scoped, tag = 'internal scratch']
  #allocation2 [shape = 'f32[442,3]{1,0:T(8,128)}', space=vmem, size = 0x38000, scoped, tag = 'scratch operand']
  #allocation3 [shape = 'f32[122,8]{1,0:T(8,128)}', space=vmem, size = 0x10000, scoped, tag = 'scratch operand']
  #allocation4 [shape = 'f32[122,8]{1,0:T(8,128)}', space=vmem, size = 0x10000, scoped, tag = 'scratch operand']
  #allocation5 [shape = 'f32[420,8]{1,0:T(8,128)}', space=vmem, size = 0x35000, scoped, tag = 'scratch operand']
  #allocation6 [shape = 'f32[110,8]{1,0:T(8,128)}', space=vmem, size = 0xe000, scoped, tag = 'scratch operand']
  #allocation7 [shape = 'f32[25,8]{1,0:T(8,128)}', space=vmem, size = 0x4000, scoped, tag = 'scratch operand']
  %s0 = inlined_call_operand.vmem [shape: f32[2,400,3], index: 0, kind: input, shape index: {}]
  %s1 = inlined_call_operand.vmem [shape: f32[400,2], index: 1, kind: input, shape index: {}]
  %s2 = inlined_call_operand.vmem [shape: f32[100,2], index: 2, kind: input, shape index: {}]
  %s3 = inlined_call_operand.vmem [shape: f32[27,8], index: 3, kind: input, shape index: {}]
  %s4 = inlined_call_operand.vmem [shape: f32[1,8], index: 4, kind: input, shape index: {}]
  %s5 = inlined_call_operand.vmem [shape: f32[72,8], index: 5, kind: input, shape index: {}]
  %s6 = inlined_call_operand.vmem [shape: f32[1,8], index: 6, kind: input, shape index: {}]
  %s7 = inlined_call_operand.vmem [shape: f32[72,8], index: 7, kind: input, shape index: {}]
  %s8 = inlined_call_operand.vmem [shape: f32[1,8], index: 8, kind: input, shape index: {}]
  %s9 = inlined_call_operand.vmem [shape: f32[200,32], index: 9, kind: input, shape index: {}]
  %s10 = inlined_call_operand.vmem [shape: f32[1,32], index: 10, kind: input, shape index: {}]
  %s11 = inlined_call_operand.vmem [shape: f32[32,5], index: 11, kind: input, shape index: {}]
  %s12 = inlined_call_operand.vmem [shape: f32[1,5], index: 12, kind: input, shape index: {}]
  %s13 = inlined_call_operand.hbm [shape: f32[2,1,5], index: 13, kind: output, shape index: {}]
  %s14 = sld [smem:[#allocation0]]
  $region85: #{gridworld_forward.1} parent=0
    _
  %s16 = ssub.s32 1, %s14
  %s17 = scalar_select 0, %s16, %s14
  $region1: #{gridworld_forward.1} parent=0
    #allocation8 [shape = 'u8[1024]{0}', space=vmem, size = 0x400, scoped, tag = 'output window, operand 0']
    #allocation9 [shape = 's32[2]{0}', space=sflag, size = 0x8, scoped, tag = 'scoped memory for gridworld_forward.1']
    %18 = vsyncpa [#allocation9], 0
    %s19 = scalar_lea.sflag [#allocation9], 1
    %20 = vsyncpa %s19, 0
    loop: start=0, step=1, limit=4
    $region2: #{gridworld_forward.1} parent=1 // loop_pre_header
      _
    $region3: #{gridworld_forward.1} parent=1 // loop_header
      %s22 = sphi 0, %s26
      %p23 = scmp.ge.s32.totalorder %s22, 4
      %s32 = sphi 0, %s34
      %s35 = sphi 0, %s32
      %s36 = sphi 0, %s35
      %s52 = sphi 0, %s36
      %s56 = sphi 0, %s56
      %s58 = sphi 0, %s56
      %s59 = sphi 0, %s58
      %s73 = sphi 0, %s59
      %s77 = sphi 0, %s77
      %s79 = sphi 0, %s77
      %s80 = sphi 0, %s79
      %s94 = sphi 0, %s80
      %s98 = sphi 0, %s98
      %s100 = sphi 0, %s98
      %s101 = sphi 0, %s100
      %s115 = sphi 0, %s101
      %s119 = sphi 0, %s119
      %s121 = sphi 0, %s119
      %s122 = sphi 0, %s121
      %s136 = sphi 0, %s122
      %s140 = sphi 0, %s140
      %s142 = sphi 0, %s140
      %s143 = sphi 0, %s142
      %s157 = sphi 0, %s143
      %s161 = sphi 0, %s161
      %s163 = sphi 0, %s161
      %s164 = sphi 0, %s163
      %s178 = sphi 0, %s164
      %s182 = sphi 0, %s182
      %s184 = sphi 0, %s182
      %s185 = sphi 0, %s184
      %s199 = sphi 0, %s185
      %s203 = sphi 0, %s203
      %s205 = sphi 0, %s203
      %s206 = sphi 0, %s205
      %s220 = sphi 0, %s206
      %s224 = sphi 0, %s224
      %s226 = sphi 0, %s224
      %s227 = sphi 0, %s226
      %s241 = sphi 0, %s227
      %s245 = sphi 0, %s245
      %s247 = sphi 0, %s245
      %s248 = sphi 0, %s247
      %s262 = sphi 0, %s248
      %s266 = sphi 0, %s266
      %s268 = sphi 0, %s266
      %s269 = sphi 0, %s268
      %s283 = sphi 0, %s269
      %s287 = sphi 0, %s287
      %s289 = sphi 0, %s287
      %s290 = sphi 0, %s289
      %s304 = sphi 0, %s290
      %s310 = sphi 0, %s312
      %s313 = sphi 0, %s310
      %s314 = sphi 0, %s313
      %s330 = sphi 0, %s314
    $region4: #{gridworld_forward.1} parent=1 // loop_header_branch
      %25 = sbr.rel (%p23) target = $region8
    $region5: #{gridworld_forward.1} parent=1 // loop_body
      %s27 = ssub.s32 %s22, 1
      %s28 = ssub.s32 %s22, 2
      %s29 = sadd.s32 %s22, 1
      %s30 = ssub.s32 %s22, %s29
      %p31 = scmp.eq.s32.totalorder %s30, 0
      %s33 = sadd.s32 %s32, 1
      %s34 = scalar_select %p31, %s32, %s33
      %p37 = pneg %p31
      %p38 = scmp.eq.s32.totalorder %s22, 1
      %p39 = por %p37, %p38
      %p40 = scmp.ne.s32.totalorder %s32, %s35
      %p41 = scmp.eq.s32.totalorder %s22, 0
      %p42 = por %p40, %p41
      %p43 = scmp.ne.s32.totalorder %s32, %s35
      %p44 = scmp.eq.s32.totalorder %s27, 1
      %p45 = por %p43, %p44
      %p46 = scmp.ne.s32.totalorder %s35, %s36
      %p47 = scmp.eq.s32.totalorder %s27, 0
      %p48 = por %p46, %p47
      %p49 = scmp.ne.s32.totalorder %s35, %s36
      %p50 = scmp.eq.s32.totalorder %s28, 1
      %p51 = por %p49, %p50
      %p53 = scmp.ne.s32.totalorder %s36, %s52
      %p54 = scmp.eq.s32.totalorder %s28, 0
      %p55 = por %p53, %p54
      %s57 = sadd.s32 %s56, 1
      %p60 = scmp.eq.s32.totalorder %s22, 1
      %p61 = scmp.ne.s32.totalorder %s56, %s58
      %p62 = scmp.eq.s32.totalorder %s22, 0
      %p63 = por %p61, %p62
      %p64 = scmp.ne.s32.totalorder %s56, %s58
      %p65 = scmp.eq.s32.totalorder %s27, 1
      %p66 = por %p64, %p65
      %p67 = scmp.ne.s32.totalorder %s58, %s59
      %p68 = scmp.eq.s32.totalorder %s27, 0
      %p69 = por %p67, %p68
      %p70 = scmp.ne.s32.totalorder %s58, %s59
      %p71 = scmp.eq.s32.totalorder %s28, 1
      %p72 = por %p70, %p71
      %p74 = scmp.ne.s32.totalorder %s59, %s73
      %p75 = scmp.eq.s32.totalorder %s28, 0
      %p76 = por %p74, %p75
      %s78 = sadd.s32 %s77, 1
      %p81 = scmp.eq.s32.totalorder %s22, 1
      %p82 = scmp.ne.s32.totalorder %s77, %s79
      %p83 = scmp.eq.s32.totalorder %s22, 0
      %p84 = por %p82, %p83
      %p85 = scmp.ne.s32.totalorder %s77, %s79
      %p86 = scmp.eq.s32.totalorder %s27, 1
      %p87 = por %p85, %p86
      %p88 = scmp.ne.s32.totalorder %s79, %s80
      %p89 = scmp.eq.s32.totalorder %s27, 0
      %p90 = por %p88, %p89
      %p91 = scmp.ne.s32.totalorder %s79, %s80
      %p92 = scmp.eq.s32.totalorder %s28, 1
      %p93 = por %p91, %p92
      %p95 = scmp.ne.s32.totalorder %s80, %s94
      %p96 = scmp.eq.s32.totalorder %s28, 0
      %p97 = por %p95, %p96
      %s99 = sadd.s32 %s98, 1
      %p102 = scmp.eq.s32.totalorder %s22, 1
      %p103 = scmp.ne.s32.totalorder %s98, %s100
      %p104 = scmp.eq.s32.totalorder %s22, 0
      %p105 = por %p103, %p104
      %p106 = scmp.ne.s32.totalorder %s98, %s100
      %p107 = scmp.eq.s32.totalorder %s27, 1
      %p108 = por %p106, %p107
      %p109 = scmp.ne.s32.totalorder %s100, %s101
      %p110 = scmp.eq.s32.totalorder %s27, 0
      %p111 = por %p109, %p110
      %p112 = scmp.ne.s32.totalorder %s100, %s101
      %p113 = scmp.eq.s32.totalorder %s28, 1
      %p114 = por %p112, %p113
      %p116 = scmp.ne.s32.totalorder %s101, %s115
      %p117 = scmp.eq.s32.totalorder %s28, 0
      %p118 = por %p116, %p117
      %s120 = sadd.s32 %s119, 1
      %p123 = scmp.eq.s32.totalorder %s22, 1
      %p124 = scmp.ne.s32.totalorder %s119, %s121
      %p125 = scmp.eq.s32.totalorder %s22, 0
      %p126 = por %p124, %p125
      %p127 = scmp.ne.s32.totalorder %s119, %s121
      %p128 = scmp.eq.s32.totalorder %s27, 1
      %p129 = por %p127, %p128
      %p130 = scmp.ne.s32.totalorder %s121, %s122
      %p131 = scmp.eq.s32.totalorder %s27, 0
      %p132 = por %p130, %p131
      %p133 = scmp.ne.s32.totalorder %s121, %s122
      %p134 = scmp.eq.s32.totalorder %s28, 1
      %p135 = por %p133, %p134
      %p137 = scmp.ne.s32.totalorder %s122, %s136
      %p138 = scmp.eq.s32.totalorder %s28, 0
      %p139 = por %p137, %p138
      %s141 = sadd.s32 %s140, 1
      %p144 = scmp.eq.s32.totalorder %s22, 1
      %p145 = scmp.ne.s32.totalorder %s140, %s142
      %p146 = scmp.eq.s32.totalorder %s22, 0
      %p147 = por %p145, %p146
      %p148 = scmp.ne.s32.totalorder %s140, %s142
      %p149 = scmp.eq.s32.totalorder %s27, 1
      %p150 = por %p148, %p149
      %p151 = scmp.ne.s32.totalorder %s142, %s143
      %p152 = scmp.eq.s32.totalorder %s27, 0
      %p153 = por %p151, %p152
      %p154 = scmp.ne.s32.totalorder %s142, %s143
      %p155 = scmp.eq.s32.totalorder %s28, 1
      %p156 = por %p154, %p155
      %p158 = scmp.ne.s32.totalorder %s143, %s157
      %p159 = scmp.eq.s32.totalorder %s28, 0
      %p160 = por %p158, %p159
      %s162 = sadd.s32 %s161, 1
      %p165 = scmp.eq.s32.totalorder %s22, 1
      %p166 = scmp.ne.s32.totalorder %s161, %s163
      %p167 = scmp.eq.s32.totalorder %s22, 0
      %p168 = por %p166, %p167
      %p169 = scmp.ne.s32.totalorder %s161, %s163
      %p170 = scmp.eq.s32.totalorder %s27, 1
      %p171 = por %p169, %p170
      %p172 = scmp.ne.s32.totalorder %s163, %s164
      %p173 = scmp.eq.s32.totalorder %s27, 0
      %p174 = por %p172, %p173
      %p175 = scmp.ne.s32.totalorder %s163, %s164
      %p176 = scmp.eq.s32.totalorder %s28, 1
      %p177 = por %p175, %p176
      %p179 = scmp.ne.s32.totalorder %s164, %s178
      %p180 = scmp.eq.s32.totalorder %s28, 0
      %p181 = por %p179, %p180
      %s183 = sadd.s32 %s182, 1
      %p186 = scmp.eq.s32.totalorder %s22, 1
      %p187 = scmp.ne.s32.totalorder %s182, %s184
      %p188 = scmp.eq.s32.totalorder %s22, 0
      %p189 = por %p187, %p188
      %p190 = scmp.ne.s32.totalorder %s182, %s184
      %p191 = scmp.eq.s32.totalorder %s27, 1
      %p192 = por %p190, %p191
      %p193 = scmp.ne.s32.totalorder %s184, %s185
      %p194 = scmp.eq.s32.totalorder %s27, 0
      %p195 = por %p193, %p194
      %p196 = scmp.ne.s32.totalorder %s184, %s185
      %p197 = scmp.eq.s32.totalorder %s28, 1
      %p198 = por %p196, %p197
      %p200 = scmp.ne.s32.totalorder %s185, %s199
      %p201 = scmp.eq.s32.totalorder %s28, 0
      %p202 = por %p200, %p201
      %s204 = sadd.s32 %s203, 1
      %p207 = scmp.eq.s32.totalorder %s22, 1
      %p208 = scmp.ne.s32.totalorder %s203, %s205
      %p209 = scmp.eq.s32.totalorder %s22, 0
      %p210 = por %p208, %p209
      %p211 = scmp.ne.s32.totalorder %s203, %s205
      %p212 = scmp.eq.s32.totalorder %s27, 1
      %p213 = por %p211, %p212
      %p214 = scmp.ne.s32.totalorder %s205, %s206
      %p215 = scmp.eq.s32.totalorder %s27, 0
      %p216 = por %p214, %p215
      %p217 = scmp.ne.s32.totalorder %s205, %s206
      %p218 = scmp.eq.s32.totalorder %s28, 1
      %p219 = por %p217, %p218
      %p221 = scmp.ne.s32.totalorder %s206, %s220
      %p222 = scmp.eq.s32.totalorder %s28, 0
      %p223 = por %p221, %p222
      %s225 = sadd.s32 %s224, 1
      %p228 = scmp.eq.s32.totalorder %s22, 1
      %p229 = scmp.ne.s32.totalorder %s224, %s226
      %p230 = scmp.eq.s32.totalorder %s22, 0
      %p231 = por %p229, %p230
      %p232 = scmp.ne.s32.totalorder %s224, %s226
      %p233 = scmp.eq.s32.totalorder %s27, 1
      %p234 = por %p232, %p233
      %p235 = scmp.ne.s32.totalorder %s226, %s227
      %p236 = scmp.eq.s32.totalorder %s27, 0
      %p237 = por %p235, %p236
      %p238 = scmp.ne.s32.totalorder %s226, %s227
      %p239 = scmp.eq.s32.totalorder %s28, 1
      %p240 = por %p238, %p239
      %p242 = scmp.ne.s32.totalorder %s227, %s241
      %p243 = scmp.eq.s32.totalorder %s28, 0
      %p244 = por %p242, %p243
      %s246 = sadd.s32 %s245, 1
      %p249 = scmp.eq.s32.totalorder %s22, 1
      %p250 = scmp.ne.s32.totalorder %s245, %s247
      %p251 = scmp.eq.s32.totalorder %s22, 0
      %p252 = por %p250, %p251
      %p253 = scmp.ne.s32.totalorder %s245, %s247
      %p254 = scmp.eq.s32.totalorder %s27, 1
      %p255 = por %p253, %p254
      %p256 = scmp.ne.s32.totalorder %s247, %s248
      %p257 = scmp.eq.s32.totalorder %s27, 0
      %p258 = por %p256, %p257
      %p259 = scmp.ne.s32.totalorder %s247, %s248
      %p260 = scmp.eq.s32.totalorder %s28, 1
      %p261 = por %p259, %p260
      %p263 = scmp.ne.s32.totalorder %s248, %s262
      %p264 = scmp.eq.s32.totalorder %s28, 0
      %p265 = por %p263, %p264
      %s267 = sadd.s32 %s266, 1
      %p270 = scmp.eq.s32.totalorder %s22, 1
      %p271 = scmp.ne.s32.totalorder %s266, %s268
      %p272 = scmp.eq.s32.totalorder %s22, 0
      %p273 = por %p271, %p272
      %p274 = scmp.ne.s32.totalorder %s266, %s268
      %p275 = scmp.eq.s32.totalorder %s27, 1
      %p276 = por %p274, %p275
      %p277 = scmp.ne.s32.totalorder %s268, %s269
      %p278 = scmp.eq.s32.totalorder %s27, 0
      %p279 = por %p277, %p278
      %p280 = scmp.ne.s32.totalorder %s268, %s269
      %p281 = scmp.eq.s32.totalorder %s28, 1
      %p282 = por %p280, %p281
      %p284 = scmp.ne.s32.totalorder %s269, %s283
      %p285 = scmp.eq.s32.totalorder %s28, 0
      %p286 = por %p284, %p285
      %s288 = sadd.s32 %s287, 1
      %p291 = scmp.eq.s32.totalorder %s22, 1
      %p292 = scmp.ne.s32.totalorder %s287, %s289
      %p293 = scmp.eq.s32.totalorder %s22, 0
      %p294 = por %p292, %p293
      %p295 = scmp.ne.s32.totalorder %s287, %s289
      %p296 = scmp.eq.s32.totalorder %s27, 1
      %p297 = por %p295, %p296
      %p298 = scmp.ne.s32.totalorder %s289, %s290
      %p299 = scmp.eq.s32.totalorder %s27, 0
      %p300 = por %p298, %p299
      %p301 = scmp.ne.s32.totalorder %s289, %s290
      %p302 = scmp.eq.s32.totalorder %s28, 1
      %p303 = por %p301, %p302
      %p305 = scmp.ne.s32.totalorder %s290, %s304
      %p306 = scmp.eq.s32.totalorder %s28, 0
      %p307 = por %p305, %p306
      %s308 = ssub.s32 %s22, %s29
      %p309 = scmp.eq.s32.totalorder %s308, 0
      %s311 = sadd.s32 %s310, 1
      %s312 = scalar_select %p309, %s310, %s311
      %p315 = pneg %p309
      %p316 = scmp.eq.s32.totalorder %s22, 1
      %p317 = por %p315, %p316
      %p318 = scmp.ne.s32.totalorder %s310, %s313
      %p319 = scmp.eq.s32.totalorder %s22, 0
      %p320 = por %p318, %p319
      %p321 = scmp.ne.s32.totalorder %s310, %s313
      %p322 = scmp.eq.s32.totalorder %s27, 1
      %p323 = por %p321, %p322
      %p324 = scmp.ne.s32.totalorder %s313, %s314
      %p325 = scmp.eq.s32.totalorder %s27, 0
      %p326 = por %p324, %p325
      %p327 = scmp.ne.s32.totalorder %s313, %s314
      %p328 = scmp.eq.s32.totalorder %s28, 1
      %p329 = por %p327, %p328
      %p331 = scmp.ne.s32.totalorder %s314, %s330
      %p332 = scmp.eq.s32.totalorder %s28, 0
      %p333 = por %p331, %p332
      %p334 = scmp.le.s32.totalorder 1, %s22
      %p335 = scmp.lt.s32.totalorder %s22, 3
      %p336 = pnand %p334, %p335
      %p337 = pneg %p336
      // Predicated region
      $region9: #{gridworld_forward.1} parent=5 // pred_check
        _
      $region10: #{gridworld_forward.1} parent=5 // pred_check_branch
        %339 = sbr.rel (%p336) target = $region12
      $region11: #{gridworld_forward.1} parent=5 // pred_region
        %s340 = ssub.s32 %s22, 1
        // Predicated region
        $region13: #{gridworld_forward.1} parent=11 // pred_check
          %p341 = pneg %p69
        $region14: #{gridworld_forward.1} parent=11 // pred_check_branch
          %343 = sbr.rel (%p341) target = $region16
        $region15: #{gridworld_forward.1} parent=11 // pred_region
          _
        $region16: #{gridworld_forward.1} parent=11 // pred_fallthru
          _
        // Predicated region
        $region17: #{gridworld_forward.1} parent=11 // pred_check
          %p344 = pneg %p90
        $region18: #{gridworld_forward.1} parent=11 // pred_check_branch
          %346 = sbr.rel (%p344) target = $region20
        $region19: #{gridworld_forward.1} parent=11 // pred_region
          _
        $region20: #{gridworld_forward.1} parent=11 // pred_fallthru
          _
        // Predicated region
        $region21: #{gridworld_forward.1} parent=11 // pred_check
          %p347 = pneg %p111
        $region22: #{gridworld_forward.1} parent=11 // pred_check_branch
          %349 = sbr.rel (%p347) target = $region24
        $region23: #{gridworld_forward.1} parent=11 // pred_region
          _
        $region24: #{gridworld_forward.1} parent=11 // pred_fallthru
          _
        // Predicated region
        $region25: #{gridworld_forward.1} parent=11 // pred_check
          %p350 = pneg %p132
        $region26: #{gridworld_forward.1} parent=11 // pred_check_branch
          %352 = sbr.rel (%p350) target = $region28
        $region27: #{gridworld_forward.1} parent=11 // pred_region
          _
        $region28: #{gridworld_forward.1} parent=11 // pred_fallthru
          _
        // Predicated region
        $region29: #{gridworld_forward.1} parent=11 // pred_check
          %p353 = pneg %p153
        $region30: #{gridworld_forward.1} parent=11 // pred_check_branch
          %355 = sbr.rel (%p353) target = $region32
        $region31: #{gridworld_forward.1} parent=11 // pred_region
          _
        $region32: #{gridworld_forward.1} parent=11 // pred_fallthru
          _
        // Predicated region
        $region33: #{gridworld_forward.1} parent=11 // pred_check
          %p356 = pneg %p174
        $region34: #{gridworld_forward.1} parent=11 // pred_check_branch
          %358 = sbr.rel (%p356) target = $region36
        $region35: #{gridworld_forward.1} parent=11 // pred_region
          _
        $region36: #{gridworld_forward.1} parent=11 // pred_fallthru
          _
        // Predicated region
        $region37: #{gridworld_forward.1} parent=11 // pred_check
          %p359 = pneg %p195
        $region38: #{gridworld_forward.1} parent=11 // pred_check_branch
          %361 = sbr.rel (%p359) target = $region40
        $region39: #{gridworld_forward.1} parent=11 // pred_region
          _
        $region40: #{gridworld_forward.1} parent=11 // pred_fallthru
          _
        // Predicated region
        $region41: #{gridworld_forward.1} parent=11 // pred_check
          %p362 = pneg %p216
        $region42: #{gridworld_forward.1} parent=11 // pred_check_branch
          %364 = sbr.rel (%p362) target = $region44
        $region43: #{gridworld_forward.1} parent=11 // pred_region
          _
        $region44: #{gridworld_forward.1} parent=11 // pred_fallthru
          _
        // Predicated region
        $region45: #{gridworld_forward.1} parent=11 // pred_check
          %p365 = pneg %p237
        $region46: #{gridworld_forward.1} parent=11 // pred_check_branch
          %367 = sbr.rel (%p365) target = $region48
        $region47: #{gridworld_forward.1} parent=11 // pred_region
          _
        $region48: #{gridworld_forward.1} parent=11 // pred_fallthru
          _
        // Predicated region
        $region49: #{gridworld_forward.1} parent=11 // pred_check
          %p368 = pneg %p258
        $region50: #{gridworld_forward.1} parent=11 // pred_check_branch
          %370 = sbr.rel (%p368) target = $region52
        $region51: #{gridworld_forward.1} parent=11 // pred_region
          _
        $region52: #{gridworld_forward.1} parent=11 // pred_fallthru
          _
        // Predicated region
        $region53: #{gridworld_forward.1} parent=11 // pred_check
          %p371 = pneg %p279
        $region54: #{gridworld_forward.1} parent=11 // pred_check_branch
          %373 = sbr.rel (%p371) target = $region56
        $region55: #{gridworld_forward.1} parent=11 // pred_region
          _
        $region56: #{gridworld_forward.1} parent=11 // pred_fallthru
          _
        // Predicated region
        $region57: #{gridworld_forward.1} parent=11 // pred_check
          %p374 = pneg %p300
        $region58: #{gridworld_forward.1} parent=11 // pred_check_branch
          %376 = sbr.rel (%p374) target = $region60
        $region59: #{gridworld_forward.1} parent=11 // pred_region
          _
        $region60: #{gridworld_forward.1} parent=11 // pred_fallthru
          _
      $region12: #{gridworld_forward.1} parent=5 // pred_fallthru
        _
      %p377 = scmp.lt.s32.totalorder %s22, 2
      // Predicated region
      $region61: #{gridworld_forward.1} parent=5 // pred_check
        %p378 = pneg %p377
      $region62: #{gridworld_forward.1} parent=5 // pred_check_branch
        %380 = sbr.rel (%p378) target = $region64
      $region63: #{gridworld_forward.1} parent=5 // pred_region
        // Predicated region
        $region65: #{gridworld_forward.1} parent=63 // pred_check
          %p381 = pneg %p42
        $region66: #{gridworld_forward.1} parent=63 // pred_check_branch
          %383 = sbr.rel (%p381) target = $region68
        $region67: #{gridworld_forward.1} parent=63 // pred_region
          %p384 = scmp.lt.s32.totalorder %s22, 1
          %s385 = scalar_select %p384, %s22, 1
          %s386 = smul.addr %s385, 50
          %s387 = smul.addr %s386, 8
          %s388 = scalar_lea.vmem %s0, %s387
        $region68: #{gridworld_forward.1} parent=63 // pred_fallthru
          _
      $region64: #{gridworld_forward.1} parent=5 // pred_fallthru
        _
      %p389 = scmp.le.s32.totalorder 1, %s22
      %p390 = scmp.lt.s32.totalorder %s22, 3
      %p391 = pnand %p389, %p390
      %p392 = pneg %p391
      // Predicated region
      $region69: #{gridworld_forward.1} parent=5 // pred_check
        _
      $region70: #{gridworld_forward.1} parent=5 // pred_check_branch
        %394 = sbr.rel (%p391) target = $region72
      $region71: #{gridworld_forward.1} parent=5 // pred_region
        %s395 = ssub.s32 %s22, 1
        %p396 = scmp.lt.s32.totalorder %s27, 1
        %s397 = scalar_select %p396, %s27, 1
        %s398 = smul.addr %s397, 50
        %s399 = smul.addr %s398, 8
        %s400 = scalar_lea.vmem %s0, %s399
        %p401 = pneg %p48
        %p402 = pneg %p45
        %p403 = pneg %p69
        %p404 = pneg %p66
        %p405 = pneg %p90
        %p406 = pneg %p87
        %p407 = pneg %p111
        %p408 = pneg %p108
        %p409 = pneg %p132
        %p410 = pneg %p129
        %p411 = pneg %p153
        %p412 = pneg %p150
        %p413 = pneg %p174
        %p414 = pneg %p171
        %p415 = pneg %p195
        %p416 = pneg %p192
        %p417 = pneg %p216
        %p418 = pneg %p213
        %p419 = pneg %p237
        %p420 = pneg %p234
        %p421 = pneg %p258
        %p422 = pneg %p255
        %p423 = pneg %p279
        %p424 = pneg %p276
        %p425 = pneg %p300
        %p426 = pneg %p297
        %p427 = pneg %p326
        %p428 = pneg %p323
        %s429 = sand.u32 %s313, 1
        %s430 = scalar_lea.sflag [#allocation9], %s429
        %s431 = sand.u32 %s313, 1
        %s432 = scalar_lea.vmem [#allocation8], %s431
        %p433 = scmp.lt.s32.totalorder %s27, 1
        %s434 = scalar_select %p433, %s27, 1
        %s435 = smul.addr %s434, 50
        %s436 = smul.addr %s435, 8
        %s437 = scalar_lea.vmem %s0, %s436
        %v438 = vld [vmem:[%s437] sm:$0xff]
        %v439 = vld [vmem:[%s437 + $0x8] sm:$0xff]
        %v440 = vld [vmem:[%s437 + $0x10] sm:$0xff]
        %v441 = vld [vmem:[%s437 + $0x18] sm:$0xff]
        %v442 = vld [vmem:[%s437 + $0x20] sm:$0xff]
        %v443 = vld [vmem:[%s437 + $0x28] sm:$0xff]
        %v444 = vld [vmem:[%s437 + $0x30] sm:$0xff]
        %v445 = vld [vmem:[%s437 + $0x38] sm:$0xff]
        %v446 = vld [vmem:[%s437 + $0x40] sm:$0xff]
        %v447 = vld [vmem:[%s437 + $0x48] sm:$0xff]
        %v448 = vld [vmem:[%s437 + $0x50] sm:$0xff]
        %v449 = vld [vmem:[%s437 + $0x58] sm:$0xff]
        %v450 = vld [vmem:[%s437 + $0x60] sm:$0xff]
        %v451 = vld [vmem:[%s437 + $0x68] sm:$0xff]
        %v452 = vld [vmem:[%s437 + $0x70] sm:$0xff]
        %v453 = vld [vmem:[%s437 + $0x78] sm:$0xff]
        %v454 = vld [vmem:[%s437 + $0x80] sm:$0xff]
        %v455 = vld [vmem:[%s437 + $0x88] sm:$0xff]
        %v456 = vld [vmem:[%s437 + $0x90] sm:$0xff]
        %v457 = vld [vmem:[%s437 + $0x98] sm:$0xff]
        %v458 = vld [vmem:[%s437 + $0xa0] sm:$0xff]
        %v459 = vld [vmem:[%s437 + $0xa8] sm:$0xff]
        %v460 = vld [vmem:[%s437 + $0xb0] sm:$0xff]
        %v461 = vld [vmem:[%s437 + $0xb8] sm:$0xff]
        %v462 = vld [vmem:[%s437 + $0xc0] sm:$0xff]
        %v463 = vld [vmem:[%s437 + $0xc8] sm:$0xff]
        %v464 = vld [vmem:[%s437 + $0xd0] sm:$0xff]
        %v465 = vld [vmem:[%s437 + $0xd8] sm:$0xff]
        %v466 = vld [vmem:[%s437 + $0xe0] sm:$0xff]
        %v467 = vld [vmem:[%s437 + $0xe8] sm:$0xff]
        %v468 = vld [vmem:[%s437 + $0xf0] sm:$0xff]
        %v469 = vld [vmem:[%s437 + $0xf8] sm:$0xff]
        %v470 = vld [vmem:[%s437 + $0x100] sm:$0xff]
        %v471 = vld [vmem:[%s437 + $0x108] sm:$0xff]
        %v472 = vld [vmem:[%s437 + $0x110] sm:$0xff]
        %v473 = vld [vmem:[%s437 + $0x118] sm:$0xff]
        %v474 = vld [vmem:[%s437 + $0x120] sm:$0xff]
        %v475 = vld [vmem:[%s437 + $0x128] sm:$0xff]
        %v476 = vld [vmem:[%s437 + $0x130] sm:$0xff]
        %v477 = vld [vmem:[%s437 + $0x138] sm:$0xff]
        %v478 = vld [vmem:[%s437 + $0x140] sm:$0xff]
        %v479 = vld [vmem:[%s437 + $0x148] sm:$0xff]
        %v480 = vld [vmem:[%s437 + $0x150] sm:$0xff]
        %v481 = vld [vmem:[%s437 + $0x158] sm:$0xff]
        %v482 = vld [vmem:[%s437 + $0x160] sm:$0xff]
        %v483 = vld [vmem:[%s437 + $0x168] sm:$0xff]
        %v484 = vld [vmem:[%s437 + $0x170] sm:$0xff]
        %v485 = vld [vmem:[%s437 + $0x178] sm:$0xff]
        %v486 = vld [vmem:[%s437 + $0x180] sm:$0xff]
        %v487 = vld [vmem:[%s437 + $0x188] sm:$0xff]
        %vm488 = vcmask 23552
        %489 = vst.msk [vmem:[#allocation2 + $0x15] sm:$0xff] %vm488, %v438
        %490 = vst.msk [vmem:[#allocation2 + $0x1d] sm:$0xff] %vm488, %v439
        %491 = vst.msk [vmem:[#allocation2 + $0x25] sm:$0xff] %vm488, %v440
        %492 = vst.msk [vmem:[#allocation2 + $0x2d] sm:$0xff] %vm488, %v441
        %493 = vst.msk [vmem:[#allocation2 + $0x35] sm:$0xff] %vm488, %v442
        %494 = vst.msk [vmem:[#allocation2 + $0x3d] sm:$0xff] %vm488, %v443
        %495 = vst.msk [vmem:[#allocation2 + $0x45] sm:$0xff] %vm488, %v444
        %496 = vst.msk [vmem:[#allocation2 + $0x4d] sm:$0xff] %vm488, %v445
        %497 = vst.msk [vmem:[#allocation2 + $0x55] sm:$0xff] %vm488, %v446
        %498 = vst.msk [vmem:[#allocation2 + $0x5d] sm:$0xff] %vm488, %v447
        %499 = vst.msk [vmem:[#allocation2 + $0x65] sm:$0xff] %vm488, %v448
        %500 = vst.msk [vmem:[#allocation2 + $0x6d] sm:$0xff] %vm488, %v449
        %501 = vst.msk [vmem:[#allocation2 + $0x75] sm:$0xff] %vm488, %v450
        %502 = vst.msk [vmem:[#allocation2 + $0x7d] sm:$0xff] %vm488, %v451
        %503 = vst.msk [vmem:[#allocation2 + $0x85] sm:$0xff] %vm488, %v452
        %504 = vst.msk [vmem:[#allocation2 + $0x8d] sm:$0xff] %vm488, %v453
        %505 = vst.msk [vmem:[#allocation2 + $0x95] sm:$0xff] %vm488, %v454
        %506 = vst.msk [vmem:[#allocation2 + $0x9d] sm:$0xff] %vm488, %v455
        %507 = vst.msk [vmem:[#allocation2 + $0xa5] sm:$0xff] %vm488, %v456
        %508 = vst.msk [vmem:[#allocation2 + $0xad] sm:$0xff] %vm488, %v457
        %509 = vst.msk [vmem:[#allocation2 + $0xb5] sm:$0xff] %vm488, %v458
        %510 = vst.msk [vmem:[#allocation2 + $0xbd] sm:$0xff] %vm488, %v459
        %511 = vst.msk [vmem:[#allocation2 + $0xc5] sm:$0xff] %vm488, %v460
        %512 = vst.msk [vmem:[#allocation2 + $0xcd] sm:$0xff] %vm488, %v461
        %513 = vst.msk [vmem:[#allocation2 + $0xd5] sm:$0xff] %vm488, %v462
        %514 = vst.msk [vmem:[#allocation2 + $0xdd] sm:$0xff] %vm488, %v463
        %515 = vst.msk [vmem:[#allocation2 + $0xe5] sm:$0xff] %vm488, %v464
        %516 = vst.msk [vmem:[#allocation2 + $0xed] sm:$0xff] %vm488, %v465
        %517 = vst.msk [vmem:[#allocation2 + $0xf5] sm:$0xff] %vm488, %v466
        %518 = vst.msk [vmem:[#allocation2 + $0xfd] sm:$0xff] %vm488, %v467
        %519 = vst.msk [vmem:[#allocation2 + $0x105] sm:$0xff] %vm488, %v468
        %520 = vst.msk [vmem:[#allocation2 + $0x10d] sm:$0xff] %vm488, %v469
        %521 = vst.msk [vmem:[#allocation2 + $0x115] sm:$0xff] %vm488, %v470
        %522 = vst.msk [vmem:[#allocation2 + $0x11d] sm:$0xff] %vm488, %v471
        %523 = vst.msk [vmem:[#allocation2 + $0x125] sm:$0xff] %vm488, %v472
        %524 = vst.msk [vmem:[#allocation2 + $0x12d] sm:$0xff] %vm488, %v473
        %525 = vst.msk [vmem:[#allocation2 + $0x135] sm:$0xff] %vm488, %v474
        %526 = vst.msk [vmem:[#allocation2 + $0x13d] sm:$0xff] %vm488, %v475
        %527 = vst.msk [vmem:[#allocation2 + $0x145] sm:$0xff] %vm488, %v476
        %528 = vst.msk [vmem:[#allocation2 + $0x14d] sm:$0xff] %vm488, %v477
        %529 = vst.msk [vmem:[#allocation2 + $0x155] sm:$0xff] %vm488, %v478
        %530 = vst.msk [vmem:[#allocation2 + $0x15d] sm:$0xff] %vm488, %v479
        %531 = vst.msk [vmem:[#allocation2 + $0x165] sm:$0xff] %vm488, %v480
        %532 = vst.msk [vmem:[#allocation2 + $0x16d] sm:$0xff] %vm488, %v481
        %533 = vst.msk [vmem:[#allocation2 + $0x175] sm:$0xff] %vm488, %v482
        %534 = vst.msk [vmem:[#allocation2 + $0x17d] sm:$0xff] %vm488, %v483
        %535 = vst.msk [vmem:[#allocation2 + $0x185] sm:$0xff] %vm488, %v484
        %536 = vst.msk [vmem:[#allocation2 + $0x18d] sm:$0xff] %vm488, %v485
        %537 = vst.msk [vmem:[#allocation2 + $0x195] sm:$0xff] %vm488, %v486
        %538 = vst.msk [vmem:[#allocation2 + $0x19d] sm:$0xff] %vm488, %v487
        %v539 = vld [vmem:[%s3] sm:$0xff]
        %v540 = vld [vmem:[%s3 + $0x8] sm:$0xff]
        %v541 = vld [vmem:[%s3 + $0x10] sm:$0xff]
        %v542 = vld [vmem:[%s3 + $0x18] sm:$0x7]
        %v543 = vld [vmem:[%s4] sm:$0x1]
        %v544 = vld [vmem:[%s1] sm:$0xff]
        %v545 = vld [vmem:[%s1 + $0x8] sm:$0xff]
        %v546 = vld [vmem:[%s1 + $0x10] sm:$0xff]
        %v547 = vld [vmem:[%s1 + $0x18] sm:$0xff]
        %v548 = vld [vmem:[%s1 + $0x20] sm:$0xff]
        %v549 = vld [vmem:[%s1 + $0x28] sm:$0xff]
        %v550 = vld [vmem:[%s1 + $0x30] sm:$0xff]
        %v551 = vld [vmem:[%s1 + $0x38] sm:$0xff]
        %v552 = vld [vmem:[%s1 + $0x40] sm:$0xff]
        %v553 = vld [vmem:[%s1 + $0x48] sm:$0xff]
        %v554 = vld [vmem:[%s1 + $0x50] sm:$0xff]
        %v555 = vld [vmem:[%s1 + $0x58] sm:$0xff]
        %v556 = vld [vmem:[%s1 + $0x60] sm:$0xff]
        %v557 = vld [vmem:[%s1 + $0x68] sm:$0xff]
        %v558 = vld [vmem:[%s1 + $0x70] sm:$0xff]
        %v559 = vld [vmem:[%s1 + $0x78] sm:$0xff]
        %v560 = vld [vmem:[%s1 + $0x80] sm:$0xff]
        %v561 = vld [vmem:[%s1 + $0x88] sm:$0xff]
        %v562 = vld [vmem:[%s1 + $0x90] sm:$0xff]
        %v563 = vld [vmem:[%s1 + $0x98] sm:$0xff]
        %v564 = vld [vmem:[%s1 + $0xa0] sm:$0xff]
        %v565 = vld [vmem:[%s1 + $0xa8] sm:$0xff]
        %v566 = vld [vmem:[%s1 + $0xb0] sm:$0xff]
        %v567 = vld [vmem:[%s1 + $0xb8] sm:$0xff]
        %v568 = vld [vmem:[%s1 + $0xc0] sm:$0xff]
        %v569 = vld [vmem:[%s1 + $0xc8] sm:$0xff]
        %v570 = vld [vmem:[%s1 + $0xd0] sm:$0xff]
        %v571 = vld [vmem:[%s1 + $0xd8] sm:$0xff]
        %v572 = vld [vmem:[%s1 + $0xe0] sm:$0xff]
        %v573 = vld [vmem:[%s1 + $0xe8] sm:$0xff]
        %v574 = vld [vmem:[%s1 + $0xf0] sm:$0xff]
        %v575 = vld [vmem:[%s1 + $0xf8] sm:$0xff]
        %v576 = vld [vmem:[%s1 + $0x100] sm:$0xff]
        %v577 = vld [vmem:[%s1 + $0x108] sm:$0xff]
        %v578 = vld [vmem:[%s1 + $0x110] sm:$0xff]
        %v579 = vld [vmem:[%s1 + $0x118] sm:$0xff]
        %v580 = vld [vmem:[%s1 + $0x120] sm:$0xff]
        %v581 = vld [vmem:[%s1 + $0x128] sm:$0xff]
        %v582 = vld [vmem:[%s1 + $0x130] sm:$0xff]
        %v583 = vld [vmem:[%s1 + $0x138] sm:$0xff]
        %v584 = vld [vmem:[%s1 + $0x140] sm:$0xff]
        %v585 = vld [vmem:[%s1 + $0x148] sm:$0xff]
        %v586 = vld [vmem:[%s1 + $0x150] sm:$0xff]
        %v587 = vld [vmem:[%s1 + $0x158] sm:$0xff]
        %v588 = vld [vmem:[%s1 + $0x160] sm:$0xff]
        %v589 = vld [vmem:[%s1 + $0x168] sm:$0xff]
        %v590 = vld [vmem:[%s1 + $0x170] sm:$0xff]
        %v591 = vld [vmem:[%s1 + $0x178] sm:$0xff]
        %v592 = vld [vmem:[%s1 + $0x180] sm:$0xff]
        %v593 = vld [vmem:[%s1 + $0x188] sm:$0xff]
        %594 = vst.msk [vmem:[#allocation2] sm:$0xff] %vm488, 0.0
        %595 = vst.msk [vmem:[#allocation2 + $0x8] sm:$0xff] %vm488, 0.0
        %vm596 = vcmask 20480
        %597 = vst.msk [vmem:[#allocation2 + $0x10] sm:$0x1f] %vm596, 0.0
        %598 = vst.msk [vmem:[#allocation2 + $0x1a5] sm:$0xff] %vm488, 0.0
        %599 = vst.msk [vmem:[#allocation2 + $0x1ad] sm:$0xff] %vm488, 0.0
        %600 = vst.msk [vmem:[#allocation2 + $0x1b5] sm:$0x1f] %vm596, 0.0
        %v601 = vld [vmem:[#allocation2] sm:$0xff]
        %v602 = vld [vmem:[#allocation2 + $0x8] sm:$0xff]
        %v603 = vld [vmem:[#allocation2 + $0x10] sm:$0xff]
        %v604 = vld [vmem:[#allocation2 + $0x18] sm:$0xff]
        %v605 = vld [vmem:[#allocation2 + $0x20] sm:$0xff]
        %v606 = vld [vmem:[#allocation2 + $0x28] sm:$0xff]
        %v607 = vld [vmem:[#allocation2 + $0x30] sm:$0xff]
        %v608 = vld [vmem:[#allocation2 + $0x38] sm:$0xff]
        %v609 = vld [vmem:[#allocation2 + $0x40] sm:$0xff]
        %v610 = vld [vmem:[#allocation2 + $0x48] sm:$0xff]
        %v611 = vld [vmem:[#allocation2 + $0x50] sm:$0xff]
        %v612 = vld [vmem:[#allocation2 + $0x58] sm:$0xff]
        %v613 = vld [vmem:[#allocation2 + $0x60] sm:$0xff]
        %v614 = vld [vmem:[#allocation2 + $0x68] sm:$0xff]
        %v615 = vld [vmem:[#allocation2 + $0x70] sm:$0xff]
        %v616 = vld [vmem:[#allocation2 + $0x78] sm:$0xff]
        %v617 = vld [vmem:[#allocation2 + $0x80] sm:$0xff]
        %v618 = vld [vmem:[#allocation2 + $0x88] sm:$0xff]
        %v619 = vld [vmem:[#allocation2 + $0x90] sm:$0xff]
        %v620 = vld [vmem:[#allocation2 + $0x98] sm:$0xff]
        %v621 = vld [vmem:[#allocation2 + $0xa0] sm:$0xff]
        %v622 = vld [vmem:[#allocation2 + $0xa8] sm:$0xff]
        %v623 = vld [vmem:[#allocation2 + $0xb0] sm:$0xff]
        %v624 = vld [vmem:[#allocation2 + $0xb8] sm:$0xff]
        %v625 = vld [vmem:[#allocation2 + $0xc0] sm:$0xff]
        %v626 = vld [vmem:[#allocation2 + $0xc8] sm:$0xff]
        %v627 = vld [vmem:[#allocation2 + $0xd0] sm:$0xff]
        %v628 = vld [vmem:[#allocation2 + $0xd8] sm:$0xff]
        %v629 = vld [vmem:[#allocation2 + $0xe0] sm:$0xff]
        %v630 = vld [vmem:[#allocation2 + $0xe8] sm:$0xff]
        %v631 = vld [vmem:[#allocation2 + $0xf0] sm:$0xff]
        %v632 = vld [vmem:[#allocation2 + $0xf8] sm:$0xff]
        %v633 = vld [vmem:[#allocation2 + $0x100] sm:$0xff]
        %v634 = vld [vmem:[#allocation2 + $0x108] sm:$0xff]
        %v635 = vld [vmem:[#allocation2 + $0x110] sm:$0xff]
        %v636 = vld [vmem:[#allocation2 + $0x118] sm:$0xff]
        %v637 = vld [vmem:[#allocation2 + $0x120] sm:$0xff]
        %v638 = vld [vmem:[#allocation2 + $0x128] sm:$0xff]
        %v639 = vld [vmem:[#allocation2 + $0x130] sm:$0xff]
        %v640 = vld [vmem:[#allocation2 + $0x138] sm:$0xff]
        %v641 = vld [vmem:[#allocation2 + $0x140] sm:$0xff]
        %v642 = vld [vmem:[#allocation2 + $0x148] sm:$0xff]
        %v643 = vld [vmem:[#allocation2 + $0x150] sm:$0xff]
        %v644 = vld [vmem:[#allocation2 + $0x158] sm:$0xff]
        %v645 = vld [vmem:[#allocation2 + $0x160] sm:$0xff]
        %v646 = vld [vmem:[#allocation2 + $0x168] sm:$0xff]
        %v647 = vld [vmem:[#allocation2 + $0x170] sm:$0xff]
        %v648 = vld [vmem:[#allocation2 + $0x178] sm:$0xff]
        %v649 = vld [vmem:[#allocation2 + $0x180] sm:$0xff]
        %v650 = vld [vmem:[#allocation2 + $0x188] sm:$0xff]
        %652 = vset.pattern.permute.xlu0 0
        %653 = vperm.xlu0 %652, %v544
        %v654 = vpop.permute.xlu0 %653
        %657 = vset.pattern.permute.xlu0 0
        %658 = vperm.xlu0 %657, %v545
        %v659 = vpop.permute.xlu0 %658
        %662 = vset.pattern.permute.xlu0 0
        %663 = vperm.xlu0 %662, %v546
        %v664 = vpop.permute.xlu0 %663
        %667 = vset.pattern.permute.xlu0 0
        %668 = vperm.xlu0 %667, %v547
        %v669 = vpop.permute.xlu0 %668
        %672 = vset.pattern.permute.xlu0 0
        %673 = vperm.xlu0 %672, %v548
        %v674 = vpop.permute.xlu0 %673
        %677 = vset.pattern.permute.xlu0 0
        %678 = vperm.xlu0 %677, %v549
        %v679 = vpop.permute.xlu0 %678
        %682 = vset.pattern.permute.xlu0 0
        %683 = vperm.xlu0 %682, %v550
        %v684 = vpop.permute.xlu0 %683
        %687 = vset.pattern.permute.xlu0 0
        %688 = vperm.xlu0 %687, %v551
        %v689 = vpop.permute.xlu0 %688
        %692 = vset.pattern.permute.xlu0 0
        %693 = vperm.xlu0 %692, %v552
        %v694 = vpop.permute.xlu0 %693
        %697 = vset.pattern.permute.xlu0 0
        %698 = vperm.xlu0 %697, %v553
        %v699 = vpop.permute.xlu0 %698
        %702 = vset.pattern.permute.xlu0 0
        %703 = vperm.xlu0 %702, %v554
        %v704 = vpop.permute.xlu0 %703
        %707 = vset.pattern.permute.xlu0 0
        %708 = vperm.xlu0 %707, %v555
        %v709 = vpop.permute.xlu0 %708
        %712 = vset.pattern.permute.xlu0 0
        %713 = vperm.xlu0 %712, %v556
        %v714 = vpop.permute.xlu0 %713
        %717 = vset.pattern.permute.xlu0 0
        %718 = vperm.xlu0 %717, %v557
        %v719 = vpop.permute.xlu0 %718
        %722 = vset.pattern.permute.xlu0 0
        %723 = vperm.xlu0 %722, %v558
        %v724 = vpop.permute.xlu0 %723
        %727 = vset.pattern.permute.xlu0 0
        %728 = vperm.xlu0 %727, %v559
        %v729 = vpop.permute.xlu0 %728
        %732 = vset.pattern.permute.xlu0 0
        %733 = vperm.xlu0 %732, %v560
        %v734 = vpop.permute.xlu0 %733
        %737 = vset.pattern.permute.xlu0 0
        %738 = vperm.xlu0 %737, %v561
        %v739 = vpop.permute.xlu0 %738
        %742 = vset.pattern.permute.xlu0 0
        %743 = vperm.xlu0 %742, %v562
        %v744 = vpop.permute.xlu0 %743
        %747 = vset.pattern.permute.xlu0 0
        %748 = vperm.xlu0 %747, %v563
        %v749 = vpop.permute.xlu0 %748
        %752 = vset.pattern.permute.xlu0 0
        %753 = vperm.xlu0 %752, %v564
        %v754 = vpop.permute.xlu0 %753
        %757 = vset.pattern.permute.xlu0 0
        %758 = vperm.xlu0 %757, %v565
        %v759 = vpop.permute.xlu0 %758
        %762 = vset.pattern.permute.xlu0 0
        %763 = vperm.xlu0 %762, %v566
        %v764 = vpop.permute.xlu0 %763
        %767 = vset.pattern.permute.xlu0 0
        %768 = vperm.xlu0 %767, %v567
        %v769 = vpop.permute.xlu0 %768
        %772 = vset.pattern.permute.xlu0 0
        %773 = vperm.xlu0 %772, %v568
        %v774 = vpop.permute.xlu0 %773
        %777 = vset.pattern.permute.xlu0 0
        %778 = vperm.xlu0 %777, %v569
        %v779 = vpop.permute.xlu0 %778
        %782 = vset.pattern.permute.xlu0 0
        %783 = vperm.xlu0 %782, %v570
        %v784 = vpop.permute.xlu0 %783
        %787 = vset.pattern.permute.xlu0 0
        %788 = vperm.xlu0 %787, %v571
        %v789 = vpop.permute.xlu0 %788
        %792 = vset.pattern.permute.xlu0 0
        %793 = vperm.xlu0 %792, %v572
        %v794 = vpop.permute.xlu0 %793
        %797 = vset.pattern.permute.xlu0 0
        %798 = vperm.xlu0 %797, %v573
        %v799 = vpop.permute.xlu0 %798
        %802 = vset.pattern.permute.xlu0 0
        %803 = vperm.xlu0 %802, %v574
        %v804 = vpop.permute.xlu0 %803
        %807 = vset.pattern.permute.xlu0 0
        %808 = vperm.xlu0 %807, %v575
        %v809 = vpop.permute.xlu0 %808
        %812 = vset.pattern.permute.xlu0 0
        %813 = vperm.xlu0 %812, %v576
        %v814 = vpop.permute.xlu0 %813
        %817 = vset.pattern.permute.xlu0 0
        %818 = vperm.xlu0 %817, %v577
        %v819 = vpop.permute.xlu0 %818
        %822 = vset.pattern.permute.xlu0 0
        %823 = vperm.xlu0 %822, %v578
        %v824 = vpop.permute.xlu0 %823
        %827 = vset.pattern.permute.xlu0 0
        %828 = vperm.xlu0 %827, %v579
        %v829 = vpop.permute.xlu0 %828
        %832 = vset.pattern.permute.xlu0 0
        %833 = vperm.xlu0 %832, %v580
        %v834 = vpop.permute.xlu0 %833
        %837 = vset.pattern.permute.xlu0 0
        %838 = vperm.xlu0 %837, %v581
        %v839 = vpop.permute.xlu0 %838
        %842 = vset.pattern.permute.xlu0 0
        %843 = vperm.xlu0 %842, %v582
        %v844 = vpop.permute.xlu0 %843
        %847 = vset.pattern.permute.xlu0 0
        %848 = vperm.xlu0 %847, %v583
        %v849 = vpop.permute.xlu0 %848
        %852 = vset.pattern.permute.xlu0 0
        %853 = vperm.xlu0 %852, %v584
        %v854 = vpop.permute.xlu0 %853
        %857 = vset.pattern.permute.xlu0 0
        %858 = vperm.xlu0 %857, %v585
        %v859 = vpop.permute.xlu0 %858
        %862 = vset.pattern.permute.xlu0 0
        %863 = vperm.xlu0 %862, %v586
        %v864 = vpop.permute.xlu0 %863
        %867 = vset.pattern.permute.xlu0 0
        %868 = vperm.xlu0 %867, %v587
        %v869 = vpop.permute.xlu0 %868
        %872 = vset.pattern.permute.xlu0 0
        %873 = vperm.xlu0 %872, %v588
        %v874 = vpop.permute.xlu0 %873
        %877 = vset.pattern.permute.xlu0 0
        %878 = vperm.xlu0 %877, %v589
        %v879 = vpop.permute.xlu0 %878
        %882 = vset.pattern.permute.xlu0 0
        %883 = vperm.xlu0 %882, %v590
        %v884 = vpop.permute.xlu0 %883
        %887 = vset.pattern.permute.xlu0 0
        %888 = vperm.xlu0 %887, %v591
        %v889 = vpop.permute.xlu0 %888
        %892 = vset.pattern.permute.xlu0 0
        %893 = vperm.xlu0 %892, %v592
        %v894 = vpop.permute.xlu0 %893
        %897 = vset.pattern.permute.xlu0 0
        %898 = vperm.xlu0 %897, %v593
        %v899 = vpop.permute.xlu0 %898
        %v901 = vmul.f32 %v601, %v654
        %v902 = vmul.f32 %v602, %v659
        %v903 = vmul.f32 %v603, %v664
        %v904 = vmul.f32 %v604, %v669
        %v905 = vmul.f32 %v605, %v674
        %v906 = vmul.f32 %v606, %v679
        %v907 = vmul.f32 %v607, %v684
        %v908 = vmul.f32 %v608, %v689
        %v909 = vmul.f32 %v609, %v694
        %v910 = vmul.f32 %v610, %v699
        %v911 = vmul.f32 %v611, %v704
        %v912 = vmul.f32 %v612, %v709
        %v913 = vmul.f32 %v613, %v714
        %v914 = vmul.f32 %v614, %v719
        %v915 = vmul.f32 %v615, %v724
        %v916 = vmul.f32 %v616, %v729
        %v917 = vmul.f32 %v617, %v734
        %v918 = vmul.f32 %v618, %v739
        %v919 = vmul.f32 %v619, %v744
        %v920 = vmul.f32 %v620, %v749
        %v921 = vmul.f32 %v621, %v754
        %v922 = vmul.f32 %v622, %v759
        %v923 = vmul.f32 %v623, %v764
        %v924 = vmul.f32 %v624, %v769
        %v925 = vmul.f32 %v625, %v774
        %v926 = vmul.f32 %v626, %v779
        %v927 = vmul.f32 %v627, %v784
        %v928 = vmul.f32 %v628, %v789
        %v929 = vmul.f32 %v629, %v794
        %v930 = vmul.f32 %v630, %v799
        %v931 = vmul.f32 %v631, %v804
        %v932 = vmul.f32 %v632, %v809
        %v933 = vmul.f32 %v633, %v814
        %v934 = vmul.f32 %v634, %v819
        %v935 = vmul.f32 %v635, %v824
        %v936 = vmul.f32 %v636, %v829
        %v937 = vmul.f32 %v637, %v834
        %v938 = vmul.f32 %v638, %v839
        %v939 = vmul.f32 %v639, %v844
        %v940 = vmul.f32 %v640, %v849
        %v941 = vmul.f32 %v641, %v854
        %v942 = vmul.f32 %v642, %v859
        %v943 = vmul.f32 %v643, %v864
        %v944 = vmul.f32 %v644, %v869
        %v945 = vmul.f32 %v645, %v874
        %v946 = vmul.f32 %v646, %v879
        %v947 = vmul.f32 %v647, %v884
        %v948 = vmul.f32 %v648, %v889
        %v949 = vmul.f32 %v649, %v894
        %v950 = vmul.f32 %v650, %v899
        %v951 = vld [vmem:[#allocation2 + $0x1] sm:$0xff]
        %v952 = vld [vmem:[#allocation2 + $0x9] sm:$0xff]
        %v953 = vld [vmem:[#allocation2 + $0x11] sm:$0xff]
        %v954 = vld [vmem:[#allocation2 + $0x19] sm:$0xff]
        %v955 = vld [vmem:[#allocation2 + $0x21] sm:$0xff]
        %v956 = vld [vmem:[#allocation2 + $0x29] sm:$0xff]
        %v957 = vld [vmem:[#allocation2 + $0x31] sm:$0xff]
        %v958 = vld [vmem:[#allocation2 + $0x39] sm:$0xff]
        %v959 = vld [vmem:[#allocation2 + $0x41] sm:$0xff]
        %v960 = vld [vmem:[#allocation2 + $0x49] sm:$0xff]
        %v961 = vld [vmem:[#allocation2 + $0x51] sm:$0xff]
        %v962 = vld [vmem:[#allocation2 + $0x59] sm:$0xff]
        %v963 = vld [vmem:[#allocation2 + $0x61] sm:$0xff]
        %v964 = vld [vmem:[#allocation2 + $0x69] sm:$0xff]
        %v965 = vld [vmem:[#allocation2 + $0x71] sm:$0xff]
        %v966 = vld [vmem:[#allocation2 + $0x79] sm:$0xff]
        %v967 = vld [vmem:[#allocation2 + $0x81] sm:$0xff]
        %v968 = vld [vmem:[#allocation2 + $0x89] sm:$0xff]
        %v969 = vld [vmem:[#allocation2 + $0x91] sm:$0xff]
        %v970 = vld [vmem:[#allocation2 + $0x99] sm:$0xff]
        %v971 = vld [vmem:[#allocation2 + $0xa1] sm:$0xff]
        %v972 = vld [vmem:[#allocation2 + $0xa9] sm:$0xff]
        %v973 = vld [vmem:[#allocation2 + $0xb1] sm:$0xff]
        %v974 = vld [vmem:[#allocation2 + $0xb9] sm:$0xff]
        %v975 = vld [vmem:[#allocation2 + $0xc1] sm:$0xff]
        %v976 = vld [vmem:[#allocation2 + $0xc9] sm:$0xff]
        %v977 = vld [vmem:[#allocation2 + $0xd1] sm:$0xff]
        %v978 = vld [vmem:[#allocation2 + $0xd9] sm:$0xff]
        %v979 = vld [vmem:[#allocation2 + $0xe1] sm:$0xff]
        %v980 = vld [vmem:[#allocation2 + $0xe9] sm:$0xff]
        %v981 = vld [vmem:[#allocation2 + $0xf1] sm:$0xff]
        %v982 = vld [vmem:[#allocation2 + $0xf9] sm:$0xff]
        %v983 = vld [vmem:[#allocation2 + $0x101] sm:$0xff]
        %v984 = vld [vmem:[#allocation2 + $0x109] sm:$0xff]
        %v985 = vld [vmem:[#allocation2 + $0x111] sm:$0xff]
        %v986 = vld [vmem:[#allocation2 + $0x119] sm:$0xff]
        %v987 = vld [vmem:[#allocation2 + $0x121] sm:$0xff]
        %v988 = vld [vmem:[#allocation2 + $0x129] sm:$0xff]
        %v989 = vld [vmem:[#allocation2 + $0x131] sm:$0xff]
        %v990 = vld [vmem:[#allocation2 + $0x139] sm:$0xff]
        %v991 = vld [vmem:[#allocation2 + $0x141] sm:$0xff]
        %v992 = vld [vmem:[#allocation2 + $0x149] sm:$0xff]
        %v993 = vld [vmem:[#allocation2 + $0x151] sm:$0xff]
        %v994 = vld [vmem:[#allocation2 + $0x159] sm:$0xff]
        %v995 = vld [vmem:[#allocation2 + $0x161] sm:$0xff]
        %v996 = vld [vmem:[#allocation2 + $0x169] sm:$0xff]
        %v997 = vld [vmem:[#allocation2 + $0x171] sm:$0xff]
        %v998 = vld [vmem:[#allocation2 + $0x179] sm:$0xff]
        %v999 = vld [vmem:[#allocation2 + $0x181] sm:$0xff]
        %v1000 = vld [vmem:[#allocation2 + $0x189] sm:$0xff]
        %v1001 = vld [vmem:[#allocation2 + $0x2] sm:$0xff]
        %v1002 = vld [vmem:[#allocation2 + $0xa] sm:$0xff]
        %v1003 = vld [vmem:[#allocation2 + $0x12] sm:$0xff]
        %v1004 = vld [vmem:[#allocation2 + $0x1a] sm:$0xff]
        %v1005 = vld [vmem:[#allocation2 + $0x22] sm:$0xff]
        %v1006 = vld [vmem:[#allocation2 + $0x2a] sm:$0xff]
        %v1007 = vld [vmem:[#allocation2 + $0x32] sm:$0xff]
        %v1008 = vld [vmem:[#allocation2 + $0x3a] sm:$0xff]
        %v1009 = vld [vmem:[#allocation2 + $0x42] sm:$0xff]
        %v1010 = vld [vmem:[#allocation2 + $0x4a] sm:$0xff]
        %v1011 = vld [vmem:[#allocation2 + $0x52] sm:$0xff]
        %v1012 = vld [vmem:[#allocation2 + $0x5a] sm:$0xff]
        %v1013 = vld [vmem:[#allocation2 + $0x62] sm:$0xff]
        %v1014 = vld [vmem:[#allocation2 + $0x6a] sm:$0xff]
        %v1015 = vld [vmem:[#allocation2 + $0x72] sm:$0xff]
        %v1016 = vld [vmem:[#allocation2 + $0x7a] sm:$0xff]
        %v1017 = vld [vmem:[#allocation2 + $0x82] sm:$0xff]
        %v1018 = vld [vmem:[#allocation2 + $0x8a] sm:$0xff]
        %v1019 = vld [vmem:[#allocation2 + $0x92] sm:$0xff]
        %v1020 = vld [vmem:[#allocation2 + $0x9a] sm:$0xff]
        %v1021 = vld [vmem:[#allocation2 + $0xa2] sm:$0xff]
        %v1022 = vld [vmem:[#allocation2 + $0xaa] sm:$0xff]
        %v1023 = vld [vmem:[#allocation2 + $0xb2] sm:$0xff]
        %v1024 = vld [vmem:[#allocation2 + $0xba] sm:$0xff]
        %v1025 = vld [vmem:[#allocation2 + $0xc2] sm:$0xff]
        %v1026 = vld [vmem:[#allocation2 + $0xca] sm:$0xff]
        %v1027 = vld [vmem:[#allocation2 + $0xd2] sm:$0xff]
        %v1028 = vld [vmem:[#allocation2 + $0xda] sm:$0xff]
        %v1029 = vld [vmem:[#allocation2 + $0xe2] sm:$0xff]
        %v1030 = vld [vmem:[#allocation2 + $0xea] sm:$0xff]
        %v1031 = vld [vmem:[#allocation2 + $0xf2] sm:$0xff]
        %v1032 = vld [vmem:[#allocation2 + $0xfa] sm:$0xff]
        %v1033 = vld [vmem:[#allocation2 + $0x102] sm:$0xff]
        %v1034 = vld [vmem:[#allocation2 + $0x10a] sm:$0xff]
        %v1035 = vld [vmem:[#allocation2 + $0x112] sm:$0xff]
        %v1036 = vld [vmem:[#allocation2 + $0x11a] sm:$0xff]
        %v1037 = vld [vmem:[#allocation2 + $0x122] sm:$0xff]
        %v1038 = vld [vmem:[#allocation2 + $0x12a] sm:$0xff]
        %v1039 = vld [vmem:[#allocation2 + $0x132] sm:$0xff]
        %v1040 = vld [vmem:[#allocation2 + $0x13a] sm:$0xff]
        %v1041 = vld [vmem:[#allocation2 + $0x142] sm:$0xff]
        %v1042 = vld [vmem:[#allocation2 + $0x14a] sm:$0xff]
        %v1043 = vld [vmem:[#allocation2 + $0x152] sm:$0xff]
        %v1044 = vld [vmem:[#allocation2 + $0x15a] sm:$0xff]
        %v1045 = vld [vmem:[#allocation2 + $0x162] sm:$0xff]
        %v1046 = vld [vmem:[#allocation2 + $0x16a] sm:$0xff]
        %v1047 = vld [vmem:[#allocation2 + $0x172] sm:$0xff]
        %v1048 = vld [vmem:[#allocation2 + $0x17a] sm:$0xff]
        %v1049 = vld [vmem:[#allocation2 + $0x182] sm:$0xff]
        %v1050 = vld [vmem:[#allocation2 + $0x18a] sm:$0xff]
        %1051 = vset.pattern.permute.xlu0 1
        %1052 = vperm.xlu0 %1051, %v544
        %v1053 = vpop.permute.xlu0 %1052
        %1055 = vset.pattern.permute.xlu0 1
        %1056 = vperm.xlu0 %1055, %v545
        %v1057 = vpop.permute.xlu0 %1056
        %1059 = vset.pattern.permute.xlu0 1
        %1060 = vperm.xlu0 %1059, %v546
        %v1061 = vpop.permute.xlu0 %1060
        %1063 = vset.pattern.permute.xlu0 1
        %1064 = vperm.xlu0 %1063, %v547
        %v1065 = vpop.permute.xlu0 %1064
        %1067 = vset.pattern.permute.xlu0 1
        %1068 = vperm.xlu0 %1067, %v548
        %v1069 = vpop.permute.xlu0 %1068
        %1071 = vset.pattern.permute.xlu0 1
        %1072 = vperm.xlu0 %1071, %v549
        %v1073 = vpop.permute.xlu0 %1072
        %1075 = vset.pattern.permute.xlu0 1
        %1076 = vperm.xlu0 %1075, %v550
        %v1077 = vpop.permute.xlu0 %1076
        %1079 = vset.pattern.permute.xlu0 1
        %1080 = vperm.xlu0 %1079, %v551
        %v1081 = vpop.permute.xlu0 %1080
        %1083 = vset.pattern.permute.xlu0 1
        %1084 = vperm.xlu0 %1083, %v552
        %v1085 = vpop.permute.xlu0 %1084
        %1087 = vset.pattern.permute.xlu0 1
        %1088 = vperm.xlu0 %1087, %v553
        %v1089 = vpop.permute.xlu0 %1088
        %1091 = vset.pattern.permute.xlu0 1
        %1092 = vperm.xlu0 %1091, %v554
        %v1093 = vpop.permute.xlu0 %1092
        %1095 = vset.pattern.permute.xlu0 1
        %1096 = vperm.xlu0 %1095, %v555
        %v1097 = vpop.permute.xlu0 %1096
        %1099 = vset.pattern.permute.xlu0 1
        %1100 = vperm.xlu0 %1099, %v556
        %v1101 = vpop.permute.xlu0 %1100
        %1103 = vset.pattern.permute.xlu0 1
        %1104 = vperm.xlu0 %1103, %v557
        %v1105 = vpop.permute.xlu0 %1104
        %1107 = vset.pattern.permute.xlu0 1
        %1108 = vperm.xlu0 %1107, %v558
        %v1109 = vpop.permute.xlu0 %1108
        %1111 = vset.pattern.permute.xlu0 1
        %1112 = vperm.xlu0 %1111, %v559
        %v1113 = vpop.permute.xlu0 %1112
        %1115 = vset.pattern.permute.xlu0 1
        %1116 = vperm.xlu0 %1115, %v560
        %v1117 = vpop.permute.xlu0 %1116
        %1119 = vset.pattern.permute.xlu0 1
        %1120 = vperm.xlu0 %1119, %v561
        %v1121 = vpop.permute.xlu0 %1120
        %1123 = vset.pattern.permute.xlu0 1
        %1124 = vperm.xlu0 %1123, %v562
        %v1125 = vpop.permute.xlu0 %1124
        %1127 = vset.pattern.permute.xlu0 1
        %1128 = vperm.xlu0 %1127, %v563
        %v1129 = vpop.permute.xlu0 %1128
        %1131 = vset.pattern.permute.xlu0 1
        %1132 = vperm.xlu0 %1131, %v564
        %v1133 = vpop.permute.xlu0 %1132
        %1135 = vset.pattern.permute.xlu0 1
        %1136 = vperm.xlu0 %1135, %v565
        %v1137 = vpop.permute.xlu0 %1136
        %1139 = vset.pattern.permute.xlu0 1
        %1140 = vperm.xlu0 %1139, %v566
        %v1141 = vpop.permute.xlu0 %1140
        %1143 = vset.pattern.permute.xlu0 1
        %1144 = vperm.xlu0 %1143, %v567
        %v1145 = vpop.permute.xlu0 %1144
        %1147 = vset.pattern.permute.xlu0 1
        %1148 = vperm.xlu0 %1147, %v568
        %v1149 = vpop.permute.xlu0 %1148
        %1151 = vset.pattern.permute.xlu0 1
        %1152 = vperm.xlu0 %1151, %v569
        %v1153 = vpop.permute.xlu0 %1152
        %1155 = vset.pattern.permute.xlu0 1
        %1156 = vperm.xlu0 %1155, %v570
        %v1157 = vpop.permute.xlu0 %1156
        %1159 = vset.pattern.permute.xlu0 1
        %1160 = vperm.xlu0 %1159, %v571
        %v1161 = vpop.permute.xlu0 %1160
        %1163 = vset.pattern.permute.xlu0 1
        %1164 = vperm.xlu0 %1163, %v572
        %v1165 = vpop.permute.xlu0 %1164
        %1167 = vset.pattern.permute.xlu0 1
        %1168 = vperm.xlu0 %1167, %v573
        %v1169 = vpop.permute.xlu0 %1168
        %1171 = vset.pattern.permute.xlu0 1
        %1172 = vperm.xlu0 %1171, %v574
        %v1173 = vpop.permute.xlu0 %1172
        %1175 = vset.pattern.permute.xlu0 1
        %1176 = vperm.xlu0 %1175, %v575
        %v1177 = vpop.permute.xlu0 %1176
        %1179 = vset.pattern.permute.xlu0 1
        %1180 = vperm.xlu0 %1179, %v576
        %v1181 = vpop.permute.xlu0 %1180
        %1183 = vset.pattern.permute.xlu0 1
        %1184 = vperm.xlu0 %1183, %v577
        %v1185 = vpop.permute.xlu0 %1184
        %1187 = vset.pattern.permute.xlu0 1
        %1188 = vperm.xlu0 %1187, %v578
        %v1189 = vpop.permute.xlu0 %1188
        %1191 = vset.pattern.permute.xlu0 1
        %1192 = vperm.xlu0 %1191, %v579
        %v1193 = vpop.permute.xlu0 %1192
        %1195 = vset.pattern.permute.xlu0 1
        %1196 = vperm.xlu0 %1195, %v580
        %v1197 = vpop.permute.xlu0 %1196
        %1199 = vset.pattern.permute.xlu0 1
        %1200 = vperm.xlu0 %1199, %v581
        %v1201 = vpop.permute.xlu0 %1200
        %1203 = vset.pattern.permute.xlu0 1
        %1204 = vperm.xlu0 %1203, %v582
        %v1205 = vpop.permute.xlu0 %1204
        %1207 = vset.pattern.permute.xlu0 1
        %1208 = vperm.xlu0 %1207, %v583
        %v1209 = vpop.permute.xlu0 %1208
        %1211 = vset.pattern.permute.xlu0 1
        %1212 = vperm.xlu0 %1211, %v584
        %v1213 = vpop.permute.xlu0 %1212
        %1215 = vset.pattern.permute.xlu0 1
        %1216 = vperm.xlu0 %1215, %v585
        %v1217 = vpop.permute.xlu0 %1216
        %1219 = vset.pattern.permute.xlu0 1
        %1220 = vperm.xlu0 %1219, %v586
        %v1221 = vpop.permute.xlu0 %1220
        %1223 = vset.pattern.permute.xlu0 1
        %1224 = vperm.xlu0 %1223, %v587
        %v1225 = vpop.permute.xlu0 %1224
        %1227 = vset.pattern.permute.xlu0 1
        %1228 = vperm.xlu0 %1227, %v588
        %v1229 = vpop.permute.xlu0 %1228
        %1231 = vset.pattern.permute.xlu0 1
        %1232 = vperm.xlu0 %1231, %v589
        %v1233 = vpop.permute.xlu0 %1232
        %1235 = vset.pattern.permute.xlu0 1
        %1236 = vperm.xlu0 %1235, %v590
        %v1237 = vpop.permute.xlu0 %1236
        %1239 = vset.pattern.permute.xlu0 1
        %1240 = vperm.xlu0 %1239, %v591
        %v1241 = vpop.permute.xlu0 %1240
        %1243 = vset.pattern.permute.xlu0 1
        %1244 = vperm.xlu0 %1243, %v592
        %v1245 = vpop.permute.xlu0 %1244
        %1247 = vset.pattern.permute.xlu0 1
        %1248 = vperm.xlu0 %1247, %v593
        %v1249 = vpop.permute.xlu0 %1248
        %v1251 = vmul.f32 %v1001, %v1053
        %v1252 = vmul.f32 %v1002, %v1057
        %v1253 = vmul.f32 %v1003, %v1061
        %v1254 = vmul.f32 %v1004, %v1065
        %v1255 = vmul.f32 %v1005, %v1069
        %v1256 = vmul.f32 %v1006, %v1073
        %v1257 = vmul.f32 %v1007, %v1077
        %v1258 = vmul.f32 %v1008, %v1081
        %v1259 = vmul.f32 %v1009, %v1085
        %v1260 = vmul.f32 %v1010, %v1089
        %v1261 = vmul.f32 %v1011, %v1093
        %v1262 = vmul.f32 %v1012, %v1097
        %v1263 = vmul.f32 %v1013, %v1101
        %v1264 = vmul.f32 %v1014, %v1105
        %v1265 = vmul.f32 %v1015, %v1109
        %v1266 = vmul.f32 %v1016, %v1113
        %v1267 = vmul.f32 %v1017, %v1117
        %v1268 = vmul.f32 %v1018, %v1121
        %v1269 = vmul.f32 %v1019, %v1125
        %v1270 = vmul.f32 %v1020, %v1129
        %v1271 = vmul.f32 %v1021, %v1133
        %v1272 = vmul.f32 %v1022, %v1137
        %v1273 = vmul.f32 %v1023, %v1141
        %v1274 = vmul.f32 %v1024, %v1145
        %v1275 = vmul.f32 %v1025, %v1149
        %v1276 = vmul.f32 %v1026, %v1153
        %v1277 = vmul.f32 %v1027, %v1157
        %v1278 = vmul.f32 %v1028, %v1161
        %v1279 = vmul.f32 %v1029, %v1165
        %v1280 = vmul.f32 %v1030, %v1169
        %v1281 = vmul.f32 %v1031, %v1173
        %v1282 = vmul.f32 %v1032, %v1177
        %v1283 = vmul.f32 %v1033, %v1181
        %v1284 = vmul.f32 %v1034, %v1185
        %v1285 = vmul.f32 %v1035, %v1189
        %v1286 = vmul.f32 %v1036, %v1193
        %v1287 = vmul.f32 %v1037, %v1197
        %v1288 = vmul.f32 %v1038, %v1201
        %v1289 = vmul.f32 %v1039, %v1205
        %v1290 = vmul.f32 %v1040, %v1209
        %v1291 = vmul.f32 %v1041, %v1213
        %v1292 = vmul.f32 %v1042, %v1217
        %v1293 = vmul.f32 %v1043, %v1221
        %v1294 = vmul.f32 %v1044, %v1225
        %v1295 = vmul.f32 %v1045, %v1229
        %v1296 = vmul.f32 %v1046, %v1233
        %v1297 = vmul.f32 %v1047, %v1237
        %v1298 = vmul.f32 %v1048, %v1241
        %v1299 = vmul.f32 %v1049, %v1245
        %v1300 = vmul.f32 %v1050, %v1249
        %v1301 = vld [vmem:[#allocation2 + $0x14] sm:$0xff]
        %v1302 = vld [vmem:[#allocation2 + $0x1c] sm:$0xff]
        %v1303 = vld [vmem:[#allocation2 + $0x24] sm:$0xff]
        %v1304 = vld [vmem:[#allocation2 + $0x2c] sm:$0xff]
        %v1305 = vld [vmem:[#allocation2 + $0x34] sm:$0xff]
        %v1306 = vld [vmem:[#allocation2 + $0x3c] sm:$0xff]
        %v1307 = vld [vmem:[#allocation2 + $0x44] sm:$0xff]
        %v1308 = vld [vmem:[#allocation2 + $0x4c] sm:$0xff]
        %v1309 = vld [vmem:[#allocation2 + $0x54] sm:$0xff]
        %v1310 = vld [vmem:[#allocation2 + $0x5c] sm:$0xff]
        %v1311 = vld [vmem:[#allocation2 + $0x64] sm:$0xff]
        %v1312 = vld [vmem:[#allocation2 + $0x6c] sm:$0xff]
        %v1313 = vld [vmem:[#allocation2 + $0x74] sm:$0xff]
        %v1314 = vld [vmem:[#allocation2 + $0x7c] sm:$0xff]
        %v1315 = vld [vmem:[#allocation2 + $0x84] sm:$0xff]
        %v1316 = vld [vmem:[#allocation2 + $0x8c] sm:$0xff]
        %v1317 = vld [vmem:[#allocation2 + $0x94] sm:$0xff]
        %v1318 = vld [vmem:[#allocation2 + $0x9c] sm:$0xff]
        %v1319 = vld [vmem:[#allocation2 + $0xa4] sm:$0xff]
        %v1320 = vld [vmem:[#allocation2 + $0xac] sm:$0xff]
        %v1321 = vld [vmem:[#allocation2 + $0xb4] sm:$0xff]
        %v1322 = vld [vmem:[#allocation2 + $0xbc] sm:$0xff]
        %v1323 = vld [vmem:[#allocation2 + $0xc4] sm:$0xff]
        %v1324 = vld [vmem:[#allocation2 + $0xcc] sm:$0xff]
        %v1325 = vld [vmem:[#allocation2 + $0xd4] sm:$0xff]
        %v1326 = vld [vmem:[#allocation2 + $0xdc] sm:$0xff]
        %v1327 = vld [vmem:[#allocation2 + $0xe4] sm:$0xff]
        %v1328 = vld [vmem:[#allocation2 + $0xec] sm:$0xff]
        %v1329 = vld [vmem:[#allocation2 + $0xf4] sm:$0xff]
        %v1330 = vld [vmem:[#allocation2 + $0xfc] sm:$0xff]
        %v1331 = vld [vmem:[#allocation2 + $0x104] sm:$0xff]
        %v1332 = vld [vmem:[#allocation2 + $0x10c] sm:$0xff]
        %v1333 = vld [vmem:[#allocation2 + $0x114] sm:$0xff]
        %v1334 = vld [vmem:[#allocation2 + $0x11c] sm:$0xff]
        %v1335 = vld [vmem:[#allocation2 + $0x124] sm:$0xff]
        %v1336 = vld [vmem:[#allocation2 + $0x12c] sm:$0xff]
        %v1337 = vld [vmem:[#allocation2 + $0x134] sm:$0xff]
        %v1338 = vld [vmem:[#allocation2 + $0x13c] sm:$0xff]
        %v1339 = vld [vmem:[#allocation2 + $0x144] sm:$0xff]
        %v1340 = vld [vmem:[#allocation2 + $0x14c] sm:$0xff]
        %v1341 = vld [vmem:[#allocation2 + $0x154] sm:$0xff]
        %v1342 = vld [vmem:[#allocation2 + $0x15c] sm:$0xff]
        %v1343 = vld [vmem:[#allocation2 + $0x164] sm:$0xff]
        %v1344 = vld [vmem:[#allocation2 + $0x16c] sm:$0xff]
        %v1345 = vld [vmem:[#allocation2 + $0x174] sm:$0xff]
        %v1346 = vld [vmem:[#allocation2 + $0x17c] sm:$0xff]
        %v1347 = vld [vmem:[#allocation2 + $0x184] sm:$0xff]
        %v1348 = vld [vmem:[#allocation2 + $0x18c] sm:$0xff]
        %v1349 = vld [vmem:[#allocation2 + $0x194] sm:$0xff]
        %v1350 = vld [vmem:[#allocation2 + $0x19c] sm:$0xff]
        %v1351 = vmul.f32 %v1301, %v654
        %v1352 = vmul.f32 %v1302, %v659
        %v1353 = vmul.f32 %v1303, %v664
        %v1354 = vmul.f32 %v1304, %v669
        %v1355 = vmul.f32 %v1305, %v674
        %v1356 = vmul.f32 %v1306, %v679
        %v1357 = vmul.f32 %v1307, %v684
        %v1358 = vmul.f32 %v1308, %v689
        %v1359 = vmul.f32 %v1309, %v694
        %v1360 = vmul.f32 %v1310, %v699
        %v1361 = vmul.f32 %v1311, %v704
        %v1362 = vmul.f32 %v1312, %v709
        %v1363 = vmul.f32 %v1313, %v714
        %v1364 = vmul.f32 %v1314, %v719
        %v1365 = vmul.f32 %v1315, %v724
        %v1366 = vmul.f32 %v1316, %v729
        %v1367 = vmul.f32 %v1317, %v734
        %v1368 = vmul.f32 %v1318, %v739
        %v1369 = vmul.f32 %v1319, %v744
        %v1370 = vmul.f32 %v1320, %v749
        %v1371 = vmul.f32 %v1321, %v754
        %v1372 = vmul.f32 %v1322, %v759
        %v1373 = vmul.f32 %v1323, %v764
        %v1374 = vmul.f32 %v1324, %v769
        %v1375 = vmul.f32 %v1325, %v774
        %v1376 = vmul.f32 %v1326, %v779
        %v1377 = vmul.f32 %v1327, %v784
        %v1378 = vmul.f32 %v1328, %v789
        %v1379 = vmul.f32 %v1329, %v794
        %v1380 = vmul.f32 %v1330, %v799
        %v1381 = vmul.f32 %v1331, %v804
        %v1382 = vmul.f32 %v1332, %v809
        %v1383 = vmul.f32 %v1333, %v814
        %v1384 = vmul.f32 %v1334, %v819
        %v1385 = vmul.f32 %v1335, %v824
        %v1386 = vmul.f32 %v1336, %v829
        %v1387 = vmul.f32 %v1337, %v834
        %v1388 = vmul.f32 %v1338, %v839
        %v1389 = vmul.f32 %v1339, %v844
        %v1390 = vmul.f32 %v1340, %v849
        %v1391 = vmul.f32 %v1341, %v854
        %v1392 = vmul.f32 %v1342, %v859
        %v1393 = vmul.f32 %v1343, %v864
        %v1394 = vmul.f32 %v1344, %v869
        %v1395 = vmul.f32 %v1345, %v874
        %v1396 = vmul.f32 %v1346, %v879
        %v1397 = vmul.f32 %v1347, %v884
        %v1398 = vmul.f32 %v1348, %v889
        %v1399 = vmul.f32 %v1349, %v894
        %v1400 = vmul.f32 %v1350, %v899
        %v1401 = vld [vmem:[#allocation2 + $0x15] sm:$0xff]
        %v1402 = vld [vmem:[#allocation2 + $0x1d] sm:$0xff]
        %v1403 = vld [vmem:[#allocation2 + $0x25] sm:$0xff]
        %v1404 = vld [vmem:[#allocation2 + $0x2d] sm:$0xff]
        %v1405 = vld [vmem:[#allocation2 + $0x35] sm:$0xff]
        %v1406 = vld [vmem:[#allocation2 + $0x3d] sm:$0xff]
        %v1407 = vld [vmem:[#allocation2 + $0x45] sm:$0xff]
        %v1408 = vld [vmem:[#allocation2 + $0x4d] sm:$0xff]
        %v1409 = vld [vmem:[#allocation2 + $0x55] sm:$0xff]
        %v1410 = vld [vmem:[#allocation2 + $0x5d] sm:$0xff]
        %v1411 = vld [vmem:[#allocation2 + $0x65] sm:$0xff]
        %v1412 = vld [vmem:[#allocation2 + $0x6d] sm:$0xff]
        %v1413 = vld [vmem:[#allocation2 + $0x75] sm:$0xff]
        %v1414 = vld [vmem:[#allocation2 + $0x7d] sm:$0xff]
        %v1415 = vld [vmem:[#allocation2 + $0x85] sm:$0xff]
        %v1416 = vld [vmem:[#allocation2 + $0x8d] sm:$0xff]
        %v1417 = vld [vmem:[#allocation2 + $0x95] sm:$0xff]
        %v1418 = vld [vmem:[#allocation2 + $0x9d] sm:$0xff]
        %v1419 = vld [vmem:[#allocation2 + $0xa5] sm:$0xff]
        %v1420 = vld [vmem:[#allocation2 + $0xad] sm:$0xff]
        %v1421 = vld [vmem:[#allocation2 + $0xb5] sm:$0xff]
        %v1422 = vld [vmem:[#allocation2 + $0xbd] sm:$0xff]
        %v1423 = vld [vmem:[#allocation2 + $0xc5] sm:$0xff]
        %v1424 = vld [vmem:[#allocation2 + $0xcd] sm:$0xff]
        %v1425 = vld [vmem:[#allocation2 + $0xd5] sm:$0xff]
        %v1426 = vld [vmem:[#allocation2 + $0xdd] sm:$0xff]
        %v1427 = vld [vmem:[#allocation2 + $0xe5] sm:$0xff]
        %v1428 = vld [vmem:[#allocation2 + $0xed] sm:$0xff]
        %v1429 = vld [vmem:[#allocation2 + $0xf5] sm:$0xff]
        %v1430 = vld [vmem:[#allocation2 + $0xfd] sm:$0xff]
        %v1431 = vld [vmem:[#allocation2 + $0x105] sm:$0xff]
        %v1432 = vld [vmem:[#allocation2 + $0x10d] sm:$0xff]
        %v1433 = vld [vmem:[#allocation2 + $0x115] sm:$0xff]
        %v1434 = vld [vmem:[#allocation2 + $0x11d] sm:$0xff]
        %v1435 = vld [vmem:[#allocation2 + $0x125] sm:$0xff]
        %v1436 = vld [vmem:[#allocation2 + $0x12d] sm:$0xff]
        %v1437 = vld [vmem:[#allocation2 + $0x135] sm:$0xff]
        %v1438 = vld [vmem:[#allocation2 + $0x13d] sm:$0xff]
        %v1439 = vld [vmem:[#allocation2 + $0x145] sm:$0xff]
        %v1440 = vld [vmem:[#allocation2 + $0x14d] sm:$0xff]
        %v1441 = vld [vmem:[#allocation2 + $0x155] sm:$0xff]
        %v1442 = vld [vmem:[#allocation2 + $0x15d] sm:$0xff]
        %v1443 = vld [vmem:[#allocation2 + $0x165] sm:$0xff]
        %v1444 = vld [vmem:[#allocation2 + $0x16d] sm:$0xff]
        %v1445 = vld [vmem:[#allocation2 + $0x175] sm:$0xff]
        %v1446 = vld [vmem:[#allocation2 + $0x17d] sm:$0xff]
        %v1447 = vld [vmem:[#allocation2 + $0x185] sm:$0xff]
        %v1448 = vld [vmem:[#allocation2 + $0x18d] sm:$0xff]
        %v1449 = vld [vmem:[#allocation2 + $0x195] sm:$0xff]
        %v1450 = vld [vmem:[#allocation2 + $0x19d] sm:$0xff]
        %v1451 = vld [vmem:[#allocation2 + $0x16] sm:$0xff]
        %v1452 = vld [vmem:[#allocation2 + $0x1e] sm:$0xff]
        %v1453 = vld [vmem:[#allocation2 + $0x26] sm:$0xff]
        %v1454 = vld [vmem:[#allocation2 + $0x2e] sm:$0xff]
        %v1455 = vld [vmem:[#allocation2 + $0x36] sm:$0xff]
        %v1456 = vld [vmem:[#allocation2 + $0x3e] sm:$0xff]
        %v1457 = vld [vmem:[#allocation2 + $0x46] sm:$0xff]
        %v1458 = vld [vmem:[#allocation2 + $0x4e] sm:$0xff]
        %v1459 = vld [vmem:[#allocation2 + $0x56] sm:$0xff]
        %v1460 = vld [vmem:[#allocation2 + $0x5e] sm:$0xff]
        %v1461 = vld [vmem:[#allocation2 + $0x66] sm:$0xff]
        %v1462 = vld [vmem:[#allocation2 + $0x6e] sm:$0xff]
        %v1463 = vld [vmem:[#allocation2 + $0x76] sm:$0xff]
        %v1464 = vld [vmem:[#allocation2 + $0x7e] sm:$0xff]
        %v1465 = vld [vmem:[#allocation2 + $0x86] sm:$0xff]
        %v1466 = vld [vmem:[#allocation2 + $0x8e] sm:$0xff]
        %v1467 = vld [vmem:[#allocation2 + $0x96] sm:$0xff]
        %v1468 = vld [vmem:[#allocation2 + $0x9e] sm:$0xff]
        %v1469 = vld [vmem:[#allocation2 + $0xa6] sm:$0xff]
        %v1470 = vld [vmem:[#allocation2 + $0xae] sm:$0xff]
        %v1471 = vld [vmem:[#allocation2 + $0xb6] sm:$0xff]
        %v1472 = vld [vmem:[#allocation2 + $0xbe] sm:$0xff]
        %v1473 = vld [vmem:[#allocation2 + $0xc6] sm:$0xff]
        %v1474 = vld [vmem:[#allocation2 + $0xce] sm:$0xff]
        %v1475 = vld [vmem:[#allocation2 + $0xd6] sm:$0xff]
        %v1476 = vld [vmem:[#allocation2 + $0xde] sm:$0xff]
        %v1477 = vld [vmem:[#allocation2 + $0xe6] sm:$0xff]
        %v1478 = vld [vmem:[#allocation2 + $0xee] sm:$0xff]
        %v1479 = vld [vmem:[#allocation2 + $0xf6] sm:$0xff]
        %v1480 = vld [vmem:[#allocation2 + $0xfe] sm:$0xff]
        %v1481 = vld [vmem:[#allocation2 + $0x106] sm:$0xff]
        %v1482 = vld [vmem:[#allocation2 + $0x10e] sm:$0xff]
        %v1483 = vld [vmem:[#allocation2 + $0x116] sm:$0xff]
        %v1484 = vld [vmem:[#allocation2 + $0x11e] sm:$0xff]
        %v1485 = vld [vmem:[#allocation2 + $0x126] sm:$0xff]
        %v1486 = vld [vmem:[#allocation2 + $0x12e] sm:$0xff]
        %v1487 = vld [vmem:[#allocation2 + $0x136] sm:$0xff]
        %v1488 = vld [vmem:[#allocation2 + $0x13e] sm:$0xff]
        %v1489 = vld [vmem:[#allocation2 + $0x146] sm:$0xff]
        %v1490 = vld [vmem:[#allocation2 + $0x14e] sm:$0xff]
        %v1491 = vld [vmem:[#allocation2 + $0x156] sm:$0xff]
        %v1492 = vld [vmem:[#allocation2 + $0x15e] sm:$0xff]
        %v1493 = vld [vmem:[#allocation2 + $0x166] sm:$0xff]
        %v1494 = vld [vmem:[#allocation2 + $0x16e] sm:$0xff]
        %v1495 = vld [vmem:[#allocation2 + $0x176] sm:$0xff]
        %v1496 = vld [vmem:[#allocation2 + $0x17e] sm:$0xff]
        %v1497 = vld [vmem:[#allocation2 + $0x186] sm:$0xff]
        %v1498 = vld [vmem:[#allocation2 + $0x18e] sm:$0xff]
        %v1499 = vld [vmem:[#allocation2 + $0x196] sm:$0xff]
        %v1500 = vld [vmem:[#allocation2 + $0x19e] sm:$0xff]
        %v1501 = vmul.f32 %v1451, %v1053
        %v1502 = vmul.f32 %v1452, %v1057
        %v1503 = vmul.f32 %v1453, %v1061
        %v1504 = vmul.f32 %v1454, %v1065
        %v1505 = vmul.f32 %v1455, %v1069
        %v1506 = vmul.f32 %v1456, %v1073
        %v1507 = vmul.f32 %v1457, %v1077
        %v1508 = vmul.f32 %v1458, %v1081
        %v1509 = vmul.f32 %v1459, %v1085
        %v1510 = vmul.f32 %v1460, %v1089
        %v1511 = vmul.f32 %v1461, %v1093
        %v1512 = vmul.f32 %v1462, %v1097
        %v1513 = vmul.f32 %v1463, %v1101
        %v1514 = vmul.f32 %v1464, %v1105
        %v1515 = vmul.f32 %v1465, %v1109
        %v1516 = vmul.f32 %v1466, %v1113
        %v1517 = vmul.f32 %v1467, %v1117
        %v1518 = vmul.f32 %v1468, %v1121
        %v1519 = vmul.f32 %v1469, %v1125
        %v1520 = vmul.f32 %v1470, %v1129
        %v1521 = vmul.f32 %v1471, %v1133
        %v1522 = vmul.f32 %v1472, %v1137
        %v1523 = vmul.f32 %v1473, %v1141
        %v1524 = vmul.f32 %v1474, %v1145
        %v1525 = vmul.f32 %v1475, %v1149
        %v1526 = vmul.f32 %v1476, %v1153
        %v1527 = vmul.f32 %v1477, %v1157
        %v1528 = vmul.f32 %v1478, %v1161
        %v1529 = vmul.f32 %v1479, %v1165
        %v1530 = vmul.f32 %v1480, %v1169
        %v1531 = vmul.f32 %v1481, %v1173
        %v1532 = vmul.f32 %v1482, %v1177
        %v1533 = vmul.f32 %v1483, %v1181
        %v1534 = vmul.f32 %v1484, %v1185
        %v1535 = vmul.f32 %v1485, %v1189
        %v1536 = vmul.f32 %v1486, %v1193
        %v1537 = vmul.f32 %v1487, %v1197
        %v1538 = vmul.f32 %v1488, %v1201
        %v1539 = vmul.f32 %v1489, %v1205
        %v1540 = vmul.f32 %v1490, %v1209
        %v1541 = vmul.f32 %v1491, %v1213
        %v1542 = vmul.f32 %v1492, %v1217
        %v1543 = vmul.f32 %v1493, %v1221
        %v1544 = vmul.f32 %v1494, %v1225
        %v1545 = vmul.f32 %v1495, %v1229
        %v1546 = vmul.f32 %v1496, %v1233
        %v1547 = vmul.f32 %v1497, %v1237
        %v1548 = vmul.f32 %v1498, %v1241
        %v1549 = vmul.f32 %v1499, %v1245
        %v1550 = vmul.f32 %v1500, %v1249
        %v1551 = vld [vmem:[#allocation2 + $0x28] sm:$0xff]
        %v1552 = vld [vmem:[#allocation2 + $0x30] sm:$0xff]
        %v1553 = vld [vmem:[#allocation2 + $0x38] sm:$0xff]
        %v1554 = vld [vmem:[#allocation2 + $0x40] sm:$0xff]
        %v1555 = vld [vmem:[#allocation2 + $0x48] sm:$0xff]
        %v1556 = vld [vmem:[#allocation2 + $0x50] sm:$0xff]
        %v1557 = vld [vmem:[#allocation2 + $0x58] sm:$0xff]
        %v1558 = vld [vmem:[#allocation2 + $0x60] sm:$0xff]
        %v1559 = vld [vmem:[#allocation2 + $0x68] sm:$0xff]
        %v1560 = vld [vmem:[#allocation2 + $0x70] sm:$0xff]
        %v1561 = vld [vmem:[#allocation2 + $0x78] sm:$0xff]
        %v1562 = vld [vmem:[#allocation2 + $0x80] sm:$0xff]
        %v1563 = vld [vmem:[#allocation2 + $0x88] sm:$0xff]
        %v1564 = vld [vmem:[#allocation2 + $0x90] sm:$0xff]
        %v1565 = vld [vmem:[#allocation2 + $0x98] sm:$0xff]
        %v1566 = vld [vmem:[#allocation2 + $0xa0] sm:$0xff]
        %v1567 = vld [vmem:[#allocation2 + $0xa8] sm:$0xff]
        %v1568 = vld [vmem:[#allocation2 + $0xb0] sm:$0xff]
        %v1569 = vld [vmem:[#allocation2 + $0xb8] sm:$0xff]
        %v1570 = vld [vmem:[#allocation2 + $0xc0] sm:$0xff]
        %v1571 = vld [vmem:[#allocation2 + $0xc8] sm:$0xff]
        %v1572 = vld [vmem:[#allocation2 + $0xd0] sm:$0xff]
        %v1573 = vld [vmem:[#allocation2 + $0xd8] sm:$0xff]
        %v1574 = vld [vmem:[#allocation2 + $0xe0] sm:$0xff]
        %v1575 = vld [vmem:[#allocation2 + $0xe8] sm:$0xff]
        %v1576 = vld [vmem:[#allocation2 + $0xf0] sm:$0xff]
        %v1577 = vld [vmem:[#allocation2 + $0xf8] sm:$0xff]
        %v1578 = vld [vmem:[#allocation2 + $0x100] sm:$0xff]
        %v1579 = vld [vmem:[#allocation2 + $0x108] sm:$0xff]
        %v1580 = vld [vmem:[#allocation2 + $0x110] sm:$0xff]
        %v1581 = vld [vmem:[#allocation2 + $0x118] sm:$0xff]
        %v1582 = vld [vmem:[#allocation2 + $0x120] sm:$0xff]
        %v1583 = vld [vmem:[#allocation2 + $0x128] sm:$0xff]
        %v1584 = vld [vmem:[#allocation2 + $0x130] sm:$0xff]
        %v1585 = vld [vmem:[#allocation2 + $0x138] sm:$0xff]
        %v1586 = vld [vmem:[#allocation2 + $0x140] sm:$0xff]
        %v1587 = vld [vmem:[#allocation2 + $0x148] sm:$0xff]
        %v1588 = vld [vmem:[#allocation2 + $0x150] sm:$0xff]
        %v1589 = vld [vmem:[#allocation2 + $0x158] sm:$0xff]
        %v1590 = vld [vmem:[#allocation2 + $0x160] sm:$0xff]
        %v1591 = vld [vmem:[#allocation2 + $0x168] sm:$0xff]
        %v1592 = vld [vmem:[#allocation2 + $0x170] sm:$0xff]
        %v1593 = vld [vmem:[#allocation2 + $0x178] sm:$0xff]
        %v1594 = vld [vmem:[#allocation2 + $0x180] sm:$0xff]
        %v1595 = vld [vmem:[#allocation2 + $0x188] sm:$0xff]
        %v1596 = vld [vmem:[#allocation2 + $0x190] sm:$0xff]
        %v1597 = vld [vmem:[#allocation2 + $0x198] sm:$0xff]
        %v1598 = vld [vmem:[#allocation2 + $0x1a0] sm:$0xff]
        %v1599 = vld [vmem:[#allocation2 + $0x1a8] sm:$0xff]
        %v1600 = vld [vmem:[#allocation2 + $0x1b0] sm:$0xff]
        %v1601 = vmul.f32 %v1551, %v654
        %v1602 = vmul.f32 %v1552, %v659
        %v1603 = vmul.f32 %v1553, %v664
        %v1604 = vmul.f32 %v1554, %v669
        %v1605 = vmul.f32 %v1555, %v674
        %v1606 = vmul.f32 %v1556, %v679
        %v1607 = vmul.f32 %v1557, %v684
        %v1608 = vmul.f32 %v1558, %v689
        %v1609 = vmul.f32 %v1559, %v694
        %v1610 = vmul.f32 %v1560, %v699
        %v1611 = vmul.f32 %v1561, %v704
        %v1612 = vmul.f32 %v1562, %v709
        %v1613 = vmul.f32 %v1563, %v714
        %v1614 = vmul.f32 %v1564, %v719
        %v1615 = vmul.f32 %v1565, %v724
        %v1616 = vmul.f32 %v1566, %v729
        %v1617 = vmul.f32 %v1567, %v734
        %v1618 = vmul.f32 %v1568, %v739
        %v1619 = vmul.f32 %v1569, %v744
        %v1620 = vmul.f32 %v1570, %v749
        %v1621 = vmul.f32 %v1571, %v754
        %v1622 = vmul.f32 %v1572, %v759
        %v1623 = vmul.f32 %v1573, %v764
        %v1624 = vmul.f32 %v1574, %v769
        %v1625 = vmul.f32 %v1575, %v774
        %v1626 = vmul.f32 %v1576, %v779
        %v1627 = vmul.f32 %v1577, %v784
        %v1628 = vmul.f32 %v1578, %v789
        %v1629 = vmul.f32 %v1579, %v794
        %v1630 = vmul.f32 %v1580, %v799
        %v1631 = vmul.f32 %v1581, %v804
        %v1632 = vmul.f32 %v1582, %v809
        %v1633 = vmul.f32 %v1583, %v814
        %v1634 = vmul.f32 %v1584, %v819
        %v1635 = vmul.f32 %v1585, %v824
        %v1636 = vmul.f32 %v1586, %v829
        %v1637 = vmul.f32 %v1587, %v834
        %v1638 = vmul.f32 %v1588, %v839
        %v1639 = vmul.f32 %v1589, %v844
        %v1640 = vmul.f32 %v1590, %v849
        %v1641 = vmul.f32 %v1591, %v854
        %v1642 = vmul.f32 %v1592, %v859
        %v1643 = vmul.f32 %v1593, %v864
        %v1644 = vmul.f32 %v1594, %v869
        %v1645 = vmul.f32 %v1595, %v874
        %v1646 = vmul.f32 %v1596, %v879
        %v1647 = vmul.f32 %v1597, %v884
        %v1648 = vmul.f32 %v1598, %v889
        %v1649 = vmul.f32 %v1599, %v894
        %v1650 = vmul.f32 %v1600, %v899
        %v1651 = vld [vmem:[#allocation2 + $0x29] sm:$0xff]
        %v1652 = vld [vmem:[#allocation2 + $0x31] sm:$0xff]
        %v1653 = vld [vmem:[#allocation2 + $0x39] sm:$0xff]
        %v1654 = vld [vmem:[#allocation2 + $0x41] sm:$0xff]
        %v1655 = vld [vmem:[#allocation2 + $0x49] sm:$0xff]
        %v1656 = vld [vmem:[#allocation2 + $0x51] sm:$0xff]
        %v1657 = vld [vmem:[#allocation2 + $0x59] sm:$0xff]
        %v1658 = vld [vmem:[#allocation2 + $0x61] sm:$0xff]
        %v1659 = vld [vmem:[#allocation2 + $0x69] sm:$0xff]
        %v1660 = vld [vmem:[#allocation2 + $0x71] sm:$0xff]
        %v1661 = vld [vmem:[#allocation2 + $0x79] sm:$0xff]
        %v1662 = vld [vmem:[#allocation2 + $0x81] sm:$0xff]
        %v1663 = vld [vmem:[#allocation2 + $0x89] sm:$0xff]
        %v1664 = vld [vmem:[#allocation2 + $0x91] sm:$0xff]
        %v1665 = vld [vmem:[#allocation2 + $0x99] sm:$0xff]
        %v1666 = vld [vmem:[#allocation2 + $0xa1] sm:$0xff]
        %v1667 = vld [vmem:[#allocation2 + $0xa9] sm:$0xff]
        %v1668 = vld [vmem:[#allocation2 + $0xb1] sm:$0xff]
        %v1669 = vld [vmem:[#allocation2 + $0xb9] sm:$0xff]
        %v1670 = vld [vmem:[#allocation2 + $0xc1] sm:$0xff]
        %v1671 = vld [vmem:[#allocation2 + $0xc9] sm:$0xff]
        %v1672 = vld [vmem:[#allocation2 + $0xd1] sm:$0xff]
        %v1673 = vld [vmem:[#allocation2 + $0xd9] sm:$0xff]
        %v1674 = vld [vmem:[#allocation2 + $0xe1] sm:$0xff]
        %v1675 = vld [vmem:[#allocation2 + $0xe9] sm:$0xff]
        %v1676 = vld [vmem:[#allocation2 + $0xf1] sm:$0xff]
        %v1677 = vld [vmem:[#allocation2 + $0xf9] sm:$0xff]
        %v1678 = vld [vmem:[#allocation2 + $0x101] sm:$0xff]
        %v1679 = vld [vmem:[#allocation2 + $0x109] sm:$0xff]
        %v1680 = vld [vmem:[#allocation2 + $0x111] sm:$0xff]
        %v1681 = vld [vmem:[#allocation2 + $0x119] sm:$0xff]
        %v1682 = vld [vmem:[#allocation2 + $0x121] sm:$0xff]
        %v1683 = vld [vmem:[#allocation2 + $0x129] sm:$0xff]
        %v1684 = vld [vmem:[#allocation2 + $0x131] sm:$0xff]
        %v1685 = vld [vmem:[#allocation2 + $0x139] sm:$0xff]
        %v1686 = vld [vmem:[#allocation2 + $0x141] sm:$0xff]
        %v1687 = vld [vmem:[#allocation2 + $0x149] sm:$0xff]
        %v1688 = vld [vmem:[#allocation2 + $0x151] sm:$0xff]
        %v1689 = vld [vmem:[#allocation2 + $0x159] sm:$0xff]
        %v1690 = vld [vmem:[#allocation2 + $0x161] sm:$0xff]
        %v1691 = vld [vmem:[#allocation2 + $0x169] sm:$0xff]
        %v1692 = vld [vmem:[#allocation2 + $0x171] sm:$0xff]
        %v1693 = vld [vmem:[#allocation2 + $0x179] sm:$0xff]
        %v1694 = vld [vmem:[#allocation2 + $0x181] sm:$0xff]
        %v1695 = vld [vmem:[#allocation2 + $0x189] sm:$0xff]
        %v1696 = vld [vmem:[#allocation2 + $0x191] sm:$0xff]
        %v1697 = vld [vmem:[#allocation2 + $0x199] sm:$0xff]
        %v1698 = vld [vmem:[#allocation2 + $0x1a1] sm:$0xff]
        %v1699 = vld [vmem:[#allocation2 + $0x1a9] sm:$0xff]
        %v1700 = vld [vmem:[#allocation2 + $0x1b1] sm:$0xff]
        %v1701 = vld [vmem:[#allocation2 + $0x2a] sm:$0xff]
        %v1702 = vld [vmem:[#allocation2 + $0x32] sm:$0xff]
        %v1703 = vld [vmem:[#allocation2 + $0x3a] sm:$0xff]
        %v1704 = vld [vmem:[#allocation2 + $0x42] sm:$0xff]
        %v1705 = vld [vmem:[#allocation2 + $0x4a] sm:$0xff]
        %v1706 = vld [vmem:[#allocation2 + $0x52] sm:$0xff]
        %v1707 = vld [vmem:[#allocation2 + $0x5a] sm:$0xff]
        %v1708 = vld [vmem:[#allocation2 + $0x62] sm:$0xff]
        %v1709 = vld [vmem:[#allocation2 + $0x6a] sm:$0xff]
        %v1710 = vld [vmem:[#allocation2 + $0x72] sm:$0xff]
        %v1711 = vld [vmem:[#allocation2 + $0x7a] sm:$0xff]
        %v1712 = vld [vmem:[#allocation2 + $0x82] sm:$0xff]
        %v1713 = vld [vmem:[#allocation2 + $0x8a] sm:$0xff]
        %v1714 = vld [vmem:[#allocation2 + $0x92] sm:$0xff]
        %v1715 = vld [vmem:[#allocation2 + $0x9a] sm:$0xff]
        %v1716 = vld [vmem:[#allocation2 + $0xa2] sm:$0xff]
        %v1717 = vld [vmem:[#allocation2 + $0xaa] sm:$0xff]
        %v1718 = vld [vmem:[#allocation2 + $0xb2] sm:$0xff]
        %v1719 = vld [vmem:[#allocation2 + $0xba] sm:$0xff]
        %v1720 = vld [vmem:[#allocation2 + $0xc2] sm:$0xff]
        %v1721 = vld [vmem:[#allocation2 + $0xca] sm:$0xff]
        %v1722 = vld [vmem:[#allocation2 + $0xd2] sm:$0xff]
        %v1723 = vld [vmem:[#allocation2 + $0xda] sm:$0xff]
        %v1724 = vld [vmem:[#allocation2 + $0xe2] sm:$0xff]
        %v1725 = vld [vmem:[#allocation2 + $0xea] sm:$0xff]
        %v1726 = vld [vmem:[#allocation2 + $0xf2] sm:$0xff]
        %v1727 = vld [vmem:[#allocation2 + $0xfa] sm:$0xff]
        %v1728 = vld [vmem:[#allocation2 + $0x102] sm:$0xff]
        %v1729 = vld [vmem:[#allocation2 + $0x10a] sm:$0xff]
        %v1730 = vld [vmem:[#allocation2 + $0x112] sm:$0xff]
        %v1731 = vld [vmem:[#allocation2 + $0x11a] sm:$0xff]
        %v1732 = vld [vmem:[#allocation2 + $0x122] sm:$0xff]
        %v1733 = vld [vmem:[#allocation2 + $0x12a] sm:$0xff]
        %v1734 = vld [vmem:[#allocation2 + $0x132] sm:$0xff]
        %v1735 = vld [vmem:[#allocation2 + $0x13a] sm:$0xff]
        %v1736 = vld [vmem:[#allocation2 + $0x142] sm:$0xff]
        %v1737 = vld [vmem:[#allocation2 + $0x14a] sm:$0xff]
        %v1738 = vld [vmem:[#allocation2 + $0x152] sm:$0xff]
        %v1739 = vld [vmem:[#allocation2 + $0x15a] sm:$0xff]
        %v1740 = vld [vmem:[#allocation2 + $0x162] sm:$0xff]
        %v1741 = vld [vmem:[#allocation2 + $0x16a] sm:$0xff]
        %v1742 = vld [vmem:[#allocation2 + $0x172] sm:$0xff]
        %v1743 = vld [vmem:[#allocation2 + $0x17a] sm:$0xff]
        %v1744 = vld [vmem:[#allocation2 + $0x182] sm:$0xff]
        %v1745 = vld [vmem:[#allocation2 + $0x18a] sm:$0xff]
        %v1746 = vld [vmem:[#allocation2 + $0x192] sm:$0xff]
        %v1747 = vld [vmem:[#allocation2 + $0x19a] sm:$0xff]
        %v1748 = vld [vmem:[#allocation2 + $0x1a2] sm:$0xff]
        %v1749 = vld [vmem:[#allocation2 + $0x1aa] sm:$0xff]
        %v1750 = vld [vmem:[#allocation2 + $0x1b2] sm:$0xff]
        %v1751 = vmul.f32 %v1701, %v1053
        %v1752 = vmul.f32 %v1702, %v1057
        %v1753 = vmul.f32 %v1703, %v1061
        %v1754 = vmul.f32 %v1704, %v1065
        %v1755 = vmul.f32 %v1705, %v1069
        %v1756 = vmul.f32 %v1706, %v1073
        %v1757 = vmul.f32 %v1707, %v1077
        %v1758 = vmul.f32 %v1708, %v1081
        %v1759 = vmul.f32 %v1709, %v1085
        %v1760 = vmul.f32 %v1710, %v1089
        %v1761 = vmul.f32 %v1711, %v1093
        %v1762 = vmul.f32 %v1712, %v1097
        %v1763 = vmul.f32 %v1713, %v1101
        %v1764 = vmul.f32 %v1714, %v1105
        %v1765 = vmul.f32 %v1715, %v1109
        %v1766 = vmul.f32 %v1716, %v1113
        %v1767 = vmul.f32 %v1717, %v1117
        %v1768 = vmul.f32 %v1718, %v1121
        %v1769 = vmul.f32 %v1719, %v1125
        %v1770 = vmul.f32 %v1720, %v1129
        %v1771 = vmul.f32 %v1721, %v1133
        %v1772 = vmul.f32 %v1722, %v1137
        %v1773 = vmul.f32 %v1723, %v1141
        %v1774 = vmul.f32 %v1724, %v1145
        %v1775 = vmul.f32 %v1725, %v1149
        %v1776 = vmul.f32 %v1726, %v1153
        %v1777 = vmul.f32 %v1727, %v1157
        %v1778 = vmul.f32 %v1728, %v1161
        %v1779 = vmul.f32 %v1729, %v1165
        %v1780 = vmul.f32 %v1730, %v1169
        %v1781 = vmul.f32 %v1731, %v1173
        %v1782 = vmul.f32 %v1732, %v1177
        %v1783 = vmul.f32 %v1733, %v1181
        %v1784 = vmul.f32 %v1734, %v1185
        %v1785 = vmul.f32 %v1735, %v1189
        %v1786 = vmul.f32 %v1736, %v1193
        %v1787 = vmul.f32 %v1737, %v1197
        %v1788 = vmul.f32 %v1738, %v1201
        %v1789 = vmul.f32 %v1739, %v1205
        %v1790 = vmul.f32 %v1740, %v1209
        %v1791 = vmul.f32 %v1741, %v1213
        %v1792 = vmul.f32 %v1742, %v1217
        %v1793 = vmul.f32 %v1743, %v1221
        %v1794 = vmul.f32 %v1744, %v1225
        %v1795 = vmul.f32 %v1745, %v1229
        %v1796 = vmul.f32 %v1746, %v1233
        %v1797 = vmul.f32 %v1747, %v1237
        %v1798 = vmul.f32 %v1748, %v1241
        %v1799 = vmul.f32 %v1749, %v1245
        %v1800 = vmul.f32 %v1750, %v1249
        %1851 = vrot.lane.b32.xlu0 %v951, 3
        %v1852 = vpop.permute.xlu0 %1851
        %1853 = vrot.lane.b32.xlu0 %v952, 3
        %v1854 = vpop.permute.xlu0 %1853
        %1855 = vrot.lane.b32.xlu0 %v953, 3
        %v1856 = vpop.permute.xlu0 %1855
        %1857 = vrot.lane.b32.xlu0 %v954, 3
        %v1858 = vpop.permute.xlu0 %1857
        %1859 = vrot.lane.b32.xlu0 %v955, 3
        %v1860 = vpop.permute.xlu0 %1859
        %1861 = vrot.lane.b32.xlu0 %v956, 3
        %v1862 = vpop.permute.xlu0 %1861
        %1863 = vrot.lane.b32.xlu0 %v957, 3
        %v1864 = vpop.permute.xlu0 %1863
        %1865 = vrot.lane.b32.xlu0 %v958, 3
        %v1866 = vpop.permute.xlu0 %1865
        %1867 = vrot.lane.b32.xlu0 %v959, 3
        %v1868 = vpop.permute.xlu0 %1867
        %1869 = vrot.lane.b32.xlu0 %v960, 3
        %v1870 = vpop.permute.xlu0 %1869
        %1871 = vrot.lane.b32.xlu0 %v961, 3
        %v1872 = vpop.permute.xlu0 %1871
        %1873 = vrot.lane.b32.xlu0 %v962, 3
        %v1874 = vpop.permute.xlu0 %1873
        %1875 = vrot.lane.b32.xlu0 %v963, 3
        %v1876 = vpop.permute.xlu0 %1875
        %1877 = vrot.lane.b32.xlu0 %v964, 3
        %v1878 = vpop.permute.xlu0 %1877
        %1879 = vrot.lane.b32.xlu0 %v965, 3
        %v1880 = vpop.permute.xlu0 %1879
        %1881 = vrot.lane.b32.xlu0 %v966, 3
        %v1882 = vpop.permute.xlu0 %1881
        %1883 = vrot.lane.b32.xlu0 %v967, 3
        %v1884 = vpop.permute.xlu0 %1883
        %1885 = vrot.lane.b32.xlu0 %v968, 3
        %v1886 = vpop.permute.xlu0 %1885
        %1887 = vrot.lane.b32.xlu0 %v969, 3
        %v1888 = vpop.permute.xlu0 %1887
        %1889 = vrot.lane.b32.xlu0 %v970, 3
        %v1890 = vpop.permute.xlu0 %1889
        %1891 = vrot.lane.b32.xlu0 %v971, 3
        %v1892 = vpop.permute.xlu0 %1891
        %1893 = vrot.lane.b32.xlu0 %v972, 3
        %v1894 = vpop.permute.xlu0 %1893
        %1895 = vrot.lane.b32.xlu0 %v973, 3
        %v1896 = vpop.permute.xlu0 %1895
        %1897 = vrot.lane.b32.xlu0 %v974, 3
        %v1898 = vpop.permute.xlu0 %1897
        %1899 = vrot.lane.b32.xlu0 %v975, 3
        %v1900 = vpop.permute.xlu0 %1899
        %1901 = vrot.lane.b32.xlu0 %v976, 3
        %v1902 = vpop.permute.xlu0 %1901
        %1903 = vrot.lane.b32.xlu0 %v977, 3
        %v1904 = vpop.permute.xlu0 %1903
        %1905 = vrot.lane.b32.xlu0 %v978, 3
        %v1906 = vpop.permute.xlu0 %1905
        %1907 = vrot.lane.b32.xlu0 %v979, 3
        %v1908 = vpop.permute.xlu0 %1907
        %1909 = vrot.lane.b32.xlu0 %v980, 3
        %v1910 = vpop.permute.xlu0 %1909
        %1911 = vrot.lane.b32.xlu0 %v981, 3
        %v1912 = vpop.permute.xlu0 %1911
        %1913 = vrot.lane.b32.xlu0 %v982, 3
        %v1914 = vpop.permute.xlu0 %1913
        %1915 = vrot.lane.b32.xlu0 %v983, 3
        %v1916 = vpop.permute.xlu0 %1915
        %1917 = vrot.lane.b32.xlu0 %v984, 3
        %v1918 = vpop.permute.xlu0 %1917
        %1919 = vrot.lane.b32.xlu0 %v985, 3
        %v1920 = vpop.permute.xlu0 %1919
        %1921 = vrot.lane.b32.xlu0 %v986, 3
        %v1922 = vpop.permute.xlu0 %1921
        %1923 = vrot.lane.b32.xlu0 %v987, 3
        %v1924 = vpop.permute.xlu0 %1923
        %1925 = vrot.lane.b32.xlu0 %v988, 3
        %v1926 = vpop.permute.xlu0 %1925
        %1927 = vrot.lane.b32.xlu0 %v989, 3
        %v1928 = vpop.permute.xlu0 %1927
        %1929 = vrot.lane.b32.xlu0 %v990, 3
        %v1930 = vpop.permute.xlu0 %1929
        %1931 = vrot.lane.b32.xlu0 %v991, 3
        %v1932 = vpop.permute.xlu0 %1931
        %1933 = vrot.lane.b32.xlu0 %v992, 3
        %v1934 = vpop.permute.xlu0 %1933
        %1935 = vrot.lane.b32.xlu0 %v993, 3
        %v1936 = vpop.permute.xlu0 %1935
        %1937 = vrot.lane.b32.xlu0 %v994, 3
        %v1938 = vpop.permute.xlu0 %1937
        %1939 = vrot.lane.b32.xlu0 %v995, 3
        %v1940 = vpop.permute.xlu0 %1939
        %1941 = vrot.lane.b32.xlu0 %v996, 3
        %v1942 = vpop.permute.xlu0 %1941
        %1943 = vrot.lane.b32.xlu0 %v997, 3
        %v1944 = vpop.permute.xlu0 %1943
        %1945 = vrot.lane.b32.xlu0 %v998, 3
        %v1946 = vpop.permute.xlu0 %1945
        %1947 = vrot.lane.b32.xlu0 %v999, 3
        %v1948 = vpop.permute.xlu0 %1947
        %1949 = vrot.lane.b32.xlu0 %v1000, 3
        %v1950 = vpop.permute.xlu0 %1949
        %2051 = vrot.lane.b32.xlu0 %v1251, 6
        %v2052 = vpop.permute.xlu0 %2051
        %2053 = vrot.lane.b32.xlu0 %v1252, 6
        %v2054 = vpop.permute.xlu0 %2053
        %2055 = vrot.lane.b32.xlu0 %v1253, 6
        %v2056 = vpop.permute.xlu0 %2055
        %2057 = vrot.lane.b32.xlu0 %v1254, 6
        %v2058 = vpop.permute.xlu0 %2057
        %2059 = vrot.lane.b32.xlu0 %v1255, 6
        %v2060 = vpop.permute.xlu0 %2059
        %2061 = vrot.lane.b32.xlu0 %v1256, 6
        %v2062 = vpop.permute.xlu0 %2061
        %2063 = vrot.lane.b32.xlu0 %v1257, 6
        %v2064 = vpop.permute.xlu0 %2063
        %2065 = vrot.lane.b32.xlu0 %v1258, 6
        %v2066 = vpop.permute.xlu0 %2065
        %2067 = vrot.lane.b32.xlu0 %v1259, 6
        %v2068 = vpop.permute.xlu0 %2067
        %2069 = vrot.lane.b32.xlu0 %v1260, 6
        %v2070 = vpop.permute.xlu0 %2069
        %2071 = vrot.lane.b32.xlu0 %v1261, 6
        %v2072 = vpop.permute.xlu0 %2071
        %2073 = vrot.lane.b32.xlu0 %v1262, 6
        %v2074 = vpop.permute.xlu0 %2073
        %2075 = vrot.lane.b32.xlu0 %v1263, 6
        %v2076 = vpop.permute.xlu0 %2075
        %2077 = vrot.lane.b32.xlu0 %v1264, 6
        %v2078 = vpop.permute.xlu0 %2077
        %2079 = vrot.lane.b32.xlu0 %v1265, 6
        %v2080 = vpop.permute.xlu0 %2079
        %2081 = vrot.lane.b32.xlu0 %v1266, 6
        %v2082 = vpop.permute.xlu0 %2081
        %2083 = vrot.lane.b32.xlu0 %v1267, 6
        %v2084 = vpop.permute.xlu0 %2083
        %2085 = vrot.lane.b32.xlu0 %v1268, 6
        %v2086 = vpop.permute.xlu0 %2085
        %2087 = vrot.lane.b32.xlu0 %v1269, 6
        %v2088 = vpop.permute.xlu0 %2087
        %2089 = vrot.lane.b32.xlu0 %v1270, 6
        %v2090 = vpop.permute.xlu0 %2089
        %2091 = vrot.lane.b32.xlu0 %v1271, 6
        %v2092 = vpop.permute.xlu0 %2091
        %2093 = vrot.lane.b32.xlu0 %v1272, 6
        %v2094 = vpop.permute.xlu0 %2093
        %2095 = vrot.lane.b32.xlu0 %v1273, 6
        %v2096 = vpop.permute.xlu0 %2095
        %2097 = vrot.lane.b32.xlu0 %v1274, 6
        %v2098 = vpop.permute.xlu0 %2097
        %2099 = vrot.lane.b32.xlu0 %v1275, 6
        %v2100 = vpop.permute.xlu0 %2099
        %2101 = vrot.lane.b32.xlu0 %v1276, 6
        %v2102 = vpop.permute.xlu0 %2101
        %2103 = vrot.lane.b32.xlu0 %v1277, 6
        %v2104 = vpop.permute.xlu0 %2103
        %2105 = vrot.lane.b32.xlu0 %v1278, 6
        %v2106 = vpop.permute.xlu0 %2105
        %2107 = vrot.lane.b32.xlu0 %v1279, 6
        %v2108 = vpop.permute.xlu0 %2107
        %2109 = vrot.lane.b32.xlu0 %v1280, 6
        %v2110 = vpop.permute.xlu0 %2109
        %2111 = vrot.lane.b32.xlu0 %v1281, 6
        %v2112 = vpop.permute.xlu0 %2111
        %2113 = vrot.lane.b32.xlu0 %v1282, 6
        %v2114 = vpop.permute.xlu0 %2113
        %2115 = vrot.lane.b32.xlu0 %v1283, 6
        %v2116 = vpop.permute.xlu0 %2115
        %2117 = vrot.lane.b32.xlu0 %v1284, 6
        %v2118 = vpop.permute.xlu0 %2117
        %2119 = vrot.lane.b32.xlu0 %v1285, 6
        %v2120 = vpop.permute.xlu0 %2119
        %2121 = vrot.lane.b32.xlu0 %v1286, 6
        %v2122 = vpop.permute.xlu0 %2121
        %2123 = vrot.lane.b32.xlu0 %v1287, 6
        %v2124 = vpop.permute.xlu0 %2123
        %2125 = vrot.lane.b32.xlu0 %v1288, 6
        %v2126 = vpop.permute.xlu0 %2125
        %2127 = vrot.lane.b32.xlu0 %v1289, 6
        %v2128 = vpop.permute.xlu0 %2127
        %2129 = vrot.lane.b32.xlu0 %v1290, 6
        %v2130 = vpop.permute.xlu0 %2129
        %2131 = vrot.lane.b32.xlu0 %v1291, 6
        %v2132 = vpop.permute.xlu0 %2131
        %2133 = vrot.lane.b32.xlu0 %v1292, 6
        %v2134 = vpop.permute.xlu0 %2133
        %2135 = vrot.lane.b32.xlu0 %v1293, 6
        %v2136 = vpop.permute.xlu0 %2135
        %2137 = vrot.lane.b32.xlu0 %v1294, 6
        %v2138 = vpop.permute.xlu0 %2137
        %2139 = vrot.lane.b32.xlu0 %v1295, 6
        %v2140 = vpop.permute.xlu0 %2139
        %2141 = vrot.lane.b32.xlu0 %v1296, 6
        %v2142 = vpop.permute.xlu0 %2141
        %2143 = vrot.lane.b32.xlu0 %v1297, 6
        %v2144 = vpop.permute.xlu0 %2143
        %2145 = vrot.lane.b32.xlu0 %v1298, 6
        %v2146 = vpop.permute.xlu0 %2145
        %2147 = vrot.lane.b32.xlu0 %v1299, 6
        %v2148 = vpop.permute.xlu0 %2147
        %2149 = vrot.lane.b32.xlu0 %v1300, 6
        %v2150 = vpop.permute.xlu0 %2149
        %2251 = vrot.lane.b32.xlu0 %v1351, 9
        %v2252 = vpop.permute.xlu0 %2251
        %2253 = vrot.lane.b32.xlu0 %v1352, 9
        %v2254 = vpop.permute.xlu0 %2253
        %2255 = vrot.lane.b32.xlu0 %v1353, 9
        %v2256 = vpop.permute.xlu0 %2255
        %2257 = vrot.lane.b32.xlu0 %v1354, 9
        %v2258 = vpop.permute.xlu0 %2257
        %2259 = vrot.lane.b32.xlu0 %v1355, 9
        %v2260 = vpop.permute.xlu0 %2259
        %2261 = vrot.lane.b32.xlu0 %v1356, 9
        %v2262 = vpop.permute.xlu0 %2261
        %2263 = vrot.lane.b32.xlu0 %v1357, 9
        %v2264 = vpop.permute.xlu0 %2263
        %2265 = vrot.lane.b32.xlu0 %v1358, 9
        %v2266 = vpop.permute.xlu0 %2265
        %2267 = vrot.lane.b32.xlu0 %v1359, 9
        %v2268 = vpop.permute.xlu0 %2267
        %2269 = vrot.lane.b32.xlu0 %v1360, 9
        %v2270 = vpop.permute.xlu0 %2269
        %2271 = vrot.lane.b32.xlu0 %v1361, 9
        %v2272 = vpop.permute.xlu0 %2271
        %2273 = vrot.lane.b32.xlu0 %v1362, 9
        %v2274 = vpop.permute.xlu0 %2273
        %2275 = vrot.lane.b32.xlu0 %v1363, 9
        %v2276 = vpop.permute.xlu0 %2275
        %2277 = vrot.lane.b32.xlu0 %v1364, 9
        %v2278 = vpop.permute.xlu0 %2277
        %2279 = vrot.lane.b32.xlu0 %v1365, 9
        %v2280 = vpop.permute.xlu0 %2279
        %2281 = vrot.lane.b32.xlu0 %v1366, 9
        %v2282 = vpop.permute.xlu0 %2281
        %2283 = vrot.lane.b32.xlu0 %v1367, 9
        %v2284 = vpop.permute.xlu0 %2283
        %2285 = vrot.lane.b32.xlu0 %v1368, 9
        %v2286 = vpop.permute.xlu0 %2285
        %2287 = vrot.lane.b32.xlu0 %v1369, 9
        %v2288 = vpop.permute.xlu0 %2287
        %2289 = vrot.lane.b32.xlu0 %v1370, 9
        %v2290 = vpop.permute.xlu0 %2289
        %2291 = vrot.lane.b32.xlu0 %v1371, 9
        %v2292 = vpop.permute.xlu0 %2291
        %2293 = vrot.lane.b32.xlu0 %v1372, 9
        %v2294 = vpop.permute.xlu0 %2293
        %2295 = vrot.lane.b32.xlu0 %v1373, 9
        %v2296 = vpop.permute.xlu0 %2295
        %2297 = vrot.lane.b32.xlu0 %v1374, 9
        %v2298 = vpop.permute.xlu0 %2297
        %2299 = vrot.lane.b32.xlu0 %v1375, 9
        %v2300 = vpop.permute.xlu0 %2299
        %2301 = vrot.lane.b32.xlu0 %v1376, 9
        %v2302 = vpop.permute.xlu0 %2301
        %2303 = vrot.lane.b32.xlu0 %v1377, 9
        %v2304 = vpop.permute.xlu0 %2303
        %2305 = vrot.lane.b32.xlu0 %v1378, 9
        %v2306 = vpop.permute.xlu0 %2305
        %2307 = vrot.lane.b32.xlu0 %v1379, 9
        %v2308 = vpop.permute.xlu0 %2307
        %2309 = vrot.lane.b32.xlu0 %v1380, 9
        %v2310 = vpop.permute.xlu0 %2309
        %2311 = vrot.lane.b32.xlu0 %v1381, 9
        %v2312 = vpop.permute.xlu0 %2311
        %2313 = vrot.lane.b32.xlu0 %v1382, 9
        %v2314 = vpop.permute.xlu0 %2313
        %2315 = vrot.lane.b32.xlu0 %v1383, 9
        %v2316 = vpop.permute.xlu0 %2315
        %2317 = vrot.lane.b32.xlu0 %v1384, 9
        %v2318 = vpop.permute.xlu0 %2317
        %2319 = vrot.lane.b32.xlu0 %v1385, 9
        %v2320 = vpop.permute.xlu0 %2319
        %2321 = vrot.lane.b32.xlu0 %v1386, 9
        %v2322 = vpop.permute.xlu0 %2321
        %2323 = vrot.lane.b32.xlu0 %v1387, 9
        %v2324 = vpop.permute.xlu0 %2323
        %2325 = vrot.lane.b32.xlu0 %v1388, 9
        %v2326 = vpop.permute.xlu0 %2325
        %2327 = vrot.lane.b32.xlu0 %v1389, 9
        %v2328 = vpop.permute.xlu0 %2327
        %2329 = vrot.lane.b32.xlu0 %v1390, 9
        %v2330 = vpop.permute.xlu0 %2329
        %2331 = vrot.lane.b32.xlu0 %v1391, 9
        %v2332 = vpop.permute.xlu0 %2331
        %2333 = vrot.lane.b32.xlu0 %v1392, 9
        %v2334 = vpop.permute.xlu0 %2333
        %2335 = vrot.lane.b32.xlu0 %v1393, 9
        %v2336 = vpop.permute.xlu0 %2335
        %2337 = vrot.lane.b32.xlu0 %v1394, 9
        %v2338 = vpop.permute.xlu0 %2337
        %2339 = vrot.lane.b32.xlu0 %v1395, 9
        %v2340 = vpop.permute.xlu0 %2339
        %2341 = vrot.lane.b32.xlu0 %v1396, 9
        %v2342 = vpop.permute.xlu0 %2341
        %2343 = vrot.lane.b32.xlu0 %v1397, 9
        %v2344 = vpop.permute.xlu0 %2343
        %2345 = vrot.lane.b32.xlu0 %v1398, 9
        %v2346 = vpop.permute.xlu0 %2345
        %2347 = vrot.lane.b32.xlu0 %v1399, 9
        %v2348 = vpop.permute.xlu0 %2347
        %2349 = vrot.lane.b32.xlu0 %v1400, 9
        %v2350 = vpop.permute.xlu0 %2349
        %2451 = vrot.lane.b32.xlu0 %v1401, 12
        %v2452 = vpop.permute.xlu0 %2451
        %2453 = vrot.lane.b32.xlu0 %v1402, 12
        %v2454 = vpop.permute.xlu0 %2453
        %2455 = vrot.lane.b32.xlu0 %v1403, 12
        %v2456 = vpop.permute.xlu0 %2455
        %2457 = vrot.lane.b32.xlu0 %v1404, 12
        %v2458 = vpop.permute.xlu0 %2457
        %2459 = vrot.lane.b32.xlu0 %v1405, 12
        %v2460 = vpop.permute.xlu0 %2459
        %2461 = vrot.lane.b32.xlu0 %v1406, 12
        %v2462 = vpop.permute.xlu0 %2461
        %2463 = vrot.lane.b32.xlu0 %v1407, 12
        %v2464 = vpop.permute.xlu0 %2463
        %2465 = vrot.lane.b32.xlu0 %v1408, 12
        %v2466 = vpop.permute.xlu0 %2465
        %2467 = vrot.lane.b32.xlu0 %v1409, 12
        %v2468 = vpop.permute.xlu0 %2467
        %2469 = vrot.lane.b32.xlu0 %v1410, 12
        %v2470 = vpop.permute.xlu0 %2469
        %2471 = vrot.lane.b32.xlu0 %v1411, 12
        %v2472 = vpop.permute.xlu0 %2471
        %2473 = vrot.lane.b32.xlu0 %v1412, 12
        %v2474 = vpop.permute.xlu0 %2473
        %2475 = vrot.lane.b32.xlu0 %v1413, 12
        %v2476 = vpop.permute.xlu0 %2475
        %2477 = vrot.lane.b32.xlu0 %v1414, 12
        %v2478 = vpop.permute.xlu0 %2477
        %2479 = vrot.lane.b32.xlu0 %v1415, 12
        %v2480 = vpop.permute.xlu0 %2479
        %2481 = vrot.lane.b32.xlu0 %v1416, 12
        %v2482 = vpop.permute.xlu0 %2481
        %2483 = vrot.lane.b32.xlu0 %v1417, 12
        %v2484 = vpop.permute.xlu0 %2483
        %2485 = vrot.lane.b32.xlu0 %v1418, 12
        %v2486 = vpop.permute.xlu0 %2485
        %2487 = vrot.lane.b32.xlu0 %v1419, 12
        %v2488 = vpop.permute.xlu0 %2487
        %2489 = vrot.lane.b32.xlu0 %v1420, 12
        %v2490 = vpop.permute.xlu0 %2489
        %2491 = vrot.lane.b32.xlu0 %v1421, 12
        %v2492 = vpop.permute.xlu0 %2491
        %2493 = vrot.lane.b32.xlu0 %v1422, 12
        %v2494 = vpop.permute.xlu0 %2493
        %2495 = vrot.lane.b32.xlu0 %v1423, 12
        %v2496 = vpop.permute.xlu0 %2495
        %2497 = vrot.lane.b32.xlu0 %v1424, 12
        %v2498 = vpop.permute.xlu0 %2497
        %2499 = vrot.lane.b32.xlu0 %v1425, 12
        %v2500 = vpop.permute.xlu0 %2499
        %2501 = vrot.lane.b32.xlu0 %v1426, 12
        %v2502 = vpop.permute.xlu0 %2501
        %2503 = vrot.lane.b32.xlu0 %v1427, 12
        %v2504 = vpop.permute.xlu0 %2503
        %2505 = vrot.lane.b32.xlu0 %v1428, 12
        %v2506 = vpop.permute.xlu0 %2505
        %2507 = vrot.lane.b32.xlu0 %v1429, 12
        %v2508 = vpop.permute.xlu0 %2507
        %2509 = vrot.lane.b32.xlu0 %v1430, 12
        %v2510 = vpop.permute.xlu0 %2509
        %2511 = vrot.lane.b32.xlu0 %v1431, 12
        %v2512 = vpop.permute.xlu0 %2511
        %2513 = vrot.lane.b32.xlu0 %v1432, 12
        %v2514 = vpop.permute.xlu0 %2513
        %2515 = vrot.lane.b32.xlu0 %v1433, 12
        %v2516 = vpop.permute.xlu0 %2515
        %2517 = vrot.lane.b32.xlu0 %v1434, 12
        %v2518 = vpop.permute.xlu0 %2517
        %2519 = vrot.lane.b32.xlu0 %v1435, 12
        %v2520 = vpop.permute.xlu0 %2519
        %2521 = vrot.lane.b32.xlu0 %v1436, 12
        %v2522 = vpop.permute.xlu0 %2521
        %2523 = vrot.lane.b32.xlu0 %v1437, 12
        %v2524 = vpop.permute.xlu0 %2523
        %2525 = vrot.lane.b32.xlu0 %v1438, 12
        %v2526 = vpop.permute.xlu0 %2525
        %2527 = vrot.lane.b32.xlu0 %v1439, 12
        %v2528 = vpop.permute.xlu0 %2527
        %2529 = vrot.lane.b32.xlu0 %v1440, 12
        %v2530 = vpop.permute.xlu0 %2529
        %2531 = vrot.lane.b32.xlu0 %v1441, 12
        %v2532 = vpop.permute.xlu0 %2531
        %2533 = vrot.lane.b32.xlu0 %v1442, 12
        %v2534 = vpop.permute.xlu0 %2533
        %2535 = vrot.lane.b32.xlu0 %v1443, 12
        %v2536 = vpop.permute.xlu0 %2535
        %2537 = vrot.lane.b32.xlu0 %v1444, 12
        %v2538 = vpop.permute.xlu0 %2537
        %2539 = vrot.lane.b32.xlu0 %v1445, 12
        %v2540 = vpop.permute.xlu0 %2539
        %2541 = vrot.lane.b32.xlu0 %v1446, 12
        %v2542 = vpop.permute.xlu0 %2541
        %2543 = vrot.lane.b32.xlu0 %v1447, 12
        %v2544 = vpop.permute.xlu0 %2543
        %2545 = vrot.lane.b32.xlu0 %v1448, 12
        %v2546 = vpop.permute.xlu0 %2545
        %2547 = vrot.lane.b32.xlu0 %v1449, 12
        %v2548 = vpop.permute.xlu0 %2547
        %2549 = vrot.lane.b32.xlu0 %v1450, 12
        %v2550 = vpop.permute.xlu0 %2549
        %2651 = vrot.lane.b32.xlu0 %v1501, 15
        %v2652 = vpop.permute.xlu0 %2651
        %2653 = vrot.lane.b32.xlu0 %v1502, 15
        %v2654 = vpop.permute.xlu0 %2653
        %2655 = vrot.lane.b32.xlu0 %v1503, 15
        %v2656 = vpop.permute.xlu0 %2655
        %2657 = vrot.lane.b32.xlu0 %v1504, 15
        %v2658 = vpop.permute.xlu0 %2657
        %2659 = vrot.lane.b32.xlu0 %v1505, 15
        %v2660 = vpop.permute.xlu0 %2659
        %2661 = vrot.lane.b32.xlu0 %v1506, 15
        %v2662 = vpop.permute.xlu0 %2661
        %2663 = vrot.lane.b32.xlu0 %v1507, 15
        %v2664 = vpop.permute.xlu0 %2663
        %2665 = vrot.lane.b32.xlu0 %v1508, 15
        %v2666 = vpop.permute.xlu0 %2665
        %2667 = vrot.lane.b32.xlu0 %v1509, 15
        %v2668 = vpop.permute.xlu0 %2667
        %2669 = vrot.lane.b32.xlu0 %v1510, 15
        %v2670 = vpop.permute.xlu0 %2669
        %2671 = vrot.lane.b32.xlu0 %v1511, 15
        %v2672 = vpop.permute.xlu0 %2671
        %2673 = vrot.lane.b32.xlu0 %v1512, 15
        %v2674 = vpop.permute.xlu0 %2673
        %2675 = vrot.lane.b32.xlu0 %v1513, 15
        %v2676 = vpop.permute.xlu0 %2675
        %2677 = vrot.lane.b32.xlu0 %v1514, 15
        %v2678 = vpop.permute.xlu0 %2677
        %2679 = vrot.lane.b32.xlu0 %v1515, 15
        %v2680 = vpop.permute.xlu0 %2679
        %2681 = vrot.lane.b32.xlu0 %v1516, 15
        %v2682 = vpop.permute.xlu0 %2681
        %2683 = vrot.lane.b32.xlu0 %v1517, 15
        %v2684 = vpop.permute.xlu0 %2683
        %2685 = vrot.lane.b32.xlu0 %v1518, 15
        %v2686 = vpop.permute.xlu0 %2685
        %2687 = vrot.lane.b32.xlu0 %v1519, 15
        %v2688 = vpop.permute.xlu0 %2687
        %2689 = vrot.lane.b32.xlu0 %v1520, 15
        %v2690 = vpop.permute.xlu0 %2689
        %2691 = vrot.lane.b32.xlu0 %v1521, 15
        %v2692 = vpop.permute.xlu0 %2691
        %2693 = vrot.lane.b32.xlu0 %v1522, 15
        %v2694 = vpop.permute.xlu0 %2693
        %2695 = vrot.lane.b32.xlu0 %v1523, 15
        %v2696 = vpop.permute.xlu0 %2695
        %2697 = vrot.lane.b32.xlu0 %v1524, 15
        %v2698 = vpop.permute.xlu0 %2697
        %2699 = vrot.lane.b32.xlu0 %v1525, 15
        %v2700 = vpop.permute.xlu0 %2699
        %2701 = vrot.lane.b32.xlu0 %v1526, 15
        %v2702 = vpop.permute.xlu0 %2701
        %2703 = vrot.lane.b32.xlu0 %v1527, 15
        %v2704 = vpop.permute.xlu0 %2703
        %2705 = vrot.lane.b32.xlu0 %v1528, 15
        %v2706 = vpop.permute.xlu0 %2705
        %2707 = vrot.lane.b32.xlu0 %v1529, 15
        %v2708 = vpop.permute.xlu0 %2707
        %2709 = vrot.lane.b32.xlu0 %v1530, 15
        %v2710 = vpop.permute.xlu0 %2709
        %2711 = vrot.lane.b32.xlu0 %v1531, 15
        %v2712 = vpop.permute.xlu0 %2711
        %2713 = vrot.lane.b32.xlu0 %v1532, 15
        %v2714 = vpop.permute.xlu0 %2713
        %2715 = vrot.lane.b32.xlu0 %v1533, 15
        %v2716 = vpop.permute.xlu0 %2715
        %2717 = vrot.lane.b32.xlu0 %v1534, 15
        %v2718 = vpop.permute.xlu0 %2717
        %2719 = vrot.lane.b32.xlu0 %v1535, 15
        %v2720 = vpop.permute.xlu0 %2719
        %2721 = vrot.lane.b32.xlu0 %v1536, 15
        %v2722 = vpop.permute.xlu0 %2721
        %2723 = vrot.lane.b32.xlu0 %v1537, 15
        %v2724 = vpop.permute.xlu0 %2723
        %2725 = vrot.lane.b32.xlu0 %v1538, 15
        %v2726 = vpop.permute.xlu0 %2725
        %2727 = vrot.lane.b32.xlu0 %v1539, 15
        %v2728 = vpop.permute.xlu0 %2727
        %2729 = vrot.lane.b32.xlu0 %v1540, 15
        %v2730 = vpop.permute.xlu0 %2729
        %2731 = vrot.lane.b32.xlu0 %v1541, 15
        %v2732 = vpop.permute.xlu0 %2731
        %2733 = vrot.lane.b32.xlu0 %v1542, 15
        %v2734 = vpop.permute.xlu0 %2733
        %2735 = vrot.lane.b32.xlu0 %v1543, 15
        %v2736 = vpop.permute.xlu0 %2735
        %2737 = vrot.lane.b32.xlu0 %v1544, 15
        %v2738 = vpop.permute.xlu0 %2737
        %2739 = vrot.lane.b32.xlu0 %v1545, 15
        %v2740 = vpop.permute.xlu0 %2739
        %2741 = vrot.lane.b32.xlu0 %v1546, 15
        %v2742 = vpop.permute.xlu0 %2741
        %2743 = vrot.lane.b32.xlu0 %v1547, 15
        %v2744 = vpop.permute.xlu0 %2743
        %2745 = vrot.lane.b32.xlu0 %v1548, 15
        %v2746 = vpop.permute.xlu0 %2745
        %2747 = vrot.lane.b32.xlu0 %v1549, 15
        %v2748 = vpop.permute.xlu0 %2747
        %2749 = vrot.lane.b32.xlu0 %v1550, 15
        %v2750 = vpop.permute.xlu0 %2749
        %2851 = vrot.lane.b32.xlu0 %v1601, 18
        %v2852 = vpop.permute.xlu0 %2851
        %2853 = vrot.lane.b32.xlu0 %v1602, 18
        %v2854 = vpop.permute.xlu0 %2853
        %2855 = vrot.lane.b32.xlu0 %v1603, 18
        %v2856 = vpop.permute.xlu0 %2855
        %2857 = vrot.lane.b32.xlu0 %v1604, 18
        %v2858 = vpop.permute.xlu0 %2857
        %2859 = vrot.lane.b32.xlu0 %v1605, 18
        %v2860 = vpop.permute.xlu0 %2859
        %2861 = vrot.lane.b32.xlu0 %v1606, 18
        %v2862 = vpop.permute.xlu0 %2861
        %2863 = vrot.lane.b32.xlu0 %v1607, 18
        %v2864 = vpop.permute.xlu0 %2863
        %2865 = vrot.lane.b32.xlu0 %v1608, 18
        %v2866 = vpop.permute.xlu0 %2865
        %2867 = vrot.lane.b32.xlu0 %v1609, 18
        %v2868 = vpop.permute.xlu0 %2867
        %2869 = vrot.lane.b32.xlu0 %v1610, 18
        %v2870 = vpop.permute.xlu0 %2869
        %2871 = vrot.lane.b32.xlu0 %v1611, 18
        %v2872 = vpop.permute.xlu0 %2871
        %2873 = vrot.lane.b32.xlu0 %v1612, 18
        %v2874 = vpop.permute.xlu0 %2873
        %2875 = vrot.lane.b32.xlu0 %v1613, 18
        %v2876 = vpop.permute.xlu0 %2875
        %2877 = vrot.lane.b32.xlu0 %v1614, 18
        %v2878 = vpop.permute.xlu0 %2877
        %2879 = vrot.lane.b32.xlu0 %v1615, 18
        %v2880 = vpop.permute.xlu0 %2879
        %2881 = vrot.lane.b32.xlu0 %v1616, 18
        %v2882 = vpop.permute.xlu0 %2881
        %2883 = vrot.lane.b32.xlu0 %v1617, 18
        %v2884 = vpop.permute.xlu0 %2883
        %2885 = vrot.lane.b32.xlu0 %v1618, 18
        %v2886 = vpop.permute.xlu0 %2885
        %2887 = vrot.lane.b32.xlu0 %v1619, 18
        %v2888 = vpop.permute.xlu0 %2887
        %2889 = vrot.lane.b32.xlu0 %v1620, 18
        %v2890 = vpop.permute.xlu0 %2889
        %2891 = vrot.lane.b32.xlu0 %v1621, 18
        %v2892 = vpop.permute.xlu0 %2891
        %2893 = vrot.lane.b32.xlu0 %v1622, 18
        %v2894 = vpop.permute.xlu0 %2893
        %2895 = vrot.lane.b32.xlu0 %v1623, 18
        %v2896 = vpop.permute.xlu0 %2895
        %2897 = vrot.lane.b32.xlu0 %v1624, 18
        %v2898 = vpop.permute.xlu0 %2897
        %2899 = vrot.lane.b32.xlu0 %v1625, 18
        %v2900 = vpop.permute.xlu0 %2899
        %2901 = vrot.lane.b32.xlu0 %v1626, 18
        %v2902 = vpop.permute.xlu0 %2901
        %2903 = vrot.lane.b32.xlu0 %v1627, 18
        %v2904 = vpop.permute.xlu0 %2903
        %2905 = vrot.lane.b32.xlu0 %v1628, 18
        %v2906 = vpop.permute.xlu0 %2905
        %2907 = vrot.lane.b32.xlu0 %v1629, 18
        %v2908 = vpop.permute.xlu0 %2907
        %2909 = vrot.lane.b32.xlu0 %v1630, 18
        %v2910 = vpop.permute.xlu0 %2909
        %2911 = vrot.lane.b32.xlu0 %v1631, 18
        %v2912 = vpop.permute.xlu0 %2911
        %2913 = vrot.lane.b32.xlu0 %v1632, 18
        %v2914 = vpop.permute.xlu0 %2913
        %2915 = vrot.lane.b32.xlu0 %v1633, 18
        %v2916 = vpop.permute.xlu0 %2915
        %2917 = vrot.lane.b32.xlu0 %v1634, 18
        %v2918 = vpop.permute.xlu0 %2917
        %2919 = vrot.lane.b32.xlu0 %v1635, 18
        %v2920 = vpop.permute.xlu0 %2919
        %2921 = vrot.lane.b32.xlu0 %v1636, 18
        %v2922 = vpop.permute.xlu0 %2921
        %2923 = vrot.lane.b32.xlu0 %v1637, 18
        %v2924 = vpop.permute.xlu0 %2923
        %2925 = vrot.lane.b32.xlu0 %v1638, 18
        %v2926 = vpop.permute.xlu0 %2925
        %2927 = vrot.lane.b32.xlu0 %v1639, 18
        %v2928 = vpop.permute.xlu0 %2927
        %2929 = vrot.lane.b32.xlu0 %v1640, 18
        %v2930 = vpop.permute.xlu0 %2929
        %2931 = vrot.lane.b32.xlu0 %v1641, 18
        %v2932 = vpop.permute.xlu0 %2931
        %2933 = vrot.lane.b32.xlu0 %v1642, 18
        %v2934 = vpop.permute.xlu0 %2933
        %2935 = vrot.lane.b32.xlu0 %v1643, 18
        %v2936 = vpop.permute.xlu0 %2935
        %2937 = vrot.lane.b32.xlu0 %v1644, 18
        %v2938 = vpop.permute.xlu0 %2937
        %2939 = vrot.lane.b32.xlu0 %v1645, 18
        %v2940 = vpop.permute.xlu0 %2939
        %2941 = vrot.lane.b32.xlu0 %v1646, 18
        %v2942 = vpop.permute.xlu0 %2941
        %2943 = vrot.lane.b32.xlu0 %v1647, 18
        %v2944 = vpop.permute.xlu0 %2943
        %2945 = vrot.lane.b32.xlu0 %v1648, 18
        %v2946 = vpop.permute.xlu0 %2945
        %2947 = vrot.lane.b32.xlu0 %v1649, 18
        %v2948 = vpop.permute.xlu0 %2947
        %2949 = vrot.lane.b32.xlu0 %v1650, 18
        %v2950 = vpop.permute.xlu0 %2949
        %3051 = vrot.lane.b32.xlu0 %v1651, 21
        %v3052 = vpop.permute.xlu0 %3051
        %3053 = vrot.lane.b32.xlu0 %v1652, 21
        %v3054 = vpop.permute.xlu0 %3053
        %3055 = vrot.lane.b32.xlu0 %v1653, 21
        %v3056 = vpop.permute.xlu0 %3055
        %3057 = vrot.lane.b32.xlu0 %v1654, 21
        %v3058 = vpop.permute.xlu0 %3057
        %3059 = vrot.lane.b32.xlu0 %v1655, 21
        %v3060 = vpop.permute.xlu0 %3059
        %3061 = vrot.lane.b32.xlu0 %v1656, 21
        %v3062 = vpop.permute.xlu0 %3061
        %3063 = vrot.lane.b32.xlu0 %v1657, 21
        %v3064 = vpop.permute.xlu0 %3063
        %3065 = vrot.lane.b32.xlu0 %v1658, 21
        %v3066 = vpop.permute.xlu0 %3065
        %3067 = vrot.lane.b32.xlu0 %v1659, 21
        %v3068 = vpop.permute.xlu0 %3067
        %3069 = vrot.lane.b32.xlu0 %v1660, 21
        %v3070 = vpop.permute.xlu0 %3069
        %3071 = vrot.lane.b32.xlu0 %v1661, 21
        %v3072 = vpop.permute.xlu0 %3071
        %3073 = vrot.lane.b32.xlu0 %v1662, 21
        %v3074 = vpop.permute.xlu0 %3073
        %3075 = vrot.lane.b32.xlu0 %v1663, 21
        %v3076 = vpop.permute.xlu0 %3075
        %3077 = vrot.lane.b32.xlu0 %v1664, 21
        %v3078 = vpop.permute.xlu0 %3077
        %3079 = vrot.lane.b32.xlu0 %v1665, 21
        %v3080 = vpop.permute.xlu0 %3079
        %3081 = vrot.lane.b32.xlu0 %v1666, 21
        %v3082 = vpop.permute.xlu0 %3081
        %3083 = vrot.lane.b32.xlu0 %v1667, 21
        %v3084 = vpop.permute.xlu0 %3083
        %3085 = vrot.lane.b32.xlu0 %v1668, 21
        %v3086 = vpop.permute.xlu0 %3085
        %3087 = vrot.lane.b32.xlu0 %v1669, 21
        %v3088 = vpop.permute.xlu0 %3087
        %3089 = vrot.lane.b32.xlu0 %v1670, 21
        %v3090 = vpop.permute.xlu0 %3089
        %3091 = vrot.lane.b32.xlu0 %v1671, 21
        %v3092 = vpop.permute.xlu0 %3091
        %3093 = vrot.lane.b32.xlu0 %v1672, 21
        %v3094 = vpop.permute.xlu0 %3093
        %3095 = vrot.lane.b32.xlu0 %v1673, 21
        %v3096 = vpop.permute.xlu0 %3095
        %3097 = vrot.lane.b32.xlu0 %v1674, 21
        %v3098 = vpop.permute.xlu0 %3097
        %3099 = vrot.lane.b32.xlu0 %v1675, 21
        %v3100 = vpop.permute.xlu0 %3099
        %3101 = vrot.lane.b32.xlu0 %v1676, 21
        %v3102 = vpop.permute.xlu0 %3101
        %3103 = vrot.lane.b32.xlu0 %v1677, 21
        %v3104 = vpop.permute.xlu0 %3103
        %3105 = vrot.lane.b32.xlu0 %v1678, 21
        %v3106 = vpop.permute.xlu0 %3105
        %3107 = vrot.lane.b32.xlu0 %v1679, 21
        %v3108 = vpop.permute.xlu0 %3107
        %3109 = vrot.lane.b32.xlu0 %v1680, 21
        %v3110 = vpop.permute.xlu0 %3109
        %3111 = vrot.lane.b32.xlu0 %v1681, 21
        %v3112 = vpop.permute.xlu0 %3111
        %3113 = vrot.lane.b32.xlu0 %v1682, 21
        %v3114 = vpop.permute.xlu0 %3113
        %3115 = vrot.lane.b32.xlu0 %v1683, 21
        %v3116 = vpop.permute.xlu0 %3115
        %3117 = vrot.lane.b32.xlu0 %v1684, 21
        %v3118 = vpop.permute.xlu0 %3117
        %3119 = vrot.lane.b32.xlu0 %v1685, 21
        %v3120 = vpop.permute.xlu0 %3119
        %3121 = vrot.lane.b32.xlu0 %v1686, 21
        %v3122 = vpop.permute.xlu0 %3121
        %3123 = vrot.lane.b32.xlu0 %v1687, 21
        %v3124 = vpop.permute.xlu0 %3123
        %3125 = vrot.lane.b32.xlu0 %v1688, 21
        %v3126 = vpop.permute.xlu0 %3125
        %3127 = vrot.lane.b32.xlu0 %v1689, 21
        %v3128 = vpop.permute.xlu0 %3127
        %3129 = vrot.lane.b32.xlu0 %v1690, 21
        %v3130 = vpop.permute.xlu0 %3129
        %3131 = vrot.lane.b32.xlu0 %v1691, 21
        %v3132 = vpop.permute.xlu0 %3131
        %3133 = vrot.lane.b32.xlu0 %v1692, 21
        %v3134 = vpop.permute.xlu0 %3133
        %3135 = vrot.lane.b32.xlu0 %v1693, 21
        %v3136 = vpop.permute.xlu0 %3135
        %3137 = vrot.lane.b32.xlu0 %v1694, 21
        %v3138 = vpop.permute.xlu0 %3137
        %3139 = vrot.lane.b32.xlu0 %v1695, 21
        %v3140 = vpop.permute.xlu0 %3139
        %3141 = vrot.lane.b32.xlu0 %v1696, 21
        %v3142 = vpop.permute.xlu0 %3141
        %3143 = vrot.lane.b32.xlu0 %v1697, 21
        %v3144 = vpop.permute.xlu0 %3143
        %3145 = vrot.lane.b32.xlu0 %v1698, 21
        %v3146 = vpop.permute.xlu0 %3145
        %3147 = vrot.lane.b32.xlu0 %v1699, 21
        %v3148 = vpop.permute.xlu0 %3147
        %3149 = vrot.lane.b32.xlu0 %v1700, 21
        %v3150 = vpop.permute.xlu0 %3149
        %3251 = vrot.lane.b32.xlu0 %v1751, 24
        %v3252 = vpop.permute.xlu0 %3251
        %3253 = vrot.lane.b32.xlu0 %v1752, 24
        %v3254 = vpop.permute.xlu0 %3253
        %3255 = vrot.lane.b32.xlu0 %v1753, 24
        %v3256 = vpop.permute.xlu0 %3255
        %3257 = vrot.lane.b32.xlu0 %v1754, 24
        %v3258 = vpop.permute.xlu0 %3257
        %3259 = vrot.lane.b32.xlu0 %v1755, 24
        %v3260 = vpop.permute.xlu0 %3259
        %3261 = vrot.lane.b32.xlu0 %v1756, 24
        %v3262 = vpop.permute.xlu0 %3261
        %3263 = vrot.lane.b32.xlu0 %v1757, 24
        %v3264 = vpop.permute.xlu0 %3263
        %3265 = vrot.lane.b32.xlu0 %v1758, 24
        %v3266 = vpop.permute.xlu0 %3265
        %3267 = vrot.lane.b32.xlu0 %v1759, 24
        %v3268 = vpop.permute.xlu0 %3267
        %3269 = vrot.lane.b32.xlu0 %v1760, 24
        %v3270 = vpop.permute.xlu0 %3269
        %3271 = vrot.lane.b32.xlu0 %v1761, 24
        %v3272 = vpop.permute.xlu0 %3271
        %3273 = vrot.lane.b32.xlu0 %v1762, 24
        %v3274 = vpop.permute.xlu0 %3273
        %3275 = vrot.lane.b32.xlu0 %v1763, 24
        %v3276 = vpop.permute.xlu0 %3275
        %3277 = vrot.lane.b32.xlu0 %v1764, 24
        %v3278 = vpop.permute.xlu0 %3277
        %3279 = vrot.lane.b32.xlu0 %v1765, 24
        %v3280 = vpop.permute.xlu0 %3279
        %3281 = vrot.lane.b32.xlu0 %v1766, 24
        %v3282 = vpop.permute.xlu0 %3281
        %3283 = vrot.lane.b32.xlu0 %v1767, 24
        %v3284 = vpop.permute.xlu0 %3283
        %3285 = vrot.lane.b32.xlu0 %v1768, 24
        %v3286 = vpop.permute.xlu0 %3285
        %3287 = vrot.lane.b32.xlu0 %v1769, 24
        %v3288 = vpop.permute.xlu0 %3287
        %3289 = vrot.lane.b32.xlu0 %v1770, 24
        %v3290 = vpop.permute.xlu0 %3289
        %3291 = vrot.lane.b32.xlu0 %v1771, 24
        %v3292 = vpop.permute.xlu0 %3291
        %3293 = vrot.lane.b32.xlu0 %v1772, 24
        %v3294 = vpop.permute.xlu0 %3293
        %3295 = vrot.lane.b32.xlu0 %v1773, 24
        %v3296 = vpop.permute.xlu0 %3295
        %3297 = vrot.lane.b32.xlu0 %v1774, 24
        %v3298 = vpop.permute.xlu0 %3297
        %3299 = vrot.lane.b32.xlu0 %v1775, 24
        %v3300 = vpop.permute.xlu0 %3299
        %3301 = vrot.lane.b32.xlu0 %v1776, 24
        %v3302 = vpop.permute.xlu0 %3301
        %3303 = vrot.lane.b32.xlu0 %v1777, 24
        %v3304 = vpop.permute.xlu0 %3303
        %3305 = vrot.lane.b32.xlu0 %v1778, 24
        %v3306 = vpop.permute.xlu0 %3305
        %3307 = vrot.lane.b32.xlu0 %v1779, 24
        %v3308 = vpop.permute.xlu0 %3307
        %3309 = vrot.lane.b32.xlu0 %v1780, 24
        %v3310 = vpop.permute.xlu0 %3309
        %3311 = vrot.lane.b32.xlu0 %v1781, 24
        %v3312 = vpop.permute.xlu0 %3311
        %3313 = vrot.lane.b32.xlu0 %v1782, 24
        %v3314 = vpop.permute.xlu0 %3313
        %3315 = vrot.lane.b32.xlu0 %v1783, 24
        %v3316 = vpop.permute.xlu0 %3315
        %3317 = vrot.lane.b32.xlu0 %v1784, 24
        %v3318 = vpop.permute.xlu0 %3317
        %3319 = vrot.lane.b32.xlu0 %v1785, 24
        %v3320 = vpop.permute.xlu0 %3319
        %3321 = vrot.lane.b32.xlu0 %v1786, 24
        %v3322 = vpop.permute.xlu0 %3321
        %3323 = vrot.lane.b32.xlu0 %v1787, 24
        %v3324 = vpop.permute.xlu0 %3323
        %3325 = vrot.lane.b32.xlu0 %v1788, 24
        %v3326 = vpop.permute.xlu0 %3325
        %3327 = vrot.lane.b32.xlu0 %v1789, 24
        %v3328 = vpop.permute.xlu0 %3327
        %3329 = vrot.lane.b32.xlu0 %v1790, 24
        %v3330 = vpop.permute.xlu0 %3329
        %3331 = vrot.lane.b32.xlu0 %v1791, 24
        %v3332 = vpop.permute.xlu0 %3331
        %3333 = vrot.lane.b32.xlu0 %v1792, 24
        %v3334 = vpop.permute.xlu0 %3333
        %3335 = vrot.lane.b32.xlu0 %v1793, 24
        %v3336 = vpop.permute.xlu0 %3335
        %3337 = vrot.lane.b32.xlu0 %v1794, 24
        %v3338 = vpop.permute.xlu0 %3337
        %3339 = vrot.lane.b32.xlu0 %v1795, 24
        %v3340 = vpop.permute.xlu0 %3339
        %3341 = vrot.lane.b32.xlu0 %v1796, 24
        %v3342 = vpop.permute.xlu0 %3341
        %3343 = vrot.lane.b32.xlu0 %v1797, 24
        %v3344 = vpop.permute.xlu0 %3343
        %3345 = vrot.lane.b32.xlu0 %v1798, 24
        %v3346 = vpop.permute.xlu0 %3345
        %3347 = vrot.lane.b32.xlu0 %v1799, 24
        %v3348 = vpop.permute.xlu0 %3347
        %3349 = vrot.lane.b32.xlu0 %v1800, 24
        %v3350 = vpop.permute.xlu0 %3349
        %v3401 = vsel %vm488, %v901, %v1852
        %v3402 = vsel %vm488, %v902, %v1854
        %v3403 = vsel %vm488, %v903, %v1856
        %v3404 = vsel %vm488, %v904, %v1858
        %v3405 = vsel %vm488, %v905, %v1860
        %v3406 = vsel %vm488, %v906, %v1862
        %v3407 = vsel %vm488, %v907, %v1864
        %v3408 = vsel %vm488, %v908, %v1866
        %v3409 = vsel %vm488, %v909, %v1868
        %v3410 = vsel %vm488, %v910, %v1870
        %v3411 = vsel %vm488, %v911, %v1872
        %v3412 = vsel %vm488, %v912, %v1874
        %v3413 = vsel %vm488, %v913, %v1876
        %v3414 = vsel %vm488, %v914, %v1878
        %v3415 = vsel %vm488, %v915, %v1880
        %v3416 = vsel %vm488, %v916, %v1882
        %v3417 = vsel %vm488, %v917, %v1884
        %v3418 = vsel %vm488, %v918, %v1886
        %v3419 = vsel %vm488, %v919, %v1888
        %v3420 = vsel %vm488, %v920, %v1890
        %v3421 = vsel %vm488, %v921, %v1892
        %v3422 = vsel %vm488, %v922, %v1894
        %v3423 = vsel %vm488, %v923, %v1896
        %v3424 = vsel %vm488, %v924, %v1898
        %v3425 = vsel %vm488, %v925, %v1900
        %v3426 = vsel %vm488, %v926, %v1902
        %v3427 = vsel %vm488, %v927, %v1904
        %v3428 = vsel %vm488, %v928, %v1906
        %v3429 = vsel %vm488, %v929, %v1908
        %v3430 = vsel %vm488, %v930, %v1910
        %v3431 = vsel %vm488, %v931, %v1912
        %v3432 = vsel %vm488, %v932, %v1914
        %v3433 = vsel %vm488, %v933, %v1916
        %v3434 = vsel %vm488, %v934, %v1918
        %v3435 = vsel %vm488, %v935, %v1920
        %v3436 = vsel %vm488, %v936, %v1922
        %v3437 = vsel %vm488, %v937, %v1924
        %v3438 = vsel %vm488, %v938, %v1926
        %v3439 = vsel %vm488, %v939, %v1928
        %v3440 = vsel %vm488, %v940, %v1930
        %v3441 = vsel %vm488, %v941, %v1932
        %v3442 = vsel %vm488, %v942, %v1934
        %v3443 = vsel %vm488, %v943, %v1936
        %v3444 = vsel %vm488, %v944, %v1938
        %v3445 = vsel %vm488, %v945, %v1940
        %v3446 = vsel %vm488, %v946, %v1942
        %v3447 = vsel %vm488, %v947, %v1944
        %v3448 = vsel %vm488, %v948, %v1946
        %v3449 = vsel %vm488, %v949, %v1948
        %v3450 = vsel %vm488, %v950, %v1950
        %vm3451 = vcmask 48128
        %v3452 = vsel %vm3451, %v3401, %v2052
        %v3453 = vsel %vm3451, %v3402, %v2054
        %v3454 = vsel %vm3451, %v3403, %v2056
        %v3455 = vsel %vm3451, %v3404, %v2058
        %v3456 = vsel %vm3451, %v3405, %v2060
        %v3457 = vsel %vm3451, %v3406, %v2062
        %v3458 = vsel %vm3451, %v3407, %v2064
        %v3459 = vsel %vm3451, %v3408, %v2066
        %v3460 = vsel %vm3451, %v3409, %v2068
        %v3461 = vsel %vm3451, %v3410, %v2070
        %v3462 = vsel %vm3451, %v3411, %v2072
        %v3463 = vsel %vm3451, %v3412, %v2074
        %v3464 = vsel %vm3451, %v3413, %v2076
        %v3465 = vsel %vm3451, %v3414, %v2078
        %v3466 = vsel %vm3451, %v3415, %v2080
        %v3467 = vsel %vm3451, %v3416, %v2082
        %v3468 = vsel %vm3451, %v3417, %v2084
        %v3469 = vsel %vm3451, %v3418, %v2086
        %v3470 = vsel %vm3451, %v3419, %v2088
        %v3471 = vsel %vm3451, %v3420, %v2090
        %v3472 = vsel %vm3451, %v3421, %v2092
        %v3473 = vsel %vm3451, %v3422, %v2094
        %v3474 = vsel %vm3451, %v3423, %v2096
        %v3475 = vsel %vm3451, %v3424, %v2098
        %v3476 = vsel %vm3451, %v3425, %v2100
        %v3477 = vsel %vm3451, %v3426, %v2102
        %v3478 = vsel %vm3451, %v3427, %v2104
        %v3479 = vsel %vm3451, %v3428, %v2106
        %v3480 = vsel %vm3451, %v3429, %v2108
        %v3481 = vsel %vm3451, %v3430, %v2110
        %v3482 = vsel %vm3451, %v3431, %v2112
        %v3483 = vsel %vm3451, %v3432, %v2114
        %v3484 = vsel %vm3451, %v3433, %v2116
        %v3485 = vsel %vm3451, %v3434, %v2118
        %v3486 = vsel %vm3451, %v3435, %v2120
        %v3487 = vsel %vm3451, %v3436, %v2122
        %v3488 = vsel %vm3451, %v3437, %v2124
        %v3489 = vsel %vm3451, %v3438, %v2126
        %v3490 = vsel %vm3451, %v3439, %v2128
        %v3491 = vsel %vm3451, %v3440, %v2130
        %v3492 = vsel %vm3451, %v3441, %v2132
        %v3493 = vsel %vm3451, %v3442, %v2134
        %v3494 = vsel %vm3451, %v3443, %v2136
        %v3495 = vsel %vm3451, %v3444, %v2138
        %v3496 = vsel %vm3451, %v3445, %v2140
        %v3497 = vsel %vm3451, %v3446, %v2142
        %v3498 = vsel %vm3451, %v3447, %v2144
        %v3499 = vsel %vm3451, %v3448, %v2146
        %v3500 = vsel %vm3451, %v3449, %v2148
        %v3501 = vsel %vm3451, %v3450, %v2150
        %vm3502 = vcmask 72704
        %v3503 = vsel %vm3502, %v3452, %v2252
        %v3504 = vsel %vm3502, %v3453, %v2254
        %v3505 = vsel %vm3502, %v3454, %v2256
        %v3506 = vsel %vm3502, %v3455, %v2258
        %v3507 = vsel %vm3502, %v3456, %v2260
        %v3508 = vsel %vm3502, %v3457, %v2262
        %v3509 = vsel %vm3502, %v3458, %v2264
        %v3510 = vsel %vm3502, %v3459, %v2266
        %v3511 = vsel %vm3502, %v3460, %v2268
        %v3512 = vsel %vm3502, %v3461, %v2270
        %v3513 = vsel %vm3502, %v3462, %v2272
        %v3514 = vsel %vm3502, %v3463, %v2274
        %v3515 = vsel %vm3502, %v3464, %v2276
        %v3516 = vsel %vm3502, %v3465, %v2278
        %v3517 = vsel %vm3502, %v3466, %v2280
        %v3518 = vsel %vm3502, %v3467, %v2282
        %v3519 = vsel %vm3502, %v3468, %v2284
        %v3520 = vsel %vm3502, %v3469, %v2286
        %v3521 = vsel %vm3502, %v3470, %v2288
        %v3522 = vsel %vm3502, %v3471, %v2290
        %v3523 = vsel %vm3502, %v3472, %v2292
        %v3524 = vsel %vm3502, %v3473, %v2294
        %v3525 = vsel %vm3502, %v3474, %v2296
        %v3526 = vsel %vm3502, %v3475, %v2298
        %v3527 = vsel %vm3502, %v3476, %v2300
        %v3528 = vsel %vm3502, %v3477, %v2302
        %v3529 = vsel %vm3502, %v3478, %v2304
        %v3530 = vsel %vm3502, %v3479, %v2306
        %v3531 = vsel %vm3502, %v3480, %v2308
        %v3532 = vsel %vm3502, %v3481, %v2310
        %v3533 = vsel %vm3502, %v3482, %v2312
        %v3534 = vsel %vm3502, %v3483, %v2314
        %v3535 = vsel %vm3502, %v3484, %v2316
        %v3536 = vsel %vm3502, %v3485, %v2318
        %v3537 = vsel %vm3502, %v3486, %v2320
        %v3538 = vsel %vm3502, %v3487, %v2322
        %v3539 = vsel %vm3502, %v3488, %v2324
        %v3540 = vsel %vm3502, %v3489, %v2326
        %v3541 = vsel %vm3502, %v3490, %v2328
        %v3542 = vsel %vm3502, %v3491, %v2330
        %v3543 = vsel %vm3502, %v3492, %v2332
        %v3544 = vsel %vm3502, %v3493, %v2334
        %v3545 = vsel %vm3502, %v3494, %v2336
        %v3546 = vsel %vm3502, %v3495, %v2338
        %v3547 = vsel %vm3502, %v3496, %v2340
        %v3548 = vsel %vm3502, %v3497, %v2342
        %v3549 = vsel %vm3502, %v3498, %v2344
        %v3550 = vsel %vm3502, %v3499, %v2346
        %v3551 = vsel %vm3502, %v3500, %v2348
        %v3552 = vsel %vm3502, %v3501, %v2350
        %vm3553 = vcmask 97280
        %v3554 = vsel %vm3553, %v3503, %v2452
        %v3555 = vsel %vm3553, %v3504, %v2454
        %v3556 = vsel %vm3553, %v3505, %v2456
        %v3557 = vsel %vm3553, %v3506, %v2458
        %v3558 = vsel %vm3553, %v3507, %v2460
        %v3559 = vsel %vm3553, %v3508, %v2462
        %v3560 = vsel %vm3553, %v3509, %v2464
        %v3561 = vsel %vm3553, %v3510, %v2466
        %v3562 = vsel %vm3553, %v3511, %v2468
        %v3563 = vsel %vm3553, %v3512, %v2470
        %v3564 = vsel %vm3553, %v3513, %v2472
        %v3565 = vsel %vm3553, %v3514, %v2474
        %v3566 = vsel %vm3553, %v3515, %v2476
        %v3567 = vsel %vm3553, %v3516, %v2478
        %v3568 = vsel %vm3553, %v3517, %v2480
        %v3569 = vsel %vm3553, %v3518, %v2482
        %v3570 = vsel %vm3553, %v3519, %v2484
        %v3571 = vsel %vm3553, %v3520, %v2486
        %v3572 = vsel %vm3553, %v3521, %v2488
        %v3573 = vsel %vm3553, %v3522, %v2490
        %v3574 = vsel %vm3553, %v3523, %v2492
        %v3575 = vsel %vm3553, %v3524, %v2494
        %v3576 = vsel %vm3553, %v3525, %v2496
        %v3577 = vsel %vm3553, %v3526, %v2498
        %v3578 = vsel %vm3553, %v3527, %v2500
        %v3579 = vsel %vm3553, %v3528, %v2502
        %v3580 = vsel %vm3553, %v3529, %v2504
        %v3581 = vsel %vm3553, %v3530, %v2506
        %v3582 = vsel %vm3553, %v3531, %v2508
        %v3583 = vsel %vm3553, %v3532, %v2510
        %v3584 = vsel %vm3553, %v3533, %v2512
        %v3585 = vsel %vm3553, %v3534, %v2514
        %v3586 = vsel %vm3553, %v3535, %v2516
        %v3587 = vsel %vm3553, %v3536, %v2518
        %v3588 = vsel %vm3553, %v3537, %v2520
        %v3589 = vsel %vm3553, %v3538, %v2522
        %v3590 = vsel %vm3553, %v3539, %v2524
        %v3591 = vsel %vm3553, %v3540, %v2526
        %v3592 = vsel %vm3553, %v3541, %v2528
        %v3593 = vsel %vm3553, %v3542, %v2530
        %v3594 = vsel %vm3553, %v3543, %v2532
        %v3595 = vsel %vm3553, %v3544, %v2534
        %v3596 = vsel %vm3553, %v3545, %v2536
        %v3597 = vsel %vm3553, %v3546, %v2538
        %v3598 = vsel %vm3553, %v3547, %v2540
        %v3599 = vsel %vm3553, %v3548, %v2542
        %v3600 = vsel %vm3553, %v3549, %v2544
        %v3601 = vsel %vm3553, %v3550, %v2546
        %v3602 = vsel %vm3553, %v3551, %v2548
        %v3603 = vsel %vm3553, %v3552, %v2550
        %vm3604 = vcmask 121856
        %v3605 = vsel %vm3604, %v3554, %v2652
        %v3606 = vsel %vm3604, %v3555, %v2654
        %v3607 = vsel %vm3604, %v3556, %v2656
        %v3608 = vsel %vm3604, %v3557, %v2658
        %v3609 = vsel %vm3604, %v3558, %v2660
        %v3610 = vsel %vm3604, %v3559, %v2662
        %v3611 = vsel %vm3604, %v3560, %v2664
        %v3612 = vsel %vm3604, %v3561, %v2666
        %v3613 = vsel %vm3604, %v3562, %v2668
        %v3614 = vsel %vm3604, %v3563, %v2670
        %v3615 = vsel %vm3604, %v3564, %v2672
        %v3616 = vsel %vm3604, %v3565, %v2674
        %v3617 = vsel %vm3604, %v3566, %v2676
        %v3618 = vsel %vm3604, %v3567, %v2678
        %v3619 = vsel %vm3604, %v3568, %v2680
        %v3620 = vsel %vm3604, %v3569, %v2682
        %v3621 = vsel %vm3604, %v3570, %v2684
        %v3622 = vsel %vm3604, %v3571, %v2686
        %v3623 = vsel %vm3604, %v3572, %v2688
        %v3624 = vsel %vm3604, %v3573, %v2690
        %v3625 = vsel %vm3604, %v3574, %v2692
        %v3626 = vsel %vm3604, %v3575, %v2694
        %v3627 = vsel %vm3604, %v3576, %v2696
        %v3628 = vsel %vm3604, %v3577, %v2698
        %v3629 = vsel %vm3604, %v3578, %v2700
        %v3630 = vsel %vm3604, %v3579, %v2702
        %v3631 = vsel %vm3604, %v3580, %v2704
        %v3632 = vsel %vm3604, %v3581, %v2706
        %v3633 = vsel %vm3604, %v3582, %v2708
        %v3634 = vsel %vm3604, %v3583, %v2710
        %v3635 = vsel %vm3604, %v3584, %v2712
        %v3636 = vsel %vm3604, %v3585, %v2714
        %v3637 = vsel %vm3604, %v3586, %v2716
        %v3638 = vsel %vm3604, %v3587, %v2718
        %v3639 = vsel %vm3604, %v3588, %v2720
        %v3640 = vsel %vm3604, %v3589, %v2722
        %v3641 = vsel %vm3604, %v3590, %v2724
        %v3642 = vsel %vm3604, %v3591, %v2726
        %v3643 = vsel %vm3604, %v3592, %v2728
        %v3644 = vsel %vm3604, %v3593, %v2730
        %v3645 = vsel %vm3604, %v3594, %v2732
        %v3646 = vsel %vm3604, %v3595, %v2734
        %v3647 = vsel %vm3604, %v3596, %v2736
        %v3648 = vsel %vm3604, %v3597, %v2738
        %v3649 = vsel %vm3604, %v3598, %v2740
        %v3650 = vsel %vm3604, %v3599, %v2742
        %v3651 = vsel %vm3604, %v3600, %v2744
        %v3652 = vsel %vm3604, %v3601, %v2746
        %v3653 = vsel %vm3604, %v3602, %v2748
        %v3654 = vsel %vm3604, %v3603, %v2750
        %vm3655 = vcmask 146432
        %v3656 = vsel %vm3655, %v3605, %v2852
        %v3657 = vsel %vm3655, %v3606, %v2854
        %v3658 = vsel %vm3655, %v3607, %v2856
        %v3659 = vsel %vm3655, %v3608, %v2858
        %v3660 = vsel %vm3655, %v3609, %v2860
        %v3661 = vsel %vm3655, %v3610, %v2862
        %v3662 = vsel %vm3655, %v3611, %v2864
        %v3663 = vsel %vm3655, %v3612, %v2866
        %v3664 = vsel %vm3655, %v3613, %v2868
        %v3665 = vsel %vm3655, %v3614, %v2870
        %v3666 = vsel %vm3655, %v3615, %v2872
        %v3667 = vsel %vm3655, %v3616, %v2874
        %v3668 = vsel %vm3655, %v3617, %v2876
        %v3669 = vsel %vm3655, %v3618, %v2878
        %v3670 = vsel %vm3655, %v3619, %v2880
        %v3671 = vsel %vm3655, %v3620, %v2882
        %v3672 = vsel %vm3655, %v3621, %v2884
        %v3673 = vsel %vm3655, %v3622, %v2886
        %v3674 = vsel %vm3655, %v3623, %v2888
        %v3675 = vsel %vm3655, %v3624, %v2890
        %v3676 = vsel %vm3655, %v3625, %v2892
        %v3677 = vsel %vm3655, %v3626, %v2894
        %v3678 = vsel %vm3655, %v3627, %v2896
        %v3679 = vsel %vm3655, %v3628, %v2898
        %v3680 = vsel %vm3655, %v3629, %v2900
        %v3681 = vsel %vm3655, %v3630, %v2902
        %v3682 = vsel %vm3655, %v3631, %v2904
        %v3683 = vsel %vm3655, %v3632, %v2906
        %v3684 = vsel %vm3655, %v3633, %v2908
        %v3685 = vsel %vm3655, %v3634, %v2910
        %v3686 = vsel %vm3655, %v3635, %v2912
        %v3687 = vsel %vm3655, %v3636, %v2914
        %v3688 = vsel %vm3655, %v3637, %v2916
        %v3689 = vsel %vm3655, %v3638, %v2918
        %v3690 = vsel %vm3655, %v3639, %v2920
        %v3691 = vsel %vm3655, %v3640, %v2922
        %v3692 = vsel %vm3655, %v3641, %v2924
        %v3693 = vsel %vm3655, %v3642, %v2926
        %v3694 = vsel %vm3655, %v3643, %v2928
        %v3695 = vsel %vm3655, %v3644, %v2930
        %v3696 = vsel %vm3655, %v3645, %v2932
        %v3697 = vsel %vm3655, %v3646, %v2934
        %v3698 = vsel %vm3655, %v3647, %v2936
        %v3699 = vsel %vm3655, %v3648, %v2938
        %v3700 = vsel %vm3655, %v3649, %v2940
        %v3701 = vsel %vm3655, %v3650, %v2942
        %v3702 = vsel %vm3655, %v3651, %v2944
        %v3703 = vsel %vm3655, %v3652, %v2946
        %v3704 = vsel %vm3655, %v3653, %v2948
        %v3705 = vsel %vm3655, %v3654, %v2950
        %vm3706 = vcmask 171008
        %v3707 = vsel %vm3706, %v3656, %v3052
        %v3708 = vsel %vm3706, %v3657, %v3054
        %v3709 = vsel %vm3706, %v3658, %v3056
        %v3710 = vsel %vm3706, %v3659, %v3058
        %v3711 = vsel %vm3706, %v3660, %v3060
        %v3712 = vsel %vm3706, %v3661, %v3062
        %v3713 = vsel %vm3706, %v3662, %v3064
        %v3714 = vsel %vm3706, %v3663, %v3066
        %v3715 = vsel %vm3706, %v3664, %v3068
        %v3716 = vsel %vm3706, %v3665, %v3070
        %v3717 = vsel %vm3706, %v3666, %v3072
        %v3718 = vsel %vm3706, %v3667, %v3074
        %v3719 = vsel %vm3706, %v3668, %v3076
        %v3720 = vsel %vm3706, %v3669, %v3078
        %v3721 = vsel %vm3706, %v3670, %v3080
        %v3722 = vsel %vm3706, %v3671, %v3082
        %v3723 = vsel %vm3706, %v3672, %v3084
        %v3724 = vsel %vm3706, %v3673, %v3086
        %v3725 = vsel %vm3706, %v3674, %v3088
        %v3726 = vsel %vm3706, %v3675, %v3090
        %v3727 = vsel %vm3706, %v3676, %v3092
        %v3728 = vsel %vm3706, %v3677, %v3094
        %v3729 = vsel %vm3706, %v3678, %v3096
        %v3730 = vsel %vm3706, %v3679, %v3098
        %v3731 = vsel %vm3706, %v3680, %v3100
        %v3732 = vsel %vm3706, %v3681, %v3102
        %v3733 = vsel %vm3706, %v3682, %v3104
        %v3734 = vsel %vm3706, %v3683, %v3106
        %v3735 = vsel %vm3706, %v3684, %v3108
        %v3736 = vsel %vm3706, %v3685, %v3110
        %v3737 = vsel %vm3706, %v3686, %v3112
        %v3738 = vsel %vm3706, %v3687, %v3114
        %v3739 = vsel %vm3706, %v3688, %v3116
        %v3740 = vsel %vm3706, %v3689, %v3118
        %v3741 = vsel %vm3706, %v3690, %v3120
        %v3742 = vsel %vm3706, %v3691, %v3122
        %v3743 = vsel %vm3706, %v3692, %v3124
        %v3744 = vsel %vm3706, %v3693, %v3126
        %v3745 = vsel %vm3706, %v3694, %v3128
        %v3746 = vsel %vm3706, %v3695, %v3130
        %v3747 = vsel %vm3706, %v3696, %v3132
        %v3748 = vsel %vm3706, %v3697, %v3134
        %v3749 = vsel %vm3706, %v3698, %v3136
        %v3750 = vsel %vm3706, %v3699, %v3138
        %v3751 = vsel %vm3706, %v3700, %v3140
        %v3752 = vsel %vm3706, %v3701, %v3142
        %v3753 = vsel %vm3706, %v3702, %v3144
        %v3754 = vsel %vm3706, %v3703, %v3146
        %v3755 = vsel %vm3706, %v3704, %v3148
        %v3756 = vsel %vm3706, %v3705, %v3150
        %vm3757 = vcmask 195584
        %v3758 = vsel %vm3757, %v3707, %v3252
        %v3759 = vsel %vm3757, %v3708, %v3254
        %v3760 = vsel %vm3757, %v3709, %v3256
        %v3761 = vsel %vm3757, %v3710, %v3258
        %v3762 = vsel %vm3757, %v3711, %v3260
        %v3763 = vsel %vm3757, %v3712, %v3262
        %v3764 = vsel %vm3757, %v3713, %v3264
        %v3765 = vsel %vm3757, %v3714, %v3266
        %v3766 = vsel %vm3757, %v3715, %v3268
        %v3767 = vsel %vm3757, %v3716, %v3270
        %v3768 = vsel %vm3757, %v3717, %v3272
        %v3769 = vsel %vm3757, %v3718, %v3274
        %v3770 = vsel %vm3757, %v3719, %v3276
        %v3771 = vsel %vm3757, %v3720, %v3278
        %v3772 = vsel %vm3757, %v3721, %v3280
        %v3773 = vsel %vm3757, %v3722, %v3282
        %v3774 = vsel %vm3757, %v3723, %v3284
        %v3775 = vsel %vm3757, %v3724, %v3286
        %v3776 = vsel %vm3757, %v3725, %v3288
        %v3777 = vsel %vm3757, %v3726, %v3290
        %v3778 = vsel %vm3757, %v3727, %v3292
        %v3779 = vsel %vm3757, %v3728, %v3294
        %v3780 = vsel %vm3757, %v3729, %v3296
        %v3781 = vsel %vm3757, %v3730, %v3298
        %v3782 = vsel %vm3757, %v3731, %v3300
        %v3783 = vsel %vm3757, %v3732, %v3302
        %v3784 = vsel %vm3757, %v3733, %v3304
        %v3785 = vsel %vm3757, %v3734, %v3306
        %v3786 = vsel %vm3757, %v3735, %v3308
        %v3787 = vsel %vm3757, %v3736, %v3310
        %v3788 = vsel %vm3757, %v3737, %v3312
        %v3789 = vsel %vm3757, %v3738, %v3314
        %v3790 = vsel %vm3757, %v3739, %v3316
        %v3791 = vsel %vm3757, %v3740, %v3318
        %v3792 = vsel %vm3757, %v3741, %v3320
        %v3793 = vsel %vm3757, %v3742, %v3322
        %v3794 = vsel %vm3757, %v3743, %v3324
        %v3795 = vsel %vm3757, %v3744, %v3326
        %v3796 = vsel %vm3757, %v3745, %v3328
        %v3797 = vsel %vm3757, %v3746, %v3330
        %v3798 = vsel %vm3757, %v3747, %v3332
        %v3799 = vsel %vm3757, %v3748, %v3334
        %v3800 = vsel %vm3757, %v3749, %v3336
        %v3801 = vsel %vm3757, %v3750, %v3338
        %v3802 = vsel %vm3757, %v3751, %v3340
        %v3803 = vsel %vm3757, %v3752, %v3342
        %v3804 = vsel %vm3757, %v3753, %v3344
        %v3805 = vsel %vm3757, %v3754, %v3346
        %v3806 = vsel %vm3757, %v3755, %v3348
        %v3807 = vsel %vm3757, %v3756, %v3350
        %v3809 = vperm.slane %v543, 0
        %vm3811 = vcmask 220160
        %v3813 = vsel %vm3811, %v3758, 0
        %v3816 = vsel %vm3811, %v3759, 0
        %v3819 = vsel %vm3811, %v3760, 0
        %v3822 = vsel %vm3811, %v3761, 0
        %v3825 = vsel %vm3811, %v3762, 0
        %v3828 = vsel %vm3811, %v3763, 0
        %v3831 = vsel %vm3811, %v3764, 0
        %v3834 = vsel %vm3811, %v3765, 0
        %v3837 = vsel %vm3811, %v3766, 0
        %v3840 = vsel %vm3811, %v3767, 0
        %v3843 = vsel %vm3811, %v3768, 0
        %v3846 = vsel %vm3811, %v3769, 0
        %v3849 = vsel %vm3811, %v3770, 0
        %v3852 = vsel %vm3811, %v3771, 0
        %v3855 = vsel %vm3811, %v3772, 0
        %v3858 = vsel %vm3811, %v3773, 0
        %v3861 = vsel %vm3811, %v3774, 0
        %v3864 = vsel %vm3811, %v3775, 0
        %v3867 = vsel %vm3811, %v3776, 0
        %v3870 = vsel %vm3811, %v3777, 0
        %v3873 = vsel %vm3811, %v3778, 0
        %v3876 = vsel %vm3811, %v3779, 0
        %v3879 = vsel %vm3811, %v3780, 0
        %v3882 = vsel %vm3811, %v3781, 0
        %v3885 = vsel %vm3811, %v3782, 0
        %v3888 = vsel %vm3811, %v3783, 0
        %v3891 = vsel %vm3811, %v3784, 0
        %v3894 = vsel %vm3811, %v3785, 0
        %v3897 = vsel %vm3811, %v3786, 0
        %v3900 = vsel %vm3811, %v3787, 0
        %v3903 = vsel %vm3811, %v3788, 0
        %v3906 = vsel %vm3811, %v3789, 0
        %v3909 = vsel %vm3811, %v3790, 0
        %v3912 = vsel %vm3811, %v3791, 0
        %v3915 = vsel %vm3811, %v3792, 0
        %v3918 = vsel %vm3811, %v3793, 0
        %v3921 = vsel %vm3811, %v3794, 0
        %v3924 = vsel %vm3811, %v3795, 0
        %v3927 = vsel %vm3811, %v3796, 0
        %v3930 = vsel %vm3811, %v3797, 0
        %v3933 = vsel %vm3811, %v3798, 0
        %v3936 = vsel %vm3811, %v3799, 0
        %v3939 = vsel %vm3811, %v3800, 0
        %v3942 = vsel %vm3811, %v3801, 0
        %v3945 = vsel %vm3811, %v3802, 0
        %v3948 = vsel %vm3811, %v3803, 0
        %v3951 = vsel %vm3811, %v3804, 0
        %v3954 = vsel %vm3811, %v3805, 0
        %v3957 = vsel %vm3811, %v3806, 0
        %v3960 = vsel %vm3811, %v3807, 0
        %vm3962 = vcmask 1042432
        %v3964 = vsel %vm3962, %v542, 0
        %3966 = vmatpush.msra.mxu0 0.0
        %3967 = vmatpush.msra.mxu0 0.0
        %3968 = vmatpush.msra.mxu0 0.0
        %3969 = vmatpush.msra.mxu0 0.0
        %3970 = vmatpush.msra.mxu0 0.0
        %3971 = vmatpush.msra.mxu0 0.0
        %3972 = vmatpush.msra.mxu0 0.0
        %3973 = vmatpush.msra.mxu0 0.0
        %3974 = vmatpush.msra.mxu0 0.0
        %3975 = vmatpush.msra.mxu0 0.0
        %3976 = vmatpush.msra.mxu0 0.0
        %3977 = vmatpush.msra.mxu0 0.0
        %v3978 = vand.u32 %v3964, 4294901760
        %3979 = vmatpush.msra.mxu0 %v3978
        %v3980 = vand.u32 %v541, 4294901760
        %3981 = vmatpush.msra.mxu0 %v3980
        %v3982 = vand.u32 %v540, 4294901760
        %3983 = vmatpush.msra.mxu0 %v3982
        %v3984 = vand.u32 %v539, 4294901760
        %3985 = vmatpush.msra.mxu0 %v3984
        %v3986 = vand.u32 %v3813, 4294901760
        %v3987 = vsub.f32 %v3813, %v3986
        %v3988 = vand.u32 %v3987, 4294901760
        %v3989 = vsub.f32 %v3987, %v3988
        %v3990 = vand.u32 %v3989, 4294901760
        %3991 = vmatmul.f32.gmra.mxu0 %v3990
        %v3992 = vpop.f32.mrf.mxu0
        %v3993 = vadd.f32 %v3809, %v3992
        %v3994 = vand.u32 %v3816, 4294901760
        %v3995 = vsub.f32 %v3816, %v3994
        %v3996 = vand.u32 %v3995, 4294901760
        %v3997 = vsub.f32 %v3995, %v3996
        %v3998 = vand.u32 %v3997, 4294901760
        %3999 = vmatmul.f32.gmra.mxu0 %v3998
        %v4000 = vpop.f32.mrf.mxu0
        %v4001 = vadd.f32 %v3809, %v4000
        %v4002 = vand.u32 %v3819, 4294901760
        %v4003 = vsub.f32 %v3819, %v4002
        %v4004 = vand.u32 %v4003, 4294901760
        %v4005 = vsub.f32 %v4003, %v4004
        %v4006 = vand.u32 %v4005, 4294901760
        %4007 = vmatmul.f32.gmra.mxu0 %v4006
        %v4008 = vpop.f32.mrf.mxu0
        %v4009 = vadd.f32 %v3809, %v4008
        %v4010 = vand.u32 %v3822, 4294901760
        %v4011 = vsub.f32 %v3822, %v4010
        %v4012 = vand.u32 %v4011, 4294901760
        %v4013 = vsub.f32 %v4011, %v4012
        %v4014 = vand.u32 %v4013, 4294901760
        %4015 = vmatmul.f32.gmra.mxu0 %v4014
        %v4016 = vpop.f32.mrf.mxu0
        %v4017 = vadd.f32 %v3809, %v4016
        %v4018 = vand.u32 %v3825, 4294901760
        %v4019 = vsub.f32 %v3825, %v4018
        %v4020 = vand.u32 %v4019, 4294901760
        %v4021 = vsub.f32 %v4019, %v4020
        %v4022 = vand.u32 %v4021, 4294901760
        %4023 = vmatmul.f32.gmra.mxu0 %v4022
        %v4024 = vpop.f32.mrf.mxu0
        %v4025 = vadd.f32 %v3809, %v4024
        %v4026 = vand.u32 %v3828, 4294901760
        %v4027 = vsub.f32 %v3828, %v4026
        %v4028 = vand.u32 %v4027, 4294901760
        %v4029 = vsub.f32 %v4027, %v4028
        %v4030 = vand.u32 %v4029, 4294901760
        %4031 = vmatmul.f32.gmra.mxu0 %v4030
        %v4032 = vpop.f32.mrf.mxu0
        %v4033 = vadd.f32 %v3809, %v4032
        %v4034 = vand.u32 %v3831, 4294901760
        %v4035 = vsub.f32 %v3831, %v4034
        %v4036 = vand.u32 %v4035, 4294901760
        %v4037 = vsub.f32 %v4035, %v4036
        %v4038 = vand.u32 %v4037, 4294901760
        %4039 = vmatmul.f32.gmra.mxu0 %v4038
        %v4040 = vpop.f32.mrf.mxu0
        %v4041 = vadd.f32 %v3809, %v4040
        %v4042 = vand.u32 %v3834, 4294901760
        %v4043 = vsub.f32 %v3834, %v4042
        %v4044 = vand.u32 %v4043, 4294901760
        %v4045 = vsub.f32 %v4043, %v4044
        %v4046 = vand.u32 %v4045, 4294901760
        %4047 = vmatmul.f32.gmra.mxu0 %v4046
        %v4048 = vpop.f32.mrf.mxu0
        %v4049 = vadd.f32 %v3809, %v4048
        %v4050 = vand.u32 %v3837, 4294901760
        %v4051 = vsub.f32 %v3837, %v4050
        %v4052 = vand.u32 %v4051, 4294901760
        %v4053 = vsub.f32 %v4051, %v4052
        %v4054 = vand.u32 %v4053, 4294901760
        %4055 = vmatmul.f32.gmra.mxu0 %v4054
        %v4056 = vpop.f32.mrf.mxu0
        %v4057 = vadd.f32 %v3809, %v4056
        %v4058 = vand.u32 %v3840, 4294901760
        %v4059 = vsub.f32 %v3840, %v4058
        %v4060 = vand.u32 %v4059, 4294901760
        %v4061 = vsub.f32 %v4059, %v4060
        %v4062 = vand.u32 %v4061, 4294901760
        %4063 = vmatmul.f32.gmra.mxu0 %v4062
        %v4064 = vpop.f32.mrf.mxu0
        %v4065 = vadd.f32 %v3809, %v4064
        %v4066 = vand.u32 %v3843, 4294901760
        %v4067 = vsub.f32 %v3843, %v4066
        %v4068 = vand.u32 %v4067, 4294901760
        %v4069 = vsub.f32 %v4067, %v4068
        %v4070 = vand.u32 %v4069, 4294901760
        %4071 = vmatmul.f32.gmra.mxu0 %v4070
        %v4072 = vpop.f32.mrf.mxu0
        %v4073 = vadd.f32 %v3809, %v4072
        %v4074 = vand.u32 %v3846, 4294901760
        %v4075 = vsub.f32 %v3846, %v4074
        %v4076 = vand.u32 %v4075, 4294901760
        %v4077 = vsub.f32 %v4075, %v4076
        %v4078 = vand.u32 %v4077, 4294901760
        %4079 = vmatmul.f32.gmra.mxu0 %v4078
        %v4080 = vpop.f32.mrf.mxu0
        %v4081 = vadd.f32 %v3809, %v4080
        %v4082 = vand.u32 %v3849, 4294901760
        %v4083 = vsub.f32 %v3849, %v4082
        %v4084 = vand.u32 %v4083, 4294901760
        %v4085 = vsub.f32 %v4083, %v4084
        %v4086 = vand.u32 %v4085, 4294901760
        %4087 = vmatmul.f32.gmra.mxu0 %v4086
        %v4088 = vpop.f32.mrf.mxu0
        %v4089 = vadd.f32 %v3809, %v4088
        %v4090 = vand.u32 %v3852, 4294901760
        %v4091 = vsub.f32 %v3852, %v4090
        %v4092 = vand.u32 %v4091, 4294901760
        %v4093 = vsub.f32 %v4091, %v4092
        %v4094 = vand.u32 %v4093, 4294901760
        %4095 = vmatmul.f32.gmra.mxu0 %v4094
        %v4096 = vpop.f32.mrf.mxu0
        %v4097 = vadd.f32 %v3809, %v4096
        %v4098 = vand.u32 %v3855, 4294901760
        %v4099 = vsub.f32 %v3855, %v4098
        %v4100 = vand.u32 %v4099, 4294901760
        %v4101 = vsub.f32 %v4099, %v4100
        %v4102 = vand.u32 %v4101, 4294901760
        %4103 = vmatmul.f32.gmra.mxu0 %v4102
        %v4104 = vpop.f32.mrf.mxu0
        %v4105 = vadd.f32 %v3809, %v4104
        %v4106 = vand.u32 %v3858, 4294901760
        %v4107 = vsub.f32 %v3858, %v4106
        %v4108 = vand.u32 %v4107, 4294901760
        %v4109 = vsub.f32 %v4107, %v4108
        %v4110 = vand.u32 %v4109, 4294901760
        %4111 = vmatmul.f32.gmra.mxu0 %v4110
        %v4112 = vpop.f32.mrf.mxu0
        %v4113 = vadd.f32 %v3809, %v4112
        %v4114 = vand.u32 %v3861, 4294901760
        %v4115 = vsub.f32 %v3861, %v4114
        %v4116 = vand.u32 %v4115, 4294901760
        %v4117 = vsub.f32 %v4115, %v4116
        %v4118 = vand.u32 %v4117, 4294901760
        %4119 = vmatmul.f32.gmra.mxu0 %v4118
        %v4120 = vpop.f32.mrf.mxu0
        %v4121 = vadd.f32 %v3809, %v4120
        %v4122 = vand.u32 %v3864, 4294901760
        %v4123 = vsub.f32 %v3864, %v4122
        %v4124 = vand.u32 %v4123, 4294901760
        %v4125 = vsub.f32 %v4123, %v4124
        %v4126 = vand.u32 %v4125, 4294901760
        %4127 = vmatmul.f32.gmra.mxu0 %v4126
        %v4128 = vpop.f32.mrf.mxu0
        %v4129 = vadd.f32 %v3809, %v4128
        %v4130 = vand.u32 %v3867, 4294901760
        %v4131 = vsub.f32 %v3867, %v4130
        %v4132 = vand.u32 %v4131, 4294901760
        %v4133 = vsub.f32 %v4131, %v4132
        %v4134 = vand.u32 %v4133, 4294901760
        %4135 = vmatmul.f32.gmra.mxu0 %v4134
        %v4136 = vpop.f32.mrf.mxu0
        %v4137 = vadd.f32 %v3809, %v4136
        %v4138 = vand.u32 %v3870, 4294901760
        %v4139 = vsub.f32 %v3870, %v4138
        %v4140 = vand.u32 %v4139, 4294901760
        %v4141 = vsub.f32 %v4139, %v4140
        %v4142 = vand.u32 %v4141, 4294901760
        %4143 = vmatmul.f32.gmra.mxu0 %v4142
        %v4144 = vpop.f32.mrf.mxu0
        %v4145 = vadd.f32 %v3809, %v4144
        %v4146 = vand.u32 %v3873, 4294901760
        %v4147 = vsub.f32 %v3873, %v4146
        %v4148 = vand.u32 %v4147, 4294901760
        %v4149 = vsub.f32 %v4147, %v4148
        %v4150 = vand.u32 %v4149, 4294901760
        %4151 = vmatmul.f32.gmra.mxu0 %v4150
        %v4152 = vpop.f32.mrf.mxu0
        %v4153 = vadd.f32 %v3809, %v4152
        %v4154 = vand.u32 %v3876, 4294901760
        %v4155 = vsub.f32 %v3876, %v4154
        %v4156 = vand.u32 %v4155, 4294901760
        %v4157 = vsub.f32 %v4155, %v4156
        %v4158 = vand.u32 %v4157, 4294901760
        %4159 = vmatmul.f32.gmra.mxu0 %v4158
        %v4160 = vpop.f32.mrf.mxu0
        %v4161 = vadd.f32 %v3809, %v4160
        %v4162 = vand.u32 %v3879, 4294901760
        %v4163 = vsub.f32 %v3879, %v4162
        %v4164 = vand.u32 %v4163, 4294901760
        %v4165 = vsub.f32 %v4163, %v4164
        %v4166 = vand.u32 %v4165, 4294901760
        %4167 = vmatmul.f32.gmra.mxu0 %v4166
        %v4168 = vpop.f32.mrf.mxu0
        %v4169 = vadd.f32 %v3809, %v4168
        %v4170 = vand.u32 %v3882, 4294901760
        %v4171 = vsub.f32 %v3882, %v4170
        %v4172 = vand.u32 %v4171, 4294901760
        %v4173 = vsub.f32 %v4171, %v4172
        %v4174 = vand.u32 %v4173, 4294901760
        %4175 = vmatmul.f32.gmra.mxu0 %v4174
        %v4176 = vpop.f32.mrf.mxu0
        %v4177 = vadd.f32 %v3809, %v4176
        %v4178 = vand.u32 %v3885, 4294901760
        %v4179 = vsub.f32 %v3885, %v4178
        %v4180 = vand.u32 %v4179, 4294901760
        %v4181 = vsub.f32 %v4179, %v4180
        %v4182 = vand.u32 %v4181, 4294901760
        %4183 = vmatmul.f32.gmra.mxu0 %v4182
        %v4184 = vpop.f32.mrf.mxu0
        %v4185 = vadd.f32 %v3809, %v4184
        %v4186 = vand.u32 %v3888, 4294901760
        %v4187 = vsub.f32 %v3888, %v4186
        %v4188 = vand.u32 %v4187, 4294901760
        %v4189 = vsub.f32 %v4187, %v4188
        %v4190 = vand.u32 %v4189, 4294901760
        %4191 = vmatmul.f32.gmra.mxu0 %v4190
        %v4192 = vpop.f32.mrf.mxu0
        %v4193 = vadd.f32 %v3809, %v4192
        %v4194 = vand.u32 %v3891, 4294901760
        %v4195 = vsub.f32 %v3891, %v4194
        %v4196 = vand.u32 %v4195, 4294901760
        %v4197 = vsub.f32 %v4195, %v4196
        %v4198 = vand.u32 %v4197, 4294901760
        %4199 = vmatmul.f32.gmra.mxu0 %v4198
        %v4200 = vpop.f32.mrf.mxu0
        %v4201 = vadd.f32 %v3809, %v4200
        %v4202 = vand.u32 %v3894, 4294901760
        %v4203 = vsub.f32 %v3894, %v4202
        %v4204 = vand.u32 %v4203, 4294901760
        %v4205 = vsub.f32 %v4203, %v4204
        %v4206 = vand.u32 %v4205, 4294901760
        %4207 = vmatmul.f32.gmra.mxu0 %v4206
        %v4208 = vpop.f32.mrf.mxu0
        %v4209 = vadd.f32 %v3809, %v4208
        %v4210 = vand.u32 %v3897, 4294901760
        %v4211 = vsub.f32 %v3897, %v4210
        %v4212 = vand.u32 %v4211, 4294901760
        %v4213 = vsub.f32 %v4211, %v4212
        %v4214 = vand.u32 %v4213, 4294901760
        %4215 = vmatmul.f32.gmra.mxu0 %v4214
        %v4216 = vpop.f32.mrf.mxu0
        %v4217 = vadd.f32 %v3809, %v4216
        %v4218 = vand.u32 %v3900, 4294901760
        %v4219 = vsub.f32 %v3900, %v4218
        %v4220 = vand.u32 %v4219, 4294901760
        %v4221 = vsub.f32 %v4219, %v4220
        %v4222 = vand.u32 %v4221, 4294901760
        %4223 = vmatmul.f32.gmra.mxu0 %v4222
        %v4224 = vpop.f32.mrf.mxu0
        %v4225 = vadd.f32 %v3809, %v4224
        %v4226 = vand.u32 %v3903, 4294901760
        %v4227 = vsub.f32 %v3903, %v4226
        %v4228 = vand.u32 %v4227, 4294901760
        %v4229 = vsub.f32 %v4227, %v4228
        %v4230 = vand.u32 %v4229, 4294901760
        %4231 = vmatmul.f32.gmra.mxu0 %v4230
        %v4232 = vpop.f32.mrf.mxu0
        %v4233 = vadd.f32 %v3809, %v4232
        %v4234 = vand.u32 %v3906, 4294901760
        %v4235 = vsub.f32 %v3906, %v4234
        %v4236 = vand.u32 %v4235, 4294901760
        %v4237 = vsub.f32 %v4235, %v4236
        %v4238 = vand.u32 %v4237, 4294901760
        %4239 = vmatmul.f32.gmra.mxu0 %v4238
        %v4240 = vpop.f32.mrf.mxu0
        %v4241 = vadd.f32 %v3809, %v4240
        %v4242 = vand.u32 %v3909, 4294901760
        %v4243 = vsub.f32 %v3909, %v4242
        %v4244 = vand.u32 %v4243, 4294901760
        %v4245 = vsub.f32 %v4243, %v4244
        %v4246 = vand.u32 %v4245, 4294901760
        %4247 = vmatmul.f32.gmra.mxu0 %v4246
        %v4248 = vpop.f32.mrf.mxu0
        %v4249 = vadd.f32 %v3809, %v4248
        %v4250 = vand.u32 %v3912, 4294901760
        %v4251 = vsub.f32 %v3912, %v4250
        %v4252 = vand.u32 %v4251, 4294901760
        %v4253 = vsub.f32 %v4251, %v4252
        %v4254 = vand.u32 %v4253, 4294901760
        %4255 = vmatmul.f32.gmra.mxu0 %v4254
        %v4256 = vpop.f32.mrf.mxu0
        %v4257 = vadd.f32 %v3809, %v4256
        %v4258 = vand.u32 %v3915, 4294901760
        %v4259 = vsub.f32 %v3915, %v4258
        %v4260 = vand.u32 %v4259, 4294901760
        %v4261 = vsub.f32 %v4259, %v4260
        %v4262 = vand.u32 %v4261, 4294901760
        %4263 = vmatmul.f32.gmra.mxu0 %v4262
        %v4264 = vpop.f32.mrf.mxu0
        %v4265 = vadd.f32 %v3809, %v4264
        %v4266 = vand.u32 %v3918, 4294901760
        %v4267 = vsub.f32 %v3918, %v4266
        %v4268 = vand.u32 %v4267, 4294901760
        %v4269 = vsub.f32 %v4267, %v4268
        %v4270 = vand.u32 %v4269, 4294901760
        %4271 = vmatmul.f32.gmra.mxu0 %v4270
        %v4272 = vpop.f32.mrf.mxu0
        %v4273 = vadd.f32 %v3809, %v4272
        %v4274 = vand.u32 %v3921, 4294901760
        %v4275 = vsub.f32 %v3921, %v4274
        %v4276 = vand.u32 %v4275, 4294901760
        %v4277 = vsub.f32 %v4275, %v4276
        %v4278 = vand.u32 %v4277, 4294901760
        %4279 = vmatmul.f32.gmra.mxu0 %v4278
        %v4280 = vpop.f32.mrf.mxu0
        %v4281 = vadd.f32 %v3809, %v4280
        %v4282 = vand.u32 %v3924, 4294901760
        %v4283 = vsub.f32 %v3924, %v4282
        %v4284 = vand.u32 %v4283, 4294901760
        %v4285 = vsub.f32 %v4283, %v4284
        %v4286 = vand.u32 %v4285, 4294901760
        %4287 = vmatmul.f32.gmra.mxu0 %v4286
        %v4288 = vpop.f32.mrf.mxu0
        %v4289 = vadd.f32 %v3809, %v4288
        %v4290 = vand.u32 %v3927, 4294901760
        %v4291 = vsub.f32 %v3927, %v4290
        %v4292 = vand.u32 %v4291, 4294901760
        %v4293 = vsub.f32 %v4291, %v4292
        %v4294 = vand.u32 %v4293, 4294901760
        %4295 = vmatmul.f32.gmra.mxu0 %v4294
        %v4296 = vpop.f32.mrf.mxu0
        %v4297 = vadd.f32 %v3809, %v4296
        %v4298 = vand.u32 %v3930, 4294901760
        %v4299 = vsub.f32 %v3930, %v4298
        %v4300 = vand.u32 %v4299, 4294901760
        %v4301 = vsub.f32 %v4299, %v4300
        %v4302 = vand.u32 %v4301, 4294901760
        %4303 = vmatmul.f32.gmra.mxu0 %v4302
        %v4304 = vpop.f32.mrf.mxu0
        %v4305 = vadd.f32 %v3809, %v4304
        %v4306 = vand.u32 %v3933, 4294901760
        %v4307 = vsub.f32 %v3933, %v4306
        %v4308 = vand.u32 %v4307, 4294901760
        %v4309 = vsub.f32 %v4307, %v4308
        %v4310 = vand.u32 %v4309, 4294901760
        %4311 = vmatmul.f32.gmra.mxu0 %v4310
        %v4312 = vpop.f32.mrf.mxu0
        %v4313 = vadd.f32 %v3809, %v4312
        %v4314 = vand.u32 %v3936, 4294901760
        %v4315 = vsub.f32 %v3936, %v4314
        %v4316 = vand.u32 %v4315, 4294901760
        %v4317 = vsub.f32 %v4315, %v4316
        %v4318 = vand.u32 %v4317, 4294901760
        %4319 = vmatmul.f32.gmra.mxu0 %v4318
        %v4320 = vpop.f32.mrf.mxu0
        %v4321 = vadd.f32 %v3809, %v4320
        %v4322 = vand.u32 %v3939, 4294901760
        %v4323 = vsub.f32 %v3939, %v4322
        %v4324 = vand.u32 %v4323, 4294901760
        %v4325 = vsub.f32 %v4323, %v4324
        %v4326 = vand.u32 %v4325, 4294901760
        %4327 = vmatmul.f32.gmra.mxu0 %v4326
        %v4328 = vpop.f32.mrf.mxu0
        %v4329 = vadd.f32 %v3809, %v4328
        %v4330 = vand.u32 %v3942, 4294901760
        %v4331 = vsub.f32 %v3942, %v4330
        %v4332 = vand.u32 %v4331, 4294901760
        %v4333 = vsub.f32 %v4331, %v4332
        %v4334 = vand.u32 %v4333, 4294901760
        %4335 = vmatmul.f32.gmra.mxu0 %v4334
        %v4336 = vpop.f32.mrf.mxu0
        %v4337 = vadd.f32 %v3809, %v4336
        %v4338 = vand.u32 %v3945, 4294901760
        %v4339 = vsub.f32 %v3945, %v4338
        %v4340 = vand.u32 %v4339, 4294901760
        %v4341 = vsub.f32 %v4339, %v4340
        %v4342 = vand.u32 %v4341, 4294901760
        %4343 = vmatmul.f32.gmra.mxu0 %v4342
        %v4344 = vpop.f32.mrf.mxu0
        %v4345 = vadd.f32 %v3809, %v4344
        %v4346 = vand.u32 %v3948, 4294901760
        %v4347 = vsub.f32 %v3948, %v4346
        %v4348 = vand.u32 %v4347, 4294901760
        %v4349 = vsub.f32 %v4347, %v4348
        %v4350 = vand.u32 %v4349, 4294901760
        %4351 = vmatmul.f32.gmra.mxu0 %v4350
        %v4352 = vpop.f32.mrf.mxu0
        %v4353 = vadd.f32 %v3809, %v4352
        %v4354 = vand.u32 %v3951, 4294901760
        %v4355 = vsub.f32 %v3951, %v4354
        %v4356 = vand.u32 %v4355, 4294901760
        %v4357 = vsub.f32 %v4355, %v4356
        %v4358 = vand.u32 %v4357, 4294901760
        %4359 = vmatmul.f32.gmra.mxu0 %v4358
        %v4360 = vpop.f32.mrf.mxu0
        %v4361 = vadd.f32 %v3809, %v4360
        %v4362 = vand.u32 %v3954, 4294901760
        %v4363 = vsub.f32 %v3954, %v4362
        %v4364 = vand.u32 %v4363, 4294901760
        %v4365 = vsub.f32 %v4363, %v4364
        %v4366 = vand.u32 %v4365, 4294901760
        %4367 = vmatmul.f32.gmra.mxu0 %v4366
        %v4368 = vpop.f32.mrf.mxu0
        %v4369 = vadd.f32 %v3809, %v4368
        %v4370 = vand.u32 %v3957, 4294901760
        %v4371 = vsub.f32 %v3957, %v4370
        %v4372 = vand.u32 %v4371, 4294901760
        %v4373 = vsub.f32 %v4371, %v4372
        %v4374 = vand.u32 %v4373, 4294901760
        %4375 = vmatmul.f32.gmra.mxu0 %v4374
        %v4376 = vpop.f32.mrf.mxu0
        %v4377 = vadd.f32 %v3809, %v4376
        %v4378 = vand.u32 %v3960, 4294901760
        %v4379 = vsub.f32 %v3960, %v4378
        %v4380 = vand.u32 %v4379, 4294901760
        %v4381 = vsub.f32 %v4379, %v4380
        %v4382 = vand.u32 %v4381, 4294901760
        %4383 = vmatmul.f32.gmra.mxu0 %v4382
        %v4384 = vpop.f32.mrf.mxu0
        %v4385 = vadd.f32 %v3809, %v4384
        %4386 = vdwg.mxu0
        %4387 = vmatpush.msra.mxu0 0.0
        %4388 = vmatpush.msra.mxu0 0.0
        %4389 = vmatpush.msra.mxu0 0.0
        %4390 = vmatpush.msra.mxu0 0.0
        %4391 = vmatpush.msra.mxu0 0.0
        %4392 = vmatpush.msra.mxu0 0.0
        %4393 = vmatpush.msra.mxu0 0.0
        %4394 = vmatpush.msra.mxu0 0.0
        %4395 = vmatpush.msra.mxu0 0.0
        %4396 = vmatpush.msra.mxu0 0.0
        %4397 = vmatpush.msra.mxu0 0.0
        %4398 = vmatpush.msra.mxu0 0.0
        %v4399 = vand.u32 %v3964, 4294901760
        %v4400 = vsub.f32 %v3964, %v4399
        %v4401 = vand.u32 %v4400, 4294901760
        %v4402 = vsub.f32 %v4400, %v4401
        %v4403 = vand.u32 %v4402, 4294901760
        %4404 = vmatpush.msra.mxu0 %v4403
        %v4405 = vand.u32 %v541, 4294901760
        %v4406 = vsub.f32 %v541, %v4405
        %v4407 = vand.u32 %v4406, 4294901760
        %v4408 = vsub.f32 %v4406, %v4407
        %v4409 = vand.u32 %v4408, 4294901760
        %4410 = vmatpush.msra.mxu0 %v4409
        %v4411 = vand.u32 %v540, 4294901760
        %v4412 = vsub.f32 %v540, %v4411
        %v4413 = vand.u32 %v4412, 4294901760
        %v4414 = vsub.f32 %v4412, %v4413
        %v4415 = vand.u32 %v4414, 4294901760
        %4416 = vmatpush.msra.mxu0 %v4415
        %v4417 = vand.u32 %v539, 4294901760
        %v4418 = vsub.f32 %v539, %v4417
        %v4419 = vand.u32 %v4418, 4294901760
        %v4420 = vsub.f32 %v4418, %v4419
        %v4421 = vand.u32 %v4420, 4294901760
        %4422 = vmatpush.msra.mxu0 %v4421
        %v4423 = vand.u32 %v3813, 4294901760
        %4424 = vmatmul.f32.gmra.mxu0 %v4423
        %v4425 = vpop.f32.mrf.mxu0
        %v4426 = vadd.f32 %v3993, %v4425
        %v4427 = vand.u32 %v3816, 4294901760
        %4428 = vmatmul.f32.gmra.mxu0 %v4427
        %v4429 = vpop.f32.mrf.mxu0
        %v4430 = vadd.f32 %v4001, %v4429
        %v4431 = vand.u32 %v3819, 4294901760
        %4432 = vmatmul.f32.gmra.mxu0 %v4431
        %v4433 = vpop.f32.mrf.mxu0
        %v4434 = vadd.f32 %v4009, %v4433
        %v4435 = vand.u32 %v3822, 4294901760
        %4436 = vmatmul.f32.gmra.mxu0 %v4435
        %v4437 = vpop.f32.mrf.mxu0
        %v4438 = vadd.f32 %v4017, %v4437
        %v4439 = vand.u32 %v3825, 4294901760
        %4440 = vmatmul.f32.gmra.mxu0 %v4439
        %v4441 = vpop.f32.mrf.mxu0
        %v4442 = vadd.f32 %v4025, %v4441
        %v4443 = vand.u32 %v3828, 4294901760
        %4444 = vmatmul.f32.gmra.mxu0 %v4443
        %v4445 = vpop.f32.mrf.mxu0
        %v4446 = vadd.f32 %v4033, %v4445
        %v4447 = vand.u32 %v3831, 4294901760
        %4448 = vmatmul.f32.gmra.mxu0 %v4447
        %v4449 = vpop.f32.mrf.mxu0
        %v4450 = vadd.f32 %v4041, %v4449
        %v4451 = vand.u32 %v3834, 4294901760
        %4452 = vmatmul.f32.gmra.mxu0 %v4451
        %v4453 = vpop.f32.mrf.mxu0
        %v4454 = vadd.f32 %v4049, %v4453
        %v4455 = vand.u32 %v3837, 4294901760
        %4456 = vmatmul.f32.gmra.mxu0 %v4455
        %v4457 = vpop.f32.mrf.mxu0
        %v4458 = vadd.f32 %v4057, %v4457
        %v4459 = vand.u32 %v3840, 4294901760
        %4460 = vmatmul.f32.gmra.mxu0 %v4459
        %v4461 = vpop.f32.mrf.mxu0
        %v4462 = vadd.f32 %v4065, %v4461
        %v4463 = vand.u32 %v3843, 4294901760
        %4464 = vmatmul.f32.gmra.mxu0 %v4463
        %v4465 = vpop.f32.mrf.mxu0
        %v4466 = vadd.f32 %v4073, %v4465
        %v4467 = vand.u32 %v3846, 4294901760
        %4468 = vmatmul.f32.gmra.mxu0 %v4467
        %v4469 = vpop.f32.mrf.mxu0
        %v4470 = vadd.f32 %v4081, %v4469
        %v4471 = vand.u32 %v3849, 4294901760
        %4472 = vmatmul.f32.gmra.mxu0 %v4471
        %v4473 = vpop.f32.mrf.mxu0
        %v4474 = vadd.f32 %v4089, %v4473
        %v4475 = vand.u32 %v3852, 4294901760
        %4476 = vmatmul.f32.gmra.mxu0 %v4475
        %v4477 = vpop.f32.mrf.mxu0
        %v4478 = vadd.f32 %v4097, %v4477
        %v4479 = vand.u32 %v3855, 4294901760
        %4480 = vmatmul.f32.gmra.mxu0 %v4479
        %v4481 = vpop.f32.mrf.mxu0
        %v4482 = vadd.f32 %v4105, %v4481
        %v4483 = vand.u32 %v3858, 4294901760
        %4484 = vmatmul.f32.gmra.mxu0 %v4483
        %v4485 = vpop.f32.mrf.mxu0
        %v4486 = vadd.f32 %v4113, %v4485
        %v4487 = vand.u32 %v3861, 4294901760
        %4488 = vmatmul.f32.gmra.mxu0 %v4487
        %v4489 = vpop.f32.mrf.mxu0
        %v4490 = vadd.f32 %v4121, %v4489
        %v4491 = vand.u32 %v3864, 4294901760
        %4492 = vmatmul.f32.gmra.mxu0 %v4491
        %v4493 = vpop.f32.mrf.mxu0
        %v4494 = vadd.f32 %v4129, %v4493
        %v4495 = vand.u32 %v3867, 4294901760
        %4496 = vmatmul.f32.gmra.mxu0 %v4495
        %v4497 = vpop.f32.mrf.mxu0
        %v4498 = vadd.f32 %v4137, %v4497
        %v4499 = vand.u32 %v3870, 4294901760
        %4500 = vmatmul.f32.gmra.mxu0 %v4499
        %v4501 = vpop.f32.mrf.mxu0
        %v4502 = vadd.f32 %v4145, %v4501
        %v4503 = vand.u32 %v3873, 4294901760
        %4504 = vmatmul.f32.gmra.mxu0 %v4503
        %v4505 = vpop.f32.mrf.mxu0
        %v4506 = vadd.f32 %v4153, %v4505
        %v4507 = vand.u32 %v3876, 4294901760
        %4508 = vmatmul.f32.gmra.mxu0 %v4507
        %v4509 = vpop.f32.mrf.mxu0
        %v4510 = vadd.f32 %v4161, %v4509
        %v4511 = vand.u32 %v3879, 4294901760
        %4512 = vmatmul.f32.gmra.mxu0 %v4511
        %v4513 = vpop.f32.mrf.mxu0
        %v4514 = vadd.f32 %v4169, %v4513
        %v4515 = vand.u32 %v3882, 4294901760
        %4516 = vmatmul.f32.gmra.mxu0 %v4515
        %v4517 = vpop.f32.mrf.mxu0
        %v4518 = vadd.f32 %v4177, %v4517
        %v4519 = vand.u32 %v3885, 4294901760
        %4520 = vmatmul.f32.gmra.mxu0 %v4519
        %v4521 = vpop.f32.mrf.mxu0
        %v4522 = vadd.f32 %v4185, %v4521
        %v4523 = vand.u32 %v3888, 4294901760
        %4524 = vmatmul.f32.gmra.mxu0 %v4523
        %v4525 = vpop.f32.mrf.mxu0
        %v4526 = vadd.f32 %v4193, %v4525
        %v4527 = vand.u32 %v3891, 4294901760
        %4528 = vmatmul.f32.gmra.mxu0 %v4527
        %v4529 = vpop.f32.mrf.mxu0
        %v4530 = vadd.f32 %v4201, %v4529
        %v4531 = vand.u32 %v3894, 4294901760
        %4532 = vmatmul.f32.gmra.mxu0 %v4531
        %v4533 = vpop.f32.mrf.mxu0
        %v4534 = vadd.f32 %v4209, %v4533
        %v4535 = vand.u32 %v3897, 4294901760
        %4536 = vmatmul.f32.gmra.mxu0 %v4535
        %v4537 = vpop.f32.mrf.mxu0
        %v4538 = vadd.f32 %v4217, %v4537
        %v4539 = vand.u32 %v3900, 4294901760
        %4540 = vmatmul.f32.gmra.mxu0 %v4539
        %v4541 = vpop.f32.mrf.mxu0
        %v4542 = vadd.f32 %v4225, %v4541
        %v4543 = vand.u32 %v3903, 4294901760
        %4544 = vmatmul.f32.gmra.mxu0 %v4543
        %v4545 = vpop.f32.mrf.mxu0
        %v4546 = vadd.f32 %v4233, %v4545
        %v4547 = vand.u32 %v3906, 4294901760
        %4548 = vmatmul.f32.gmra.mxu0 %v4547
        %v4549 = vpop.f32.mrf.mxu0
        %v4550 = vadd.f32 %v4241, %v4549
        %v4551 = vand.u32 %v3909, 4294901760
        %4552 = vmatmul.f32.gmra.mxu0 %v4551
        %v4553 = vpop.f32.mrf.mxu0
        %v4554 = vadd.f32 %v4249, %v4553
        %v4555 = vand.u32 %v3912, 4294901760
        %4556 = vmatmul.f32.gmra.mxu0 %v4555
        %v4557 = vpop.f32.mrf.mxu0
        %v4558 = vadd.f32 %v4257, %v4557
        %v4559 = vand.u32 %v3915, 4294901760
        %4560 = vmatmul.f32.gmra.mxu0 %v4559
        %v4561 = vpop.f32.mrf.mxu0
        %v4562 = vadd.f32 %v4265, %v4561
        %v4563 = vand.u32 %v3918, 4294901760
        %4564 = vmatmul.f32.gmra.mxu0 %v4563
        %v4565 = vpop.f32.mrf.mxu0
        %v4566 = vadd.f32 %v4273, %v4565
        %v4567 = vand.u32 %v3921, 4294901760
        %4568 = vmatmul.f32.gmra.mxu0 %v4567
        %v4569 = vpop.f32.mrf.mxu0
        %v4570 = vadd.f32 %v4281, %v4569
        %v4571 = vand.u32 %v3924, 4294901760
        %4572 = vmatmul.f32.gmra.mxu0 %v4571
        %v4573 = vpop.f32.mrf.mxu0
        %v4574 = vadd.f32 %v4289, %v4573
        %v4575 = vand.u32 %v3927, 4294901760
        %4576 = vmatmul.f32.gmra.mxu0 %v4575
        %v4577 = vpop.f32.mrf.mxu0
        %v4578 = vadd.f32 %v4297, %v4577
        %v4579 = vand.u32 %v3930, 4294901760
        %4580 = vmatmul.f32.gmra.mxu0 %v4579
        %v4581 = vpop.f32.mrf.mxu0
        %v4582 = vadd.f32 %v4305, %v4581
        %v4583 = vand.u32 %v3933, 4294901760
        %4584 = vmatmul.f32.gmra.mxu0 %v4583
        %v4585 = vpop.f32.mrf.mxu0
        %v4586 = vadd.f32 %v4313, %v4585
        %v4587 = vand.u32 %v3936, 4294901760
        %4588 = vmatmul.f32.gmra.mxu0 %v4587
        %v4589 = vpop.f32.mrf.mxu0
        %v4590 = vadd.f32 %v4321, %v4589
        %v4591 = vand.u32 %v3939, 4294901760
        %4592 = vmatmul.f32.gmra.mxu0 %v4591
        %v4593 = vpop.f32.mrf.mxu0
        %v4594 = vadd.f32 %v4329, %v4593
        %v4595 = vand.u32 %v3942, 4294901760
        %4596 = vmatmul.f32.gmra.mxu0 %v4595
        %v4597 = vpop.f32.mrf.mxu0
        %v4598 = vadd.f32 %v4337, %v4597
        %v4599 = vand.u32 %v3945, 4294901760
        %4600 = vmatmul.f32.gmra.mxu0 %v4599
        %v4601 = vpop.f32.mrf.mxu0
        %v4602 = vadd.f32 %v4345, %v4601
        %v4603 = vand.u32 %v3948, 4294901760
        %4604 = vmatmul.f32.gmra.mxu0 %v4603
        %v4605 = vpop.f32.mrf.mxu0
        %v4606 = vadd.f32 %v4353, %v4605
        %v4607 = vand.u32 %v3951, 4294901760
        %4608 = vmatmul.f32.gmra.mxu0 %v4607
        %v4609 = vpop.f32.mrf.mxu0
        %v4610 = vadd.f32 %v4361, %v4609
        %v4611 = vand.u32 %v3954, 4294901760
        %4612 = vmatmul.f32.gmra.mxu0 %v4611
        %v4613 = vpop.f32.mrf.mxu0
        %v4614 = vadd.f32 %v4369, %v4613
        %v4615 = vand.u32 %v3957, 4294901760
        %4616 = vmatmul.f32.gmra.mxu0 %v4615
        %v4617 = vpop.f32.mrf.mxu0
        %v4618 = vadd.f32 %v4377, %v4617
        %v4619 = vand.u32 %v3960, 4294901760
        %4620 = vmatmul.f32.gmra.mxu0 %v4619
        %v4621 = vpop.f32.mrf.mxu0
        %v4622 = vadd.f32 %v4385, %v4621
        %4623 = vdwg.mxu0
        %4624 = vmatpush.msra.mxu0 0.0
        %4625 = vmatpush.msra.mxu0 0.0
        %4626 = vmatpush.msra.mxu0 0.0
        %4627 = vmatpush.msra.mxu0 0.0
        %4628 = vmatpush.msra.mxu0 0.0
        %4629 = vmatpush.msra.mxu0 0.0
        %4630 = vmatpush.msra.mxu0 0.0
        %4631 = vmatpush.msra.mxu0 0.0
        %4632 = vmatpush.msra.mxu0 0.0
        %4633 = vmatpush.msra.mxu0 0.0
        %4634 = vmatpush.msra.mxu0 0.0
        %4635 = vmatpush.msra.mxu0 0.0
        %v4636 = vand.u32 %v3964, 4294901760
        %v4637 = vsub.f32 %v3964, %v4636
        %4638 = vmatpush.msra.mxu0 %v4637
        %v4639 = vand.u32 %v541, 4294901760
        %v4640 = vsub.f32 %v541, %v4639
        %4641 = vmatpush.msra.mxu0 %v4640
        %v4642 = vand.u32 %v540, 4294901760
        %v4643 = vsub.f32 %v540, %v4642
        %4644 = vmatpush.msra.mxu0 %v4643
        %v4645 = vand.u32 %v539, 4294901760
        %v4646 = vsub.f32 %v539, %v4645
        %4647 = vmatpush.msra.mxu0 %v4646
        %v4648 = vand.u32 %v3813, 4294901760
        %v4649 = vsub.f32 %v3813, %v4648
        %4650 = vmatmul.f32.gmra.mxu0 %v4649
        %v4651 = vpop.f32.mrf.mxu0
        %v4652 = vadd.f32 %v4426, %v4651
        %v4653 = vand.u32 %v3816, 4294901760
        %v4654 = vsub.f32 %v3816, %v4653
        %4655 = vmatmul.f32.gmra.mxu0 %v4654
        %v4656 = vpop.f32.mrf.mxu0
        %v4657 = vadd.f32 %v4430, %v4656
        %v4658 = vand.u32 %v3819, 4294901760
        %v4659 = vsub.f32 %v3819, %v4658
        %4660 = vmatmul.f32.gmra.mxu0 %v4659
        %v4661 = vpop.f32.mrf.mxu0
        %v4662 = vadd.f32 %v4434, %v4661
        %v4663 = vand.u32 %v3822, 4294901760
        %v4664 = vsub.f32 %v3822, %v4663
        %4665 = vmatmul.f32.gmra.mxu0 %v4664
        %v4666 = vpop.f32.mrf.mxu0
        %v4667 = vadd.f32 %v4438, %v4666
        %v4668 = vand.u32 %v3825, 4294901760
        %v4669 = vsub.f32 %v3825, %v4668
        %4670 = vmatmul.f32.gmra.mxu0 %v4669
        %v4671 = vpop.f32.mrf.mxu0
        %v4672 = vadd.f32 %v4442, %v4671
        %v4673 = vand.u32 %v3828, 4294901760
        %v4674 = vsub.f32 %v3828, %v4673
        %4675 = vmatmul.f32.gmra.mxu0 %v4674
        %v4676 = vpop.f32.mrf.mxu0
        %v4677 = vadd.f32 %v4446, %v4676
        %v4678 = vand.u32 %v3831, 4294901760
        %v4679 = vsub.f32 %v3831, %v4678
        %4680 = vmatmul.f32.gmra.mxu0 %v4679
        %v4681 = vpop.f32.mrf.mxu0
        %v4682 = vadd.f32 %v4450, %v4681
        %v4683 = vand.u32 %v3834, 4294901760
        %v4684 = vsub.f32 %v3834, %v4683
        %4685 = vmatmul.f32.gmra.mxu0 %v4684
        %v4686 = vpop.f32.mrf.mxu0
        %v4687 = vadd.f32 %v4454, %v4686
        %v4688 = vand.u32 %v3837, 4294901760
        %v4689 = vsub.f32 %v3837, %v4688
        %4690 = vmatmul.f32.gmra.mxu0 %v4689
        %v4691 = vpop.f32.mrf.mxu0
        %v4692 = vadd.f32 %v4458, %v4691
        %v4693 = vand.u32 %v3840, 4294901760
        %v4694 = vsub.f32 %v3840, %v4693
        %4695 = vmatmul.f32.gmra.mxu0 %v4694
        %v4696 = vpop.f32.mrf.mxu0
        %v4697 = vadd.f32 %v4462, %v4696
        %v4698 = vand.u32 %v3843, 4294901760
        %v4699 = vsub.f32 %v3843, %v4698
        %4700 = vmatmul.f32.gmra.mxu0 %v4699
        %v4701 = vpop.f32.mrf.mxu0
        %v4702 = vadd.f32 %v4466, %v4701
        %v4703 = vand.u32 %v3846, 4294901760
        %v4704 = vsub.f32 %v3846, %v4703
        %4705 = vmatmul.f32.gmra.mxu0 %v4704
        %v4706 = vpop.f32.mrf.mxu0
        %v4707 = vadd.f32 %v4470, %v4706
        %v4708 = vand.u32 %v3849, 4294901760
        %v4709 = vsub.f32 %v3849, %v4708
        %4710 = vmatmul.f32.gmra.mxu0 %v4709
        %v4711 = vpop.f32.mrf.mxu0
        %v4712 = vadd.f32 %v4474, %v4711
        %v4713 = vand.u32 %v3852, 4294901760
        %v4714 = vsub.f32 %v3852, %v4713
        %4715 = vmatmul.f32.gmra.mxu0 %v4714
        %v4716 = vpop.f32.mrf.mxu0
        %v4717 = vadd.f32 %v4478, %v4716
        %v4718 = vand.u32 %v3855, 4294901760
        %v4719 = vsub.f32 %v3855, %v4718
        %4720 = vmatmul.f32.gmra.mxu0 %v4719
        %v4721 = vpop.f32.mrf.mxu0
        %v4722 = vadd.f32 %v4482, %v4721
        %v4723 = vand.u32 %v3858, 4294901760
        %v4724 = vsub.f32 %v3858, %v4723
        %4725 = vmatmul.f32.gmra.mxu0 %v4724
        %v4726 = vpop.f32.mrf.mxu0
        %v4727 = vadd.f32 %v4486, %v4726
        %v4728 = vand.u32 %v3861, 4294901760
        %v4729 = vsub.f32 %v3861, %v4728
        %4730 = vmatmul.f32.gmra.mxu0 %v4729
        %v4731 = vpop.f32.mrf.mxu0
        %v4732 = vadd.f32 %v4490, %v4731
        %v4733 = vand.u32 %v3864, 4294901760
        %v4734 = vsub.f32 %v3864, %v4733
        %4735 = vmatmul.f32.gmra.mxu0 %v4734
        %v4736 = vpop.f32.mrf.mxu0
        %v4737 = vadd.f32 %v4494, %v4736
        %v4738 = vand.u32 %v3867, 4294901760
        %v4739 = vsub.f32 %v3867, %v4738
        %4740 = vmatmul.f32.gmra.mxu0 %v4739
        %v4741 = vpop.f32.mrf.mxu0
        %v4742 = vadd.f32 %v4498, %v4741
        %v4743 = vand.u32 %v3870, 4294901760
        %v4744 = vsub.f32 %v3870, %v4743
        %4745 = vmatmul.f32.gmra.mxu0 %v4744
        %v4746 = vpop.f32.mrf.mxu0
        %v4747 = vadd.f32 %v4502, %v4746
        %v4748 = vand.u32 %v3873, 4294901760
        %v4749 = vsub.f32 %v3873, %v4748
        %4750 = vmatmul.f32.gmra.mxu0 %v4749
        %v4751 = vpop.f32.mrf.mxu0
        %v4752 = vadd.f32 %v4506, %v4751
        %v4753 = vand.u32 %v3876, 4294901760
        %v4754 = vsub.f32 %v3876, %v4753
        %4755 = vmatmul.f32.gmra.mxu0 %v4754
        %v4756 = vpop.f32.mrf.mxu0
        %v4757 = vadd.f32 %v4510, %v4756
        %v4758 = vand.u32 %v3879, 4294901760
        %v4759 = vsub.f32 %v3879, %v4758
        %4760 = vmatmul.f32.gmra.mxu0 %v4759
        %v4761 = vpop.f32.mrf.mxu0
        %v4762 = vadd.f32 %v4514, %v4761
        %v4763 = vand.u32 %v3882, 4294901760
        %v4764 = vsub.f32 %v3882, %v4763
        %4765 = vmatmul.f32.gmra.mxu0 %v4764
        %v4766 = vpop.f32.mrf.mxu0
        %v4767 = vadd.f32 %v4518, %v4766
        %v4768 = vand.u32 %v3885, 4294901760
        %v4769 = vsub.f32 %v3885, %v4768
        %4770 = vmatmul.f32.gmra.mxu0 %v4769
        %v4771 = vpop.f32.mrf.mxu0
        %v4772 = vadd.f32 %v4522, %v4771
        %v4773 = vand.u32 %v3888, 4294901760
        %v4774 = vsub.f32 %v3888, %v4773
        %4775 = vmatmul.f32.gmra.mxu0 %v4774
        %v4776 = vpop.f32.mrf.mxu0
        %v4777 = vadd.f32 %v4526, %v4776
        %v4778 = vand.u32 %v3891, 4294901760
        %v4779 = vsub.f32 %v3891, %v4778
        %4780 = vmatmul.f32.gmra.mxu0 %v4779
        %v4781 = vpop.f32.mrf.mxu0
        %v4782 = vadd.f32 %v4530, %v4781
        %v4783 = vand.u32 %v3894, 4294901760
        %v4784 = vsub.f32 %v3894, %v4783
        %4785 = vmatmul.f32.gmra.mxu0 %v4784
        %v4786 = vpop.f32.mrf.mxu0
        %v4787 = vadd.f32 %v4534, %v4786
        %v4788 = vand.u32 %v3897, 4294901760
        %v4789 = vsub.f32 %v3897, %v4788
        %4790 = vmatmul.f32.gmra.mxu0 %v4789
        %v4791 = vpop.f32.mrf.mxu0
        %v4792 = vadd.f32 %v4538, %v4791
        %v4793 = vand.u32 %v3900, 4294901760
        %v4794 = vsub.f32 %v3900, %v4793
        %4795 = vmatmul.f32.gmra.mxu0 %v4794
        %v4796 = vpop.f32.mrf.mxu0
        %v4797 = vadd.f32 %v4542, %v4796
        %v4798 = vand.u32 %v3903, 4294901760
        %v4799 = vsub.f32 %v3903, %v4798
        %4800 = vmatmul.f32.gmra.mxu0 %v4799
        %v4801 = vpop.f32.mrf.mxu0
        %v4802 = vadd.f32 %v4546, %v4801
        %v4803 = vand.u32 %v3906, 4294901760
        %v4804 = vsub.f32 %v3906, %v4803
        %4805 = vmatmul.f32.gmra.mxu0 %v4804
        %v4806 = vpop.f32.mrf.mxu0
        %v4807 = vadd.f32 %v4550, %v4806
        %v4808 = vand.u32 %v3909, 4294901760
        %v4809 = vsub.f32 %v3909, %v4808
        %4810 = vmatmul.f32.gmra.mxu0 %v4809
        %v4811 = vpop.f32.mrf.mxu0
        %v4812 = vadd.f32 %v4554, %v4811
        %v4813 = vand.u32 %v3912, 4294901760
        %v4814 = vsub.f32 %v3912, %v4813
        %4815 = vmatmul.f32.gmra.mxu0 %v4814
        %v4816 = vpop.f32.mrf.mxu0
        %v4817 = vadd.f32 %v4558, %v4816
        %v4818 = vand.u32 %v3915, 4294901760
        %v4819 = vsub.f32 %v3915, %v4818
        %4820 = vmatmul.f32.gmra.mxu0 %v4819
        %v4821 = vpop.f32.mrf.mxu0
        %v4822 = vadd.f32 %v4562, %v4821
        %v4823 = vand.u32 %v3918, 4294901760
        %v4824 = vsub.f32 %v3918, %v4823
        %4825 = vmatmul.f32.gmra.mxu0 %v4824
        %v4826 = vpop.f32.mrf.mxu0
        %v4827 = vadd.f32 %v4566, %v4826
        %v4828 = vand.u32 %v3921, 4294901760
        %v4829 = vsub.f32 %v3921, %v4828
        %4830 = vmatmul.f32.gmra.mxu0 %v4829
        %v4831 = vpop.f32.mrf.mxu0
        %v4832 = vadd.f32 %v4570, %v4831
        %v4833 = vand.u32 %v3924, 4294901760
        %v4834 = vsub.f32 %v3924, %v4833
        %4835 = vmatmul.f32.gmra.mxu0 %v4834
        %v4836 = vpop.f32.mrf.mxu0
        %v4837 = vadd.f32 %v4574, %v4836
        %v4838 = vand.u32 %v3927, 4294901760
        %v4839 = vsub.f32 %v3927, %v4838
        %4840 = vmatmul.f32.gmra.mxu0 %v4839
        %v4841 = vpop.f32.mrf.mxu0
        %v4842 = vadd.f32 %v4578, %v4841
        %v4843 = vand.u32 %v3930, 4294901760
        %v4844 = vsub.f32 %v3930, %v4843
        %4845 = vmatmul.f32.gmra.mxu0 %v4844
        %v4846 = vpop.f32.mrf.mxu0
        %v4847 = vadd.f32 %v4582, %v4846
        %v4848 = vand.u32 %v3933, 4294901760
        %v4849 = vsub.f32 %v3933, %v4848
        %4850 = vmatmul.f32.gmra.mxu0 %v4849
        %v4851 = vpop.f32.mrf.mxu0
        %v4852 = vadd.f32 %v4586, %v4851
        %v4853 = vand.u32 %v3936, 4294901760
        %v4854 = vsub.f32 %v3936, %v4853
        %4855 = vmatmul.f32.gmra.mxu0 %v4854
        %v4856 = vpop.f32.mrf.mxu0
        %v4857 = vadd.f32 %v4590, %v4856
        %v4858 = vand.u32 %v3939, 4294901760
        %v4859 = vsub.f32 %v3939, %v4858
        %4860 = vmatmul.f32.gmra.mxu0 %v4859
        %v4861 = vpop.f32.mrf.mxu0
        %v4862 = vadd.f32 %v4594, %v4861
        %v4863 = vand.u32 %v3942, 4294901760
        %v4864 = vsub.f32 %v3942, %v4863
        %4865 = vmatmul.f32.gmra.mxu0 %v4864
        %v4866 = vpop.f32.mrf.mxu0
        %v4867 = vadd.f32 %v4598, %v4866
        %v4868 = vand.u32 %v3945, 4294901760
        %v4869 = vsub.f32 %v3945, %v4868
        %4870 = vmatmul.f32.gmra.mxu0 %v4869
        %v4871 = vpop.f32.mrf.mxu0
        %v4872 = vadd.f32 %v4602, %v4871
        %v4873 = vand.u32 %v3948, 4294901760
        %v4874 = vsub.f32 %v3948, %v4873
        %4875 = vmatmul.f32.gmra.mxu0 %v4874
        %v4876 = vpop.f32.mrf.mxu0
        %v4877 = vadd.f32 %v4606, %v4876
        %v4878 = vand.u32 %v3951, 4294901760
        %v4879 = vsub.f32 %v3951, %v4878
        %4880 = vmatmul.f32.gmra.mxu0 %v4879
        %v4881 = vpop.f32.mrf.mxu0
        %v4882 = vadd.f32 %v4610, %v4881
        %v4883 = vand.u32 %v3954, 4294901760
        %v4884 = vsub.f32 %v3954, %v4883
        %4885 = vmatmul.f32.gmra.mxu0 %v4884
        %v4886 = vpop.f32.mrf.mxu0
        %v4887 = vadd.f32 %v4614, %v4886
        %v4888 = vand.u32 %v3957, 4294901760
        %v4889 = vsub.f32 %v3957, %v4888
        %4890 = vmatmul.f32.gmra.mxu0 %v4889
        %v4891 = vpop.f32.mrf.mxu0
        %v4892 = vadd.f32 %v4618, %v4891
        %v4893 = vand.u32 %v3960, 4294901760
        %v4894 = vsub.f32 %v3960, %v4893
        %4895 = vmatmul.f32.gmra.mxu0 %v4894
        %v4896 = vpop.f32.mrf.mxu0
        %v4897 = vadd.f32 %v4622, %v4896
        %4898 = vdwg.mxu0
        %4899 = vmatpush.msra.mxu0 0.0
        %4900 = vmatpush.msra.mxu0 0.0
        %4901 = vmatpush.msra.mxu0 0.0
        %4902 = vmatpush.msra.mxu0 0.0
        %4903 = vmatpush.msra.mxu0 0.0
        %4904 = vmatpush.msra.mxu0 0.0
        %4905 = vmatpush.msra.mxu0 0.0
        %4906 = vmatpush.msra.mxu0 0.0
        %4907 = vmatpush.msra.mxu0 0.0
        %4908 = vmatpush.msra.mxu0 0.0
        %4909 = vmatpush.msra.mxu0 0.0
        %4910 = vmatpush.msra.mxu0 0.0
        %v4911 = vand.u32 %v3964, 4294901760
        %4912 = vmatpush.msra.mxu0 %v4911
        %v4913 = vand.u32 %v541, 4294901760
        %4914 = vmatpush.msra.mxu0 %v4913
        %v4915 = vand.u32 %v540, 4294901760
        %4916 = vmatpush.msra.mxu0 %v4915
        %v4917 = vand.u32 %v539, 4294901760
        %4918 = vmatpush.msra.mxu0 %v4917
        %v4919 = vand.u32 %v3813, 4294901760
        %v4920 = vsub.f32 %v3813, %v4919
        %v4921 = vand.u32 %v4920, 4294901760
        %4922 = vmatmul.f32.gmra.mxu0 %v4921
        %v4923 = vpop.f32.mrf.mxu0
        %v4924 = vadd.f32 %v4652, %v4923
        %v4925 = vand.u32 %v3816, 4294901760
        %v4926 = vsub.f32 %v3816, %v4925
        %v4927 = vand.u32 %v4926, 4294901760
        %4928 = vmatmul.f32.gmra.mxu0 %v4927
        %v4929 = vpop.f32.mrf.mxu0
        %v4930 = vadd.f32 %v4657, %v4929
        %v4931 = vand.u32 %v3819, 4294901760
        %v4932 = vsub.f32 %v3819, %v4931
        %v4933 = vand.u32 %v4932, 4294901760
        %4934 = vmatmul.f32.gmra.mxu0 %v4933
        %v4935 = vpop.f32.mrf.mxu0
        %v4936 = vadd.f32 %v4662, %v4935
        %v4937 = vand.u32 %v3822, 4294901760
        %v4938 = vsub.f32 %v3822, %v4937
        %v4939 = vand.u32 %v4938, 4294901760
        %4940 = vmatmul.f32.gmra.mxu0 %v4939
        %v4941 = vpop.f32.mrf.mxu0
        %v4942 = vadd.f32 %v4667, %v4941
        %v4943 = vand.u32 %v3825, 4294901760
        %v4944 = vsub.f32 %v3825, %v4943
        %v4945 = vand.u32 %v4944, 4294901760
        %4946 = vmatmul.f32.gmra.mxu0 %v4945
        %v4947 = vpop.f32.mrf.mxu0
        %v4948 = vadd.f32 %v4672, %v4947
        %v4949 = vand.u32 %v3828, 4294901760
        %v4950 = vsub.f32 %v3828, %v4949
        %v4951 = vand.u32 %v4950, 4294901760
        %4952 = vmatmul.f32.gmra.mxu0 %v4951
        %v4953 = vpop.f32.mrf.mxu0
        %v4954 = vadd.f32 %v4677, %v4953
        %v4955 = vand.u32 %v3831, 4294901760
        %v4956 = vsub.f32 %v3831, %v4955
        %v4957 = vand.u32 %v4956, 4294901760
        %4958 = vmatmul.f32.gmra.mxu0 %v4957
        %v4959 = vpop.f32.mrf.mxu0
        %v4960 = vadd.f32 %v4682, %v4959
        %v4961 = vand.u32 %v3834, 4294901760
        %v4962 = vsub.f32 %v3834, %v4961
        %v4963 = vand.u32 %v4962, 4294901760
        %4964 = vmatmul.f32.gmra.mxu0 %v4963
        %v4965 = vpop.f32.mrf.mxu0
        %v4966 = vadd.f32 %v4687, %v4965
        %v4967 = vand.u32 %v3837, 4294901760
        %v4968 = vsub.f32 %v3837, %v4967
        %v4969 = vand.u32 %v4968, 4294901760
        %4970 = vmatmul.f32.gmra.mxu0 %v4969
        %v4971 = vpop.f32.mrf.mxu0
        %v4972 = vadd.f32 %v4692, %v4971
        %v4973 = vand.u32 %v3840, 4294901760
        %v4974 = vsub.f32 %v3840, %v4973
        %v4975 = vand.u32 %v4974, 4294901760
        %4976 = vmatmul.f32.gmra.mxu0 %v4975
        %v4977 = vpop.f32.mrf.mxu0
        %v4978 = vadd.f32 %v4697, %v4977
        %v4979 = vand.u32 %v3843, 4294901760
        %v4980 = vsub.f32 %v3843, %v4979
        %v4981 = vand.u32 %v4980, 4294901760
        %4982 = vmatmul.f32.gmra.mxu0 %v4981
        %v4983 = vpop.f32.mrf.mxu0
        %v4984 = vadd.f32 %v4702, %v4983
        %v4985 = vand.u32 %v3846, 4294901760
        %v4986 = vsub.f32 %v3846, %v4985
        %v4987 = vand.u32 %v4986, 4294901760
        %4988 = vmatmul.f32.gmra.mxu0 %v4987
        %v4989 = vpop.f32.mrf.mxu0
        %v4990 = vadd.f32 %v4707, %v4989
        %v4991 = vand.u32 %v3849, 4294901760
        %v4992 = vsub.f32 %v3849, %v4991
        %v4993 = vand.u32 %v4992, 4294901760
        %4994 = vmatmul.f32.gmra.mxu0 %v4993
        %v4995 = vpop.f32.mrf.mxu0
        %v4996 = vadd.f32 %v4712, %v4995
        %v4997 = vand.u32 %v3852, 4294901760
        %v4998 = vsub.f32 %v3852, %v4997
        %v4999 = vand.u32 %v4998, 4294901760
        %5000 = vmatmul.f32.gmra.mxu0 %v4999
        %v5001 = vpop.f32.mrf.mxu0
        %v5002 = vadd.f32 %v4717, %v5001
        %v5003 = vand.u32 %v3855, 4294901760
        %v5004 = vsub.f32 %v3855, %v5003
        %v5005 = vand.u32 %v5004, 4294901760
        %5006 = vmatmul.f32.gmra.mxu0 %v5005
        %v5007 = vpop.f32.mrf.mxu0
        %v5008 = vadd.f32 %v4722, %v5007
        %v5009 = vand.u32 %v3858, 4294901760
        %v5010 = vsub.f32 %v3858, %v5009
        %v5011 = vand.u32 %v5010, 4294901760
        %5012 = vmatmul.f32.gmra.mxu0 %v5011
        %v5013 = vpop.f32.mrf.mxu0
        %v5014 = vadd.f32 %v4727, %v5013
        %v5015 = vand.u32 %v3861, 4294901760
        %v5016 = vsub.f32 %v3861, %v5015
        %v5017 = vand.u32 %v5016, 4294901760
        %5018 = vmatmul.f32.gmra.mxu0 %v5017
        %v5019 = vpop.f32.mrf.mxu0
        %v5020 = vadd.f32 %v4732, %v5019
        %v5021 = vand.u32 %v3864, 4294901760
        %v5022 = vsub.f32 %v3864, %v5021
        %v5023 = vand.u32 %v5022, 4294901760
        %5024 = vmatmul.f32.gmra.mxu0 %v5023
        %v5025 = vpop.f32.mrf.mxu0
        %v5026 = vadd.f32 %v4737, %v5025
        %v5027 = vand.u32 %v3867, 4294901760
        %v5028 = vsub.f32 %v3867, %v5027
        %v5029 = vand.u32 %v5028, 4294901760
        %5030 = vmatmul.f32.gmra.mxu0 %v5029
        %v5031 = vpop.f32.mrf.mxu0
        %v5032 = vadd.f32 %v4742, %v5031
        %v5033 = vand.u32 %v3870, 4294901760
        %v5034 = vsub.f32 %v3870, %v5033
        %v5035 = vand.u32 %v5034, 4294901760
        %5036 = vmatmul.f32.gmra.mxu0 %v5035
        %v5037 = vpop.f32.mrf.mxu0
        %v5038 = vadd.f32 %v4747, %v5037
        %v5039 = vand.u32 %v3873, 4294901760
        %v5040 = vsub.f32 %v3873, %v5039
        %v5041 = vand.u32 %v5040, 4294901760
        %5042 = vmatmul.f32.gmra.mxu0 %v5041
        %v5043 = vpop.f32.mrf.mxu0
        %v5044 = vadd.f32 %v4752, %v5043
        %v5045 = vand.u32 %v3876, 4294901760
        %v5046 = vsub.f32 %v3876, %v5045
        %v5047 = vand.u32 %v5046, 4294901760
        %5048 = vmatmul.f32.gmra.mxu0 %v5047
        %v5049 = vpop.f32.mrf.mxu0
        %v5050 = vadd.f32 %v4757, %v5049
        %v5051 = vand.u32 %v3879, 4294901760
        %v5052 = vsub.f32 %v3879, %v5051
        %v5053 = vand.u32 %v5052, 4294901760
        %5054 = vmatmul.f32.gmra.mxu0 %v5053
        %v5055 = vpop.f32.mrf.mxu0
        %v5056 = vadd.f32 %v4762, %v5055
        %v5057 = vand.u32 %v3882, 4294901760
        %v5058 = vsub.f32 %v3882, %v5057
        %v5059 = vand.u32 %v5058, 4294901760
        %5060 = vmatmul.f32.gmra.mxu0 %v5059
        %v5061 = vpop.f32.mrf.mxu0
        %v5062 = vadd.f32 %v4767, %v5061
        %v5063 = vand.u32 %v3885, 4294901760
        %v5064 = vsub.f32 %v3885, %v5063
        %v5065 = vand.u32 %v5064, 4294901760
        %5066 = vmatmul.f32.gmra.mxu0 %v5065
        %v5067 = vpop.f32.mrf.mxu0
        %v5068 = vadd.f32 %v4772, %v5067
        %v5069 = vand.u32 %v3888, 4294901760
        %v5070 = vsub.f32 %v3888, %v5069
        %v5071 = vand.u32 %v5070, 4294901760
        %5072 = vmatmul.f32.gmra.mxu0 %v5071
        %v5073 = vpop.f32.mrf.mxu0
        %v5074 = vadd.f32 %v4777, %v5073
        %v5075 = vand.u32 %v3891, 4294901760
        %v5076 = vsub.f32 %v3891, %v5075
        %v5077 = vand.u32 %v5076, 4294901760
        %5078 = vmatmul.f32.gmra.mxu0 %v5077
        %v5079 = vpop.f32.mrf.mxu0
        %v5080 = vadd.f32 %v4782, %v5079
        %v5081 = vand.u32 %v3894, 4294901760
        %v5082 = vsub.f32 %v3894, %v5081
        %v5083 = vand.u32 %v5082, 4294901760
        %5084 = vmatmul.f32.gmra.mxu0 %v5083
        %v5085 = vpop.f32.mrf.mxu0
        %v5086 = vadd.f32 %v4787, %v5085
        %v5087 = vand.u32 %v3897, 4294901760
        %v5088 = vsub.f32 %v3897, %v5087
        %v5089 = vand.u32 %v5088, 4294901760
        %5090 = vmatmul.f32.gmra.mxu0 %v5089
        %v5091 = vpop.f32.mrf.mxu0
        %v5092 = vadd.f32 %v4792, %v5091
        %v5093 = vand.u32 %v3900, 4294901760
        %v5094 = vsub.f32 %v3900, %v5093
        %v5095 = vand.u32 %v5094, 4294901760
        %5096 = vmatmul.f32.gmra.mxu0 %v5095
        %v5097 = vpop.f32.mrf.mxu0
        %v5098 = vadd.f32 %v4797, %v5097
        %v5099 = vand.u32 %v3903, 4294901760
        %v5100 = vsub.f32 %v3903, %v5099
        %v5101 = vand.u32 %v5100, 4294901760
        %5102 = vmatmul.f32.gmra.mxu0 %v5101
        %v5103 = vpop.f32.mrf.mxu0
        %v5104 = vadd.f32 %v4802, %v5103
        %v5105 = vand.u32 %v3906, 4294901760
        %v5106 = vsub.f32 %v3906, %v5105
        %v5107 = vand.u32 %v5106, 4294901760
        %5108 = vmatmul.f32.gmra.mxu0 %v5107
        %v5109 = vpop.f32.mrf.mxu0
        %v5110 = vadd.f32 %v4807, %v5109
        %v5111 = vand.u32 %v3909, 4294901760
        %v5112 = vsub.f32 %v3909, %v5111
        %v5113 = vand.u32 %v5112, 4294901760
        %5114 = vmatmul.f32.gmra.mxu0 %v5113
        %v5115 = vpop.f32.mrf.mxu0
        %v5116 = vadd.f32 %v4812, %v5115
        %v5117 = vand.u32 %v3912, 4294901760
        %v5118 = vsub.f32 %v3912, %v5117
        %v5119 = vand.u32 %v5118, 4294901760
        %5120 = vmatmul.f32.gmra.mxu0 %v5119
        %v5121 = vpop.f32.mrf.mxu0
        %v5122 = vadd.f32 %v4817, %v5121
        %v5123 = vand.u32 %v3915, 4294901760
        %v5124 = vsub.f32 %v3915, %v5123
        %v5125 = vand.u32 %v5124, 4294901760
        %5126 = vmatmul.f32.gmra.mxu0 %v5125
        %v5127 = vpop.f32.mrf.mxu0
        %v5128 = vadd.f32 %v4822, %v5127
        %v5129 = vand.u32 %v3918, 4294901760
        %v5130 = vsub.f32 %v3918, %v5129
        %v5131 = vand.u32 %v5130, 4294901760
        %5132 = vmatmul.f32.gmra.mxu0 %v5131
        %v5133 = vpop.f32.mrf.mxu0
        %v5134 = vadd.f32 %v4827, %v5133
        %v5135 = vand.u32 %v3921, 4294901760
        %v5136 = vsub.f32 %v3921, %v5135
        %v5137 = vand.u32 %v5136, 4294901760
        %5138 = vmatmul.f32.gmra.mxu0 %v5137
        %v5139 = vpop.f32.mrf.mxu0
        %v5140 = vadd.f32 %v4832, %v5139
        %v5141 = vand.u32 %v3924, 4294901760
        %v5142 = vsub.f32 %v3924, %v5141
        %v5143 = vand.u32 %v5142, 4294901760
        %5144 = vmatmul.f32.gmra.mxu0 %v5143
        %v5145 = vpop.f32.mrf.mxu0
        %v5146 = vadd.f32 %v4837, %v5145
        %v5147 = vand.u32 %v3927, 4294901760
        %v5148 = vsub.f32 %v3927, %v5147
        %v5149 = vand.u32 %v5148, 4294901760
        %5150 = vmatmul.f32.gmra.mxu0 %v5149
        %v5151 = vpop.f32.mrf.mxu0
        %v5152 = vadd.f32 %v4842, %v5151
        %v5153 = vand.u32 %v3930, 4294901760
        %v5154 = vsub.f32 %v3930, %v5153
        %v5155 = vand.u32 %v5154, 4294901760
        %5156 = vmatmul.f32.gmra.mxu0 %v5155
        %v5157 = vpop.f32.mrf.mxu0
        %v5158 = vadd.f32 %v4847, %v5157
        %v5159 = vand.u32 %v3933, 4294901760
        %v5160 = vsub.f32 %v3933, %v5159
        %v5161 = vand.u32 %v5160, 4294901760
        %5162 = vmatmul.f32.gmra.mxu0 %v5161
        %v5163 = vpop.f32.mrf.mxu0
        %v5164 = vadd.f32 %v4852, %v5163
        %v5165 = vand.u32 %v3936, 4294901760
        %v5166 = vsub.f32 %v3936, %v5165
        %v5167 = vand.u32 %v5166, 4294901760
        %5168 = vmatmul.f32.gmra.mxu0 %v5167
        %v5169 = vpop.f32.mrf.mxu0
        %v5170 = vadd.f32 %v4857, %v5169
        %v5171 = vand.u32 %v3939, 4294901760
        %v5172 = vsub.f32 %v3939, %v5171
        %v5173 = vand.u32 %v5172, 4294901760
        %5174 = vmatmul.f32.gmra.mxu0 %v5173
        %v5175 = vpop.f32.mrf.mxu0
        %v5176 = vadd.f32 %v4862, %v5175
        %v5177 = vand.u32 %v3942, 4294901760
        %v5178 = vsub.f32 %v3942, %v5177
        %v5179 = vand.u32 %v5178, 4294901760
        %5180 = vmatmul.f32.gmra.mxu0 %v5179
        %v5181 = vpop.f32.mrf.mxu0
        %v5182 = vadd.f32 %v4867, %v5181
        %v5183 = vand.u32 %v3945, 4294901760
        %v5184 = vsub.f32 %v3945, %v5183
        %v5185 = vand.u32 %v5184, 4294901760
        %5186 = vmatmul.f32.gmra.mxu0 %v5185
        %v5187 = vpop.f32.mrf.mxu0
        %v5188 = vadd.f32 %v4872, %v5187
        %v5189 = vand.u32 %v3948, 4294901760
        %v5190 = vsub.f32 %v3948, %v5189
        %v5191 = vand.u32 %v5190, 4294901760
        %5192 = vmatmul.f32.gmra.mxu0 %v5191
        %v5193 = vpop.f32.mrf.mxu0
        %v5194 = vadd.f32 %v4877, %v5193
        %v5195 = vand.u32 %v3951, 4294901760
        %v5196 = vsub.f32 %v3951, %v5195
        %v5197 = vand.u32 %v5196, 4294901760
        %5198 = vmatmul.f32.gmra.mxu0 %v5197
        %v5199 = vpop.f32.mrf.mxu0
        %v5200 = vadd.f32 %v4882, %v5199
        %v5201 = vand.u32 %v3954, 4294901760
        %v5202 = vsub.f32 %v3954, %v5201
        %v5203 = vand.u32 %v5202, 4294901760
        %5204 = vmatmul.f32.gmra.mxu0 %v5203
        %v5205 = vpop.f32.mrf.mxu0
        %v5206 = vadd.f32 %v4887, %v5205
        %v5207 = vand.u32 %v3957, 4294901760
        %v5208 = vsub.f32 %v3957, %v5207
        %v5209 = vand.u32 %v5208, 4294901760
        %5210 = vmatmul.f32.gmra.mxu0 %v5209
        %v5211 = vpop.f32.mrf.mxu0
        %v5212 = vadd.f32 %v4892, %v5211
        %v5213 = vand.u32 %v3960, 4294901760
        %v5214 = vsub.f32 %v3960, %v5213
        %v5215 = vand.u32 %v5214, 4294901760
        %5216 = vmatmul.f32.gmra.mxu0 %v5215
        %v5217 = vpop.f32.mrf.mxu0
        %v5218 = vadd.f32 %v4897, %v5217
        %5219 = vdwg.mxu0
        %5220 = vmatpush.msra.mxu0 0.0
        %5221 = vmatpush.msra.mxu0 0.0
        %5222 = vmatpush.msra.mxu0 0.0
        %5223 = vmatpush.msra.mxu0 0.0
        %5224 = vmatpush.msra.mxu0 0.0
        %5225 = vmatpush.msra.mxu0 0.0
        %5226 = vmatpush.msra.mxu0 0.0
        %5227 = vmatpush.msra.mxu0 0.0
        %5228 = vmatpush.msra.mxu0 0.0
        %5229 = vmatpush.msra.mxu0 0.0
        %5230 = vmatpush.msra.mxu0 0.0
        %5231 = vmatpush.msra.mxu0 0.0
        %v5232 = vand.u32 %v3964, 4294901760
        %v5233 = vsub.f32 %v3964, %v5232
        %v5234 = vand.u32 %v5233, 4294901760
        %5235 = vmatpush.msra.mxu0 %v5234
        %v5236 = vand.u32 %v541, 4294901760
        %v5237 = vsub.f32 %v541, %v5236
        %v5238 = vand.u32 %v5237, 4294901760
        %5239 = vmatpush.msra.mxu0 %v5238
        %v5240 = vand.u32 %v540, 4294901760
        %v5241 = vsub.f32 %v540, %v5240
        %v5242 = vand.u32 %v5241, 4294901760
        %5243 = vmatpush.msra.mxu0 %v5242
        %v5244 = vand.u32 %v539, 4294901760
        %v5245 = vsub.f32 %v539, %v5244
        %v5246 = vand.u32 %v5245, 4294901760
        %5247 = vmatpush.msra.mxu0 %v5246
        %v5248 = vand.u32 %v3813, 4294901760
        %5249 = vmatmul.f32.gmra.mxu0 %v5248
        %v5250 = vpop.f32.mrf.mxu0
        %v5251 = vadd.f32 %v4924, %v5250
        %v5252 = vand.u32 %v3816, 4294901760
        %5253 = vmatmul.f32.gmra.mxu0 %v5252
        %v5254 = vpop.f32.mrf.mxu0
        %v5255 = vadd.f32 %v4930, %v5254
        %v5256 = vand.u32 %v3819, 4294901760
        %5257 = vmatmul.f32.gmra.mxu0 %v5256
        %v5258 = vpop.f32.mrf.mxu0
        %v5259 = vadd.f32 %v4936, %v5258
        %v5260 = vand.u32 %v3822, 4294901760
        %5261 = vmatmul.f32.gmra.mxu0 %v5260
        %v5262 = vpop.f32.mrf.mxu0
        %v5263 = vadd.f32 %v4942, %v5262
        %v5264 = vand.u32 %v3825, 4294901760
        %5265 = vmatmul.f32.gmra.mxu0 %v5264
        %v5266 = vpop.f32.mrf.mxu0
        %v5267 = vadd.f32 %v4948, %v5266
        %v5268 = vand.u32 %v3828, 4294901760
        %5269 = vmatmul.f32.gmra.mxu0 %v5268
        %v5270 = vpop.f32.mrf.mxu0
        %v5271 = vadd.f32 %v4954, %v5270
        %v5272 = vand.u32 %v3831, 4294901760
        %5273 = vmatmul.f32.gmra.mxu0 %v5272
        %v5274 = vpop.f32.mrf.mxu0
        %v5275 = vadd.f32 %v4960, %v5274
        %v5276 = vand.u32 %v3834, 4294901760
        %5277 = vmatmul.f32.gmra.mxu0 %v5276
        %v5278 = vpop.f32.mrf.mxu0
        %v5279 = vadd.f32 %v4966, %v5278
        %v5280 = vand.u32 %v3837, 4294901760
        %5281 = vmatmul.f32.gmra.mxu0 %v5280
        %v5282 = vpop.f32.mrf.mxu0
        %v5283 = vadd.f32 %v4972, %v5282
        %v5284 = vand.u32 %v3840, 4294901760
        %5285 = vmatmul.f32.gmra.mxu0 %v5284
        %v5286 = vpop.f32.mrf.mxu0
        %v5287 = vadd.f32 %v4978, %v5286
        %v5288 = vand.u32 %v3843, 4294901760
        %5289 = vmatmul.f32.gmra.mxu0 %v5288
        %v5290 = vpop.f32.mrf.mxu0
        %v5291 = vadd.f32 %v4984, %v5290
        %v5292 = vand.u32 %v3846, 4294901760
        %5293 = vmatmul.f32.gmra.mxu0 %v5292
        %v5294 = vpop.f32.mrf.mxu0
        %v5295 = vadd.f32 %v4990, %v5294
        %v5296 = vand.u32 %v3849, 4294901760
        %5297 = vmatmul.f32.gmra.mxu0 %v5296
        %v5298 = vpop.f32.mrf.mxu0
        %v5299 = vadd.f32 %v4996, %v5298
        %v5300 = vand.u32 %v3852, 4294901760
        %5301 = vmatmul.f32.gmra.mxu0 %v5300
        %v5302 = vpop.f32.mrf.mxu0
        %v5303 = vadd.f32 %v5002, %v5302
        %v5304 = vand.u32 %v3855, 4294901760
        %5305 = vmatmul.f32.gmra.mxu0 %v5304
        %v5306 = vpop.f32.mrf.mxu0
        %v5307 = vadd.f32 %v5008, %v5306
        %v5308 = vand.u32 %v3858, 4294901760
        %5309 = vmatmul.f32.gmra.mxu0 %v5308
        %v5310 = vpop.f32.mrf.mxu0
        %v5311 = vadd.f32 %v5014, %v5310
        %v5312 = vand.u32 %v3861, 4294901760
        %5313 = vmatmul.f32.gmra.mxu0 %v5312
        %v5314 = vpop.f32.mrf.mxu0
        %v5315 = vadd.f32 %v5020, %v5314
        %v5316 = vand.u32 %v3864, 4294901760
        %5317 = vmatmul.f32.gmra.mxu0 %v5316
        %v5318 = vpop.f32.mrf.mxu0
        %v5319 = vadd.f32 %v5026, %v5318
        %v5320 = vand.u32 %v3867, 4294901760
        %5321 = vmatmul.f32.gmra.mxu0 %v5320
        %v5322 = vpop.f32.mrf.mxu0
        %v5323 = vadd.f32 %v5032, %v5322
        %v5324 = vand.u32 %v3870, 4294901760
        %5325 = vmatmul.f32.gmra.mxu0 %v5324
        %v5326 = vpop.f32.mrf.mxu0
        %v5327 = vadd.f32 %v5038, %v5326
        %v5328 = vand.u32 %v3873, 4294901760
        %5329 = vmatmul.f32.gmra.mxu0 %v5328
        %v5330 = vpop.f32.mrf.mxu0
        %v5331 = vadd.f32 %v5044, %v5330
        %v5332 = vand.u32 %v3876, 4294901760
        %5333 = vmatmul.f32.gmra.mxu0 %v5332
        %v5334 = vpop.f32.mrf.mxu0
        %v5335 = vadd.f32 %v5050, %v5334
        %v5336 = vand.u32 %v3879, 4294901760
        %5337 = vmatmul.f32.gmra.mxu0 %v5336
        %v5338 = vpop.f32.mrf.mxu0
        %v5339 = vadd.f32 %v5056, %v5338
        %v5340 = vand.u32 %v3882, 4294901760
        %5341 = vmatmul.f32.gmra.mxu0 %v5340
        %v5342 = vpop.f32.mrf.mxu0
        %v5343 = vadd.f32 %v5062, %v5342
        %v5344 = vand.u32 %v3885, 4294901760
        %5345 = vmatmul.f32.gmra.mxu0 %v5344
        %v5346 = vpop.f32.mrf.mxu0
        %v5347 = vadd.f32 %v5068, %v5346
        %v5348 = vand.u32 %v3888, 4294901760
        %5349 = vmatmul.f32.gmra.mxu0 %v5348
        %v5350 = vpop.f32.mrf.mxu0
        %v5351 = vadd.f32 %v5074, %v5350
        %v5352 = vand.u32 %v3891, 4294901760
        %5353 = vmatmul.f32.gmra.mxu0 %v5352
        %v5354 = vpop.f32.mrf.mxu0
        %v5355 = vadd.f32 %v5080, %v5354
        %v5356 = vand.u32 %v3894, 4294901760
        %5357 = vmatmul.f32.gmra.mxu0 %v5356
        %v5358 = vpop.f32.mrf.mxu0
        %v5359 = vadd.f32 %v5086, %v5358
        %v5360 = vand.u32 %v3897, 4294901760
        %5361 = vmatmul.f32.gmra.mxu0 %v5360
        %v5362 = vpop.f32.mrf.mxu0
        %v5363 = vadd.f32 %v5092, %v5362
        %v5364 = vand.u32 %v3900, 4294901760
        %5365 = vmatmul.f32.gmra.mxu0 %v5364
        %v5366 = vpop.f32.mrf.mxu0
        %v5367 = vadd.f32 %v5098, %v5366
        %v5368 = vand.u32 %v3903, 4294901760
        %5369 = vmatmul.f32.gmra.mxu0 %v5368
        %v5370 = vpop.f32.mrf.mxu0
        %v5371 = vadd.f32 %v5104, %v5370
        %v5372 = vand.u32 %v3906, 4294901760
        %5373 = vmatmul.f32.gmra.mxu0 %v5372
        %v5374 = vpop.f32.mrf.mxu0
        %v5375 = vadd.f32 %v5110, %v5374
        %v5376 = vand.u32 %v3909, 4294901760
        %5377 = vmatmul.f32.gmra.mxu0 %v5376
        %v5378 = vpop.f32.mrf.mxu0
        %v5379 = vadd.f32 %v5116, %v5378
        %v5380 = vand.u32 %v3912, 4294901760
        %5381 = vmatmul.f32.gmra.mxu0 %v5380
        %v5382 = vpop.f32.mrf.mxu0
        %v5383 = vadd.f32 %v5122, %v5382
        %v5384 = vand.u32 %v3915, 4294901760
        %5385 = vmatmul.f32.gmra.mxu0 %v5384
        %v5386 = vpop.f32.mrf.mxu0
        %v5387 = vadd.f32 %v5128, %v5386
        %v5388 = vand.u32 %v3918, 4294901760
        %5389 = vmatmul.f32.gmra.mxu0 %v5388
        %v5390 = vpop.f32.mrf.mxu0
        %v5391 = vadd.f32 %v5134, %v5390
        %v5392 = vand.u32 %v3921, 4294901760
        %5393 = vmatmul.f32.gmra.mxu0 %v5392
        %v5394 = vpop.f32.mrf.mxu0
        %v5395 = vadd.f32 %v5140, %v5394
        %v5396 = vand.u32 %v3924, 4294901760
        %5397 = vmatmul.f32.gmra.mxu0 %v5396
        %v5398 = vpop.f32.mrf.mxu0
        %v5399 = vadd.f32 %v5146, %v5398
        %v5400 = vand.u32 %v3927, 4294901760
        %5401 = vmatmul.f32.gmra.mxu0 %v5400
        %v5402 = vpop.f32.mrf.mxu0
        %v5403 = vadd.f32 %v5152, %v5402
        %v5404 = vand.u32 %v3930, 4294901760
        %5405 = vmatmul.f32.gmra.mxu0 %v5404
        %v5406 = vpop.f32.mrf.mxu0
        %v5407 = vadd.f32 %v5158, %v5406
        %v5408 = vand.u32 %v3933, 4294901760
        %5409 = vmatmul.f32.gmra.mxu0 %v5408
        %v5410 = vpop.f32.mrf.mxu0
        %v5411 = vadd.f32 %v5164, %v5410
        %v5412 = vand.u32 %v3936, 4294901760
        %5413 = vmatmul.f32.gmra.mxu0 %v5412
        %v5414 = vpop.f32.mrf.mxu0
        %v5415 = vadd.f32 %v5170, %v5414
        %v5416 = vand.u32 %v3939, 4294901760
        %5417 = vmatmul.f32.gmra.mxu0 %v5416
        %v5418 = vpop.f32.mrf.mxu0
        %v5419 = vadd.f32 %v5176, %v5418
        %v5420 = vand.u32 %v3942, 4294901760
        %5421 = vmatmul.f32.gmra.mxu0 %v5420
        %v5422 = vpop.f32.mrf.mxu0
        %v5423 = vadd.f32 %v5182, %v5422
        %v5424 = vand.u32 %v3945, 4294901760
        %5425 = vmatmul.f32.gmra.mxu0 %v5424
        %v5426 = vpop.f32.mrf.mxu0
        %v5427 = vadd.f32 %v5188, %v5426
        %v5428 = vand.u32 %v3948, 4294901760
        %5429 = vmatmul.f32.gmra.mxu0 %v5428
        %v5430 = vpop.f32.mrf.mxu0
        %v5431 = vadd.f32 %v5194, %v5430
        %v5432 = vand.u32 %v3951, 4294901760
        %5433 = vmatmul.f32.gmra.mxu0 %v5432
        %v5434 = vpop.f32.mrf.mxu0
        %v5435 = vadd.f32 %v5200, %v5434
        %v5436 = vand.u32 %v3954, 4294901760
        %5437 = vmatmul.f32.gmra.mxu0 %v5436
        %v5438 = vpop.f32.mrf.mxu0
        %v5439 = vadd.f32 %v5206, %v5438
        %v5440 = vand.u32 %v3957, 4294901760
        %5441 = vmatmul.f32.gmra.mxu0 %v5440
        %v5442 = vpop.f32.mrf.mxu0
        %v5443 = vadd.f32 %v5212, %v5442
        %v5444 = vand.u32 %v3960, 4294901760
        %5445 = vmatmul.f32.gmra.mxu0 %v5444
        %v5446 = vpop.f32.mrf.mxu0
        %v5447 = vadd.f32 %v5218, %v5446
        %5448 = vdwg.mxu0
        %5449 = vmatpush.msra.mxu0 0.0
        %5450 = vmatpush.msra.mxu0 0.0
        %5451 = vmatpush.msra.mxu0 0.0
        %5452 = vmatpush.msra.mxu0 0.0
        %5453 = vmatpush.msra.mxu0 0.0
        %5454 = vmatpush.msra.mxu0 0.0
        %5455 = vmatpush.msra.mxu0 0.0
        %5456 = vmatpush.msra.mxu0 0.0
        %5457 = vmatpush.msra.mxu0 0.0
        %5458 = vmatpush.msra.mxu0 0.0
        %5459 = vmatpush.msra.mxu0 0.0
        %5460 = vmatpush.msra.mxu0 0.0
        %v5461 = vand.u32 %v3964, 4294901760
        %5462 = vmatpush.msra.mxu0 %v5461
        %v5463 = vand.u32 %v541, 4294901760
        %5464 = vmatpush.msra.mxu0 %v5463
        %v5465 = vand.u32 %v540, 4294901760
        %5466 = vmatpush.msra.mxu0 %v5465
        %v5467 = vand.u32 %v539, 4294901760
        %5468 = vmatpush.msra.mxu0 %v5467
        %v5469 = vand.u32 %v3813, 4294901760
        %5470 = vmatmul.f32.gmra.mxu0 %v5469
        %v5471 = vpop.f32.mrf.mxu0
        %v5472 = vadd.f32 %v5251, %v5471
        %v5473 = vand.u32 %v3816, 4294901760
        %5474 = vmatmul.f32.gmra.mxu0 %v5473
        %v5475 = vpop.f32.mrf.mxu0
        %v5476 = vadd.f32 %v5255, %v5475
        %v5477 = vand.u32 %v3819, 4294901760
        %5478 = vmatmul.f32.gmra.mxu0 %v5477
        %v5479 = vpop.f32.mrf.mxu0
        %v5480 = vadd.f32 %v5259, %v5479
        %v5481 = vand.u32 %v3822, 4294901760
        %5482 = vmatmul.f32.gmra.mxu0 %v5481
        %v5483 = vpop.f32.mrf.mxu0
        %v5484 = vadd.f32 %v5263, %v5483
        %v5485 = vand.u32 %v3825, 4294901760
        %5486 = vmatmul.f32.gmra.mxu0 %v5485
        %v5487 = vpop.f32.mrf.mxu0
        %v5488 = vadd.f32 %v5267, %v5487
        %v5489 = vand.u32 %v3828, 4294901760
        %5490 = vmatmul.f32.gmra.mxu0 %v5489
        %v5491 = vpop.f32.mrf.mxu0
        %v5492 = vadd.f32 %v5271, %v5491
        %v5493 = vand.u32 %v3831, 4294901760
        %5494 = vmatmul.f32.gmra.mxu0 %v5493
        %v5495 = vpop.f32.mrf.mxu0
        %v5496 = vadd.f32 %v5275, %v5495
        %v5497 = vand.u32 %v3834, 4294901760
        %5498 = vmatmul.f32.gmra.mxu0 %v5497
        %v5499 = vpop.f32.mrf.mxu0
        %v5500 = vadd.f32 %v5279, %v5499
        %v5501 = vand.u32 %v3837, 4294901760
        %5502 = vmatmul.f32.gmra.mxu0 %v5501
        %v5503 = vpop.f32.mrf.mxu0
        %v5504 = vadd.f32 %v5283, %v5503
        %v5505 = vand.u32 %v3840, 4294901760
        %5506 = vmatmul.f32.gmra.mxu0 %v5505
        %v5507 = vpop.f32.mrf.mxu0
        %v5508 = vadd.f32 %v5287, %v5507
        %v5509 = vand.u32 %v3843, 4294901760
        %5510 = vmatmul.f32.gmra.mxu0 %v5509
        %v5511 = vpop.f32.mrf.mxu0
        %v5512 = vadd.f32 %v5291, %v5511
        %v5513 = vand.u32 %v3846, 4294901760
        %5514 = vmatmul.f32.gmra.mxu0 %v5513
        %v5515 = vpop.f32.mrf.mxu0
        %v5516 = vadd.f32 %v5295, %v5515
        %v5517 = vand.u32 %v3849, 4294901760
        %5518 = vmatmul.f32.gmra.mxu0 %v5517
        %v5519 = vpop.f32.mrf.mxu0
        %v5520 = vadd.f32 %v5299, %v5519
        %v5521 = vand.u32 %v3852, 4294901760
        %5522 = vmatmul.f32.gmra.mxu0 %v5521
        %v5523 = vpop.f32.mrf.mxu0
        %v5524 = vadd.f32 %v5303, %v5523
        %v5525 = vand.u32 %v3855, 4294901760
        %5526 = vmatmul.f32.gmra.mxu0 %v5525
        %v5527 = vpop.f32.mrf.mxu0
        %v5528 = vadd.f32 %v5307, %v5527
        %v5529 = vand.u32 %v3858, 4294901760
        %5530 = vmatmul.f32.gmra.mxu0 %v5529
        %v5531 = vpop.f32.mrf.mxu0
        %v5532 = vadd.f32 %v5311, %v5531
        %v5533 = vand.u32 %v3861, 4294901760
        %5534 = vmatmul.f32.gmra.mxu0 %v5533
        %v5535 = vpop.f32.mrf.mxu0
        %v5536 = vadd.f32 %v5315, %v5535
        %v5537 = vand.u32 %v3864, 4294901760
        %5538 = vmatmul.f32.gmra.mxu0 %v5537
        %v5539 = vpop.f32.mrf.mxu0
        %v5540 = vadd.f32 %v5319, %v5539
        %v5541 = vand.u32 %v3867, 4294901760
        %5542 = vmatmul.f32.gmra.mxu0 %v5541
        %v5543 = vpop.f32.mrf.mxu0
        %v5544 = vadd.f32 %v5323, %v5543
        %v5545 = vand.u32 %v3870, 4294901760
        %5546 = vmatmul.f32.gmra.mxu0 %v5545
        %v5547 = vpop.f32.mrf.mxu0
        %v5548 = vadd.f32 %v5327, %v5547
        %v5549 = vand.u32 %v3873, 4294901760
        %5550 = vmatmul.f32.gmra.mxu0 %v5549
        %v5551 = vpop.f32.mrf.mxu0
        %v5552 = vadd.f32 %v5331, %v5551
        %v5553 = vand.u32 %v3876, 4294901760
        %5554 = vmatmul.f32.gmra.mxu0 %v5553
        %v5555 = vpop.f32.mrf.mxu0
        %v5556 = vadd.f32 %v5335, %v5555
        %v5557 = vand.u32 %v3879, 4294901760
        %5558 = vmatmul.f32.gmra.mxu0 %v5557
        %v5559 = vpop.f32.mrf.mxu0
        %v5560 = vadd.f32 %v5339, %v5559
        %v5561 = vand.u32 %v3882, 4294901760
        %5562 = vmatmul.f32.gmra.mxu0 %v5561
        %v5563 = vpop.f32.mrf.mxu0
        %v5564 = vadd.f32 %v5343, %v5563
        %v5565 = vand.u32 %v3885, 4294901760
        %5566 = vmatmul.f32.gmra.mxu0 %v5565
        %v5567 = vpop.f32.mrf.mxu0
        %v5568 = vadd.f32 %v5347, %v5567
        %v5569 = vand.u32 %v3888, 4294901760
        %5570 = vmatmul.f32.gmra.mxu0 %v5569
        %v5571 = vpop.f32.mrf.mxu0
        %v5572 = vadd.f32 %v5351, %v5571
        %v5573 = vand.u32 %v3891, 4294901760
        %5574 = vmatmul.f32.gmra.mxu0 %v5573
        %v5575 = vpop.f32.mrf.mxu0
        %v5576 = vadd.f32 %v5355, %v5575
        %v5577 = vand.u32 %v3894, 4294901760
        %5578 = vmatmul.f32.gmra.mxu0 %v5577
        %v5579 = vpop.f32.mrf.mxu0
        %v5580 = vadd.f32 %v5359, %v5579
        %v5581 = vand.u32 %v3897, 4294901760
        %5582 = vmatmul.f32.gmra.mxu0 %v5581
        %v5583 = vpop.f32.mrf.mxu0
        %v5584 = vadd.f32 %v5363, %v5583
        %v5585 = vand.u32 %v3900, 4294901760
        %5586 = vmatmul.f32.gmra.mxu0 %v5585
        %v5587 = vpop.f32.mrf.mxu0
        %v5588 = vadd.f32 %v5367, %v5587
        %v5589 = vand.u32 %v3903, 4294901760
        %5590 = vmatmul.f32.gmra.mxu0 %v5589
        %v5591 = vpop.f32.mrf.mxu0
        %v5592 = vadd.f32 %v5371, %v5591
        %v5593 = vand.u32 %v3906, 4294901760
        %5594 = vmatmul.f32.gmra.mxu0 %v5593
        %v5595 = vpop.f32.mrf.mxu0
        %v5596 = vadd.f32 %v5375, %v5595
        %v5597 = vand.u32 %v3909, 4294901760
        %5598 = vmatmul.f32.gmra.mxu0 %v5597
        %v5599 = vpop.f32.mrf.mxu0
        %v5600 = vadd.f32 %v5379, %v5599
        %v5601 = vand.u32 %v3912, 4294901760
        %5602 = vmatmul.f32.gmra.mxu0 %v5601
        %v5603 = vpop.f32.mrf.mxu0
        %v5604 = vadd.f32 %v5383, %v5603
        %v5605 = vand.u32 %v3915, 4294901760
        %5606 = vmatmul.f32.gmra.mxu0 %v5605
        %v5607 = vpop.f32.mrf.mxu0
        %v5608 = vadd.f32 %v5387, %v5607
        %v5609 = vand.u32 %v3918, 4294901760
        %5610 = vmatmul.f32.gmra.mxu0 %v5609
        %v5611 = vpop.f32.mrf.mxu0
        %v5612 = vadd.f32 %v5391, %v5611
        %v5613 = vand.u32 %v3921, 4294901760
        %5614 = vmatmul.f32.gmra.mxu0 %v5613
        %v5615 = vpop.f32.mrf.mxu0
        %v5616 = vadd.f32 %v5395, %v5615
        %v5617 = vand.u32 %v3924, 4294901760
        %5618 = vmatmul.f32.gmra.mxu0 %v5617
        %v5619 = vpop.f32.mrf.mxu0
        %v5620 = vadd.f32 %v5399, %v5619
        %v5621 = vand.u32 %v3927, 4294901760
        %5622 = vmatmul.f32.gmra.mxu0 %v5621
        %v5623 = vpop.f32.mrf.mxu0
        %v5624 = vadd.f32 %v5403, %v5623
        %v5625 = vand.u32 %v3930, 4294901760
        %5626 = vmatmul.f32.gmra.mxu0 %v5625
        %v5627 = vpop.f32.mrf.mxu0
        %v5628 = vadd.f32 %v5407, %v5627
        %v5629 = vand.u32 %v3933, 4294901760
        %5630 = vmatmul.f32.gmra.mxu0 %v5629
        %v5631 = vpop.f32.mrf.mxu0
        %v5632 = vadd.f32 %v5411, %v5631
        %v5633 = vand.u32 %v3936, 4294901760
        %5634 = vmatmul.f32.gmra.mxu0 %v5633
        %v5635 = vpop.f32.mrf.mxu0
        %v5636 = vadd.f32 %v5415, %v5635
        %v5637 = vand.u32 %v3939, 4294901760
        %5638 = vmatmul.f32.gmra.mxu0 %v5637
        %v5639 = vpop.f32.mrf.mxu0
        %v5640 = vadd.f32 %v5419, %v5639
        %v5641 = vand.u32 %v3942, 4294901760
        %5642 = vmatmul.f32.gmra.mxu0 %v5641
        %v5643 = vpop.f32.mrf.mxu0
        %v5644 = vadd.f32 %v5423, %v5643
        %v5645 = vand.u32 %v3945, 4294901760
        %5646 = vmatmul.f32.gmra.mxu0 %v5645
        %v5647 = vpop.f32.mrf.mxu0
        %v5648 = vadd.f32 %v5427, %v5647
        %v5649 = vand.u32 %v3948, 4294901760
        %5650 = vmatmul.f32.gmra.mxu0 %v5649
        %v5651 = vpop.f32.mrf.mxu0
        %v5652 = vadd.f32 %v5431, %v5651
        %v5653 = vand.u32 %v3951, 4294901760
        %5654 = vmatmul.f32.gmra.mxu0 %v5653
        %v5655 = vpop.f32.mrf.mxu0
        %v5656 = vadd.f32 %v5435, %v5655
        %v5657 = vand.u32 %v3954, 4294901760
        %5658 = vmatmul.f32.gmra.mxu0 %v5657
        %v5659 = vpop.f32.mrf.mxu0
        %v5660 = vadd.f32 %v5439, %v5659
        %v5661 = vand.u32 %v3957, 4294901760
        %5662 = vmatmul.f32.gmra.mxu0 %v5661
        %v5663 = vpop.f32.mrf.mxu0
        %v5664 = vadd.f32 %v5443, %v5663
        %v5665 = vand.u32 %v3960, 4294901760
        %5666 = vmatmul.f32.gmra.mxu0 %v5665
        %v5667 = vpop.f32.mrf.mxu0
        %v5668 = vadd.f32 %v5447, %v5667
        %5669 = vdwg.mxu0
        %v5670 = vmax.f32 %v5472, 0.0
        %v5671 = vmax.f32 %v5476, 0.0
        %v5672 = vmax.f32 %v5480, 0.0
        %v5673 = vmax.f32 %v5484, 0.0
        %v5674 = vmax.f32 %v5488, 0.0
        %v5675 = vmax.f32 %v5492, 0.0
        %v5676 = vmax.f32 %v5496, 0.0
        %v5677 = vmax.f32 %v5500, 0.0
        %v5678 = vmax.f32 %v5504, 0.0
        %v5679 = vmax.f32 %v5508, 0.0
        %v5680 = vmax.f32 %v5512, 0.0
        %v5681 = vmax.f32 %v5516, 0.0
        %v5682 = vmax.f32 %v5520, 0.0
        %v5683 = vmax.f32 %v5524, 0.0
        %v5684 = vmax.f32 %v5528, 0.0
        %v5685 = vmax.f32 %v5532, 0.0
        %v5686 = vmax.f32 %v5536, 0.0
        %v5687 = vmax.f32 %v5540, 0.0
        %v5688 = vmax.f32 %v5544, 0.0
        %v5689 = vmax.f32 %v5548, 0.0
        %v5690 = vmax.f32 %v5552, 0.0
        %v5691 = vmax.f32 %v5556, 0.0
        %v5692 = vmax.f32 %v5560, 0.0
        %v5693 = vmax.f32 %v5564, 0.0
        %v5694 = vmax.f32 %v5568, 0.0
        %v5695 = vmax.f32 %v5572, 0.0
        %v5696 = vmax.f32 %v5576, 0.0
        %v5697 = vmax.f32 %v5580, 0.0
        %v5698 = vmax.f32 %v5584, 0.0
        %v5699 = vmax.f32 %v5588, 0.0
        %v5700 = vmax.f32 %v5592, 0.0
        %v5701 = vmax.f32 %v5596, 0.0
        %v5702 = vmax.f32 %v5600, 0.0
        %v5703 = vmax.f32 %v5604, 0.0
        %v5704 = vmax.f32 %v5608, 0.0
        %v5705 = vmax.f32 %v5612, 0.0
        %v5706 = vmax.f32 %v5616, 0.0
        %v5707 = vmax.f32 %v5620, 0.0
        %v5708 = vmax.f32 %v5624, 0.0
        %v5709 = vmax.f32 %v5628, 0.0
        %v5710 = vmax.f32 %v5632, 0.0
        %v5711 = vmax.f32 %v5636, 0.0
        %v5712 = vmax.f32 %v5640, 0.0
        %v5713 = vmax.f32 %v5644, 0.0
        %v5714 = vmax.f32 %v5648, 0.0
        %v5715 = vmax.f32 %v5652, 0.0
        %v5716 = vmax.f32 %v5656, 0.0
        %v5717 = vmax.f32 %v5660, 0.0
        %v5718 = vmax.f32 %v5664, 0.0
        %v5719 = vmax.f32 %v5668, 0.0
        %vm5720 = vcmask 64512
        %5721 = vst.msk [vmem:[#allocation5] sm:$0xff] %vm5720, %v5670
        %5722 = vst.msk [vmem:[#allocation5 + $0x8] sm:$0xff] %vm5720, %v5671
        %5723 = vst.msk [vmem:[#allocation5 + $0x10] sm:$0xff] %vm5720, %v5672
        %5724 = vst.msk [vmem:[#allocation5 + $0x18] sm:$0xff] %vm5720, %v5673
        %5725 = vst.msk [vmem:[#allocation5 + $0x20] sm:$0xff] %vm5720, %v5674
        %5726 = vst.msk [vmem:[#allocation5 + $0x28] sm:$0xff] %vm5720, %v5675
        %5727 = vst.msk [vmem:[#allocation5 + $0x30] sm:$0xff] %vm5720, %v5676
        %5728 = vst.msk [vmem:[#allocation5 + $0x38] sm:$0xff] %vm5720, %v5677
        %5729 = vst.msk [vmem:[#allocation5 + $0x40] sm:$0xff] %vm5720, %v5678
        %5730 = vst.msk [vmem:[#allocation5 + $0x48] sm:$0xff] %vm5720, %v5679
        %5731 = vst.msk [vmem:[#allocation5 + $0x50] sm:$0xff] %vm5720, %v5680
        %5732 = vst.msk [vmem:[#allocation5 + $0x58] sm:$0xff] %vm5720, %v5681
        %5733 = vst.msk [vmem:[#allocation5 + $0x60] sm:$0xff] %vm5720, %v5682
        %5734 = vst.msk [vmem:[#allocation5 + $0x68] sm:$0xff] %vm5720, %v5683
        %5735 = vst.msk [vmem:[#allocation5 + $0x70] sm:$0xff] %vm5720, %v5684
        %5736 = vst.msk [vmem:[#allocation5 + $0x78] sm:$0xff] %vm5720, %v5685
        %5737 = vst.msk [vmem:[#allocation5 + $0x80] sm:$0xff] %vm5720, %v5686
        %5738 = vst.msk [vmem:[#allocation5 + $0x88] sm:$0xff] %vm5720, %v5687
        %5739 = vst.msk [vmem:[#allocation5 + $0x90] sm:$0xff] %vm5720, %v5688
        %5740 = vst.msk [vmem:[#allocation5 + $0x98] sm:$0xff] %vm5720, %v5689
        %5741 = vst.msk [vmem:[#allocation5 + $0xa0] sm:$0xff] %vm5720, %v5690
        %5742 = vst.msk [vmem:[#allocation5 + $0xa8] sm:$0xff] %vm5720, %v5691
        %5743 = vst.msk [vmem:[#allocation5 + $0xb0] sm:$0xff] %vm5720, %v5692
        %5744 = vst.msk [vmem:[#allocation5 + $0xb8] sm:$0xff] %vm5720, %v5693
        %5745 = vst.msk [vmem:[#allocation5 + $0xc0] sm:$0xff] %vm5720, %v5694
        %5746 = vst.msk [vmem:[#allocation5 + $0xc8] sm:$0xff] %vm5720, %v5695
        %5747 = vst.msk [vmem:[#allocation5 + $0xd0] sm:$0xff] %vm5720, %v5696
        %5748 = vst.msk [vmem:[#allocation5 + $0xd8] sm:$0xff] %vm5720, %v5697
        %5749 = vst.msk [vmem:[#allocation5 + $0xe0] sm:$0xff] %vm5720, %v5698
        %5750 = vst.msk [vmem:[#allocation5 + $0xe8] sm:$0xff] %vm5720, %v5699
        %5751 = vst.msk [vmem:[#allocation5 + $0xf0] sm:$0xff] %vm5720, %v5700
        %5752 = vst.msk [vmem:[#allocation5 + $0xf8] sm:$0xff] %vm5720, %v5701
        %5753 = vst.msk [vmem:[#allocation5 + $0x100] sm:$0xff] %vm5720, %v5702
        %5754 = vst.msk [vmem:[#allocation5 + $0x108] sm:$0xff] %vm5720, %v5703
        %5755 = vst.msk [vmem:[#allocation5 + $0x110] sm:$0xff] %vm5720, %v5704
        %5756 = vst.msk [vmem:[#allocation5 + $0x118] sm:$0xff] %vm5720, %v5705
        %5757 = vst.msk [vmem:[#allocation5 + $0x120] sm:$0xff] %vm5720, %v5706
        %5758 = vst.msk [vmem:[#allocation5 + $0x128] sm:$0xff] %vm5720, %v5707
        %5759 = vst.msk [vmem:[#allocation5 + $0x130] sm:$0xff] %vm5720, %v5708
        %5760 = vst.msk [vmem:[#allocation5 + $0x138] sm:$0xff] %vm5720, %v5709
        %5761 = vst.msk [vmem:[#allocation5 + $0x140] sm:$0xff] %vm5720, %v5710
        %5762 = vst.msk [vmem:[#allocation5 + $0x148] sm:$0xff] %vm5720, %v5711
        %5763 = vst.msk [vmem:[#allocation5 + $0x150] sm:$0xff] %vm5720, %v5712
        %5764 = vst.msk [vmem:[#allocation5 + $0x158] sm:$0xff] %vm5720, %v5713
        %5765 = vst.msk [vmem:[#allocation5 + $0x160] sm:$0xff] %vm5720, %v5714
        %5766 = vst.msk [vmem:[#allocation5 + $0x168] sm:$0xff] %vm5720, %v5715
        %5767 = vst.msk [vmem:[#allocation5 + $0x170] sm:$0xff] %vm5720, %v5716
        %5768 = vst.msk [vmem:[#allocation5 + $0x178] sm:$0xff] %vm5720, %v5717
        %5769 = vst.msk [vmem:[#allocation5 + $0x180] sm:$0xff] %vm5720, %v5718
        %5770 = vst.msk [vmem:[#allocation5 + $0x188] sm:$0xff] %vm5720, %v5719
        %5771 = vst.msk [vmem:[#allocation5 + $0x190] sm:$0xff] %vm5720, 0.0
        %5772 = vst.msk [vmem:[#allocation5 + $0x198] sm:$0xff] %vm5720, 0.0
        %vm5773 = vcmask 60416
        %5774 = vst.msk [vmem:[#allocation5 + $0x1a0] sm:$0xf] %vm5773, 0.0
        %v5775 = vld [vmem:[#allocation5 + $0x14] sm:$0xff]
        %v5776 = vld [vmem:[#allocation5 + $0x1c] sm:$0xff]
        %v5777 = vld [vmem:[#allocation5 + $0x24] sm:$0xff]
        %v5778 = vld [vmem:[#allocation5 + $0x2c] sm:$0xff]
        %v5779 = vld [vmem:[#allocation5 + $0x34] sm:$0xff]
        %v5780 = vld [vmem:[#allocation5 + $0x3c] sm:$0xff]
        %v5781 = vld [vmem:[#allocation5 + $0x44] sm:$0xff]
        %v5782 = vld [vmem:[#allocation5 + $0x4c] sm:$0xff]
        %v5783 = vld [vmem:[#allocation5 + $0x54] sm:$0xff]
        %v5784 = vld [vmem:[#allocation5 + $0x5c] sm:$0xff]
        %v5785 = vld [vmem:[#allocation5 + $0x64] sm:$0xff]
        %v5786 = vld [vmem:[#allocation5 + $0x6c] sm:$0xff]
        %v5787 = vld [vmem:[#allocation5 + $0x74] sm:$0xff]
        %v5788 = vld [vmem:[#allocation5 + $0x7c] sm:$0xff]
        %v5789 = vld [vmem:[#allocation5 + $0x84] sm:$0xff]
        %v5790 = vld [vmem:[#allocation5 + $0x8c] sm:$0xff]
        %v5791 = vld [vmem:[#allocation5 + $0x94] sm:$0xff]
        %v5792 = vld [vmem:[#allocation5 + $0x9c] sm:$0xff]
        %v5793 = vld [vmem:[#allocation5 + $0xa4] sm:$0xff]
        %v5794 = vld [vmem:[#allocation5 + $0xac] sm:$0xff]
        %v5795 = vld [vmem:[#allocation5 + $0xb4] sm:$0xff]
        %v5796 = vld [vmem:[#allocation5 + $0xbc] sm:$0xff]
        %v5797 = vld [vmem:[#allocation5 + $0xc4] sm:$0xff]
        %v5798 = vld [vmem:[#allocation5 + $0xcc] sm:$0xff]
        %v5799 = vld [vmem:[#allocation5 + $0xd4] sm:$0xff]
        %v5800 = vld [vmem:[#allocation5 + $0xdc] sm:$0xff]
        %v5801 = vld [vmem:[#allocation5 + $0xe4] sm:$0xff]
        %v5802 = vld [vmem:[#allocation5 + $0xec] sm:$0xff]
        %v5803 = vld [vmem:[#allocation5 + $0xf4] sm:$0xff]
        %v5804 = vld [vmem:[#allocation5 + $0xfc] sm:$0xff]
        %v5805 = vld [vmem:[#allocation5 + $0x104] sm:$0xff]
        %v5806 = vld [vmem:[#allocation5 + $0x10c] sm:$0xff]
        %v5807 = vld [vmem:[#allocation5 + $0x114] sm:$0xff]
        %v5808 = vld [vmem:[#allocation5 + $0x11c] sm:$0xff]
        %v5809 = vld [vmem:[#allocation5 + $0x124] sm:$0xff]
        %v5810 = vld [vmem:[#allocation5 + $0x12c] sm:$0xff]
        %v5811 = vld [vmem:[#allocation5 + $0x134] sm:$0xff]
        %v5812 = vld [vmem:[#allocation5 + $0x13c] sm:$0xff]
        %v5813 = vld [vmem:[#allocation5 + $0x144] sm:$0xff]
        %v5814 = vld [vmem:[#allocation5 + $0x14c] sm:$0xff]
        %v5815 = vld [vmem:[#allocation5 + $0x154] sm:$0xff]
        %v5816 = vld [vmem:[#allocation5 + $0x15c] sm:$0xff]
        %v5817 = vld [vmem:[#allocation5 + $0x164] sm:$0xff]
        %v5818 = vld [vmem:[#allocation5 + $0x16c] sm:$0xff]
        %v5819 = vld [vmem:[#allocation5 + $0x174] sm:$0xff]
        %v5820 = vld [vmem:[#allocation5 + $0x17c] sm:$0xff]
        %v5821 = vld [vmem:[#allocation5 + $0x184] sm:$0xff]
        %v5822 = vld [vmem:[#allocation5 + $0x18c] sm:$0xff]
        %v5823 = vld [vmem:[#allocation5 + $0x194] sm:$0xff]
        %v5824 = vld [vmem:[#allocation5 + $0x19c] sm:$0xff]
        %v5825 = vmax.f32 %v5670, %v5775
        %v5826 = vmax.f32 %v5671, %v5776
        %v5827 = vmax.f32 %v5672, %v5777
        %v5828 = vmax.f32 %v5673, %v5778
        %v5829 = vmax.f32 %v5674, %v5779
        %v5830 = vmax.f32 %v5675, %v5780
        %v5831 = vmax.f32 %v5676, %v5781
        %v5832 = vmax.f32 %v5677, %v5782
        %v5833 = vmax.f32 %v5678, %v5783
        %v5834 = vmax.f32 %v5679, %v5784
        %v5835 = vmax.f32 %v5680, %v5785
        %v5836 = vmax.f32 %v5681, %v5786
        %v5837 = vmax.f32 %v5682, %v5787
        %v5838 = vmax.f32 %v5683, %v5788
        %v5839 = vmax.f32 %v5684, %v5789
        %v5840 = vmax.f32 %v5685, %v5790
        %v5841 = vmax.f32 %v5686, %v5791
        %v5842 = vmax.f32 %v5687, %v5792
        %v5843 = vmax.f32 %v5688, %v5793
        %v5844 = vmax.f32 %v5689, %v5794
        %v5845 = vmax.f32 %v5690, %v5795
        %v5846 = vmax.f32 %v5691, %v5796
        %v5847 = vmax.f32 %v5692, %v5797
        %v5848 = vmax.f32 %v5693, %v5798
        %v5849 = vmax.f32 %v5694, %v5799
        %v5850 = vmax.f32 %v5695, %v5800
        %v5851 = vmax.f32 %v5696, %v5801
        %v5852 = vmax.f32 %v5697, %v5802
        %v5853 = vmax.f32 %v5698, %v5803
        %v5854 = vmax.f32 %v5699, %v5804
        %v5855 = vmax.f32 %v5700, %v5805
        %v5856 = vmax.f32 %v5701, %v5806
        %v5857 = vmax.f32 %v5702, %v5807
        %v5858 = vmax.f32 %v5703, %v5808
        %v5859 = vmax.f32 %v5704, %v5809
        %v5860 = vmax.f32 %v5705, %v5810
        %v5861 = vmax.f32 %v5706, %v5811
        %v5862 = vmax.f32 %v5707, %v5812
        %v5863 = vmax.f32 %v5708, %v5813
        %v5864 = vmax.f32 %v5709, %v5814
        %v5865 = vmax.f32 %v5710, %v5815
        %v5866 = vmax.f32 %v5711, %v5816
        %v5867 = vmax.f32 %v5712, %v5817
        %v5868 = vmax.f32 %v5713, %v5818
        %v5869 = vmax.f32 %v5714, %v5819
        %v5870 = vmax.f32 %v5715, %v5820
        %v5871 = vmax.f32 %v5716, %v5821
        %v5872 = vmax.f32 %v5717, %v5822
        %v5873 = vmax.f32 %v5718, %v5823
        %v5874 = vmax.f32 %v5719, %v5824
        %5875 = vst.msk [vmem:[#allocation5] sm:$0xff] %vm5720, %v5825
        %5876 = vst.msk [vmem:[#allocation5 + $0x8] sm:$0xff] %vm5720, %v5826
        %5877 = vst.msk [vmem:[#allocation5 + $0x10] sm:$0xff] %vm5720, %v5827
        %5878 = vst.msk [vmem:[#allocation5 + $0x18] sm:$0xff] %vm5720, %v5828
        %5879 = vst.msk [vmem:[#allocation5 + $0x20] sm:$0xff] %vm5720, %v5829
        %5880 = vst.msk [vmem:[#allocation5 + $0x28] sm:$0xff] %vm5720, %v5830
        %5881 = vst.msk [vmem:[#allocation5 + $0x30] sm:$0xff] %vm5720, %v5831
        %5882 = vst.msk [vmem:[#allocation5 + $0x38] sm:$0xff] %vm5720, %v5832
        %5883 = vst.msk [vmem:[#allocation5 + $0x40] sm:$0xff] %vm5720, %v5833
        %5884 = vst.msk [vmem:[#allocation5 + $0x48] sm:$0xff] %vm5720, %v5834
        %5885 = vst.msk [vmem:[#allocation5 + $0x50] sm:$0xff] %vm5720, %v5835
        %5886 = vst.msk [vmem:[#allocation5 + $0x58] sm:$0xff] %vm5720, %v5836
        %5887 = vst.msk [vmem:[#allocation5 + $0x60] sm:$0xff] %vm5720, %v5837
        %5888 = vst.msk [vmem:[#allocation5 + $0x68] sm:$0xff] %vm5720, %v5838
        %5889 = vst.msk [vmem:[#allocation5 + $0x70] sm:$0xff] %vm5720, %v5839
        %5890 = vst.msk [vmem:[#allocation5 + $0x78] sm:$0xff] %vm5720, %v5840
        %5891 = vst.msk [vmem:[#allocation5 + $0x80] sm:$0xff] %vm5720, %v5841
        %5892 = vst.msk [vmem:[#allocation5 + $0x88] sm:$0xff] %vm5720, %v5842
        %5893 = vst.msk [vmem:[#allocation5 + $0x90] sm:$0xff] %vm5720, %v5843
        %5894 = vst.msk [vmem:[#allocation5 + $0x98] sm:$0xff] %vm5720, %v5844
        %5895 = vst.msk [vmem:[#allocation5 + $0xa0] sm:$0xff] %vm5720, %v5845
        %5896 = vst.msk [vmem:[#allocation5 + $0xa8] sm:$0xff] %vm5720, %v5846
        %5897 = vst.msk [vmem:[#allocation5 + $0xb0] sm:$0xff] %vm5720, %v5847
        %5898 = vst.msk [vmem:[#allocation5 + $0xb8] sm:$0xff] %vm5720, %v5848
        %5899 = vst.msk [vmem:[#allocation5 + $0xc0] sm:$0xff] %vm5720, %v5849
        %5900 = vst.msk [vmem:[#allocation5 + $0xc8] sm:$0xff] %vm5720, %v5850
        %5901 = vst.msk [vmem:[#allocation5 + $0xd0] sm:$0xff] %vm5720, %v5851
        %5902 = vst.msk [vmem:[#allocation5 + $0xd8] sm:$0xff] %vm5720, %v5852
        %5903 = vst.msk [vmem:[#allocation5 + $0xe0] sm:$0xff] %vm5720, %v5853
        %5904 = vst.msk [vmem:[#allocation5 + $0xe8] sm:$0xff] %vm5720, %v5854
        %5905 = vst.msk [vmem:[#allocation5 + $0xf0] sm:$0xff] %vm5720, %v5855
        %5906 = vst.msk [vmem:[#allocation5 + $0xf8] sm:$0xff] %vm5720, %v5856
        %5907 = vst.msk [vmem:[#allocation5 + $0x100] sm:$0xff] %vm5720, %v5857
        %5908 = vst.msk [vmem:[#allocation5 + $0x108] sm:$0xff] %vm5720, %v5858
        %5909 = vst.msk [vmem:[#allocation5 + $0x110] sm:$0xff] %vm5720, %v5859
        %5910 = vst.msk [vmem:[#allocation5 + $0x118] sm:$0xff] %vm5720, %v5860
        %5911 = vst.msk [vmem:[#allocation5 + $0x120] sm:$0xff] %vm5720, %v5861
        %5912 = vst.msk [vmem:[#allocation5 + $0x128] sm:$0xff] %vm5720, %v5862
        %5913 = vst.msk [vmem:[#allocation5 + $0x130] sm:$0xff] %vm5720, %v5863
        %5914 = vst.msk [vmem:[#allocation5 + $0x138] sm:$0xff] %vm5720, %v5864
        %5915 = vst.msk [vmem:[#allocation5 + $0x140] sm:$0xff] %vm5720, %v5865
        %5916 = vst.msk [vmem:[#allocation5 + $0x148] sm:$0xff] %vm5720, %v5866
        %5917 = vst.msk [vmem:[#allocation5 + $0x150] sm:$0xff] %vm5720, %v5867
        %5918 = vst.msk [vmem:[#allocation5 + $0x158] sm:$0xff] %vm5720, %v5868
        %5919 = vst.msk [vmem:[#allocation5 + $0x160] sm:$0xff] %vm5720, %v5869
        %5920 = vst.msk [vmem:[#allocation5 + $0x168] sm:$0xff] %vm5720, %v5870
        %5921 = vst.msk [vmem:[#allocation5 + $0x170] sm:$0xff] %vm5720, %v5871
        %5922 = vst.msk [vmem:[#allocation5 + $0x178] sm:$0xff] %vm5720, %v5872
        %5923 = vst.msk [vmem:[#allocation5 + $0x180] sm:$0xff] %vm5720, %v5873
        %5924 = vst.msk [vmem:[#allocation5 + $0x188] sm:$0xff] %vm5720, %v5874
        %v5925 = vld [vmem:[#allocation5 + $0x1] sm:$0xff]
        %v5926 = vld [vmem:[#allocation5 + $0x9] sm:$0xff]
        %v5927 = vld [vmem:[#allocation5 + $0x11] sm:$0xff]
        %v5928 = vld [vmem:[#allocation5 + $0x19] sm:$0xff]
        %v5929 = vld [vmem:[#allocation5 + $0x21] sm:$0xff]
        %v5930 = vld [vmem:[#allocation5 + $0x29] sm:$0xff]
        %v5931 = vld [vmem:[#allocation5 + $0x31] sm:$0xff]
        %v5932 = vld [vmem:[#allocation5 + $0x39] sm:$0xff]
        %v5933 = vld [vmem:[#allocation5 + $0x41] sm:$0xff]
        %v5934 = vld [vmem:[#allocation5 + $0x49] sm:$0xff]
        %v5935 = vld [vmem:[#allocation5 + $0x51] sm:$0xff]
        %v5936 = vld [vmem:[#allocation5 + $0x59] sm:$0xff]
        %v5937 = vld [vmem:[#allocation5 + $0x61] sm:$0xff]
        %v5938 = vld [vmem:[#allocation5 + $0x69] sm:$0xff]
        %v5939 = vld [vmem:[#allocation5 + $0x71] sm:$0xff]
        %v5940 = vld [vmem:[#allocation5 + $0x79] sm:$0xff]
        %v5941 = vld [vmem:[#allocation5 + $0x81] sm:$0xff]
        %v5942 = vld [vmem:[#allocation5 + $0x89] sm:$0xff]
        %v5943 = vld [vmem:[#allocation5 + $0x91] sm:$0xff]
        %v5944 = vld [vmem:[#allocation5 + $0x99] sm:$0xff]
        %v5945 = vld [vmem:[#allocation5 + $0xa1] sm:$0xff]
        %v5946 = vld [vmem:[#allocation5 + $0xa9] sm:$0xff]
        %v5947 = vld [vmem:[#allocation5 + $0xb1] sm:$0xff]
        %v5948 = vld [vmem:[#allocation5 + $0xb9] sm:$0xff]
        %v5949 = vld [vmem:[#allocation5 + $0xc1] sm:$0xff]
        %v5950 = vld [vmem:[#allocation5 + $0xc9] sm:$0xff]
        %v5951 = vld [vmem:[#allocation5 + $0xd1] sm:$0xff]
        %v5952 = vld [vmem:[#allocation5 + $0xd9] sm:$0xff]
        %v5953 = vld [vmem:[#allocation5 + $0xe1] sm:$0xff]
        %v5954 = vld [vmem:[#allocation5 + $0xe9] sm:$0xff]
        %v5955 = vld [vmem:[#allocation5 + $0xf1] sm:$0xff]
        %v5956 = vld [vmem:[#allocation5 + $0xf9] sm:$0xff]
        %v5957 = vld [vmem:[#allocation5 + $0x101] sm:$0xff]
        %v5958 = vld [vmem:[#allocation5 + $0x109] sm:$0xff]
        %v5959 = vld [vmem:[#allocation5 + $0x111] sm:$0xff]
        %v5960 = vld [vmem:[#allocation5 + $0x119] sm:$0xff]
        %v5961 = vld [vmem:[#allocation5 + $0x121] sm:$0xff]
        %v5962 = vld [vmem:[#allocation5 + $0x129] sm:$0xff]
        %v5963 = vld [vmem:[#allocation5 + $0x131] sm:$0xff]
        %v5964 = vld [vmem:[#allocation5 + $0x139] sm:$0xff]
        %v5965 = vld [vmem:[#allocation5 + $0x141] sm:$0xff]
        %v5966 = vld [vmem:[#allocation5 + $0x149] sm:$0xff]
        %v5967 = vld [vmem:[#allocation5 + $0x151] sm:$0xff]
        %v5968 = vld [vmem:[#allocation5 + $0x159] sm:$0xff]
        %v5969 = vld [vmem:[#allocation5 + $0x161] sm:$0xff]
        %v5970 = vld [vmem:[#allocation5 + $0x169] sm:$0xff]
        %v5971 = vld [vmem:[#allocation5 + $0x171] sm:$0xff]
        %v5972 = vld [vmem:[#allocation5 + $0x179] sm:$0xff]
        %v5973 = vld [vmem:[#allocation5 + $0x181] sm:$0xff]
        %v5974 = vld [vmem:[#allocation5 + $0x189] sm:$0xff]
        %v5975 = vmax.f32 %v5825, %v5925
        %v5976 = vmax.f32 %v5826, %v5926
        %v5977 = vmax.f32 %v5827, %v5927
        %v5978 = vmax.f32 %v5828, %v5928
        %v5979 = vmax.f32 %v5829, %v5929
        %v5980 = vmax.f32 %v5830, %v5930
        %v5981 = vmax.f32 %v5831, %v5931
        %v5982 = vmax.f32 %v5832, %v5932
        %v5983 = vmax.f32 %v5833, %v5933
        %v5984 = vmax.f32 %v5834, %v5934
        %v5985 = vmax.f32 %v5835, %v5935
        %v5986 = vmax.f32 %v5836, %v5936
        %v5987 = vmax.f32 %v5837, %v5937
        %v5988 = vmax.f32 %v5838, %v5938
        %v5989 = vmax.f32 %v5839, %v5939
        %v5990 = vmax.f32 %v5840, %v5940
        %v5991 = vmax.f32 %v5841, %v5941
        %v5992 = vmax.f32 %v5842, %v5942
        %v5993 = vmax.f32 %v5843, %v5943
        %v5994 = vmax.f32 %v5844, %v5944
        %v5995 = vmax.f32 %v5845, %v5945
        %v5996 = vmax.f32 %v5846, %v5946
        %v5997 = vmax.f32 %v5847, %v5947
        %v5998 = vmax.f32 %v5848, %v5948
        %v5999 = vmax.f32 %v5849, %v5949
        %v6000 = vmax.f32 %v5850, %v5950
        %v6001 = vmax.f32 %v5851, %v5951
        %v6002 = vmax.f32 %v5852, %v5952
        %v6003 = vmax.f32 %v5853, %v5953
        %v6004 = vmax.f32 %v5854, %v5954
        %v6005 = vmax.f32 %v5855, %v5955
        %v6006 = vmax.f32 %v5856, %v5956
        %v6007 = vmax.f32 %v5857, %v5957
        %v6008 = vmax.f32 %v5858, %v5958
        %v6009 = vmax.f32 %v5859, %v5959
        %v6010 = vmax.f32 %v5860, %v5960
        %v6011 = vmax.f32 %v5861, %v5961
        %v6012 = vmax.f32 %v5862, %v5962
        %v6013 = vmax.f32 %v5863, %v5963
        %v6014 = vmax.f32 %v5864, %v5964
        %v6015 = vmax.f32 %v5865, %v5965
        %v6016 = vmax.f32 %v5866, %v5966
        %v6017 = vmax.f32 %v5867, %v5967
        %v6018 = vmax.f32 %v5868, %v5968
        %v6019 = vmax.f32 %v5869, %v5969
        %v6020 = vmax.f32 %v5870, %v5970
        %v6021 = vmax.f32 %v5871, %v5971
        %v6022 = vmax.f32 %v5872, %v5972
        %v6023 = vmax.f32 %v5873, %v5973
        %v6024 = vmax.f32 %v5874, %v5974
        %6025 = vst.msk [vmem:[#allocation5] sm:$0xff] %vm5720, %v5975
        %6026 = vst.msk [vmem:[#allocation5 + $0x8] sm:$0xff] %vm5720, %v5976
        %6027 = vst.msk [vmem:[#allocation5 + $0x10] sm:$0xff] %vm5720, %v5977
        %6028 = vst.msk [vmem:[#allocation5 + $0x18] sm:$0xff] %vm5720, %v5978
        %6029 = vst.msk [vmem:[#allocation5 + $0x20] sm:$0xff] %vm5720, %v5979
        %6030 = vst.msk [vmem:[#allocation5 + $0x28] sm:$0xff] %vm5720, %v5980
        %6031 = vst.msk [vmem:[#allocation5 + $0x30] sm:$0xff] %vm5720, %v5981
        %6032 = vst.msk [vmem:[#allocation5 + $0x38] sm:$0xff] %vm5720, %v5982
        %6033 = vst.msk [vmem:[#allocation5 + $0x40] sm:$0xff] %vm5720, %v5983
        %6034 = vst.msk [vmem:[#allocation5 + $0x48] sm:$0xff] %vm5720, %v5984
        %6035 = vst.msk [vmem:[#allocation5 + $0x50] sm:$0xff] %vm5720, %v5985
        %6036 = vst.msk [vmem:[#allocation5 + $0x58] sm:$0xff] %vm5720, %v5986
        %6037 = vst.msk [vmem:[#allocation5 + $0x60] sm:$0xff] %vm5720, %v5987
        %6038 = vst.msk [vmem:[#allocation5 + $0x68] sm:$0xff] %vm5720, %v5988
        %6039 = vst.msk [vmem:[#allocation5 + $0x70] sm:$0xff] %vm5720, %v5989
        %6040 = vst.msk [vmem:[#allocation5 + $0x78] sm:$0xff] %vm5720, %v5990
        %6041 = vst.msk [vmem:[#allocation5 + $0x80] sm:$0xff] %vm5720, %v5991
        %6042 = vst.msk [vmem:[#allocation5 + $0x88] sm:$0xff] %vm5720, %v5992
        %6043 = vst.msk [vmem:[#allocation5 + $0x90] sm:$0xff] %vm5720, %v5993
        %6044 = vst.msk [vmem:[#allocation5 + $0x98] sm:$0xff] %vm5720, %v5994
        %6045 = vst.msk [vmem:[#allocation5 + $0xa0] sm:$0xff] %vm5720, %v5995
        %6046 = vst.msk [vmem:[#allocation5 + $0xa8] sm:$0xff] %vm5720, %v5996
        %6047 = vst.msk [vmem:[#allocation5 + $0xb0] sm:$0xff] %vm5720, %v5997
        %6048 = vst.msk [vmem:[#allocation5 + $0xb8] sm:$0xff] %vm5720, %v5998
        %6049 = vst.msk [vmem:[#allocation5 + $0xc0] sm:$0xff] %vm5720, %v5999
        %6050 = vst.msk [vmem:[#allocation5 + $0xc8] sm:$0xff] %vm5720, %v6000
        %6051 = vst.msk [vmem:[#allocation5 + $0xd0] sm:$0xff] %vm5720, %v6001
        %6052 = vst.msk [vmem:[#allocation5 + $0xd8] sm:$0xff] %vm5720, %v6002
        %6053 = vst.msk [vmem:[#allocation5 + $0xe0] sm:$0xff] %vm5720, %v6003
        %6054 = vst.msk [vmem:[#allocation5 + $0xe8] sm:$0xff] %vm5720, %v6004
        %6055 = vst.msk [vmem:[#allocation5 + $0xf0] sm:$0xff] %vm5720, %v6005
        %6056 = vst.msk [vmem:[#allocation5 + $0xf8] sm:$0xff] %vm5720, %v6006
        %6057 = vst.msk [vmem:[#allocation5 + $0x100] sm:$0xff] %vm5720, %v6007
        %6058 = vst.msk [vmem:[#allocation5 + $0x108] sm:$0xff] %vm5720, %v6008
        %6059 = vst.msk [vmem:[#allocation5 + $0x110] sm:$0xff] %vm5720, %v6009
        %6060 = vst.msk [vmem:[#allocation5 + $0x118] sm:$0xff] %vm5720, %v6010
        %6061 = vst.msk [vmem:[#allocation5 + $0x120] sm:$0xff] %vm5720, %v6011
        %6062 = vst.msk [vmem:[#allocation5 + $0x128] sm:$0xff] %vm5720, %v6012
        %6063 = vst.msk [vmem:[#allocation5 + $0x130] sm:$0xff] %vm5720, %v6013
        %6064 = vst.msk [vmem:[#allocation5 + $0x138] sm:$0xff] %vm5720, %v6014
        %6065 = vst.msk [vmem:[#allocation5 + $0x140] sm:$0xff] %vm5720, %v6015
        %6066 = vst.msk [vmem:[#allocation5 + $0x148] sm:$0xff] %vm5720, %v6016
        %6067 = vst.msk [vmem:[#allocation5 + $0x150] sm:$0xff] %vm5720, %v6017
        %6068 = vst.msk [vmem:[#allocation5 + $0x158] sm:$0xff] %vm5720, %v6018
        %6069 = vst.msk [vmem:[#allocation5 + $0x160] sm:$0xff] %vm5720, %v6019
        %6070 = vst.msk [vmem:[#allocation5 + $0x168] sm:$0xff] %vm5720, %v6020
        %6071 = vst.msk [vmem:[#allocation5 + $0x170] sm:$0xff] %vm5720, %v6021
        %6072 = vst.msk [vmem:[#allocation5 + $0x178] sm:$0xff] %vm5720, %v6022
        %6073 = vst.msk [vmem:[#allocation5 + $0x180] sm:$0xff] %vm5720, %v6023
        %6074 = vst.msk [vmem:[#allocation5 + $0x188] sm:$0xff] %vm5720, %v6024
        %v6075 = vld [vmem:[#allocation5] ss:$2 sm:$0xff]
        %s6076 = scalar_lea.vmem [#allocation5], 16
        %v6077 = vld [vmem:[%s6076] ss:$2 sm:$0x3]
        %6078 = vst.msk [vmem:[#allocation3 + $0xb] sm:$0xff] %vm5720, %v6075
        %vm6079 = vcmask 58368
        %6080 = vst.msk [vmem:[#allocation3 + $0x13] sm:$0x3] %vm6079, %v6077
        %s6081 = scalar_lea.vmem [#allocation5], 40
        %v6082 = vld [vmem:[%s6081] ss:$2 sm:$0xff]
        %s6083 = scalar_lea.vmem [#allocation5], 56
        %v6084 = vld [vmem:[%s6083] ss:$2 sm:$0x3]
        %6085 = vst.msk [vmem:[#allocation3 + $0x15] sm:$0xff] %vm5720, %v6082
        %6086 = vst.msk [vmem:[#allocation3 + $0x1d] sm:$0x3] %vm6079, %v6084
        %s6087 = scalar_lea.vmem [#allocation5], 80
        %v6088 = vld [vmem:[%s6087] ss:$2 sm:$0xff]
        %s6089 = scalar_lea.vmem [#allocation5], 96
        %v6090 = vld [vmem:[%s6089] ss:$2 sm:$0x3]
        %6091 = vst.msk [vmem:[#allocation3 + $0x1f] sm:$0xff] %vm5720, %v6088
        %6092 = vst.msk [vmem:[#allocation3 + $0x27] sm:$0x3] %vm6079, %v6090
        %s6093 = scalar_lea.vmem [#allocation5], 120
        %v6094 = vld [vmem:[%s6093] ss:$2 sm:$0xff]
        %s6095 = scalar_lea.vmem [#allocation5], 136
        %v6096 = vld [vmem:[%s6095] ss:$2 sm:$0x3]
        %6097 = vst.msk [vmem:[#allocation3 + $0x29] sm:$0xff] %vm5720, %v6094
        %6098 = vst.msk [vmem:[#allocation3 + $0x31] sm:$0x3] %vm6079, %v6096
        %s6099 = scalar_lea.vmem [#allocation5], 160
        %v6100 = vld [vmem:[%s6099] ss:$2 sm:$0xff]
        %s6101 = scalar_lea.vmem [#allocation5], 176
        %v6102 = vld [vmem:[%s6101] ss:$2 sm:$0x3]
        %6103 = vst.msk [vmem:[#allocation3 + $0x33] sm:$0xff] %vm5720, %v6100
        %6104 = vst.msk [vmem:[#allocation3 + $0x3b] sm:$0x3] %vm6079, %v6102
        %s6105 = scalar_lea.vmem [#allocation5], 200
        %v6106 = vld [vmem:[%s6105] ss:$2 sm:$0xff]
        %s6107 = scalar_lea.vmem [#allocation5], 216
        %v6108 = vld [vmem:[%s6107] ss:$2 sm:$0x3]
        %6109 = vst.msk [vmem:[#allocation3 + $0x3d] sm:$0xff] %vm5720, %v6106
        %6110 = vst.msk [vmem:[#allocation3 + $0x45] sm:$0x3] %vm6079, %v6108
        %s6111 = scalar_lea.vmem [#allocation5], 240
        %v6112 = vld [vmem:[%s6111] ss:$2 sm:$0xff]
        %s6113 = scalar_lea.vmem [#allocation5], 256
        %v6114 = vld [vmem:[%s6113] ss:$2 sm:$0x3]
        %6115 = vst.msk [vmem:[#allocation3 + $0x47] sm:$0xff] %vm5720, %v6112
        %6116 = vst.msk [vmem:[#allocation3 + $0x4f] sm:$0x3] %vm6079, %v6114
        %s6117 = scalar_lea.vmem [#allocation5], 280
        %v6118 = vld [vmem:[%s6117] ss:$2 sm:$0xff]
        %s6119 = scalar_lea.vmem [#allocation5], 296
        %v6120 = vld [vmem:[%s6119] ss:$2 sm:$0x3]
        %6121 = vst.msk [vmem:[#allocation3 + $0x51] sm:$0xff] %vm5720, %v6118
        %6122 = vst.msk [vmem:[#allocation3 + $0x59] sm:$0x3] %vm6079, %v6120
        %s6123 = scalar_lea.vmem [#allocation5], 320
        %v6124 = vld [vmem:[%s6123] ss:$2 sm:$0xff]
        %s6125 = scalar_lea.vmem [#allocation5], 336
        %v6126 = vld [vmem:[%s6125] ss:$2 sm:$0x3]
        %6127 = vst.msk [vmem:[#allocation3 + $0x5b] sm:$0xff] %vm5720, %v6124
        %6128 = vst.msk [vmem:[#allocation3 + $0x63] sm:$0x3] %vm6079, %v6126
        %s6129 = scalar_lea.vmem [#allocation5], 360
        %v6130 = vld [vmem:[%s6129] ss:$2 sm:$0xff]
        %s6131 = scalar_lea.vmem [#allocation5], 376
        %v6132 = vld [vmem:[%s6131] ss:$2 sm:$0x3]
        %6133 = vst.msk [vmem:[#allocation3 + $0x65] sm:$0xff] %vm5720, %v6130
        %6134 = vst.msk [vmem:[#allocation3 + $0x6d] sm:$0x3] %vm6079, %v6132
        %v6135 = vld [vmem:[%s5] sm:$0xff]
        %v6136 = vld [vmem:[%s5 + $0x8] sm:$0xff]
        %v6137 = vld [vmem:[%s5 + $0x10] sm:$0xff]
        %v6138 = vld [vmem:[%s5 + $0x18] sm:$0xff]
        %v6139 = vld [vmem:[%s5 + $0x20] sm:$0xff]
        %v6140 = vld [vmem:[%s5 + $0x28] sm:$0xff]
        %v6141 = vld [vmem:[%s5 + $0x30] sm:$0xff]
        %v6142 = vld [vmem:[%s5 + $0x38] sm:$0xff]
        %v6143 = vld [vmem:[%s5 + $0x40] sm:$0xff]
        %v6144 = vld [vmem:[%s6] sm:$0x1]
        %v6145 = vld [vmem:[%s2] sm:$0xff]
        %v6146 = vld [vmem:[%s2 + $0x8] sm:$0xff]
        %v6147 = vld [vmem:[%s2 + $0x10] sm:$0xff]
        %v6148 = vld [vmem:[%s2 + $0x18] sm:$0xff]
        %v6149 = vld [vmem:[%s2 + $0x20] sm:$0xff]
        %v6150 = vld [vmem:[%s2 + $0x28] sm:$0xff]
        %v6151 = vld [vmem:[%s2 + $0x30] sm:$0xff]
        %v6152 = vld [vmem:[%s2 + $0x38] sm:$0xff]
        %v6153 = vld [vmem:[%s2 + $0x40] sm:$0xff]
        %v6154 = vld [vmem:[%s2 + $0x48] sm:$0xff]
        %v6155 = vld [vmem:[%s2 + $0x50] sm:$0xff]
        %v6156 = vld [vmem:[%s2 + $0x58] sm:$0xff]
        %v6157 = vld [vmem:[%s2 + $0x60] sm:$0xf]
        %6158 = vst.msk [vmem:[#allocation3] sm:$0xff] %vm5720, 0.0
        %vm6159 = vcmask 59392
        %6160 = vst.msk [vmem:[#allocation3 + $0x8] sm:$0x7] %vm6159, 0.0
        %6161 = vst.msk [vmem:[#allocation3 + $0x6f] sm:$0xff] %vm5720, 0.0
        %6162 = vst.msk [vmem:[#allocation3 + $0x77] sm:$0x7] %vm6159, 0.0
        %v6163 = vld [vmem:[#allocation3] sm:$0xff]
        %v6164 = vld [vmem:[#allocation3 + $0x8] sm:$0xff]
        %v6165 = vld [vmem:[#allocation3 + $0x10] sm:$0xff]
        %v6166 = vld [vmem:[#allocation3 + $0x18] sm:$0xff]
        %v6167 = vld [vmem:[#allocation3 + $0x20] sm:$0xff]
        %v6168 = vld [vmem:[#allocation3 + $0x28] sm:$0xff]
        %v6169 = vld [vmem:[#allocation3 + $0x30] sm:$0xff]
        %v6170 = vld [vmem:[#allocation3 + $0x38] sm:$0xff]
        %v6171 = vld [vmem:[#allocation3 + $0x40] sm:$0xff]
        %v6172 = vld [vmem:[#allocation3 + $0x48] sm:$0xff]
        %v6173 = vld [vmem:[#allocation3 + $0x50] sm:$0xff]
        %v6174 = vld [vmem:[#allocation3 + $0x58] sm:$0xff]
        %v6175 = vld [vmem:[#allocation3 + $0x60] sm:$0xf]
        %6177 = vset.pattern.permute.xlu0 0
        %6178 = vperm.xlu0 %6177, %v6145
        %v6179 = vpop.permute.xlu0 %6178
        %6182 = vset.pattern.permute.xlu0 0
        %6183 = vperm.xlu0 %6182, %v6146
        %v6184 = vpop.permute.xlu0 %6183
        %6187 = vset.pattern.permute.xlu0 0
        %6188 = vperm.xlu0 %6187, %v6147
        %v6189 = vpop.permute.xlu0 %6188
        %6192 = vset.pattern.permute.xlu0 0
        %6193 = vperm.xlu0 %6192, %v6148
        %v6194 = vpop.permute.xlu0 %6193
        %6197 = vset.pattern.permute.xlu0 0
        %6198 = vperm.xlu0 %6197, %v6149
        %v6199 = vpop.permute.xlu0 %6198
        %6202 = vset.pattern.permute.xlu0 0
        %6203 = vperm.xlu0 %6202, %v6150
        %v6204 = vpop.permute.xlu0 %6203
        %6207 = vset.pattern.permute.xlu0 0
        %6208 = vperm.xlu0 %6207, %v6151
        %v6209 = vpop.permute.xlu0 %6208
        %6212 = vset.pattern.permute.xlu0 0
        %6213 = vperm.xlu0 %6212, %v6152
        %v6214 = vpop.permute.xlu0 %6213
        %6217 = vset.pattern.permute.xlu0 0
        %6218 = vperm.xlu0 %6217, %v6153
        %v6219 = vpop.permute.xlu0 %6218
        %6222 = vset.pattern.permute.xlu0 0
        %6223 = vperm.xlu0 %6222, %v6154
        %v6224 = vpop.permute.xlu0 %6223
        %6227 = vset.pattern.permute.xlu0 0
        %6228 = vperm.xlu0 %6227, %v6155
        %v6229 = vpop.permute.xlu0 %6228
        %6232 = vset.pattern.permute.xlu0 0
        %6233 = vperm.xlu0 %6232, %v6156
        %v6234 = vpop.permute.xlu0 %6233
        %6237 = vset.pattern.permute.xlu0 0
        %6238 = vperm.xlu0 %6237, %v6157
        %v6239 = vpop.permute.xlu0 %6238
        %v6241 = vmul.f32 %v6163, %v6179
        %v6242 = vmul.f32 %v6164, %v6184
        %v6243 = vmul.f32 %v6165, %v6189
        %v6244 = vmul.f32 %v6166, %v6194
        %v6245 = vmul.f32 %v6167, %v6199
        %v6246 = vmul.f32 %v6168, %v6204
        %v6247 = vmul.f32 %v6169, %v6209
        %v6248 = vmul.f32 %v6170, %v6214
        %v6249 = vmul.f32 %v6171, %v6219
        %v6250 = vmul.f32 %v6172, %v6224
        %v6251 = vmul.f32 %v6173, %v6229
        %v6252 = vmul.f32 %v6174, %v6234
        %v6253 = vmul.f32 %v6175, %v6239
        %v6254 = vld [vmem:[#allocation3 + $0x1] sm:$0xff]
        %v6255 = vld [vmem:[#allocation3 + $0x9] sm:$0xff]
        %v6256 = vld [vmem:[#allocation3 + $0x11] sm:$0xff]
        %v6257 = vld [vmem:[#allocation3 + $0x19] sm:$0xff]
        %v6258 = vld [vmem:[#allocation3 + $0x21] sm:$0xff]
        %v6259 = vld [vmem:[#allocation3 + $0x29] sm:$0xff]
        %v6260 = vld [vmem:[#allocation3 + $0x31] sm:$0xff]
        %v6261 = vld [vmem:[#allocation3 + $0x39] sm:$0xff]
        %v6262 = vld [vmem:[#allocation3 + $0x41] sm:$0xff]
        %v6263 = vld [vmem:[#allocation3 + $0x49] sm:$0xff]
        %v6264 = vld [vmem:[#allocation3 + $0x51] sm:$0xff]
        %v6265 = vld [vmem:[#allocation3 + $0x59] sm:$0xff]
        %v6266 = vld [vmem:[#allocation3 + $0x61] sm:$0xf]
        %v6267 = vld [vmem:[#allocation3 + $0x2] sm:$0xff]
        %v6268 = vld [vmem:[#allocation3 + $0xa] sm:$0xff]
        %v6269 = vld [vmem:[#allocation3 + $0x12] sm:$0xff]
        %v6270 = vld [vmem:[#allocation3 + $0x1a] sm:$0xff]
        %v6271 = vld [vmem:[#allocation3 + $0x22] sm:$0xff]
        %v6272 = vld [vmem:[#allocation3 + $0x2a] sm:$0xff]
        %v6273 = vld [vmem:[#allocation3 + $0x32] sm:$0xff]
        %v6274 = vld [vmem:[#allocation3 + $0x3a] sm:$0xff]
        %v6275 = vld [vmem:[#allocation3 + $0x42] sm:$0xff]
        %v6276 = vld [vmem:[#allocation3 + $0x4a] sm:$0xff]
        %v6277 = vld [vmem:[#allocation3 + $0x52] sm:$0xff]
        %v6278 = vld [vmem:[#allocation3 + $0x5a] sm:$0xff]
        %v6279 = vld [vmem:[#allocation3 + $0x62] sm:$0xf]
        %6280 = vset.pattern.permute.xlu0 1
        %6281 = vperm.xlu0 %6280, %v6145
        %v6282 = vpop.permute.xlu0 %6281
        %6284 = vset.pattern.permute.xlu0 1
        %6285 = vperm.xlu0 %6284, %v6146
        %v6286 = vpop.permute.xlu0 %6285
        %6288 = vset.pattern.permute.xlu0 1
        %6289 = vperm.xlu0 %6288, %v6147
        %v6290 = vpop.permute.xlu0 %6289
        %6292 = vset.pattern.permute.xlu0 1
        %6293 = vperm.xlu0 %6292, %v6148
        %v6294 = vpop.permute.xlu0 %6293
        %6296 = vset.pattern.permute.xlu0 1
        %6297 = vperm.xlu0 %6296, %v6149
        %v6298 = vpop.permute.xlu0 %6297
        %6300 = vset.pattern.permute.xlu0 1
        %6301 = vperm.xlu0 %6300, %v6150
        %v6302 = vpop.permute.xlu0 %6301
        %6304 = vset.pattern.permute.xlu0 1
        %6305 = vperm.xlu0 %6304, %v6151
        %v6306 = vpop.permute.xlu0 %6305
        %6308 = vset.pattern.permute.xlu0 1
        %6309 = vperm.xlu0 %6308, %v6152
        %v6310 = vpop.permute.xlu0 %6309
        %6312 = vset.pattern.permute.xlu0 1
        %6313 = vperm.xlu0 %6312, %v6153
        %v6314 = vpop.permute.xlu0 %6313
        %6316 = vset.pattern.permute.xlu0 1
        %6317 = vperm.xlu0 %6316, %v6154
        %v6318 = vpop.permute.xlu0 %6317
        %6320 = vset.pattern.permute.xlu0 1
        %6321 = vperm.xlu0 %6320, %v6155
        %v6322 = vpop.permute.xlu0 %6321
        %6324 = vset.pattern.permute.xlu0 1
        %6325 = vperm.xlu0 %6324, %v6156
        %v6326 = vpop.permute.xlu0 %6325
        %6328 = vset.pattern.permute.xlu0 1
        %6329 = vperm.xlu0 %6328, %v6157
        %v6330 = vpop.permute.xlu0 %6329
        %v6332 = vmul.f32 %v6267, %v6282
        %v6333 = vmul.f32 %v6268, %v6286
        %v6334 = vmul.f32 %v6269, %v6290
        %v6335 = vmul.f32 %v6270, %v6294
        %v6336 = vmul.f32 %v6271, %v6298
        %v6337 = vmul.f32 %v6272, %v6302
        %v6338 = vmul.f32 %v6273, %v6306
        %v6339 = vmul.f32 %v6274, %v6310
        %v6340 = vmul.f32 %v6275, %v6314
        %v6341 = vmul.f32 %v6276, %v6318
        %v6342 = vmul.f32 %v6277, %v6322
        %v6343 = vmul.f32 %v6278, %v6326
        %v6344 = vmul.f32 %v6279, %v6330
        %v6345 = vld [vmem:[#allocation3 + $0xa] sm:$0xff]
        %v6346 = vld [vmem:[#allocation3 + $0x12] sm:$0xff]
        %v6347 = vld [vmem:[#allocation3 + $0x1a] sm:$0xff]
        %v6348 = vld [vmem:[#allocation3 + $0x22] sm:$0xff]
        %v6349 = vld [vmem:[#allocation3 + $0x2a] sm:$0xff]
        %v6350 = vld [vmem:[#allocation3 + $0x32] sm:$0xff]
        %v6351 = vld [vmem:[#allocation3 + $0x3a] sm:$0xff]
        %v6352 = vld [vmem:[#allocation3 + $0x42] sm:$0xff]
        %v6353 = vld [vmem:[#allocation3 + $0x4a] sm:$0xff]
        %v6354 = vld [vmem:[#allocation3 + $0x52] sm:$0xff]
        %v6355 = vld [vmem:[#allocation3 + $0x5a] sm:$0xff]
        %v6356 = vld [vmem:[#allocation3 + $0x62] sm:$0xff]
        %v6357 = vld [vmem:[#allocation3 + $0x6a] sm:$0xf]
        %v6358 = vmul.f32 %v6345, %v6179
        %v6359 = vmul.f32 %v6346, %v6184
        %v6360 = vmul.f32 %v6347, %v6189
        %v6361 = vmul.f32 %v6348, %v6194
        %v6362 = vmul.f32 %v6349, %v6199
        %v6363 = vmul.f32 %v6350, %v6204
        %v6364 = vmul.f32 %v6351, %v6209
        %v6365 = vmul.f32 %v6352, %v6214
        %v6366 = vmul.f32 %v6353, %v6219
        %v6367 = vmul.f32 %v6354, %v6224
        %v6368 = vmul.f32 %v6355, %v6229
        %v6369 = vmul.f32 %v6356, %v6234
        %v6370 = vmul.f32 %v6357, %v6239
        %v6371 = vld [vmem:[#allocation3 + $0xb] sm:$0xff]
        %v6372 = vld [vmem:[#allocation3 + $0x13] sm:$0xff]
        %v6373 = vld [vmem:[#allocation3 + $0x1b] sm:$0xff]
        %v6374 = vld [vmem:[#allocation3 + $0x23] sm:$0xff]
        %v6375 = vld [vmem:[#allocation3 + $0x2b] sm:$0xff]
        %v6376 = vld [vmem:[#allocation3 + $0x33] sm:$0xff]
        %v6377 = vld [vmem:[#allocation3 + $0x3b] sm:$0xff]
        %v6378 = vld [vmem:[#allocation3 + $0x43] sm:$0xff]
        %v6379 = vld [vmem:[#allocation3 + $0x4b] sm:$0xff]
        %v6380 = vld [vmem:[#allocation3 + $0x53] sm:$0xff]
        %v6381 = vld [vmem:[#allocation3 + $0x5b] sm:$0xff]
        %v6382 = vld [vmem:[#allocation3 + $0x63] sm:$0xff]
        %v6383 = vld [vmem:[#allocation3 + $0x6b] sm:$0xf]
        %v6384 = vld [vmem:[#allocation3 + $0xc] sm:$0xff]
        %v6385 = vld [vmem:[#allocation3 + $0x14] sm:$0xff]
        %v6386 = vld [vmem:[#allocation3 + $0x1c] sm:$0xff]
        %v6387 = vld [vmem:[#allocation3 + $0x24] sm:$0xff]
        %v6388 = vld [vmem:[#allocation3 + $0x2c] sm:$0xff]
        %v6389 = vld [vmem:[#allocation3 + $0x34] sm:$0xff]
        %v6390 = vld [vmem:[#allocation3 + $0x3c] sm:$0xff]
        %v6391 = vld [vmem:[#allocation3 + $0x44] sm:$0xff]
        %v6392 = vld [vmem:[#allocation3 + $0x4c] sm:$0xff]
        %v6393 = vld [vmem:[#allocation3 + $0x54] sm:$0xff]
        %v6394 = vld [vmem:[#allocation3 + $0x5c] sm:$0xff]
        %v6395 = vld [vmem:[#allocation3 + $0x64] sm:$0xff]
        %v6396 = vld [vmem:[#allocation3 + $0x6c] sm:$0xf]
        %v6397 = vmul.f32 %v6384, %v6282
        %v6398 = vmul.f32 %v6385, %v6286
        %v6399 = vmul.f32 %v6386, %v6290
        %v6400 = vmul.f32 %v6387, %v6294
        %v6401 = vmul.f32 %v6388, %v6298
        %v6402 = vmul.f32 %v6389, %v6302
        %v6403 = vmul.f32 %v6390, %v6306
        %v6404 = vmul.f32 %v6391, %v6310
        %v6405 = vmul.f32 %v6392, %v6314
        %v6406 = vmul.f32 %v6393, %v6318
        %v6407 = vmul.f32 %v6394, %v6322
        %v6408 = vmul.f32 %v6395, %v6326
        %v6409 = vmul.f32 %v6396, %v6330
        %v6410 = vld [vmem:[#allocation3 + $0x6c] sm:$0xff]
        %v6411 = vld [vmem:[#allocation3 + $0x74] sm:$0xf]
        %v6412 = vmul.f32 %v6385, %v6179
        %v6413 = vmul.f32 %v6386, %v6184
        %v6414 = vmul.f32 %v6387, %v6189
        %v6415 = vmul.f32 %v6388, %v6194
        %v6416 = vmul.f32 %v6389, %v6199
        %v6417 = vmul.f32 %v6390, %v6204
        %v6418 = vmul.f32 %v6391, %v6209
        %v6419 = vmul.f32 %v6392, %v6214
        %v6420 = vmul.f32 %v6393, %v6219
        %v6421 = vmul.f32 %v6394, %v6224
        %v6422 = vmul.f32 %v6395, %v6229
        %v6423 = vmul.f32 %v6410, %v6234
        %v6424 = vmul.f32 %v6411, %v6239
        %v6425 = vld [vmem:[#allocation3 + $0x15] sm:$0xff]
        %v6426 = vld [vmem:[#allocation3 + $0x1d] sm:$0xff]
        %v6427 = vld [vmem:[#allocation3 + $0x25] sm:$0xff]
        %v6428 = vld [vmem:[#allocation3 + $0x2d] sm:$0xff]
        %v6429 = vld [vmem:[#allocation3 + $0x35] sm:$0xff]
        %v6430 = vld [vmem:[#allocation3 + $0x3d] sm:$0xff]
        %v6431 = vld [vmem:[#allocation3 + $0x45] sm:$0xff]
        %v6432 = vld [vmem:[#allocation3 + $0x4d] sm:$0xff]
        %v6433 = vld [vmem:[#allocation3 + $0x55] sm:$0xff]
        %v6434 = vld [vmem:[#allocation3 + $0x5d] sm:$0xff]
        %v6435 = vld [vmem:[#allocation3 + $0x65] sm:$0xff]
        %v6436 = vld [vmem:[#allocation3 + $0x6d] sm:$0xff]
        %v6437 = vld [vmem:[#allocation3 + $0x75] sm:$0xf]
        %v6438 = vld [vmem:[#allocation3 + $0x16] sm:$0xff]
        %v6439 = vld [vmem:[#allocation3 + $0x1e] sm:$0xff]
        %v6440 = vld [vmem:[#allocation3 + $0x26] sm:$0xff]
        %v6441 = vld [vmem:[#allocation3 + $0x2e] sm:$0xff]
        %v6442 = vld [vmem:[#allocation3 + $0x36] sm:$0xff]
        %v6443 = vld [vmem:[#allocation3 + $0x3e] sm:$0xff]
        %v6444 = vld [vmem:[#allocation3 + $0x46] sm:$0xff]
        %v6445 = vld [vmem:[#allocation3 + $0x4e] sm:$0xff]
        %v6446 = vld [vmem:[#allocation3 + $0x56] sm:$0xff]
        %v6447 = vld [vmem:[#allocation3 + $0x5e] sm:$0xff]
        %v6448 = vld [vmem:[#allocation3 + $0x66] sm:$0xff]
        %v6449 = vld [vmem:[#allocation3 + $0x6e] sm:$0xff]
        %v6450 = vld [vmem:[#allocation3 + $0x76] sm:$0xf]
        %v6451 = vmul.f32 %v6438, %v6282
        %v6452 = vmul.f32 %v6439, %v6286
        %v6453 = vmul.f32 %v6440, %v6290
        %v6454 = vmul.f32 %v6441, %v6294
        %v6455 = vmul.f32 %v6442, %v6298
        %v6456 = vmul.f32 %v6443, %v6302
        %v6457 = vmul.f32 %v6444, %v6306
        %v6458 = vmul.f32 %v6445, %v6310
        %v6459 = vmul.f32 %v6446, %v6314
        %v6460 = vmul.f32 %v6447, %v6318
        %v6461 = vmul.f32 %v6448, %v6322
        %v6462 = vmul.f32 %v6449, %v6326
        %v6463 = vmul.f32 %v6450, %v6330
        %6477 = vrot.lane.b32.xlu0 %v6254, 8
        %v6478 = vpop.permute.xlu0 %6477
        %6479 = vrot.lane.b32.xlu0 %v6255, 8
        %v6480 = vpop.permute.xlu0 %6479
        %6481 = vrot.lane.b32.xlu0 %v6256, 8
        %v6482 = vpop.permute.xlu0 %6481
        %6483 = vrot.lane.b32.xlu0 %v6257, 8
        %v6484 = vpop.permute.xlu0 %6483
        %6485 = vrot.lane.b32.xlu0 %v6258, 8
        %v6486 = vpop.permute.xlu0 %6485
        %6487 = vrot.lane.b32.xlu0 %v6259, 8
        %v6488 = vpop.permute.xlu0 %6487
        %6489 = vrot.lane.b32.xlu0 %v6260, 8
        %v6490 = vpop.permute.xlu0 %6489
        %6491 = vrot.lane.b32.xlu0 %v6261, 8
        %v6492 = vpop.permute.xlu0 %6491
        %6493 = vrot.lane.b32.xlu0 %v6262, 8
        %v6494 = vpop.permute.xlu0 %6493
        %6495 = vrot.lane.b32.xlu0 %v6263, 8
        %v6496 = vpop.permute.xlu0 %6495
        %6497 = vrot.lane.b32.xlu0 %v6264, 8
        %v6498 = vpop.permute.xlu0 %6497
        %6499 = vrot.lane.b32.xlu0 %v6265, 8
        %v6500 = vpop.permute.xlu0 %6499
        %6501 = vrot.lane.b32.xlu0 %v6266, 8
        %v6502 = vpop.permute.xlu0 %6501
        %6529 = vrot.lane.b32.xlu0 %v6332, 16
        %v6530 = vpop.permute.xlu0 %6529
        %6531 = vrot.lane.b32.xlu0 %v6333, 16
        %v6532 = vpop.permute.xlu0 %6531
        %6533 = vrot.lane.b32.xlu0 %v6334, 16
        %v6534 = vpop.permute.xlu0 %6533
        %6535 = vrot.lane.b32.xlu0 %v6335, 16
        %v6536 = vpop.permute.xlu0 %6535
        %6537 = vrot.lane.b32.xlu0 %v6336, 16
        %v6538 = vpop.permute.xlu0 %6537
        %6539 = vrot.lane.b32.xlu0 %v6337, 16
        %v6540 = vpop.permute.xlu0 %6539
        %6541 = vrot.lane.b32.xlu0 %v6338, 16
        %v6542 = vpop.permute.xlu0 %6541
        %6543 = vrot.lane.b32.xlu0 %v6339, 16
        %v6544 = vpop.permute.xlu0 %6543
        %6545 = vrot.lane.b32.xlu0 %v6340, 16
        %v6546 = vpop.permute.xlu0 %6545
        %6547 = vrot.lane.b32.xlu0 %v6341, 16
        %v6548 = vpop.permute.xlu0 %6547
        %6549 = vrot.lane.b32.xlu0 %v6342, 16
        %v6550 = vpop.permute.xlu0 %6549
        %6551 = vrot.lane.b32.xlu0 %v6343, 16
        %v6552 = vpop.permute.xlu0 %6551
        %6553 = vrot.lane.b32.xlu0 %v6344, 16
        %v6554 = vpop.permute.xlu0 %6553
        %6581 = vrot.lane.b32.xlu0 %v6358, 24
        %v6582 = vpop.permute.xlu0 %6581
        %6583 = vrot.lane.b32.xlu0 %v6359, 24
        %v6584 = vpop.permute.xlu0 %6583
        %6585 = vrot.lane.b32.xlu0 %v6360, 24
        %v6586 = vpop.permute.xlu0 %6585
        %6587 = vrot.lane.b32.xlu0 %v6361, 24
        %v6588 = vpop.permute.xlu0 %6587
        %6589 = vrot.lane.b32.xlu0 %v6362, 24
        %v6590 = vpop.permute.xlu0 %6589
        %6591 = vrot.lane.b32.xlu0 %v6363, 24
        %v6592 = vpop.permute.xlu0 %6591
        %6593 = vrot.lane.b32.xlu0 %v6364, 24
        %v6594 = vpop.permute.xlu0 %6593
        %6595 = vrot.lane.b32.xlu0 %v6365, 24
        %v6596 = vpop.permute.xlu0 %6595
        %6597 = vrot.lane.b32.xlu0 %v6366, 24
        %v6598 = vpop.permute.xlu0 %6597
        %6599 = vrot.lane.b32.xlu0 %v6367, 24
        %v6600 = vpop.permute.xlu0 %6599
        %6601 = vrot.lane.b32.xlu0 %v6368, 24
        %v6602 = vpop.permute.xlu0 %6601
        %6603 = vrot.lane.b32.xlu0 %v6369, 24
        %v6604 = vpop.permute.xlu0 %6603
        %6605 = vrot.lane.b32.xlu0 %v6370, 24
        %v6606 = vpop.permute.xlu0 %6605
        %6633 = vrot.lane.b32.xlu0 %v6371, 32
        %v6634 = vpop.permute.xlu0 %6633
        %6635 = vrot.lane.b32.xlu0 %v6372, 32
        %v6636 = vpop.permute.xlu0 %6635
        %6637 = vrot.lane.b32.xlu0 %v6373, 32
        %v6638 = vpop.permute.xlu0 %6637
        %6639 = vrot.lane.b32.xlu0 %v6374, 32
        %v6640 = vpop.permute.xlu0 %6639
        %6641 = vrot.lane.b32.xlu0 %v6375, 32
        %v6642 = vpop.permute.xlu0 %6641
        %6643 = vrot.lane.b32.xlu0 %v6376, 32
        %v6644 = vpop.permute.xlu0 %6643
        %6645 = vrot.lane.b32.xlu0 %v6377, 32
        %v6646 = vpop.permute.xlu0 %6645
        %6647 = vrot.lane.b32.xlu0 %v6378, 32
        %v6648 = vpop.permute.xlu0 %6647
        %6649 = vrot.lane.b32.xlu0 %v6379, 32
        %v6650 = vpop.permute.xlu0 %6649
        %6651 = vrot.lane.b32.xlu0 %v6380, 32
        %v6652 = vpop.permute.xlu0 %6651
        %6653 = vrot.lane.b32.xlu0 %v6381, 32
        %v6654 = vpop.permute.xlu0 %6653
        %6655 = vrot.lane.b32.xlu0 %v6382, 32
        %v6656 = vpop.permute.xlu0 %6655
        %6657 = vrot.lane.b32.xlu0 %v6383, 32
        %v6658 = vpop.permute.xlu0 %6657
        %6685 = vrot.lane.b32.xlu0 %v6397, 40
        %v6686 = vpop.permute.xlu0 %6685
        %6687 = vrot.lane.b32.xlu0 %v6398, 40
        %v6688 = vpop.permute.xlu0 %6687
        %6689 = vrot.lane.b32.xlu0 %v6399, 40
        %v6690 = vpop.permute.xlu0 %6689
        %6691 = vrot.lane.b32.xlu0 %v6400, 40
        %v6692 = vpop.permute.xlu0 %6691
        %6693 = vrot.lane.b32.xlu0 %v6401, 40
        %v6694 = vpop.permute.xlu0 %6693
        %6695 = vrot.lane.b32.xlu0 %v6402, 40
        %v6696 = vpop.permute.xlu0 %6695
        %6697 = vrot.lane.b32.xlu0 %v6403, 40
        %v6698 = vpop.permute.xlu0 %6697
        %6699 = vrot.lane.b32.xlu0 %v6404, 40
        %v6700 = vpop.permute.xlu0 %6699
        %6701 = vrot.lane.b32.xlu0 %v6405, 40
        %v6702 = vpop.permute.xlu0 %6701
        %6703 = vrot.lane.b32.xlu0 %v6406, 40
        %v6704 = vpop.permute.xlu0 %6703
        %6705 = vrot.lane.b32.xlu0 %v6407, 40
        %v6706 = vpop.permute.xlu0 %6705
        %6707 = vrot.lane.b32.xlu0 %v6408, 40
        %v6708 = vpop.permute.xlu0 %6707
        %6709 = vrot.lane.b32.xlu0 %v6409, 40
        %v6710 = vpop.permute.xlu0 %6709
        %6737 = vrot.lane.b32.xlu0 %v6412, 48
        %v6738 = vpop.permute.xlu0 %6737
        %6739 = vrot.lane.b32.xlu0 %v6413, 48
        %v6740 = vpop.permute.xlu0 %6739
        %6741 = vrot.lane.b32.xlu0 %v6414, 48
        %v6742 = vpop.permute.xlu0 %6741
        %6743 = vrot.lane.b32.xlu0 %v6415, 48
        %v6744 = vpop.permute.xlu0 %6743
        %6745 = vrot.lane.b32.xlu0 %v6416, 48
        %v6746 = vpop.permute.xlu0 %6745
        %6747 = vrot.lane.b32.xlu0 %v6417, 48
        %v6748 = vpop.permute.xlu0 %6747
        %6749 = vrot.lane.b32.xlu0 %v6418, 48
        %v6750 = vpop.permute.xlu0 %6749
        %6751 = vrot.lane.b32.xlu0 %v6419, 48
        %v6752 = vpop.permute.xlu0 %6751
        %6753 = vrot.lane.b32.xlu0 %v6420, 48
        %v6754 = vpop.permute.xlu0 %6753
        %6755 = vrot.lane.b32.xlu0 %v6421, 48
        %v6756 = vpop.permute.xlu0 %6755
        %6757 = vrot.lane.b32.xlu0 %v6422, 48
        %v6758 = vpop.permute.xlu0 %6757
        %6759 = vrot.lane.b32.xlu0 %v6423, 48
        %v6760 = vpop.permute.xlu0 %6759
        %6761 = vrot.lane.b32.xlu0 %v6424, 48
        %v6762 = vpop.permute.xlu0 %6761
        %6789 = vrot.lane.b32.xlu0 %v6425, 56
        %v6790 = vpop.permute.xlu0 %6789
        %6791 = vrot.lane.b32.xlu0 %v6426, 56
        %v6792 = vpop.permute.xlu0 %6791
        %6793 = vrot.lane.b32.xlu0 %v6427, 56
        %v6794 = vpop.permute.xlu0 %6793
        %6795 = vrot.lane.b32.xlu0 %v6428, 56
        %v6796 = vpop.permute.xlu0 %6795
        %6797 = vrot.lane.b32.xlu0 %v6429, 56
        %v6798 = vpop.permute.xlu0 %6797
        %6799 = vrot.lane.b32.xlu0 %v6430, 56
        %v6800 = vpop.permute.xlu0 %6799
        %6801 = vrot.lane.b32.xlu0 %v6431, 56
        %v6802 = vpop.permute.xlu0 %6801
        %6803 = vrot.lane.b32.xlu0 %v6432, 56
        %v6804 = vpop.permute.xlu0 %6803
        %6805 = vrot.lane.b32.xlu0 %v6433, 56
        %v6806 = vpop.permute.xlu0 %6805
        %6807 = vrot.lane.b32.xlu0 %v6434, 56
        %v6808 = vpop.permute.xlu0 %6807
        %6809 = vrot.lane.b32.xlu0 %v6435, 56
        %v6810 = vpop.permute.xlu0 %6809
        %6811 = vrot.lane.b32.xlu0 %v6436, 56
        %v6812 = vpop.permute.xlu0 %6811
        %6813 = vrot.lane.b32.xlu0 %v6437, 56
        %v6814 = vpop.permute.xlu0 %6813
        %6841 = vrot.lane.b32.xlu0 %v6451, 64
        %v6842 = vpop.permute.xlu0 %6841
        %6843 = vrot.lane.b32.xlu0 %v6452, 64
        %v6844 = vpop.permute.xlu0 %6843
        %6845 = vrot.lane.b32.xlu0 %v6453, 64
        %v6846 = vpop.permute.xlu0 %6845
        %6847 = vrot.lane.b32.xlu0 %v6454, 64
        %v6848 = vpop.permute.xlu0 %6847
        %6849 = vrot.lane.b32.xlu0 %v6455, 64
        %v6850 = vpop.permute.xlu0 %6849
        %6851 = vrot.lane.b32.xlu0 %v6456, 64
        %v6852 = vpop.permute.xlu0 %6851
        %6853 = vrot.lane.b32.xlu0 %v6457, 64
        %v6854 = vpop.permute.xlu0 %6853
        %6855 = vrot.lane.b32.xlu0 %v6458, 64
        %v6856 = vpop.permute.xlu0 %6855
        %6857 = vrot.lane.b32.xlu0 %v6459, 64
        %v6858 = vpop.permute.xlu0 %6857
        %6859 = vrot.lane.b32.xlu0 %v6460, 64
        %v6860 = vpop.permute.xlu0 %6859
        %6861 = vrot.lane.b32.xlu0 %v6461, 64
        %v6862 = vpop.permute.xlu0 %6861
        %6863 = vrot.lane.b32.xlu0 %v6462, 64
        %v6864 = vpop.permute.xlu0 %6863
        %6865 = vrot.lane.b32.xlu0 %v6463, 64
        %v6866 = vpop.permute.xlu0 %6865
        %v6880 = vsel %vm5720, %v6241, %v6478
        %v6881 = vsel %vm5720, %v6242, %v6480
        %v6882 = vsel %vm5720, %v6243, %v6482
        %v6883 = vsel %vm5720, %v6244, %v6484
        %v6884 = vsel %vm5720, %v6245, %v6486
        %v6885 = vsel %vm5720, %v6246, %v6488
        %v6886 = vsel %vm5720, %v6247, %v6490
        %v6887 = vsel %vm5720, %v6248, %v6492
        %v6888 = vsel %vm5720, %v6249, %v6494
        %v6889 = vsel %vm5720, %v6250, %v6496
        %v6890 = vsel %vm5720, %v6251, %v6498
        %v6891 = vsel %vm5720, %v6252, %v6500
        %v6892 = vsel %vm5720, %v6253, %v6502
        %vm6893 = vcmask 130048
        %v6894 = vsel %vm6893, %v6880, %v6530
        %v6895 = vsel %vm6893, %v6881, %v6532
        %v6896 = vsel %vm6893, %v6882, %v6534
        %v6897 = vsel %vm6893, %v6883, %v6536
        %v6898 = vsel %vm6893, %v6884, %v6538
        %v6899 = vsel %vm6893, %v6885, %v6540
        %v6900 = vsel %vm6893, %v6886, %v6542
        %v6901 = vsel %vm6893, %v6887, %v6544
        %v6902 = vsel %vm6893, %v6888, %v6546
        %v6903 = vsel %vm6893, %v6889, %v6548
        %v6904 = vsel %vm6893, %v6890, %v6550
        %v6905 = vsel %vm6893, %v6891, %v6552
        %v6906 = vsel %vm6893, %v6892, %v6554
        %v6907 = vsel %vm3757, %v6894, %v6582
        %v6908 = vsel %vm3757, %v6895, %v6584
        %v6909 = vsel %vm3757, %v6896, %v6586
        %v6910 = vsel %vm3757, %v6897, %v6588
        %v6911 = vsel %vm3757, %v6898, %v6590
        %v6912 = vsel %vm3757, %v6899, %v6592
        %v6913 = vsel %vm3757, %v6900, %v6594
        %v6914 = vsel %vm3757, %v6901, %v6596
        %v6915 = vsel %vm3757, %v6902, %v6598
        %v6916 = vsel %vm3757, %v6903, %v6600
        %v6917 = vsel %vm3757, %v6904, %v6602
        %v6918 = vsel %vm3757, %v6905, %v6604
        %v6919 = vsel %vm3757, %v6906, %v6606
        %vm6920 = vcmask 261120
        %v6921 = vsel %vm6920, %v6907, %v6634
        %v6922 = vsel %vm6920, %v6908, %v6636
        %v6923 = vsel %vm6920, %v6909, %v6638
        %v6924 = vsel %vm6920, %v6910, %v6640
        %v6925 = vsel %vm6920, %v6911, %v6642
        %v6926 = vsel %vm6920, %v6912, %v6644
        %v6927 = vsel %vm6920, %v6913, %v6646
        %v6928 = vsel %vm6920, %v6914, %v6648
        %v6929 = vsel %vm6920, %v6915, %v6650
        %v6930 = vsel %vm6920, %v6916, %v6652
        %v6931 = vsel %vm6920, %v6917, %v6654
        %v6932 = vsel %vm6920, %v6918, %v6656
        %v6933 = vsel %vm6920, %v6919, %v6658
        %vm6934 = vcmask 326656
        %v6935 = vsel %vm6934, %v6921, %v6686
        %v6936 = vsel %vm6934, %v6922, %v6688
        %v6937 = vsel %vm6934, %v6923, %v6690
        %v6938 = vsel %vm6934, %v6924, %v6692
        %v6939 = vsel %vm6934, %v6925, %v6694
        %v6940 = vsel %vm6934, %v6926, %v6696
        %v6941 = vsel %vm6934, %v6927, %v6698
        %v6942 = vsel %vm6934, %v6928, %v6700
        %v6943 = vsel %vm6934, %v6929, %v6702
        %v6944 = vsel %vm6934, %v6930, %v6704
        %v6945 = vsel %vm6934, %v6931, %v6706
        %v6946 = vsel %vm6934, %v6932, %v6708
        %v6947 = vsel %vm6934, %v6933, %v6710
        %vm6948 = vcmask 392192
        %v6949 = vsel %vm6948, %v6935, %v6738
        %v6950 = vsel %vm6948, %v6936, %v6740
        %v6951 = vsel %vm6948, %v6937, %v6742
        %v6952 = vsel %vm6948, %v6938, %v6744
        %v6953 = vsel %vm6948, %v6939, %v6746
        %v6954 = vsel %vm6948, %v6940, %v6748
        %v6955 = vsel %vm6948, %v6941, %v6750
        %v6956 = vsel %vm6948, %v6942, %v6752
        %v6957 = vsel %vm6948, %v6943, %v6754
        %v6958 = vsel %vm6948, %v6944, %v6756
        %v6959 = vsel %vm6948, %v6945, %v6758
        %v6960 = vsel %vm6948, %v6946, %v6760
        %v6961 = vsel %vm6948, %v6947, %v6762
        %vm6962 = vcmask 457728
        %v6963 = vsel %vm6962, %v6949, %v6790
        %v6964 = vsel %vm6962, %v6950, %v6792
        %v6965 = vsel %vm6962, %v6951, %v6794
        %v6966 = vsel %vm6962, %v6952, %v6796
        %v6967 = vsel %vm6962, %v6953, %v6798
        %v6968 = vsel %vm6962, %v6954, %v6800
        %v6969 = vsel %vm6962, %v6955, %v6802
        %v6970 = vsel %vm6962, %v6956, %v6804
        %v6971 = vsel %vm6962, %v6957, %v6806
        %v6972 = vsel %vm6962, %v6958, %v6808
        %v6973 = vsel %vm6962, %v6959, %v6810
        %v6974 = vsel %vm6962, %v6960, %v6812
        %v6975 = vsel %vm6962, %v6961, %v6814
        %vm6976 = vcmask 523264
        %v6977 = vsel %vm6976, %v6963, %v6842
        %v6978 = vsel %vm6976, %v6964, %v6844
        %v6979 = vsel %vm6976, %v6965, %v6846
        %v6980 = vsel %vm6976, %v6966, %v6848
        %v6981 = vsel %vm6976, %v6967, %v6850
        %v6982 = vsel %vm6976, %v6968, %v6852
        %v6983 = vsel %vm6976, %v6969, %v6854
        %v6984 = vsel %vm6976, %v6970, %v6856
        %v6985 = vsel %vm6976, %v6971, %v6858
        %v6986 = vsel %vm6976, %v6972, %v6860
        %v6987 = vsel %vm6976, %v6973, %v6862
        %v6988 = vsel %vm6976, %v6974, %v6864
        %v6989 = vsel %vm6976, %v6975, %v6866
        %v6991 = vperm.slane %v6144, 0
        %vm6993 = vcmask 588800
        %v6995 = vsel %vm6993, %v6977, 0
        %v6998 = vsel %vm6993, %v6978, 0
        %v7001 = vsel %vm6993, %v6979, 0
        %v7004 = vsel %vm6993, %v6980, 0
        %v7007 = vsel %vm6993, %v6981, 0
        %v7010 = vsel %vm6993, %v6982, 0
        %v7013 = vsel %vm6993, %v6983, 0
        %v7016 = vsel %vm6993, %v6984, 0
        %v7019 = vsel %vm6993, %v6985, 0
        %v7022 = vsel %vm6993, %v6986, 0
        %v7025 = vsel %vm6993, %v6987, 0
        %v7028 = vsel %vm6993, %v6988, 0
        %v7031 = vsel %vm6993, %v6989, 0
        %7033 = vmatpush.msra.mxu0 0.0
        %7034 = vmatpush.msra.mxu0 0.0
        %7035 = vmatpush.msra.mxu0 0.0
        %7036 = vmatpush.msra.mxu0 0.0
        %7037 = vmatpush.msra.mxu0 0.0
        %7038 = vmatpush.msra.mxu0 0.0
        %7039 = vmatpush.msra.mxu0 0.0
        %v7040 = vand.u32 %v6143, 4294901760
        %7041 = vmatpush.msra.mxu0 %v7040
        %v7042 = vand.u32 %v6142, 4294901760
        %7043 = vmatpush.msra.mxu0 %v7042
        %v7044 = vand.u32 %v6141, 4294901760
        %7045 = vmatpush.msra.mxu0 %v7044
        %v7046 = vand.u32 %v6140, 4294901760
        %7047 = vmatpush.msra.mxu0 %v7046
        %v7048 = vand.u32 %v6139, 4294901760
        %7049 = vmatpush.msra.mxu0 %v7048
        %v7050 = vand.u32 %v6138, 4294901760
        %7051 = vmatpush.msra.mxu0 %v7050
        %v7052 = vand.u32 %v6137, 4294901760
        %7053 = vmatpush.msra.mxu0 %v7052
        %v7054 = vand.u32 %v6136, 4294901760
        %7055 = vmatpush.msra.mxu0 %v7054
        %v7056 = vand.u32 %v6135, 4294901760
        %7057 = vmatpush.msra.mxu0 %v7056
        %v7058 = vand.u32 %v6995, 4294901760
        %v7059 = vsub.f32 %v6995, %v7058
        %v7060 = vand.u32 %v7059, 4294901760
        %v7061 = vsub.f32 %v7059, %v7060
        %v7062 = vand.u32 %v7061, 4294901760
        %7063 = vmatmul.f32.gmra.mxu0 %v7062
        %v7064 = vpop.f32.mrf.mxu0
        %v7065 = vadd.f32 %v6991, %v7064
        %v7066 = vand.u32 %v6998, 4294901760
        %v7067 = vsub.f32 %v6998, %v7066
        %v7068 = vand.u32 %v7067, 4294901760
        %v7069 = vsub.f32 %v7067, %v7068
        %v7070 = vand.u32 %v7069, 4294901760
        %7071 = vmatmul.f32.gmra.mxu0 %v7070
        %v7072 = vpop.f32.mrf.mxu0
        %v7073 = vadd.f32 %v6991, %v7072
        %v7074 = vand.u32 %v7001, 4294901760
        %v7075 = vsub.f32 %v7001, %v7074
        %v7076 = vand.u32 %v7075, 4294901760
        %v7077 = vsub.f32 %v7075, %v7076
        %v7078 = vand.u32 %v7077, 4294901760
        %7079 = vmatmul.f32.gmra.mxu0 %v7078
        %v7080 = vpop.f32.mrf.mxu0
        %v7081 = vadd.f32 %v6991, %v7080
        %v7082 = vand.u32 %v7004, 4294901760
        %v7083 = vsub.f32 %v7004, %v7082
        %v7084 = vand.u32 %v7083, 4294901760
        %v7085 = vsub.f32 %v7083, %v7084
        %v7086 = vand.u32 %v7085, 4294901760
        %7087 = vmatmul.f32.gmra.mxu0 %v7086
        %v7088 = vpop.f32.mrf.mxu0
        %v7089 = vadd.f32 %v6991, %v7088
        %v7090 = vand.u32 %v7007, 4294901760
        %v7091 = vsub.f32 %v7007, %v7090
        %v7092 = vand.u32 %v7091, 4294901760
        %v7093 = vsub.f32 %v7091, %v7092
        %v7094 = vand.u32 %v7093, 4294901760
        %7095 = vmatmul.f32.gmra.mxu0 %v7094
        %v7096 = vpop.f32.mrf.mxu0
        %v7097 = vadd.f32 %v6991, %v7096
        %v7098 = vand.u32 %v7010, 4294901760
        %v7099 = vsub.f32 %v7010, %v7098
        %v7100 = vand.u32 %v7099, 4294901760
        %v7101 = vsub.f32 %v7099, %v7100
        %v7102 = vand.u32 %v7101, 4294901760
        %7103 = vmatmul.f32.gmra.mxu0 %v7102
        %v7104 = vpop.f32.mrf.mxu0
        %v7105 = vadd.f32 %v6991, %v7104
        %v7106 = vand.u32 %v7013, 4294901760
        %v7107 = vsub.f32 %v7013, %v7106
        %v7108 = vand.u32 %v7107, 4294901760
        %v7109 = vsub.f32 %v7107, %v7108
        %v7110 = vand.u32 %v7109, 4294901760
        %7111 = vmatmul.f32.gmra.mxu0 %v7110
        %v7112 = vpop.f32.mrf.mxu0
        %v7113 = vadd.f32 %v6991, %v7112
        %v7114 = vand.u32 %v7016, 4294901760
        %v7115 = vsub.f32 %v7016, %v7114
        %v7116 = vand.u32 %v7115, 4294901760
        %v7117 = vsub.f32 %v7115, %v7116
        %v7118 = vand.u32 %v7117, 4294901760
        %7119 = vmatmul.f32.gmra.mxu0 %v7118
        %v7120 = vpop.f32.mrf.mxu0
        %v7121 = vadd.f32 %v6991, %v7120
        %v7122 = vand.u32 %v7019, 4294901760
        %v7123 = vsub.f32 %v7019, %v7122
        %v7124 = vand.u32 %v7123, 4294901760
        %v7125 = vsub.f32 %v7123, %v7124
        %v7126 = vand.u32 %v7125, 4294901760
        %7127 = vmatmul.f32.gmra.mxu0 %v7126
        %v7128 = vpop.f32.mrf.mxu0
        %v7129 = vadd.f32 %v6991, %v7128
        %v7130 = vand.u32 %v7022, 4294901760
        %v7131 = vsub.f32 %v7022, %v7130
        %v7132 = vand.u32 %v7131, 4294901760
        %v7133 = vsub.f32 %v7131, %v7132
        %v7134 = vand.u32 %v7133, 4294901760
        %7135 = vmatmul.f32.gmra.mxu0 %v7134
        %v7136 = vpop.f32.mrf.mxu0
        %v7137 = vadd.f32 %v6991, %v7136
        %v7138 = vand.u32 %v7025, 4294901760
        %v7139 = vsub.f32 %v7025, %v7138
        %v7140 = vand.u32 %v7139, 4294901760
        %v7141 = vsub.f32 %v7139, %v7140
        %v7142 = vand.u32 %v7141, 4294901760
        %7143 = vmatmul.f32.gmra.mxu0 %v7142
        %v7144 = vpop.f32.mrf.mxu0
        %v7145 = vadd.f32 %v6991, %v7144
        %v7146 = vand.u32 %v7028, 4294901760
        %v7147 = vsub.f32 %v7028, %v7146
        %v7148 = vand.u32 %v7147, 4294901760
        %v7149 = vsub.f32 %v7147, %v7148
        %v7150 = vand.u32 %v7149, 4294901760
        %7151 = vmatmul.f32.gmra.mxu0 %v7150
        %v7152 = vpop.f32.mrf.mxu0
        %v7153 = vadd.f32 %v6991, %v7152
        %v7154 = vand.u32 %v7031, 4294901760
        %v7155 = vsub.f32 %v7031, %v7154
        %v7156 = vand.u32 %v7155, 4294901760
        %v7157 = vsub.f32 %v7155, %v7156
        %v7158 = vand.u32 %v7157, 4294901760
        %7159 = vmatmul.f32.gmra.mxu0 %v7158
        %v7160 = vpop.f32.mrf.mxu0
        %v7161 = vadd.f32 %v6991, %v7160
        %7162 = vdwg.mxu0
        %7163 = vmatpush.msra.mxu0 0.0
        %7164 = vmatpush.msra.mxu0 0.0
        %7165 = vmatpush.msra.mxu0 0.0
        %7166 = vmatpush.msra.mxu0 0.0
        %7167 = vmatpush.msra.mxu0 0.0
        %7168 = vmatpush.msra.mxu0 0.0
        %7169 = vmatpush.msra.mxu0 0.0
        %v7170 = vand.u32 %v6143, 4294901760
        %v7171 = vsub.f32 %v6143, %v7170
        %v7172 = vand.u32 %v7171, 4294901760
        %v7173 = vsub.f32 %v7171, %v7172
        %v7174 = vand.u32 %v7173, 4294901760
        %7175 = vmatpush.msra.mxu0 %v7174
        %v7176 = vand.u32 %v6142, 4294901760
        %v7177 = vsub.f32 %v6142, %v7176
        %v7178 = vand.u32 %v7177, 4294901760
        %v7179 = vsub.f32 %v7177, %v7178
        %v7180 = vand.u32 %v7179, 4294901760
        %7181 = vmatpush.msra.mxu0 %v7180
        %v7182 = vand.u32 %v6141, 4294901760
        %v7183 = vsub.f32 %v6141, %v7182
        %v7184 = vand.u32 %v7183, 4294901760
        %v7185 = vsub.f32 %v7183, %v7184
        %v7186 = vand.u32 %v7185, 4294901760
        %7187 = vmatpush.msra.mxu0 %v7186
        %v7188 = vand.u32 %v6140, 4294901760
        %v7189 = vsub.f32 %v6140, %v7188
        %v7190 = vand.u32 %v7189, 4294901760
        %v7191 = vsub.f32 %v7189, %v7190
        %v7192 = vand.u32 %v7191, 4294901760
        %7193 = vmatpush.msra.mxu0 %v7192
        %v7194 = vand.u32 %v6139, 4294901760
        %v7195 = vsub.f32 %v6139, %v7194
        %v7196 = vand.u32 %v7195, 4294901760
        %v7197 = vsub.f32 %v7195, %v7196
        %v7198 = vand.u32 %v7197, 4294901760
        %7199 = vmatpush.msra.mxu0 %v7198
        %v7200 = vand.u32 %v6138, 4294901760
        %v7201 = vsub.f32 %v6138, %v7200
        %v7202 = vand.u32 %v7201, 4294901760
        %v7203 = vsub.f32 %v7201, %v7202
        %v7204 = vand.u32 %v7203, 4294901760
        %7205 = vmatpush.msra.mxu0 %v7204
        %v7206 = vand.u32 %v6137, 4294901760
        %v7207 = vsub.f32 %v6137, %v7206
        %v7208 = vand.u32 %v7207, 4294901760
        %v7209 = vsub.f32 %v7207, %v7208
        %v7210 = vand.u32 %v7209, 4294901760
        %7211 = vmatpush.msra.mxu0 %v7210
        %v7212 = vand.u32 %v6136, 4294901760
        %v7213 = vsub.f32 %v6136, %v7212
        %v7214 = vand.u32 %v7213, 4294901760
        %v7215 = vsub.f32 %v7213, %v7214
        %v7216 = vand.u32 %v7215, 4294901760
        %7217 = vmatpush.msra.mxu0 %v7216
        %v7218 = vand.u32 %v6135, 4294901760
        %v7219 = vsub.f32 %v6135, %v7218
        %v7220 = vand.u32 %v7219, 4294901760
        %v7221 = vsub.f32 %v7219, %v7220
        %v7222 = vand.u32 %v7221, 4294901760
        %7223 = vmatpush.msra.mxu0 %v7222
        %v7224 = vand.u32 %v6995, 4294901760
        %7225 = vmatmul.f32.gmra.mxu0 %v7224
        %v7226 = vpop.f32.mrf.mxu0
        %v7227 = vadd.f32 %v7065, %v7226
        %v7228 = vand.u32 %v6998, 4294901760
        %7229 = vmatmul.f32.gmra.mxu0 %v7228
        %v7230 = vpop.f32.mrf.mxu0
        %v7231 = vadd.f32 %v7073, %v7230
        %v7232 = vand.u32 %v7001, 4294901760
        %7233 = vmatmul.f32.gmra.mxu0 %v7232
        %v7234 = vpop.f32.mrf.mxu0
        %v7235 = vadd.f32 %v7081, %v7234
        %v7236 = vand.u32 %v7004, 4294901760
        %7237 = vmatmul.f32.gmra.mxu0 %v7236
        %v7238 = vpop.f32.mrf.mxu0
        %v7239 = vadd.f32 %v7089, %v7238
        %v7240 = vand.u32 %v7007, 4294901760
        %7241 = vmatmul.f32.gmra.mxu0 %v7240
        %v7242 = vpop.f32.mrf.mxu0
        %v7243 = vadd.f32 %v7097, %v7242
        %v7244 = vand.u32 %v7010, 4294901760
        %7245 = vmatmul.f32.gmra.mxu0 %v7244
        %v7246 = vpop.f32.mrf.mxu0
        %v7247 = vadd.f32 %v7105, %v7246
        %v7248 = vand.u32 %v7013, 4294901760
        %7249 = vmatmul.f32.gmra.mxu0 %v7248
        %v7250 = vpop.f32.mrf.mxu0
        %v7251 = vadd.f32 %v7113, %v7250
        %v7252 = vand.u32 %v7016, 4294901760
        %7253 = vmatmul.f32.gmra.mxu0 %v7252
        %v7254 = vpop.f32.mrf.mxu0
        %v7255 = vadd.f32 %v7121, %v7254
        %v7256 = vand.u32 %v7019, 4294901760
        %7257 = vmatmul.f32.gmra.mxu0 %v7256
        %v7258 = vpop.f32.mrf.mxu0
        %v7259 = vadd.f32 %v7129, %v7258
        %v7260 = vand.u32 %v7022, 4294901760
        %7261 = vmatmul.f32.gmra.mxu0 %v7260
        %v7262 = vpop.f32.mrf.mxu0
        %v7263 = vadd.f32 %v7137, %v7262
        %v7264 = vand.u32 %v7025, 4294901760
        %7265 = vmatmul.f32.gmra.mxu0 %v7264
        %v7266 = vpop.f32.mrf.mxu0
        %v7267 = vadd.f32 %v7145, %v7266
        %v7268 = vand.u32 %v7028, 4294901760
        %7269 = vmatmul.f32.gmra.mxu0 %v7268
        %v7270 = vpop.f32.mrf.mxu0
        %v7271 = vadd.f32 %v7153, %v7270
        %v7272 = vand.u32 %v7031, 4294901760
        %7273 = vmatmul.f32.gmra.mxu0 %v7272
        %v7274 = vpop.f32.mrf.mxu0
        %v7275 = vadd.f32 %v7161, %v7274
        %7276 = vdwg.mxu0
        %7277 = vmatpush.msra.mxu0 0.0
        %7278 = vmatpush.msra.mxu0 0.0
        %7279 = vmatpush.msra.mxu0 0.0
        %7280 = vmatpush.msra.mxu0 0.0
        %7281 = vmatpush.msra.mxu0 0.0
        %7282 = vmatpush.msra.mxu0 0.0
        %7283 = vmatpush.msra.mxu0 0.0
        %v7284 = vand.u32 %v6143, 4294901760
        %v7285 = vsub.f32 %v6143, %v7284
        %7286 = vmatpush.msra.mxu0 %v7285
        %v7287 = vand.u32 %v6142, 4294901760
        %v7288 = vsub.f32 %v6142, %v7287
        %7289 = vmatpush.msra.mxu0 %v7288
        %v7290 = vand.u32 %v6141, 4294901760
        %v7291 = vsub.f32 %v6141, %v7290
        %7292 = vmatpush.msra.mxu0 %v7291
        %v7293 = vand.u32 %v6140, 4294901760
        %v7294 = vsub.f32 %v6140, %v7293
        %7295 = vmatpush.msra.mxu0 %v7294
        %v7296 = vand.u32 %v6139, 4294901760
        %v7297 = vsub.f32 %v6139, %v7296
        %7298 = vmatpush.msra.mxu0 %v7297
        %v7299 = vand.u32 %v6138, 4294901760
        %v7300 = vsub.f32 %v6138, %v7299
        %7301 = vmatpush.msra.mxu0 %v7300
        %v7302 = vand.u32 %v6137, 4294901760
        %v7303 = vsub.f32 %v6137, %v7302
        %7304 = vmatpush.msra.mxu0 %v7303
        %v7305 = vand.u32 %v6136, 4294901760
        %v7306 = vsub.f32 %v6136, %v7305
        %7307 = vmatpush.msra.mxu0 %v7306
        %v7308 = vand.u32 %v6135, 4294901760
        %v7309 = vsub.f32 %v6135, %v7308
        %7310 = vmatpush.msra.mxu0 %v7309
        %v7311 = vand.u32 %v6995, 4294901760
        %v7312 = vsub.f32 %v6995, %v7311
        %7313 = vmatmul.f32.gmra.mxu0 %v7312
        %v7314 = vpop.f32.mrf.mxu0
        %v7315 = vadd.f32 %v7227, %v7314
        %v7316 = vand.u32 %v6998, 4294901760
        %v7317 = vsub.f32 %v6998, %v7316
        %7318 = vmatmul.f32.gmra.mxu0 %v7317
        %v7319 = vpop.f32.mrf.mxu0
        %v7320 = vadd.f32 %v7231, %v7319
        %v7321 = vand.u32 %v7001, 4294901760
        %v7322 = vsub.f32 %v7001, %v7321
        %7323 = vmatmul.f32.gmra.mxu0 %v7322
        %v7324 = vpop.f32.mrf.mxu0
        %v7325 = vadd.f32 %v7235, %v7324
        %v7326 = vand.u32 %v7004, 4294901760
        %v7327 = vsub.f32 %v7004, %v7326
        %7328 = vmatmul.f32.gmra.mxu0 %v7327
        %v7329 = vpop.f32.mrf.mxu0
        %v7330 = vadd.f32 %v7239, %v7329
        %v7331 = vand.u32 %v7007, 4294901760
        %v7332 = vsub.f32 %v7007, %v7331
        %7333 = vmatmul.f32.gmra.mxu0 %v7332
        %v7334 = vpop.f32.mrf.mxu0
        %v7335 = vadd.f32 %v7243, %v7334
        %v7336 = vand.u32 %v7010, 4294901760
        %v7337 = vsub.f32 %v7010, %v7336
        %7338 = vmatmul.f32.gmra.mxu0 %v7337
        %v7339 = vpop.f32.mrf.mxu0
        %v7340 = vadd.f32 %v7247, %v7339
        %v7341 = vand.u32 %v7013, 4294901760
        %v7342 = vsub.f32 %v7013, %v7341
        %7343 = vmatmul.f32.gmra.mxu0 %v7342
        %v7344 = vpop.f32.mrf.mxu0
        %v7345 = vadd.f32 %v7251, %v7344
        %v7346 = vand.u32 %v7016, 4294901760
        %v7347 = vsub.f32 %v7016, %v7346
        %7348 = vmatmul.f32.gmra.mxu0 %v7347
        %v7349 = vpop.f32.mrf.mxu0
        %v7350 = vadd.f32 %v7255, %v7349
        %v7351 = vand.u32 %v7019, 4294901760
        %v7352 = vsub.f32 %v7019, %v7351
        %7353 = vmatmul.f32.gmra.mxu0 %v7352
        %v7354 = vpop.f32.mrf.mxu0
        %v7355 = vadd.f32 %v7259, %v7354
        %v7356 = vand.u32 %v7022, 4294901760
        %v7357 = vsub.f32 %v7022, %v7356
        %7358 = vmatmul.f32.gmra.mxu0 %v7357
        %v7359 = vpop.f32.mrf.mxu0
        %v7360 = vadd.f32 %v7263, %v7359
        %v7361 = vand.u32 %v7025, 4294901760
        %v7362 = vsub.f32 %v7025, %v7361
        %7363 = vmatmul.f32.gmra.mxu0 %v7362
        %v7364 = vpop.f32.mrf.mxu0
        %v7365 = vadd.f32 %v7267, %v7364
        %v7366 = vand.u32 %v7028, 4294901760
        %v7367 = vsub.f32 %v7028, %v7366
        %7368 = vmatmul.f32.gmra.mxu0 %v7367
        %v7369 = vpop.f32.mrf.mxu0
        %v7370 = vadd.f32 %v7271, %v7369
        %v7371 = vand.u32 %v7031, 4294901760
        %v7372 = vsub.f32 %v7031, %v7371
        %7373 = vmatmul.f32.gmra.mxu0 %v7372
        %v7374 = vpop.f32.mrf.mxu0
        %v7375 = vadd.f32 %v7275, %v7374
        %7376 = vdwg.mxu0
        %7377 = vmatpush.msra.mxu0 0.0
        %7378 = vmatpush.msra.mxu0 0.0
        %7379 = vmatpush.msra.mxu0 0.0
        %7380 = vmatpush.msra.mxu0 0.0
        %7381 = vmatpush.msra.mxu0 0.0
        %7382 = vmatpush.msra.mxu0 0.0
        %7383 = vmatpush.msra.mxu0 0.0
        %v7384 = vand.u32 %v6143, 4294901760
        %7385 = vmatpush.msra.mxu0 %v7384
        %v7386 = vand.u32 %v6142, 4294901760
        %7387 = vmatpush.msra.mxu0 %v7386
        %v7388 = vand.u32 %v6141, 4294901760
        %7389 = vmatpush.msra.mxu0 %v7388
        %v7390 = vand.u32 %v6140, 4294901760
        %7391 = vmatpush.msra.mxu0 %v7390
        %v7392 = vand.u32 %v6139, 4294901760
        %7393 = vmatpush.msra.mxu0 %v7392
        %v7394 = vand.u32 %v6138, 4294901760
        %7395 = vmatpush.msra.mxu0 %v7394
        %v7396 = vand.u32 %v6137, 4294901760
        %7397 = vmatpush.msra.mxu0 %v7396
        %v7398 = vand.u32 %v6136, 4294901760
        %7399 = vmatpush.msra.mxu0 %v7398
        %v7400 = vand.u32 %v6135, 4294901760
        %7401 = vmatpush.msra.mxu0 %v7400
        %v7402 = vand.u32 %v6995, 4294901760
        %v7403 = vsub.f32 %v6995, %v7402
        %v7404 = vand.u32 %v7403, 4294901760
        %7405 = vmatmul.f32.gmra.mxu0 %v7404
        %v7406 = vpop.f32.mrf.mxu0
        %v7407 = vadd.f32 %v7315, %v7406
        %v7408 = vand.u32 %v6998, 4294901760
        %v7409 = vsub.f32 %v6998, %v7408
        %v7410 = vand.u32 %v7409, 4294901760
        %7411 = vmatmul.f32.gmra.mxu0 %v7410
        %v7412 = vpop.f32.mrf.mxu0
        %v7413 = vadd.f32 %v7320, %v7412
        %v7414 = vand.u32 %v7001, 4294901760
        %v7415 = vsub.f32 %v7001, %v7414
        %v7416 = vand.u32 %v7415, 4294901760
        %7417 = vmatmul.f32.gmra.mxu0 %v7416
        %v7418 = vpop.f32.mrf.mxu0
        %v7419 = vadd.f32 %v7325, %v7418
        %v7420 = vand.u32 %v7004, 4294901760
        %v7421 = vsub.f32 %v7004, %v7420
        %v7422 = vand.u32 %v7421, 4294901760
        %7423 = vmatmul.f32.gmra.mxu0 %v7422
        %v7424 = vpop.f32.mrf.mxu0
        %v7425 = vadd.f32 %v7330, %v7424
        %v7426 = vand.u32 %v7007, 4294901760
        %v7427 = vsub.f32 %v7007, %v7426
        %v7428 = vand.u32 %v7427, 4294901760
        %7429 = vmatmul.f32.gmra.mxu0 %v7428
        %v7430 = vpop.f32.mrf.mxu0
        %v7431 = vadd.f32 %v7335, %v7430
        %v7432 = vand.u32 %v7010, 4294901760
        %v7433 = vsub.f32 %v7010, %v7432
        %v7434 = vand.u32 %v7433, 4294901760
        %7435 = vmatmul.f32.gmra.mxu0 %v7434
        %v7436 = vpop.f32.mrf.mxu0
        %v7437 = vadd.f32 %v7340, %v7436
        %v7438 = vand.u32 %v7013, 4294901760
        %v7439 = vsub.f32 %v7013, %v7438
        %v7440 = vand.u32 %v7439, 4294901760
        %7441 = vmatmul.f32.gmra.mxu0 %v7440
        %v7442 = vpop.f32.mrf.mxu0
        %v7443 = vadd.f32 %v7345, %v7442
        %v7444 = vand.u32 %v7016, 4294901760
        %v7445 = vsub.f32 %v7016, %v7444
        %v7446 = vand.u32 %v7445, 4294901760
        %7447 = vmatmul.f32.gmra.mxu0 %v7446
        %v7448 = vpop.f32.mrf.mxu0
        %v7449 = vadd.f32 %v7350, %v7448
        %v7450 = vand.u32 %v7019, 4294901760
        %v7451 = vsub.f32 %v7019, %v7450
        %v7452 = vand.u32 %v7451, 4294901760
        %7453 = vmatmul.f32.gmra.mxu0 %v7452
        %v7454 = vpop.f32.mrf.mxu0
        %v7455 = vadd.f32 %v7355, %v7454
        %v7456 = vand.u32 %v7022, 4294901760
        %v7457 = vsub.f32 %v7022, %v7456
        %v7458 = vand.u32 %v7457, 4294901760
        %7459 = vmatmul.f32.gmra.mxu0 %v7458
        %v7460 = vpop.f32.mrf.mxu0
        %v7461 = vadd.f32 %v7360, %v7460
        %v7462 = vand.u32 %v7025, 4294901760
        %v7463 = vsub.f32 %v7025, %v7462
        %v7464 = vand.u32 %v7463, 4294901760
        %7465 = vmatmul.f32.gmra.mxu0 %v7464
        %v7466 = vpop.f32.mrf.mxu0
        %v7467 = vadd.f32 %v7365, %v7466
        %v7468 = vand.u32 %v7028, 4294901760
        %v7469 = vsub.f32 %v7028, %v7468
        %v7470 = vand.u32 %v7469, 4294901760
        %7471 = vmatmul.f32.gmra.mxu0 %v7470
        %v7472 = vpop.f32.mrf.mxu0
        %v7473 = vadd.f32 %v7370, %v7472
        %v7474 = vand.u32 %v7031, 4294901760
        %v7475 = vsub.f32 %v7031, %v7474
        %v7476 = vand.u32 %v7475, 4294901760
        %7477 = vmatmul.f32.gmra.mxu0 %v7476
        %v7478 = vpop.f32.mrf.mxu0
        %v7479 = vadd.f32 %v7375, %v7478
        %7480 = vdwg.mxu0
        %7481 = vmatpush.msra.mxu0 0.0
        %7482 = vmatpush.msra.mxu0 0.0
        %7483 = vmatpush.msra.mxu0 0.0
        %7484 = vmatpush.msra.mxu0 0.0
        %7485 = vmatpush.msra.mxu0 0.0
        %7486 = vmatpush.msra.mxu0 0.0
        %7487 = vmatpush.msra.mxu0 0.0
        %v7488 = vand.u32 %v6143, 4294901760
        %v7489 = vsub.f32 %v6143, %v7488
        %v7490 = vand.u32 %v7489, 4294901760
        %7491 = vmatpush.msra.mxu0 %v7490
        %v7492 = vand.u32 %v6142, 4294901760
        %v7493 = vsub.f32 %v6142, %v7492
        %v7494 = vand.u32 %v7493, 4294901760
        %7495 = vmatpush.msra.mxu0 %v7494
        %v7496 = vand.u32 %v6141, 4294901760
        %v7497 = vsub.f32 %v6141, %v7496
        %v7498 = vand.u32 %v7497, 4294901760
        %7499 = vmatpush.msra.mxu0 %v7498
        %v7500 = vand.u32 %v6140, 4294901760
        %v7501 = vsub.f32 %v6140, %v7500
        %v7502 = vand.u32 %v7501, 4294901760
        %7503 = vmatpush.msra.mxu0 %v7502
        %v7504 = vand.u32 %v6139, 4294901760
        %v7505 = vsub.f32 %v6139, %v7504
        %v7506 = vand.u32 %v7505, 4294901760
        %7507 = vmatpush.msra.mxu0 %v7506
        %v7508 = vand.u32 %v6138, 4294901760
        %v7509 = vsub.f32 %v6138, %v7508
        %v7510 = vand.u32 %v7509, 4294901760
        %7511 = vmatpush.msra.mxu0 %v7510
        %v7512 = vand.u32 %v6137, 4294901760
        %v7513 = vsub.f32 %v6137, %v7512
        %v7514 = vand.u32 %v7513, 4294901760
        %7515 = vmatpush.msra.mxu0 %v7514
        %v7516 = vand.u32 %v6136, 4294901760
        %v7517 = vsub.f32 %v6136, %v7516
        %v7518 = vand.u32 %v7517, 4294901760
        %7519 = vmatpush.msra.mxu0 %v7518
        %v7520 = vand.u32 %v6135, 4294901760
        %v7521 = vsub.f32 %v6135, %v7520
        %v7522 = vand.u32 %v7521, 4294901760
        %7523 = vmatpush.msra.mxu0 %v7522
        %v7524 = vand.u32 %v6995, 4294901760
        %7525 = vmatmul.f32.gmra.mxu0 %v7524
        %v7526 = vpop.f32.mrf.mxu0
        %v7527 = vadd.f32 %v7407, %v7526
        %v7528 = vand.u32 %v6998, 4294901760
        %7529 = vmatmul.f32.gmra.mxu0 %v7528
        %v7530 = vpop.f32.mrf.mxu0
        %v7531 = vadd.f32 %v7413, %v7530
        %v7532 = vand.u32 %v7001, 4294901760
        %7533 = vmatmul.f32.gmra.mxu0 %v7532
        %v7534 = vpop.f32.mrf.mxu0
        %v7535 = vadd.f32 %v7419, %v7534
        %v7536 = vand.u32 %v7004, 4294901760
        %7537 = vmatmul.f32.gmra.mxu0 %v7536
        %v7538 = vpop.f32.mrf.mxu0
        %v7539 = vadd.f32 %v7425, %v7538
        %v7540 = vand.u32 %v7007, 4294901760
        %7541 = vmatmul.f32.gmra.mxu0 %v7540
        %v7542 = vpop.f32.mrf.mxu0
        %v7543 = vadd.f32 %v7431, %v7542
        %v7544 = vand.u32 %v7010, 4294901760
        %7545 = vmatmul.f32.gmra.mxu0 %v7544
        %v7546 = vpop.f32.mrf.mxu0
        %v7547 = vadd.f32 %v7437, %v7546
        %v7548 = vand.u32 %v7013, 4294901760
        %7549 = vmatmul.f32.gmra.mxu0 %v7548
        %v7550 = vpop.f32.mrf.mxu0
        %v7551 = vadd.f32 %v7443, %v7550
        %v7552 = vand.u32 %v7016, 4294901760
        %7553 = vmatmul.f32.gmra.mxu0 %v7552
        %v7554 = vpop.f32.mrf.mxu0
        %v7555 = vadd.f32 %v7449, %v7554
        %v7556 = vand.u32 %v7019, 4294901760
        %7557 = vmatmul.f32.gmra.mxu0 %v7556
        %v7558 = vpop.f32.mrf.mxu0
        %v7559 = vadd.f32 %v7455, %v7558
        %v7560 = vand.u32 %v7022, 4294901760
        %7561 = vmatmul.f32.gmra.mxu0 %v7560
        %v7562 = vpop.f32.mrf.mxu0
        %v7563 = vadd.f32 %v7461, %v7562
        %v7564 = vand.u32 %v7025, 4294901760
        %7565 = vmatmul.f32.gmra.mxu0 %v7564
        %v7566 = vpop.f32.mrf.mxu0
        %v7567 = vadd.f32 %v7467, %v7566
        %v7568 = vand.u32 %v7028, 4294901760
        %7569 = vmatmul.f32.gmra.mxu0 %v7568
        %v7570 = vpop.f32.mrf.mxu0
        %v7571 = vadd.f32 %v7473, %v7570
        %v7572 = vand.u32 %v7031, 4294901760
        %7573 = vmatmul.f32.gmra.mxu0 %v7572
        %v7574 = vpop.f32.mrf.mxu0
        %v7575 = vadd.f32 %v7479, %v7574
        %7576 = vdwg.mxu0
        %7577 = vmatpush.msra.mxu0 0.0
        %7578 = vmatpush.msra.mxu0 0.0
        %7579 = vmatpush.msra.mxu0 0.0
        %7580 = vmatpush.msra.mxu0 0.0
        %7581 = vmatpush.msra.mxu0 0.0
        %7582 = vmatpush.msra.mxu0 0.0
        %7583 = vmatpush.msra.mxu0 0.0
        %v7584 = vand.u32 %v6143, 4294901760
        %7585 = vmatpush.msra.mxu0 %v7584
        %v7586 = vand.u32 %v6142, 4294901760
        %7587 = vmatpush.msra.mxu0 %v7586
        %v7588 = vand.u32 %v6141, 4294901760
        %7589 = vmatpush.msra.mxu0 %v7588
        %v7590 = vand.u32 %v6140, 4294901760
        %7591 = vmatpush.msra.mxu0 %v7590
        %v7592 = vand.u32 %v6139, 4294901760
        %7593 = vmatpush.msra.mxu0 %v7592
        %v7594 = vand.u32 %v6138, 4294901760
        %7595 = vmatpush.msra.mxu0 %v7594
        %v7596 = vand.u32 %v6137, 4294901760
        %7597 = vmatpush.msra.mxu0 %v7596
        %v7598 = vand.u32 %v6136, 4294901760
        %7599 = vmatpush.msra.mxu0 %v7598
        %v7600 = vand.u32 %v6135, 4294901760
        %7601 = vmatpush.msra.mxu0 %v7600
        %v7602 = vand.u32 %v6995, 4294901760
        %7603 = vmatmul.f32.gmra.mxu0 %v7602
        %v7604 = vpop.f32.mrf.mxu0
        %v7605 = vadd.f32 %v7527, %v7604
        %v7606 = vand.u32 %v6998, 4294901760
        %7607 = vmatmul.f32.gmra.mxu0 %v7606
        %v7608 = vpop.f32.mrf.mxu0
        %v7609 = vadd.f32 %v7531, %v7608
        %v7610 = vand.u32 %v7001, 4294901760
        %7611 = vmatmul.f32.gmra.mxu0 %v7610
        %v7612 = vpop.f32.mrf.mxu0
        %v7613 = vadd.f32 %v7535, %v7612
        %v7614 = vand.u32 %v7004, 4294901760
        %7615 = vmatmul.f32.gmra.mxu0 %v7614
        %v7616 = vpop.f32.mrf.mxu0
        %v7617 = vadd.f32 %v7539, %v7616
        %v7618 = vand.u32 %v7007, 4294901760
        %7619 = vmatmul.f32.gmra.mxu0 %v7618
        %v7620 = vpop.f32.mrf.mxu0
        %v7621 = vadd.f32 %v7543, %v7620
        %v7622 = vand.u32 %v7010, 4294901760
        %7623 = vmatmul.f32.gmra.mxu0 %v7622
        %v7624 = vpop.f32.mrf.mxu0
        %v7625 = vadd.f32 %v7547, %v7624
        %v7626 = vand.u32 %v7013, 4294901760
        %7627 = vmatmul.f32.gmra.mxu0 %v7626
        %v7628 = vpop.f32.mrf.mxu0
        %v7629 = vadd.f32 %v7551, %v7628
        %v7630 = vand.u32 %v7016, 4294901760
        %7631 = vmatmul.f32.gmra.mxu0 %v7630
        %v7632 = vpop.f32.mrf.mxu0
        %v7633 = vadd.f32 %v7555, %v7632
        %v7634 = vand.u32 %v7019, 4294901760
        %7635 = vmatmul.f32.gmra.mxu0 %v7634
        %v7636 = vpop.f32.mrf.mxu0
        %v7637 = vadd.f32 %v7559, %v7636
        %v7638 = vand.u32 %v7022, 4294901760
        %7639 = vmatmul.f32.gmra.mxu0 %v7638
        %v7640 = vpop.f32.mrf.mxu0
        %v7641 = vadd.f32 %v7563, %v7640
        %v7642 = vand.u32 %v7025, 4294901760
        %7643 = vmatmul.f32.gmra.mxu0 %v7642
        %v7644 = vpop.f32.mrf.mxu0
        %v7645 = vadd.f32 %v7567, %v7644
        %v7646 = vand.u32 %v7028, 4294901760
        %7647 = vmatmul.f32.gmra.mxu0 %v7646
        %v7648 = vpop.f32.mrf.mxu0
        %v7649 = vadd.f32 %v7571, %v7648
        %v7650 = vand.u32 %v7031, 4294901760
        %7651 = vmatmul.f32.gmra.mxu0 %v7650
        %v7652 = vpop.f32.mrf.mxu0
        %v7653 = vadd.f32 %v7575, %v7652
        %7654 = vdwg.mxu0
        %v7655 = vmax.f32 %v7605, 0.0
        %v7656 = vmax.f32 %v7609, 0.0
        %v7657 = vmax.f32 %v7613, 0.0
        %v7658 = vmax.f32 %v7617, 0.0
        %v7659 = vmax.f32 %v7621, 0.0
        %v7660 = vmax.f32 %v7625, 0.0
        %v7661 = vmax.f32 %v7629, 0.0
        %v7662 = vmax.f32 %v7633, 0.0
        %v7663 = vmax.f32 %v7637, 0.0
        %v7664 = vmax.f32 %v7641, 0.0
        %v7665 = vmax.f32 %v7645, 0.0
        %v7666 = vmax.f32 %v7649, 0.0
        %v7667 = vmax.f32 %v7653, 0.0
        %7668 = vst.msk [vmem:[#allocation4 + $0xb] sm:$0xff] %vm5720, %v7655
        %7669 = vst.msk [vmem:[#allocation4 + $0x13] sm:$0xff] %vm5720, %v7656
        %7670 = vst.msk [vmem:[#allocation4 + $0x1b] sm:$0xff] %vm5720, %v7657
        %7671 = vst.msk [vmem:[#allocation4 + $0x23] sm:$0xff] %vm5720, %v7658
        %7672 = vst.msk [vmem:[#allocation4 + $0x2b] sm:$0xff] %vm5720, %v7659
        %7673 = vst.msk [vmem:[#allocation4 + $0x33] sm:$0xff] %vm5720, %v7660
        %7674 = vst.msk [vmem:[#allocation4 + $0x3b] sm:$0xff] %vm5720, %v7661
        %7675 = vst.msk [vmem:[#allocation4 + $0x43] sm:$0xff] %vm5720, %v7662
        %7676 = vst.msk [vmem:[#allocation4 + $0x4b] sm:$0xff] %vm5720, %v7663
        %7677 = vst.msk [vmem:[#allocation4 + $0x53] sm:$0xff] %vm5720, %v7664
        %7678 = vst.msk [vmem:[#allocation4 + $0x5b] sm:$0xff] %vm5720, %v7665
        %7679 = vst.msk [vmem:[#allocation4 + $0x63] sm:$0xff] %vm5720, %v7666
        %7680 = vst.msk [vmem:[#allocation4 + $0x6b] sm:$0xf] %vm5773, %v7667
        %v7681 = vld [vmem:[%s7] sm:$0xff]
        %v7682 = vld [vmem:[%s7 + $0x8] sm:$0xff]
        %v7683 = vld [vmem:[%s7 + $0x10] sm:$0xff]
        %v7684 = vld [vmem:[%s7 + $0x18] sm:$0xff]
        %v7685 = vld [vmem:[%s7 + $0x20] sm:$0xff]
        %v7686 = vld [vmem:[%s7 + $0x28] sm:$0xff]
        %v7687 = vld [vmem:[%s7 + $0x30] sm:$0xff]
        %v7688 = vld [vmem:[%s7 + $0x38] sm:$0xff]
        %v7689 = vld [vmem:[%s7 + $0x40] sm:$0xff]
        %v7690 = vld [vmem:[%s8] sm:$0x1]
        %v7691 = vld [vmem:[%s2] sm:$0xff]
        %v7692 = vld [vmem:[%s2 + $0x8] sm:$0xff]
        %v7693 = vld [vmem:[%s2 + $0x10] sm:$0xff]
        %v7694 = vld [vmem:[%s2 + $0x18] sm:$0xff]
        %v7695 = vld [vmem:[%s2 + $0x20] sm:$0xff]
        %v7696 = vld [vmem:[%s2 + $0x28] sm:$0xff]
        %v7697 = vld [vmem:[%s2 + $0x30] sm:$0xff]
        %v7698 = vld [vmem:[%s2 + $0x38] sm:$0xff]
        %v7699 = vld [vmem:[%s2 + $0x40] sm:$0xff]
        %v7700 = vld [vmem:[%s2 + $0x48] sm:$0xff]
        %v7701 = vld [vmem:[%s2 + $0x50] sm:$0xff]
        %v7702 = vld [vmem:[%s2 + $0x58] sm:$0xff]
        %v7703 = vld [vmem:[%s2 + $0x60] sm:$0xf]
        %7704 = vst.msk [vmem:[#allocation4] sm:$0xff] %vm5720, 0.0
        %7705 = vst.msk [vmem:[#allocation4 + $0x8] sm:$0x7] %vm6159, 0.0
        %7706 = vst.msk [vmem:[#allocation4 + $0x6f] sm:$0xff] %vm5720, 0.0
        %7707 = vst.msk [vmem:[#allocation4 + $0x77] sm:$0x7] %vm6159, 0.0
        %v7708 = vld [vmem:[#allocation4] sm:$0xff]
        %v7709 = vld [vmem:[#allocation4 + $0x8] sm:$0xff]
        %v7710 = vld [vmem:[#allocation4 + $0x10] sm:$0xff]
        %v7711 = vld [vmem:[#allocation4 + $0x18] sm:$0xff]
        %v7712 = vld [vmem:[#allocation4 + $0x20] sm:$0xff]
        %v7713 = vld [vmem:[#allocation4 + $0x28] sm:$0xff]
        %v7714 = vld [vmem:[#allocation4 + $0x30] sm:$0xff]
        %v7715 = vld [vmem:[#allocation4 + $0x38] sm:$0xff]
        %v7716 = vld [vmem:[#allocation4 + $0x40] sm:$0xff]
        %v7717 = vld [vmem:[#allocation4 + $0x48] sm:$0xff]
        %v7718 = vld [vmem:[#allocation4 + $0x50] sm:$0xff]
        %v7719 = vld [vmem:[#allocation4 + $0x58] sm:$0xff]
        %v7720 = vld [vmem:[#allocation4 + $0x60] sm:$0xf]
        %7722 = vset.pattern.permute.xlu0 0
        %7723 = vperm.xlu0 %7722, %v7691
        %v7724 = vpop.permute.xlu0 %7723
        %7727 = vset.pattern.permute.xlu0 0
        %7728 = vperm.xlu0 %7727, %v7692
        %v7729 = vpop.permute.xlu0 %7728
        %7732 = vset.pattern.permute.xlu0 0
        %7733 = vperm.xlu0 %7732, %v7693
        %v7734 = vpop.permute.xlu0 %7733
        %7737 = vset.pattern.permute.xlu0 0
        %7738 = vperm.xlu0 %7737, %v7694
        %v7739 = vpop.permute.xlu0 %7738
        %7742 = vset.pattern.permute.xlu0 0
        %7743 = vperm.xlu0 %7742, %v7695
        %v7744 = vpop.permute.xlu0 %7743
        %7747 = vset.pattern.permute.xlu0 0
        %7748 = vperm.xlu0 %7747, %v7696
        %v7749 = vpop.permute.xlu0 %7748
        %7752 = vset.pattern.permute.xlu0 0
        %7753 = vperm.xlu0 %7752, %v7697
        %v7754 = vpop.permute.xlu0 %7753
        %7757 = vset.pattern.permute.xlu0 0
        %7758 = vperm.xlu0 %7757, %v7698
        %v7759 = vpop.permute.xlu0 %7758
        %7762 = vset.pattern.permute.xlu0 0
        %7763 = vperm.xlu0 %7762, %v7699
        %v7764 = vpop.permute.xlu0 %7763
        %7767 = vset.pattern.permute.xlu0 0
        %7768 = vperm.xlu0 %7767, %v7700
        %v7769 = vpop.permute.xlu0 %7768
        %7772 = vset.pattern.permute.xlu0 0
        %7773 = vperm.xlu0 %7772, %v7701
        %v7774 = vpop.permute.xlu0 %7773
        %7777 = vset.pattern.permute.xlu0 0
        %7778 = vperm.xlu0 %7777, %v7702
        %v7779 = vpop.permute.xlu0 %7778
        %7782 = vset.pattern.permute.xlu0 0
        %7783 = vperm.xlu0 %7782, %v7703
        %v7784 = vpop.permute.xlu0 %7783
        %v7786 = vmul.f32 %v7708, %v7724
        %v7787 = vmul.f32 %v7709, %v7729
        %v7788 = vmul.f32 %v7710, %v7734
        %v7789 = vmul.f32 %v7711, %v7739
        %v7790 = vmul.f32 %v7712, %v7744
        %v7791 = vmul.f32 %v7713, %v7749
        %v7792 = vmul.f32 %v7714, %v7754
        %v7793 = vmul.f32 %v7715, %v7759
        %v7794 = vmul.f32 %v7716, %v7764
        %v7795 = vmul.f32 %v7717, %v7769
        %v7796 = vmul.f32 %v7718, %v7774
        %v7797 = vmul.f32 %v7719, %v7779
        %v7798 = vmul.f32 %v7720, %v7784
        %v7799 = vld [vmem:[#allocation4 + $0x1] sm:$0xff]
        %v7800 = vld [vmem:[#allocation4 + $0x9] sm:$0xff]
        %v7801 = vld [vmem:[#allocation4 + $0x11] sm:$0xff]
        %v7802 = vld [vmem:[#allocation4 + $0x19] sm:$0xff]
        %v7803 = vld [vmem:[#allocation4 + $0x21] sm:$0xff]
        %v7804 = vld [vmem:[#allocation4 + $0x29] sm:$0xff]
        %v7805 = vld [vmem:[#allocation4 + $0x31] sm:$0xff]
        %v7806 = vld [vmem:[#allocation4 + $0x39] sm:$0xff]
        %v7807 = vld [vmem:[#allocation4 + $0x41] sm:$0xff]
        %v7808 = vld [vmem:[#allocation4 + $0x49] sm:$0xff]
        %v7809 = vld [vmem:[#allocation4 + $0x51] sm:$0xff]
        %v7810 = vld [vmem:[#allocation4 + $0x59] sm:$0xff]
        %v7811 = vld [vmem:[#allocation4 + $0x61] sm:$0xf]
        %v7812 = vld [vmem:[#allocation4 + $0x2] sm:$0xff]
        %v7813 = vld [vmem:[#allocation4 + $0xa] sm:$0xff]
        %v7814 = vld [vmem:[#allocation4 + $0x12] sm:$0xff]
        %v7815 = vld [vmem:[#allocation4 + $0x1a] sm:$0xff]
        %v7816 = vld [vmem:[#allocation4 + $0x22] sm:$0xff]
        %v7817 = vld [vmem:[#allocation4 + $0x2a] sm:$0xff]
        %v7818 = vld [vmem:[#allocation4 + $0x32] sm:$0xff]
        %v7819 = vld [vmem:[#allocation4 + $0x3a] sm:$0xff]
        %v7820 = vld [vmem:[#allocation4 + $0x42] sm:$0xff]
        %v7821 = vld [vmem:[#allocation4 + $0x4a] sm:$0xff]
        %v7822 = vld [vmem:[#allocation4 + $0x52] sm:$0xff]
        %v7823 = vld [vmem:[#allocation4 + $0x5a] sm:$0xff]
        %v7824 = vld [vmem:[#allocation4 + $0x62] sm:$0xf]
        %7825 = vset.pattern.permute.xlu0 1
        %7826 = vperm.xlu0 %7825, %v7691
        %v7827 = vpop.permute.xlu0 %7826
        %7829 = vset.pattern.permute.xlu0 1
        %7830 = vperm.xlu0 %7829, %v7692
        %v7831 = vpop.permute.xlu0 %7830
        %7833 = vset.pattern.permute.xlu0 1
        %7834 = vperm.xlu0 %7833, %v7693
        %v7835 = vpop.permute.xlu0 %7834
        %7837 = vset.pattern.permute.xlu0 1
        %7838 = vperm.xlu0 %7837, %v7694
        %v7839 = vpop.permute.xlu0 %7838
        %7841 = vset.pattern.permute.xlu0 1
        %7842 = vperm.xlu0 %7841, %v7695
        %v7843 = vpop.permute.xlu0 %7842
        %7845 = vset.pattern.permute.xlu0 1
        %7846 = vperm.xlu0 %7845, %v7696
        %v7847 = vpop.permute.xlu0 %7846
        %7849 = vset.pattern.permute.xlu0 1
        %7850 = vperm.xlu0 %7849, %v7697
        %v7851 = vpop.permute.xlu0 %7850
        %7853 = vset.pattern.permute.xlu0 1
        %7854 = vperm.xlu0 %7853, %v7698
        %v7855 = vpop.permute.xlu0 %7854
        %7857 = vset.pattern.permute.xlu0 1
        %7858 = vperm.xlu0 %7857, %v7699
        %v7859 = vpop.permute.xlu0 %7858
        %7861 = vset.pattern.permute.xlu0 1
        %7862 = vperm.xlu0 %7861, %v7700
        %v7863 = vpop.permute.xlu0 %7862
        %7865 = vset.pattern.permute.xlu0 1
        %7866 = vperm.xlu0 %7865, %v7701
        %v7867 = vpop.permute.xlu0 %7866
        %7869 = vset.pattern.permute.xlu0 1
        %7870 = vperm.xlu0 %7869, %v7702
        %v7871 = vpop.permute.xlu0 %7870
        %7873 = vset.pattern.permute.xlu0 1
        %7874 = vperm.xlu0 %7873, %v7703
        %v7875 = vpop.permute.xlu0 %7874
        %v7877 = vmul.f32 %v7812, %v7827
        %v7878 = vmul.f32 %v7813, %v7831
        %v7879 = vmul.f32 %v7814, %v7835
        %v7880 = vmul.f32 %v7815, %v7839
        %v7881 = vmul.f32 %v7816, %v7843
        %v7882 = vmul.f32 %v7817, %v7847
        %v7883 = vmul.f32 %v7818, %v7851
        %v7884 = vmul.f32 %v7819, %v7855
        %v7885 = vmul.f32 %v7820, %v7859
        %v7886 = vmul.f32 %v7821, %v7863
        %v7887 = vmul.f32 %v7822, %v7867
        %v7888 = vmul.f32 %v7823, %v7871
        %v7889 = vmul.f32 %v7824, %v7875
        %v7890 = vld [vmem:[#allocation4 + $0xa] sm:$0xff]
        %v7891 = vld [vmem:[#allocation4 + $0x12] sm:$0xff]
        %v7892 = vld [vmem:[#allocation4 + $0x1a] sm:$0xff]
        %v7893 = vld [vmem:[#allocation4 + $0x22] sm:$0xff]
        %v7894 = vld [vmem:[#allocation4 + $0x2a] sm:$0xff]
        %v7895 = vld [vmem:[#allocation4 + $0x32] sm:$0xff]
        %v7896 = vld [vmem:[#allocation4 + $0x3a] sm:$0xff]
        %v7897 = vld [vmem:[#allocation4 + $0x42] sm:$0xff]
        %v7898 = vld [vmem:[#allocation4 + $0x4a] sm:$0xff]
        %v7899 = vld [vmem:[#allocation4 + $0x52] sm:$0xff]
        %v7900 = vld [vmem:[#allocation4 + $0x5a] sm:$0xff]
        %v7901 = vld [vmem:[#allocation4 + $0x62] sm:$0xff]
        %v7902 = vld [vmem:[#allocation4 + $0x6a] sm:$0xf]
        %v7903 = vmul.f32 %v7890, %v7724
        %v7904 = vmul.f32 %v7891, %v7729
        %v7905 = vmul.f32 %v7892, %v7734
        %v7906 = vmul.f32 %v7893, %v7739
        %v7907 = vmul.f32 %v7894, %v7744
        %v7908 = vmul.f32 %v7895, %v7749
        %v7909 = vmul.f32 %v7896, %v7754
        %v7910 = vmul.f32 %v7897, %v7759
        %v7911 = vmul.f32 %v7898, %v7764
        %v7912 = vmul.f32 %v7899, %v7769
        %v7913 = vmul.f32 %v7900, %v7774
        %v7914 = vmul.f32 %v7901, %v7779
        %v7915 = vmul.f32 %v7902, %v7784
        %v7916 = vld [vmem:[#allocation4 + $0xb] sm:$0xff]
        %v7917 = vld [vmem:[#allocation4 + $0x13] sm:$0xff]
        %v7918 = vld [vmem:[#allocation4 + $0x1b] sm:$0xff]
        %v7919 = vld [vmem:[#allocation4 + $0x23] sm:$0xff]
        %v7920 = vld [vmem:[#allocation4 + $0x2b] sm:$0xff]
        %v7921 = vld [vmem:[#allocation4 + $0x33] sm:$0xff]
        %v7922 = vld [vmem:[#allocation4 + $0x3b] sm:$0xff]
        %v7923 = vld [vmem:[#allocation4 + $0x43] sm:$0xff]
        %v7924 = vld [vmem:[#allocation4 + $0x4b] sm:$0xff]
        %v7925 = vld [vmem:[#allocation4 + $0x53] sm:$0xff]
        %v7926 = vld [vmem:[#allocation4 + $0x5b] sm:$0xff]
        %v7927 = vld [vmem:[#allocation4 + $0x63] sm:$0xff]
        %v7928 = vld [vmem:[#allocation4 + $0x6b] sm:$0xf]
        %v7929 = vld [vmem:[#allocation4 + $0xc] sm:$0xff]
        %v7930 = vld [vmem:[#allocation4 + $0x14] sm:$0xff]
        %v7931 = vld [vmem:[#allocation4 + $0x1c] sm:$0xff]
        %v7932 = vld [vmem:[#allocation4 + $0x24] sm:$0xff]
        %v7933 = vld [vmem:[#allocation4 + $0x2c] sm:$0xff]
        %v7934 = vld [vmem:[#allocation4 + $0x34] sm:$0xff]
        %v7935 = vld [vmem:[#allocation4 + $0x3c] sm:$0xff]
        %v7936 = vld [vmem:[#allocation4 + $0x44] sm:$0xff]
        %v7937 = vld [vmem:[#allocation4 + $0x4c] sm:$0xff]
        %v7938 = vld [vmem:[#allocation4 + $0x54] sm:$0xff]
        %v7939 = vld [vmem:[#allocation4 + $0x5c] sm:$0xff]
        %v7940 = vld [vmem:[#allocation4 + $0x64] sm:$0xff]
        %v7941 = vld [vmem:[#allocation4 + $0x6c] sm:$0xf]
        %v7942 = vmul.f32 %v7929, %v7827
        %v7943 = vmul.f32 %v7930, %v7831
        %v7944 = vmul.f32 %v7931, %v7835
        %v7945 = vmul.f32 %v7932, %v7839
        %v7946 = vmul.f32 %v7933, %v7843
        %v7947 = vmul.f32 %v7934, %v7847
        %v7948 = vmul.f32 %v7935, %v7851
        %v7949 = vmul.f32 %v7936, %v7855
        %v7950 = vmul.f32 %v7937, %v7859
        %v7951 = vmul.f32 %v7938, %v7863
        %v7952 = vmul.f32 %v7939, %v7867
        %v7953 = vmul.f32 %v7940, %v7871
        %v7954 = vmul.f32 %v7941, %v7875
        %v7955 = vld [vmem:[#allocation4 + $0x6c] sm:$0xff]
        %v7956 = vld [vmem:[#allocation4 + $0x74] sm:$0xf]
        %v7957 = vmul.f32 %v7930, %v7724
        %v7958 = vmul.f32 %v7931, %v7729
        %v7959 = vmul.f32 %v7932, %v7734
        %v7960 = vmul.f32 %v7933, %v7739
        %v7961 = vmul.f32 %v7934, %v7744
        %v7962 = vmul.f32 %v7935, %v7749
        %v7963 = vmul.f32 %v7936, %v7754
        %v7964 = vmul.f32 %v7937, %v7759
        %v7965 = vmul.f32 %v7938, %v7764
        %v7966 = vmul.f32 %v7939, %v7769
        %v7967 = vmul.f32 %v7940, %v7774
        %v7968 = vmul.f32 %v7955, %v7779
        %v7969 = vmul.f32 %v7956, %v7784
        %v7970 = vld [vmem:[#allocation4 + $0x15] sm:$0xff]
        %v7971 = vld [vmem:[#allocation4 + $0x1d] sm:$0xff]
        %v7972 = vld [vmem:[#allocation4 + $0x25] sm:$0xff]
        %v7973 = vld [vmem:[#allocation4 + $0x2d] sm:$0xff]
        %v7974 = vld [vmem:[#allocation4 + $0x35] sm:$0xff]
        %v7975 = vld [vmem:[#allocation4 + $0x3d] sm:$0xff]
        %v7976 = vld [vmem:[#allocation4 + $0x45] sm:$0xff]
        %v7977 = vld [vmem:[#allocation4 + $0x4d] sm:$0xff]
        %v7978 = vld [vmem:[#allocation4 + $0x55] sm:$0xff]
        %v7979 = vld [vmem:[#allocation4 + $0x5d] sm:$0xff]
        %v7980 = vld [vmem:[#allocation4 + $0x65] sm:$0xff]
        %v7981 = vld [vmem:[#allocation4 + $0x6d] sm:$0xff]
        %v7982 = vld [vmem:[#allocation4 + $0x75] sm:$0xf]
        %v7983 = vld [vmem:[#allocation4 + $0x16] sm:$0xff]
        %v7984 = vld [vmem:[#allocation4 + $0x1e] sm:$0xff]
        %v7985 = vld [vmem:[#allocation4 + $0x26] sm:$0xff]
        %v7986 = vld [vmem:[#allocation4 + $0x2e] sm:$0xff]
        %v7987 = vld [vmem:[#allocation4 + $0x36] sm:$0xff]
        %v7988 = vld [vmem:[#allocation4 + $0x3e] sm:$0xff]
        %v7989 = vld [vmem:[#allocation4 + $0x46] sm:$0xff]
        %v7990 = vld [vmem:[#allocation4 + $0x4e] sm:$0xff]
        %v7991 = vld [vmem:[#allocation4 + $0x56] sm:$0xff]
        %v7992 = vld [vmem:[#allocation4 + $0x5e] sm:$0xff]
        %v7993 = vld [vmem:[#allocation4 + $0x66] sm:$0xff]
        %v7994 = vld [vmem:[#allocation4 + $0x6e] sm:$0xff]
        %v7995 = vld [vmem:[#allocation4 + $0x76] sm:$0xf]
        %v7996 = vmul.f32 %v7983, %v7827
        %v7997 = vmul.f32 %v7984, %v7831
        %v7998 = vmul.f32 %v7985, %v7835
        %v7999 = vmul.f32 %v7986, %v7839
        %v8000 = vmul.f32 %v7987, %v7843
        %v8001 = vmul.f32 %v7988, %v7847
        %v8002 = vmul.f32 %v7989, %v7851
        %v8003 = vmul.f32 %v7990, %v7855
        %v8004 = vmul.f32 %v7991, %v7859
        %v8005 = vmul.f32 %v7992, %v7863
        %v8006 = vmul.f32 %v7993, %v7867
        %v8007 = vmul.f32 %v7994, %v7871
        %v8008 = vmul.f32 %v7995, %v7875
        %8022 = vrot.lane.b32.xlu0 %v7799, 8
        %v8023 = vpop.permute.xlu0 %8022
        %8024 = vrot.lane.b32.xlu0 %v7800, 8
        %v8025 = vpop.permute.xlu0 %8024
        %8026 = vrot.lane.b32.xlu0 %v7801, 8
        %v8027 = vpop.permute.xlu0 %8026
        %8028 = vrot.lane.b32.xlu0 %v7802, 8
        %v8029 = vpop.permute.xlu0 %8028
        %8030 = vrot.lane.b32.xlu0 %v7803, 8
        %v8031 = vpop.permute.xlu0 %8030
        %8032 = vrot.lane.b32.xlu0 %v7804, 8
        %v8033 = vpop.permute.xlu0 %8032
        %8034 = vrot.lane.b32.xlu0 %v7805, 8
        %v8035 = vpop.permute.xlu0 %8034
        %8036 = vrot.lane.b32.xlu0 %v7806, 8
        %v8037 = vpop.permute.xlu0 %8036
        %8038 = vrot.lane.b32.xlu0 %v7807, 8
        %v8039 = vpop.permute.xlu0 %8038
        %8040 = vrot.lane.b32.xlu0 %v7808, 8
        %v8041 = vpop.permute.xlu0 %8040
        %8042 = vrot.lane.b32.xlu0 %v7809, 8
        %v8043 = vpop.permute.xlu0 %8042
        %8044 = vrot.lane.b32.xlu0 %v7810, 8
        %v8045 = vpop.permute.xlu0 %8044
        %8046 = vrot.lane.b32.xlu0 %v7811, 8
        %v8047 = vpop.permute.xlu0 %8046
        %8074 = vrot.lane.b32.xlu0 %v7877, 16
        %v8075 = vpop.permute.xlu0 %8074
        %8076 = vrot.lane.b32.xlu0 %v7878, 16
        %v8077 = vpop.permute.xlu0 %8076
        %8078 = vrot.lane.b32.xlu0 %v7879, 16
        %v8079 = vpop.permute.xlu0 %8078
        %8080 = vrot.lane.b32.xlu0 %v7880, 16
        %v8081 = vpop.permute.xlu0 %8080
        %8082 = vrot.lane.b32.xlu0 %v7881, 16
        %v8083 = vpop.permute.xlu0 %8082
        %8084 = vrot.lane.b32.xlu0 %v7882, 16
        %v8085 = vpop.permute.xlu0 %8084
        %8086 = vrot.lane.b32.xlu0 %v7883, 16
        %v8087 = vpop.permute.xlu0 %8086
        %8088 = vrot.lane.b32.xlu0 %v7884, 16
        %v8089 = vpop.permute.xlu0 %8088
        %8090 = vrot.lane.b32.xlu0 %v7885, 16
        %v8091 = vpop.permute.xlu0 %8090
        %8092 = vrot.lane.b32.xlu0 %v7886, 16
        %v8093 = vpop.permute.xlu0 %8092
        %8094 = vrot.lane.b32.xlu0 %v7887, 16
        %v8095 = vpop.permute.xlu0 %8094
        %8096 = vrot.lane.b32.xlu0 %v7888, 16
        %v8097 = vpop.permute.xlu0 %8096
        %8098 = vrot.lane.b32.xlu0 %v7889, 16
        %v8099 = vpop.permute.xlu0 %8098
        %8126 = vrot.lane.b32.xlu0 %v7903, 24
        %v8127 = vpop.permute.xlu0 %8126
        %8128 = vrot.lane.b32.xlu0 %v7904, 24
        %v8129 = vpop.permute.xlu0 %8128
        %8130 = vrot.lane.b32.xlu0 %v7905, 24
        %v8131 = vpop.permute.xlu0 %8130
        %8132 = vrot.lane.b32.xlu0 %v7906, 24
        %v8133 = vpop.permute.xlu0 %8132
        %8134 = vrot.lane.b32.xlu0 %v7907, 24
        %v8135 = vpop.permute.xlu0 %8134
        %8136 = vrot.lane.b32.xlu0 %v7908, 24
        %v8137 = vpop.permute.xlu0 %8136
        %8138 = vrot.lane.b32.xlu0 %v7909, 24
        %v8139 = vpop.permute.xlu0 %8138
        %8140 = vrot.lane.b32.xlu0 %v7910, 24
        %v8141 = vpop.permute.xlu0 %8140
        %8142 = vrot.lane.b32.xlu0 %v7911, 24
        %v8143 = vpop.permute.xlu0 %8142
        %8144 = vrot.lane.b32.xlu0 %v7912, 24
        %v8145 = vpop.permute.xlu0 %8144
        %8146 = vrot.lane.b32.xlu0 %v7913, 24
        %v8147 = vpop.permute.xlu0 %8146
        %8148 = vrot.lane.b32.xlu0 %v7914, 24
        %v8149 = vpop.permute.xlu0 %8148
        %8150 = vrot.lane.b32.xlu0 %v7915, 24
        %v8151 = vpop.permute.xlu0 %8150
        %8178 = vrot.lane.b32.xlu0 %v7916, 32
        %v8179 = vpop.permute.xlu0 %8178
        %8180 = vrot.lane.b32.xlu0 %v7917, 32
        %v8181 = vpop.permute.xlu0 %8180
        %8182 = vrot.lane.b32.xlu0 %v7918, 32
        %v8183 = vpop.permute.xlu0 %8182
        %8184 = vrot.lane.b32.xlu0 %v7919, 32
        %v8185 = vpop.permute.xlu0 %8184
        %8186 = vrot.lane.b32.xlu0 %v7920, 32
        %v8187 = vpop.permute.xlu0 %8186
        %8188 = vrot.lane.b32.xlu0 %v7921, 32
        %v8189 = vpop.permute.xlu0 %8188
        %8190 = vrot.lane.b32.xlu0 %v7922, 32
        %v8191 = vpop.permute.xlu0 %8190
        %8192 = vrot.lane.b32.xlu0 %v7923, 32
        %v8193 = vpop.permute.xlu0 %8192
        %8194 = vrot.lane.b32.xlu0 %v7924, 32
        %v8195 = vpop.permute.xlu0 %8194
        %8196 = vrot.lane.b32.xlu0 %v7925, 32
        %v8197 = vpop.permute.xlu0 %8196
        %8198 = vrot.lane.b32.xlu0 %v7926, 32
        %v8199 = vpop.permute.xlu0 %8198
        %8200 = vrot.lane.b32.xlu0 %v7927, 32
        %v8201 = vpop.permute.xlu0 %8200
        %8202 = vrot.lane.b32.xlu0 %v7928, 32
        %v8203 = vpop.permute.xlu0 %8202
        %8230 = vrot.lane.b32.xlu0 %v7942, 40
        %v8231 = vpop.permute.xlu0 %8230
        %8232 = vrot.lane.b32.xlu0 %v7943, 40
        %v8233 = vpop.permute.xlu0 %8232
        %8234 = vrot.lane.b32.xlu0 %v7944, 40
        %v8235 = vpop.permute.xlu0 %8234
        %8236 = vrot.lane.b32.xlu0 %v7945, 40
        %v8237 = vpop.permute.xlu0 %8236
        %8238 = vrot.lane.b32.xlu0 %v7946, 40
        %v8239 = vpop.permute.xlu0 %8238
        %8240 = vrot.lane.b32.xlu0 %v7947, 40
        %v8241 = vpop.permute.xlu0 %8240
        %8242 = vrot.lane.b32.xlu0 %v7948, 40
        %v8243 = vpop.permute.xlu0 %8242
        %8244 = vrot.lane.b32.xlu0 %v7949, 40
        %v8245 = vpop.permute.xlu0 %8244
        %8246 = vrot.lane.b32.xlu0 %v7950, 40
        %v8247 = vpop.permute.xlu0 %8246
        %8248 = vrot.lane.b32.xlu0 %v7951, 40
        %v8249 = vpop.permute.xlu0 %8248
        %8250 = vrot.lane.b32.xlu0 %v7952, 40
        %v8251 = vpop.permute.xlu0 %8250
        %8252 = vrot.lane.b32.xlu0 %v7953, 40
        %v8253 = vpop.permute.xlu0 %8252
        %8254 = vrot.lane.b32.xlu0 %v7954, 40
        %v8255 = vpop.permute.xlu0 %8254
        %8282 = vrot.lane.b32.xlu0 %v7957, 48
        %v8283 = vpop.permute.xlu0 %8282
        %8284 = vrot.lane.b32.xlu0 %v7958, 48
        %v8285 = vpop.permute.xlu0 %8284
        %8286 = vrot.lane.b32.xlu0 %v7959, 48
        %v8287 = vpop.permute.xlu0 %8286
        %8288 = vrot.lane.b32.xlu0 %v7960, 48
        %v8289 = vpop.permute.xlu0 %8288
        %8290 = vrot.lane.b32.xlu0 %v7961, 48
        %v8291 = vpop.permute.xlu0 %8290
        %8292 = vrot.lane.b32.xlu0 %v7962, 48
        %v8293 = vpop.permute.xlu0 %8292
        %8294 = vrot.lane.b32.xlu0 %v7963, 48
        %v8295 = vpop.permute.xlu0 %8294
        %8296 = vrot.lane.b32.xlu0 %v7964, 48
        %v8297 = vpop.permute.xlu0 %8296
        %8298 = vrot.lane.b32.xlu0 %v7965, 48
        %v8299 = vpop.permute.xlu0 %8298
        %8300 = vrot.lane.b32.xlu0 %v7966, 48
        %v8301 = vpop.permute.xlu0 %8300
        %8302 = vrot.lane.b32.xlu0 %v7967, 48
        %v8303 = vpop.permute.xlu0 %8302
        %8304 = vrot.lane.b32.xlu0 %v7968, 48
        %v8305 = vpop.permute.xlu0 %8304
        %8306 = vrot.lane.b32.xlu0 %v7969, 48
        %v8307 = vpop.permute.xlu0 %8306
        %8334 = vrot.lane.b32.xlu0 %v7970, 56
        %v8335 = vpop.permute.xlu0 %8334
        %8336 = vrot.lane.b32.xlu0 %v7971, 56
        %v8337 = vpop.permute.xlu0 %8336
        %8338 = vrot.lane.b32.xlu0 %v7972, 56
        %v8339 = vpop.permute.xlu0 %8338
        %8340 = vrot.lane.b32.xlu0 %v7973, 56
        %v8341 = vpop.permute.xlu0 %8340
        %8342 = vrot.lane.b32.xlu0 %v7974, 56
        %v8343 = vpop.permute.xlu0 %8342
        %8344 = vrot.lane.b32.xlu0 %v7975, 56
        %v8345 = vpop.permute.xlu0 %8344
        %8346 = vrot.lane.b32.xlu0 %v7976, 56
        %v8347 = vpop.permute.xlu0 %8346
        %8348 = vrot.lane.b32.xlu0 %v7977, 56
        %v8349 = vpop.permute.xlu0 %8348
        %8350 = vrot.lane.b32.xlu0 %v7978, 56
        %v8351 = vpop.permute.xlu0 %8350
        %8352 = vrot.lane.b32.xlu0 %v7979, 56
        %v8353 = vpop.permute.xlu0 %8352
        %8354 = vrot.lane.b32.xlu0 %v7980, 56
        %v8355 = vpop.permute.xlu0 %8354
        %8356 = vrot.lane.b32.xlu0 %v7981, 56
        %v8357 = vpop.permute.xlu0 %8356
        %8358 = vrot.lane.b32.xlu0 %v7982, 56
        %v8359 = vpop.permute.xlu0 %8358
        %8386 = vrot.lane.b32.xlu0 %v7996, 64
        %v8387 = vpop.permute.xlu0 %8386
        %8388 = vrot.lane.b32.xlu0 %v7997, 64
        %v8389 = vpop.permute.xlu0 %8388
        %8390 = vrot.lane.b32.xlu0 %v7998, 64
        %v8391 = vpop.permute.xlu0 %8390
        %8392 = vrot.lane.b32.xlu0 %v7999, 64
        %v8393 = vpop.permute.xlu0 %8392
        %8394 = vrot.lane.b32.xlu0 %v8000, 64
        %v8395 = vpop.permute.xlu0 %8394
        %8396 = vrot.lane.b32.xlu0 %v8001, 64
        %v8397 = vpop.permute.xlu0 %8396
        %8398 = vrot.lane.b32.xlu0 %v8002, 64
        %v8399 = vpop.permute.xlu0 %8398
        %8400 = vrot.lane.b32.xlu0 %v8003, 64
        %v8401 = vpop.permute.xlu0 %8400
        %8402 = vrot.lane.b32.xlu0 %v8004, 64
        %v8403 = vpop.permute.xlu0 %8402
        %8404 = vrot.lane.b32.xlu0 %v8005, 64
        %v8405 = vpop.permute.xlu0 %8404
        %8406 = vrot.lane.b32.xlu0 %v8006, 64
        %v8407 = vpop.permute.xlu0 %8406
        %8408 = vrot.lane.b32.xlu0 %v8007, 64
        %v8409 = vpop.permute.xlu0 %8408
        %8410 = vrot.lane.b32.xlu0 %v8008, 64
        %v8411 = vpop.permute.xlu0 %8410
        %v8425 = vsel %vm5720, %v7786, %v8023
        %v8426 = vsel %vm5720, %v7787, %v8025
        %v8427 = vsel %vm5720, %v7788, %v8027
        %v8428 = vsel %vm5720, %v7789, %v8029
        %v8429 = vsel %vm5720, %v7790, %v8031
        %v8430 = vsel %vm5720, %v7791, %v8033
        %v8431 = vsel %vm5720, %v7792, %v8035
        %v8432 = vsel %vm5720, %v7793, %v8037
        %v8433 = vsel %vm5720, %v7794, %v8039
        %v8434 = vsel %vm5720, %v7795, %v8041
        %v8435 = vsel %vm5720, %v7796, %v8043
        %v8436 = vsel %vm5720, %v7797, %v8045
        %v8437 = vsel %vm5720, %v7798, %v8047
        %v8438 = vsel %vm6893, %v8425, %v8075
        %v8439 = vsel %vm6893, %v8426, %v8077
        %v8440 = vsel %vm6893, %v8427, %v8079
        %v8441 = vsel %vm6893, %v8428, %v8081
        %v8442 = vsel %vm6893, %v8429, %v8083
        %v8443 = vsel %vm6893, %v8430, %v8085
        %v8444 = vsel %vm6893, %v8431, %v8087
        %v8445 = vsel %vm6893, %v8432, %v8089
        %v8446 = vsel %vm6893, %v8433, %v8091
        %v8447 = vsel %vm6893, %v8434, %v8093
        %v8448 = vsel %vm6893, %v8435, %v8095
        %v8449 = vsel %vm6893, %v8436, %v8097
        %v8450 = vsel %vm6893, %v8437, %v8099
        %v8451 = vsel %vm3757, %v8438, %v8127
        %v8452 = vsel %vm3757, %v8439, %v8129
        %v8453 = vsel %vm3757, %v8440, %v8131
        %v8454 = vsel %vm3757, %v8441, %v8133
        %v8455 = vsel %vm3757, %v8442, %v8135
        %v8456 = vsel %vm3757, %v8443, %v8137
        %v8457 = vsel %vm3757, %v8444, %v8139
        %v8458 = vsel %vm3757, %v8445, %v8141
        %v8459 = vsel %vm3757, %v8446, %v8143
        %v8460 = vsel %vm3757, %v8447, %v8145
        %v8461 = vsel %vm3757, %v8448, %v8147
        %v8462 = vsel %vm3757, %v8449, %v8149
        %v8463 = vsel %vm3757, %v8450, %v8151
        %v8464 = vsel %vm6920, %v8451, %v8179
        %v8465 = vsel %vm6920, %v8452, %v8181
        %v8466 = vsel %vm6920, %v8453, %v8183
        %v8467 = vsel %vm6920, %v8454, %v8185
        %v8468 = vsel %vm6920, %v8455, %v8187
        %v8469 = vsel %vm6920, %v8456, %v8189
        %v8470 = vsel %vm6920, %v8457, %v8191
        %v8471 = vsel %vm6920, %v8458, %v8193
        %v8472 = vsel %vm6920, %v8459, %v8195
        %v8473 = vsel %vm6920, %v8460, %v8197
        %v8474 = vsel %vm6920, %v8461, %v8199
        %v8475 = vsel %vm6920, %v8462, %v8201
        %v8476 = vsel %vm6920, %v8463, %v8203
        %v8477 = vsel %vm6934, %v8464, %v8231
        %v8478 = vsel %vm6934, %v8465, %v8233
        %v8479 = vsel %vm6934, %v8466, %v8235
        %v8480 = vsel %vm6934, %v8467, %v8237
        %v8481 = vsel %vm6934, %v8468, %v8239
        %v8482 = vsel %vm6934, %v8469, %v8241
        %v8483 = vsel %vm6934, %v8470, %v8243
        %v8484 = vsel %vm6934, %v8471, %v8245
        %v8485 = vsel %vm6934, %v8472, %v8247
        %v8486 = vsel %vm6934, %v8473, %v8249
        %v8487 = vsel %vm6934, %v8474, %v8251
        %v8488 = vsel %vm6934, %v8475, %v8253
        %v8489 = vsel %vm6934, %v8476, %v8255
        %v8490 = vsel %vm6948, %v8477, %v8283
        %v8491 = vsel %vm6948, %v8478, %v8285
        %v8492 = vsel %vm6948, %v8479, %v8287
        %v8493 = vsel %vm6948, %v8480, %v8289
        %v8494 = vsel %vm6948, %v8481, %v8291
        %v8495 = vsel %vm6948, %v8482, %v8293
        %v8496 = vsel %vm6948, %v8483, %v8295
        %v8497 = vsel %vm6948, %v8484, %v8297
        %v8498 = vsel %vm6948, %v8485, %v8299
        %v8499 = vsel %vm6948, %v8486, %v8301
        %v8500 = vsel %vm6948, %v8487, %v8303
        %v8501 = vsel %vm6948, %v8488, %v8305
        %v8502 = vsel %vm6948, %v8489, %v8307
        %v8503 = vsel %vm6962, %v8490, %v8335
        %v8504 = vsel %vm6962, %v8491, %v8337
        %v8505 = vsel %vm6962, %v8492, %v8339
        %v8506 = vsel %vm6962, %v8493, %v8341
        %v8507 = vsel %vm6962, %v8494, %v8343
        %v8508 = vsel %vm6962, %v8495, %v8345
        %v8509 = vsel %vm6962, %v8496, %v8347
        %v8510 = vsel %vm6962, %v8497, %v8349
        %v8511 = vsel %vm6962, %v8498, %v8351
        %v8512 = vsel %vm6962, %v8499, %v8353
        %v8513 = vsel %vm6962, %v8500, %v8355
        %v8514 = vsel %vm6962, %v8501, %v8357
        %v8515 = vsel %vm6962, %v8502, %v8359
        %v8516 = vsel %vm6976, %v8503, %v8387
        %v8517 = vsel %vm6976, %v8504, %v8389
        %v8518 = vsel %vm6976, %v8505, %v8391
        %v8519 = vsel %vm6976, %v8506, %v8393
        %v8520 = vsel %vm6976, %v8507, %v8395
        %v8521 = vsel %vm6976, %v8508, %v8397
        %v8522 = vsel %vm6976, %v8509, %v8399
        %v8523 = vsel %vm6976, %v8510, %v8401
        %v8524 = vsel %vm6976, %v8511, %v8403
        %v8525 = vsel %vm6976, %v8512, %v8405
        %v8526 = vsel %vm6976, %v8513, %v8407
        %v8527 = vsel %vm6976, %v8514, %v8409
        %v8528 = vsel %vm6976, %v8515, %v8411
        %v8530 = vperm.slane %v7690, 0
        %v8533 = vsel %vm6993, %v8516, 0
        %v8536 = vsel %vm6993, %v8517, 0
        %v8539 = vsel %vm6993, %v8518, 0
        %v8542 = vsel %vm6993, %v8519, 0
        %v8545 = vsel %vm6993, %v8520, 0
        %v8548 = vsel %vm6993, %v8521, 0
        %v8551 = vsel %vm6993, %v8522, 0
        %v8554 = vsel %vm6993, %v8523, 0
        %v8557 = vsel %vm6993, %v8524, 0
        %v8560 = vsel %vm6993, %v8525, 0
        %v8563 = vsel %vm6993, %v8526, 0
        %v8566 = vsel %vm6993, %v8527, 0
        %v8569 = vsel %vm6993, %v8528, 0
        %8571 = vmatpush.msra.mxu0 0.0
        %8572 = vmatpush.msra.mxu0 0.0
        %8573 = vmatpush.msra.mxu0 0.0
        %8574 = vmatpush.msra.mxu0 0.0
        %8575 = vmatpush.msra.mxu0 0.0
        %8576 = vmatpush.msra.mxu0 0.0
        %8577 = vmatpush.msra.mxu0 0.0
        %v8578 = vand.u32 %v7689, 4294901760
        %8579 = vmatpush.msra.mxu0 %v8578
        %v8580 = vand.u32 %v7688, 4294901760
        %8581 = vmatpush.msra.mxu0 %v8580
        %v8582 = vand.u32 %v7687, 4294901760
        %8583 = vmatpush.msra.mxu0 %v8582
        %v8584 = vand.u32 %v7686, 4294901760
        %8585 = vmatpush.msra.mxu0 %v8584
        %v8586 = vand.u32 %v7685, 4294901760
        %8587 = vmatpush.msra.mxu0 %v8586
        %v8588 = vand.u32 %v7684, 4294901760
        %8589 = vmatpush.msra.mxu0 %v8588
        %v8590 = vand.u32 %v7683, 4294901760
        %8591 = vmatpush.msra.mxu0 %v8590
        %v8592 = vand.u32 %v7682, 4294901760
        %8593 = vmatpush.msra.mxu0 %v8592
        %v8594 = vand.u32 %v7681, 4294901760
        %8595 = vmatpush.msra.mxu0 %v8594
        %v8596 = vand.u32 %v8533, 4294901760
        %v8597 = vsub.f32 %v8533, %v8596
        %v8598 = vand.u32 %v8597, 4294901760
        %v8599 = vsub.f32 %v8597, %v8598
        %v8600 = vand.u32 %v8599, 4294901760
        %8601 = vmatmul.f32.gmra.mxu0 %v8600
        %v8602 = vpop.f32.mrf.mxu0
        %v8603 = vadd.f32 %v8530, %v8602
        %v8604 = vand.u32 %v8536, 4294901760
        %v8605 = vsub.f32 %v8536, %v8604
        %v8606 = vand.u32 %v8605, 4294901760
        %v8607 = vsub.f32 %v8605, %v8606
        %v8608 = vand.u32 %v8607, 4294901760
        %8609 = vmatmul.f32.gmra.mxu0 %v8608
        %v8610 = vpop.f32.mrf.mxu0
        %v8611 = vadd.f32 %v8530, %v8610
        %v8612 = vand.u32 %v8539, 4294901760
        %v8613 = vsub.f32 %v8539, %v8612
        %v8614 = vand.u32 %v8613, 4294901760
        %v8615 = vsub.f32 %v8613, %v8614
        %v8616 = vand.u32 %v8615, 4294901760
        %8617 = vmatmul.f32.gmra.mxu0 %v8616
        %v8618 = vpop.f32.mrf.mxu0
        %v8619 = vadd.f32 %v8530, %v8618
        %v8620 = vand.u32 %v8542, 4294901760
        %v8621 = vsub.f32 %v8542, %v8620
        %v8622 = vand.u32 %v8621, 4294901760
        %v8623 = vsub.f32 %v8621, %v8622
        %v8624 = vand.u32 %v8623, 4294901760
        %8625 = vmatmul.f32.gmra.mxu0 %v8624
        %v8626 = vpop.f32.mrf.mxu0
        %v8627 = vadd.f32 %v8530, %v8626
        %v8628 = vand.u32 %v8545, 4294901760
        %v8629 = vsub.f32 %v8545, %v8628
        %v8630 = vand.u32 %v8629, 4294901760
        %v8631 = vsub.f32 %v8629, %v8630
        %v8632 = vand.u32 %v8631, 4294901760
        %8633 = vmatmul.f32.gmra.mxu0 %v8632
        %v8634 = vpop.f32.mrf.mxu0
        %v8635 = vadd.f32 %v8530, %v8634
        %v8636 = vand.u32 %v8548, 4294901760
        %v8637 = vsub.f32 %v8548, %v8636
        %v8638 = vand.u32 %v8637, 4294901760
        %v8639 = vsub.f32 %v8637, %v8638
        %v8640 = vand.u32 %v8639, 4294901760
        %8641 = vmatmul.f32.gmra.mxu0 %v8640
        %v8642 = vpop.f32.mrf.mxu0
        %v8643 = vadd.f32 %v8530, %v8642
        %v8644 = vand.u32 %v8551, 4294901760
        %v8645 = vsub.f32 %v8551, %v8644
        %v8646 = vand.u32 %v8645, 4294901760
        %v8647 = vsub.f32 %v8645, %v8646
        %v8648 = vand.u32 %v8647, 4294901760
        %8649 = vmatmul.f32.gmra.mxu0 %v8648
        %v8650 = vpop.f32.mrf.mxu0
        %v8651 = vadd.f32 %v8530, %v8650
        %v8652 = vand.u32 %v8554, 4294901760
        %v8653 = vsub.f32 %v8554, %v8652
        %v8654 = vand.u32 %v8653, 4294901760
        %v8655 = vsub.f32 %v8653, %v8654
        %v8656 = vand.u32 %v8655, 4294901760
        %8657 = vmatmul.f32.gmra.mxu0 %v8656
        %v8658 = vpop.f32.mrf.mxu0
        %v8659 = vadd.f32 %v8530, %v8658
        %v8660 = vand.u32 %v8557, 4294901760
        %v8661 = vsub.f32 %v8557, %v8660
        %v8662 = vand.u32 %v8661, 4294901760
        %v8663 = vsub.f32 %v8661, %v8662
        %v8664 = vand.u32 %v8663, 4294901760
        %8665 = vmatmul.f32.gmra.mxu0 %v8664
        %v8666 = vpop.f32.mrf.mxu0
        %v8667 = vadd.f32 %v8530, %v8666
        %v8668 = vand.u32 %v8560, 4294901760
        %v8669 = vsub.f32 %v8560, %v8668
        %v8670 = vand.u32 %v8669, 4294901760
        %v8671 = vsub.f32 %v8669, %v8670
        %v8672 = vand.u32 %v8671, 4294901760
        %8673 = vmatmul.f32.gmra.mxu0 %v8672
        %v8674 = vpop.f32.mrf.mxu0
        %v8675 = vadd.f32 %v8530, %v8674
        %v8676 = vand.u32 %v8563, 4294901760
        %v8677 = vsub.f32 %v8563, %v8676
        %v8678 = vand.u32 %v8677, 4294901760
        %v8679 = vsub.f32 %v8677, %v8678
        %v8680 = vand.u32 %v8679, 4294901760
        %8681 = vmatmul.f32.gmra.mxu0 %v8680
        %v8682 = vpop.f32.mrf.mxu0
        %v8683 = vadd.f32 %v8530, %v8682
        %v8684 = vand.u32 %v8566, 4294901760
        %v8685 = vsub.f32 %v8566, %v8684
        %v8686 = vand.u32 %v8685, 4294901760
        %v8687 = vsub.f32 %v8685, %v8686
        %v8688 = vand.u32 %v8687, 4294901760
        %8689 = vmatmul.f32.gmra.mxu0 %v8688
        %v8690 = vpop.f32.mrf.mxu0
        %v8691 = vadd.f32 %v8530, %v8690
        %v8692 = vand.u32 %v8569, 4294901760
        %v8693 = vsub.f32 %v8569, %v8692
        %v8694 = vand.u32 %v8693, 4294901760
        %v8695 = vsub.f32 %v8693, %v8694
        %v8696 = vand.u32 %v8695, 4294901760
        %8697 = vmatmul.f32.gmra.mxu0 %v8696
        %v8698 = vpop.f32.mrf.mxu0
        %v8699 = vadd.f32 %v8530, %v8698
        %8700 = vdwg.mxu0
        %8701 = vmatpush.msra.mxu0 0.0
        %8702 = vmatpush.msra.mxu0 0.0
        %8703 = vmatpush.msra.mxu0 0.0
        %8704 = vmatpush.msra.mxu0 0.0
        %8705 = vmatpush.msra.mxu0 0.0
        %8706 = vmatpush.msra.mxu0 0.0
        %8707 = vmatpush.msra.mxu0 0.0
        %v8708 = vand.u32 %v7689, 4294901760
        %v8709 = vsub.f32 %v7689, %v8708
        %v8710 = vand.u32 %v8709, 4294901760
        %v8711 = vsub.f32 %v8709, %v8710
        %v8712 = vand.u32 %v8711, 4294901760
        %8713 = vmatpush.msra.mxu0 %v8712
        %v8714 = vand.u32 %v7688, 4294901760
        %v8715 = vsub.f32 %v7688, %v8714
        %v8716 = vand.u32 %v8715, 4294901760
        %v8717 = vsub.f32 %v8715, %v8716
        %v8718 = vand.u32 %v8717, 4294901760
        %8719 = vmatpush.msra.mxu0 %v8718
        %v8720 = vand.u32 %v7687, 4294901760
        %v8721 = vsub.f32 %v7687, %v8720
        %v8722 = vand.u32 %v8721, 4294901760
        %v8723 = vsub.f32 %v8721, %v8722
        %v8724 = vand.u32 %v8723, 4294901760
        %8725 = vmatpush.msra.mxu0 %v8724
        %v8726 = vand.u32 %v7686, 4294901760
        %v8727 = vsub.f32 %v7686, %v8726
        %v8728 = vand.u32 %v8727, 4294901760
        %v8729 = vsub.f32 %v8727, %v8728
        %v8730 = vand.u32 %v8729, 4294901760
        %8731 = vmatpush.msra.mxu0 %v8730
        %v8732 = vand.u32 %v7685, 4294901760
        %v8733 = vsub.f32 %v7685, %v8732
        %v8734 = vand.u32 %v8733, 4294901760
        %v8735 = vsub.f32 %v8733, %v8734
        %v8736 = vand.u32 %v8735, 4294901760
        %8737 = vmatpush.msra.mxu0 %v8736
        %v8738 = vand.u32 %v7684, 4294901760
        %v8739 = vsub.f32 %v7684, %v8738
        %v8740 = vand.u32 %v8739, 4294901760
        %v8741 = vsub.f32 %v8739, %v8740
        %v8742 = vand.u32 %v8741, 4294901760
        %8743 = vmatpush.msra.mxu0 %v8742
        %v8744 = vand.u32 %v7683, 4294901760
        %v8745 = vsub.f32 %v7683, %v8744
        %v8746 = vand.u32 %v8745, 4294901760
        %v8747 = vsub.f32 %v8745, %v8746
        %v8748 = vand.u32 %v8747, 4294901760
        %8749 = vmatpush.msra.mxu0 %v8748
        %v8750 = vand.u32 %v7682, 4294901760
        %v8751 = vsub.f32 %v7682, %v8750
        %v8752 = vand.u32 %v8751, 4294901760
        %v8753 = vsub.f32 %v8751, %v8752
        %v8754 = vand.u32 %v8753, 4294901760
        %8755 = vmatpush.msra.mxu0 %v8754
        %v8756 = vand.u32 %v7681, 4294901760
        %v8757 = vsub.f32 %v7681, %v8756
        %v8758 = vand.u32 %v8757, 4294901760
        %v8759 = vsub.f32 %v8757, %v8758
        %v8760 = vand.u32 %v8759, 4294901760
        %8761 = vmatpush.msra.mxu0 %v8760
        %v8762 = vand.u32 %v8533, 4294901760
        %8763 = vmatmul.f32.gmra.mxu0 %v8762
        %v8764 = vpop.f32.mrf.mxu0
        %v8765 = vadd.f32 %v8603, %v8764
        %v8766 = vand.u32 %v8536, 4294901760
        %8767 = vmatmul.f32.gmra.mxu0 %v8766
        %v8768 = vpop.f32.mrf.mxu0
        %v8769 = vadd.f32 %v8611, %v8768
        %v8770 = vand.u32 %v8539, 4294901760
        %8771 = vmatmul.f32.gmra.mxu0 %v8770
        %v8772 = vpop.f32.mrf.mxu0
        %v8773 = vadd.f32 %v8619, %v8772
        %v8774 = vand.u32 %v8542, 4294901760
        %8775 = vmatmul.f32.gmra.mxu0 %v8774
        %v8776 = vpop.f32.mrf.mxu0
        %v8777 = vadd.f32 %v8627, %v8776
        %v8778 = vand.u32 %v8545, 4294901760
        %8779 = vmatmul.f32.gmra.mxu0 %v8778
        %v8780 = vpop.f32.mrf.mxu0
        %v8781 = vadd.f32 %v8635, %v8780
        %v8782 = vand.u32 %v8548, 4294901760
        %8783 = vmatmul.f32.gmra.mxu0 %v8782
        %v8784 = vpop.f32.mrf.mxu0
        %v8785 = vadd.f32 %v8643, %v8784
        %v8786 = vand.u32 %v8551, 4294901760
        %8787 = vmatmul.f32.gmra.mxu0 %v8786
        %v8788 = vpop.f32.mrf.mxu0
        %v8789 = vadd.f32 %v8651, %v8788
        %v8790 = vand.u32 %v8554, 4294901760
        %8791 = vmatmul.f32.gmra.mxu0 %v8790
        %v8792 = vpop.f32.mrf.mxu0
        %v8793 = vadd.f32 %v8659, %v8792
        %v8794 = vand.u32 %v8557, 4294901760
        %8795 = vmatmul.f32.gmra.mxu0 %v8794
        %v8796 = vpop.f32.mrf.mxu0
        %v8797 = vadd.f32 %v8667, %v8796
        %v8798 = vand.u32 %v8560, 4294901760
        %8799 = vmatmul.f32.gmra.mxu0 %v8798
        %v8800 = vpop.f32.mrf.mxu0
        %v8801 = vadd.f32 %v8675, %v8800
        %v8802 = vand.u32 %v8563, 4294901760
        %8803 = vmatmul.f32.gmra.mxu0 %v8802
        %v8804 = vpop.f32.mrf.mxu0
        %v8805 = vadd.f32 %v8683, %v8804
        %v8806 = vand.u32 %v8566, 4294901760
        %8807 = vmatmul.f32.gmra.mxu0 %v8806
        %v8808 = vpop.f32.mrf.mxu0
        %v8809 = vadd.f32 %v8691, %v8808
        %v8810 = vand.u32 %v8569, 4294901760
        %8811 = vmatmul.f32.gmra.mxu0 %v8810
        %v8812 = vpop.f32.mrf.mxu0
        %v8813 = vadd.f32 %v8699, %v8812
        %8814 = vdwg.mxu0
        %8815 = vmatpush.msra.mxu0 0.0
        %8816 = vmatpush.msra.mxu0 0.0
        %8817 = vmatpush.msra.mxu0 0.0
        %8818 = vmatpush.msra.mxu0 0.0
        %8819 = vmatpush.msra.mxu0 0.0
        %8820 = vmatpush.msra.mxu0 0.0
        %8821 = vmatpush.msra.mxu0 0.0
        %v8822 = vand.u32 %v7689, 4294901760
        %v8823 = vsub.f32 %v7689, %v8822
        %8824 = vmatpush.msra.mxu0 %v8823
        %v8825 = vand.u32 %v7688, 4294901760
        %v8826 = vsub.f32 %v7688, %v8825
        %8827 = vmatpush.msra.mxu0 %v8826
        %v8828 = vand.u32 %v7687, 4294901760
        %v8829 = vsub.f32 %v7687, %v8828
        %8830 = vmatpush.msra.mxu0 %v8829
        %v8831 = vand.u32 %v7686, 4294901760
        %v8832 = vsub.f32 %v7686, %v8831
        %8833 = vmatpush.msra.mxu0 %v8832
        %v8834 = vand.u32 %v7685, 4294901760
        %v8835 = vsub.f32 %v7685, %v8834
        %8836 = vmatpush.msra.mxu0 %v8835
        %v8837 = vand.u32 %v7684, 4294901760
        %v8838 = vsub.f32 %v7684, %v8837
        %8839 = vmatpush.msra.mxu0 %v8838
        %v8840 = vand.u32 %v7683, 4294901760
        %v8841 = vsub.f32 %v7683, %v8840
        %8842 = vmatpush.msra.mxu0 %v8841
        %v8843 = vand.u32 %v7682, 4294901760
        %v8844 = vsub.f32 %v7682, %v8843
        %8845 = vmatpush.msra.mxu0 %v8844
        %v8846 = vand.u32 %v7681, 4294901760
        %v8847 = vsub.f32 %v7681, %v8846
        %8848 = vmatpush.msra.mxu0 %v8847
        %v8849 = vand.u32 %v8533, 4294901760
        %v8850 = vsub.f32 %v8533, %v8849
        %8851 = vmatmul.f32.gmra.mxu0 %v8850
        %v8852 = vpop.f32.mrf.mxu0
        %v8853 = vadd.f32 %v8765, %v8852
        %v8854 = vand.u32 %v8536, 4294901760
        %v8855 = vsub.f32 %v8536, %v8854
        %8856 = vmatmul.f32.gmra.mxu0 %v8855
        %v8857 = vpop.f32.mrf.mxu0
        %v8858 = vadd.f32 %v8769, %v8857
        %v8859 = vand.u32 %v8539, 4294901760
        %v8860 = vsub.f32 %v8539, %v8859
        %8861 = vmatmul.f32.gmra.mxu0 %v8860
        %v8862 = vpop.f32.mrf.mxu0
        %v8863 = vadd.f32 %v8773, %v8862
        %v8864 = vand.u32 %v8542, 4294901760
        %v8865 = vsub.f32 %v8542, %v8864
        %8866 = vmatmul.f32.gmra.mxu0 %v8865
        %v8867 = vpop.f32.mrf.mxu0
        %v8868 = vadd.f32 %v8777, %v8867
        %v8869 = vand.u32 %v8545, 4294901760
        %v8870 = vsub.f32 %v8545, %v8869
        %8871 = vmatmul.f32.gmra.mxu0 %v8870
        %v8872 = vpop.f32.mrf.mxu0
        %v8873 = vadd.f32 %v8781, %v8872
        %v8874 = vand.u32 %v8548, 4294901760
        %v8875 = vsub.f32 %v8548, %v8874
        %8876 = vmatmul.f32.gmra.mxu0 %v8875
        %v8877 = vpop.f32.mrf.mxu0
        %v8878 = vadd.f32 %v8785, %v8877
        %v8879 = vand.u32 %v8551, 4294901760
        %v8880 = vsub.f32 %v8551, %v8879
        %8881 = vmatmul.f32.gmra.mxu0 %v8880
        %v8882 = vpop.f32.mrf.mxu0
        %v8883 = vadd.f32 %v8789, %v8882
        %v8884 = vand.u32 %v8554, 4294901760
        %v8885 = vsub.f32 %v8554, %v8884
        %8886 = vmatmul.f32.gmra.mxu0 %v8885
        %v8887 = vpop.f32.mrf.mxu0
        %v8888 = vadd.f32 %v8793, %v8887
        %v8889 = vand.u32 %v8557, 4294901760
        %v8890 = vsub.f32 %v8557, %v8889
        %8891 = vmatmul.f32.gmra.mxu0 %v8890
        %v8892 = vpop.f32.mrf.mxu0
        %v8893 = vadd.f32 %v8797, %v8892
        %v8894 = vand.u32 %v8560, 4294901760
        %v8895 = vsub.f32 %v8560, %v8894
        %8896 = vmatmul.f32.gmra.mxu0 %v8895
        %v8897 = vpop.f32.mrf.mxu0
        %v8898 = vadd.f32 %v8801, %v8897
        %v8899 = vand.u32 %v8563, 4294901760
        %v8900 = vsub.f32 %v8563, %v8899
        %8901 = vmatmul.f32.gmra.mxu0 %v8900
        %v8902 = vpop.f32.mrf.mxu0
        %v8903 = vadd.f32 %v8805, %v8902
        %v8904 = vand.u32 %v8566, 4294901760
        %v8905 = vsub.f32 %v8566, %v8904
        %8906 = vmatmul.f32.gmra.mxu0 %v8905
        %v8907 = vpop.f32.mrf.mxu0
        %v8908 = vadd.f32 %v8809, %v8907
        %v8909 = vand.u32 %v8569, 4294901760
        %v8910 = vsub.f32 %v8569, %v8909
        %8911 = vmatmul.f32.gmra.mxu0 %v8910
        %v8912 = vpop.f32.mrf.mxu0
        %v8913 = vadd.f32 %v8813, %v8912
        %8914 = vdwg.mxu0
        %8915 = vmatpush.msra.mxu0 0.0
        %8916 = vmatpush.msra.mxu0 0.0
        %8917 = vmatpush.msra.mxu0 0.0
        %8918 = vmatpush.msra.mxu0 0.0
        %8919 = vmatpush.msra.mxu0 0.0
        %8920 = vmatpush.msra.mxu0 0.0
        %8921 = vmatpush.msra.mxu0 0.0
        %v8922 = vand.u32 %v7689, 4294901760
        %8923 = vmatpush.msra.mxu0 %v8922
        %v8924 = vand.u32 %v7688, 4294901760
        %8925 = vmatpush.msra.mxu0 %v8924
        %v8926 = vand.u32 %v7687, 4294901760
        %8927 = vmatpush.msra.mxu0 %v8926
        %v8928 = vand.u32 %v7686, 4294901760
        %8929 = vmatpush.msra.mxu0 %v8928
        %v8930 = vand.u32 %v7685, 4294901760
        %8931 = vmatpush.msra.mxu0 %v8930
        %v8932 = vand.u32 %v7684, 4294901760
        %8933 = vmatpush.msra.mxu0 %v8932
        %v8934 = vand.u32 %v7683, 4294901760
        %8935 = vmatpush.msra.mxu0 %v8934
        %v8936 = vand.u32 %v7682, 4294901760
        %8937 = vmatpush.msra.mxu0 %v8936
        %v8938 = vand.u32 %v7681, 4294901760
        %8939 = vmatpush.msra.mxu0 %v8938
        %v8940 = vand.u32 %v8533, 4294901760
        %v8941 = vsub.f32 %v8533, %v8940
        %v8942 = vand.u32 %v8941, 4294901760
        %8943 = vmatmul.f32.gmra.mxu0 %v8942
        %v8944 = vpop.f32.mrf.mxu0
        %v8945 = vadd.f32 %v8853, %v8944
        %v8946 = vand.u32 %v8536, 4294901760
        %v8947 = vsub.f32 %v8536, %v8946
        %v8948 = vand.u32 %v8947, 4294901760
        %8949 = vmatmul.f32.gmra.mxu0 %v8948
        %v8950 = vpop.f32.mrf.mxu0
        %v8951 = vadd.f32 %v8858, %v8950
        %v8952 = vand.u32 %v8539, 4294901760
        %v8953 = vsub.f32 %v8539, %v8952
        %v8954 = vand.u32 %v8953, 4294901760
        %8955 = vmatmul.f32.gmra.mxu0 %v8954
        %v8956 = vpop.f32.mrf.mxu0
        %v8957 = vadd.f32 %v8863, %v8956
        %v8958 = vand.u32 %v8542, 4294901760
        %v8959 = vsub.f32 %v8542, %v8958
        %v8960 = vand.u32 %v8959, 4294901760
        %8961 = vmatmul.f32.gmra.mxu0 %v8960
        %v8962 = vpop.f32.mrf.mxu0
        %v8963 = vadd.f32 %v8868, %v8962
        %v8964 = vand.u32 %v8545, 4294901760
        %v8965 = vsub.f32 %v8545, %v8964
        %v8966 = vand.u32 %v8965, 4294901760
        %8967 = vmatmul.f32.gmra.mxu0 %v8966
        %v8968 = vpop.f32.mrf.mxu0
        %v8969 = vadd.f32 %v8873, %v8968
        %v8970 = vand.u32 %v8548, 4294901760
        %v8971 = vsub.f32 %v8548, %v8970
        %v8972 = vand.u32 %v8971, 4294901760
        %8973 = vmatmul.f32.gmra.mxu0 %v8972
        %v8974 = vpop.f32.mrf.mxu0
        %v8975 = vadd.f32 %v8878, %v8974
        %v8976 = vand.u32 %v8551, 4294901760
        %v8977 = vsub.f32 %v8551, %v8976
        %v8978 = vand.u32 %v8977, 4294901760
        %8979 = vmatmul.f32.gmra.mxu0 %v8978
        %v8980 = vpop.f32.mrf.mxu0
        %v8981 = vadd.f32 %v8883, %v8980
        %v8982 = vand.u32 %v8554, 4294901760
        %v8983 = vsub.f32 %v8554, %v8982
        %v8984 = vand.u32 %v8983, 4294901760
        %8985 = vmatmul.f32.gmra.mxu0 %v8984
        %v8986 = vpop.f32.mrf.mxu0
        %v8987 = vadd.f32 %v8888, %v8986
        %v8988 = vand.u32 %v8557, 4294901760
        %v8989 = vsub.f32 %v8557, %v8988
        %v8990 = vand.u32 %v8989, 4294901760
        %8991 = vmatmul.f32.gmra.mxu0 %v8990
        %v8992 = vpop.f32.mrf.mxu0
        %v8993 = vadd.f32 %v8893, %v8992
        %v8994 = vand.u32 %v8560, 4294901760
        %v8995 = vsub.f32 %v8560, %v8994
        %v8996 = vand.u32 %v8995, 4294901760
        %8997 = vmatmul.f32.gmra.mxu0 %v8996
        %v8998 = vpop.f32.mrf.mxu0
        %v8999 = vadd.f32 %v8898, %v8998
        %v9000 = vand.u32 %v8563, 4294901760
        %v9001 = vsub.f32 %v8563, %v9000
        %v9002 = vand.u32 %v9001, 4294901760
        %9003 = vmatmul.f32.gmra.mxu0 %v9002
        %v9004 = vpop.f32.mrf.mxu0
        %v9005 = vadd.f32 %v8903, %v9004
        %v9006 = vand.u32 %v8566, 4294901760
        %v9007 = vsub.f32 %v8566, %v9006
        %v9008 = vand.u32 %v9007, 4294901760
        %9009 = vmatmul.f32.gmra.mxu0 %v9008
        %v9010 = vpop.f32.mrf.mxu0
        %v9011 = vadd.f32 %v8908, %v9010
        %v9012 = vand.u32 %v8569, 4294901760
        %v9013 = vsub.f32 %v8569, %v9012
        %v9014 = vand.u32 %v9013, 4294901760
        %9015 = vmatmul.f32.gmra.mxu0 %v9014
        %v9016 = vpop.f32.mrf.mxu0
        %v9017 = vadd.f32 %v8913, %v9016
        %9018 = vdwg.mxu0
        %9019 = vmatpush.msra.mxu0 0.0
        %9020 = vmatpush.msra.mxu0 0.0
        %9021 = vmatpush.msra.mxu0 0.0
        %9022 = vmatpush.msra.mxu0 0.0
        %9023 = vmatpush.msra.mxu0 0.0
        %9024 = vmatpush.msra.mxu0 0.0
        %9025 = vmatpush.msra.mxu0 0.0
        %v9026 = vand.u32 %v7689, 4294901760
        %v9027 = vsub.f32 %v7689, %v9026
        %v9028 = vand.u32 %v9027, 4294901760
        %9029 = vmatpush.msra.mxu0 %v9028
        %v9030 = vand.u32 %v7688, 4294901760
        %v9031 = vsub.f32 %v7688, %v9030
        %v9032 = vand.u32 %v9031, 4294901760
        %9033 = vmatpush.msra.mxu0 %v9032
        %v9034 = vand.u32 %v7687, 4294901760
        %v9035 = vsub.f32 %v7687, %v9034
        %v9036 = vand.u32 %v9035, 4294901760
        %9037 = vmatpush.msra.mxu0 %v9036
        %v9038 = vand.u32 %v7686, 4294901760
        %v9039 = vsub.f32 %v7686, %v9038
        %v9040 = vand.u32 %v9039, 4294901760
        %9041 = vmatpush.msra.mxu0 %v9040
        %v9042 = vand.u32 %v7685, 4294901760
        %v9043 = vsub.f32 %v7685, %v9042
        %v9044 = vand.u32 %v9043, 4294901760
        %9045 = vmatpush.msra.mxu0 %v9044
        %v9046 = vand.u32 %v7684, 4294901760
        %v9047 = vsub.f32 %v7684, %v9046
        %v9048 = vand.u32 %v9047, 4294901760
        %9049 = vmatpush.msra.mxu0 %v9048
        %v9050 = vand.u32 %v7683, 4294901760
        %v9051 = vsub.f32 %v7683, %v9050
        %v9052 = vand.u32 %v9051, 4294901760
        %9053 = vmatpush.msra.mxu0 %v9052
        %v9054 = vand.u32 %v7682, 4294901760
        %v9055 = vsub.f32 %v7682, %v9054
        %v9056 = vand.u32 %v9055, 4294901760
        %9057 = vmatpush.msra.mxu0 %v9056
        %v9058 = vand.u32 %v7681, 4294901760
        %v9059 = vsub.f32 %v7681, %v9058
        %v9060 = vand.u32 %v9059, 4294901760
        %9061 = vmatpush.msra.mxu0 %v9060
        %v9062 = vand.u32 %v8533, 4294901760
        %9063 = vmatmul.f32.gmra.mxu0 %v9062
        %v9064 = vpop.f32.mrf.mxu0
        %v9065 = vadd.f32 %v8945, %v9064
        %v9066 = vand.u32 %v8536, 4294901760
        %9067 = vmatmul.f32.gmra.mxu0 %v9066
        %v9068 = vpop.f32.mrf.mxu0
        %v9069 = vadd.f32 %v8951, %v9068
        %v9070 = vand.u32 %v8539, 4294901760
        %9071 = vmatmul.f32.gmra.mxu0 %v9070
        %v9072 = vpop.f32.mrf.mxu0
        %v9073 = vadd.f32 %v8957, %v9072
        %v9074 = vand.u32 %v8542, 4294901760
        %9075 = vmatmul.f32.gmra.mxu0 %v9074
        %v9076 = vpop.f32.mrf.mxu0
        %v9077 = vadd.f32 %v8963, %v9076
        %v9078 = vand.u32 %v8545, 4294901760
        %9079 = vmatmul.f32.gmra.mxu0 %v9078
        %v9080 = vpop.f32.mrf.mxu0
        %v9081 = vadd.f32 %v8969, %v9080
        %v9082 = vand.u32 %v8548, 4294901760
        %9083 = vmatmul.f32.gmra.mxu0 %v9082
        %v9084 = vpop.f32.mrf.mxu0
        %v9085 = vadd.f32 %v8975, %v9084
        %v9086 = vand.u32 %v8551, 4294901760
        %9087 = vmatmul.f32.gmra.mxu0 %v9086
        %v9088 = vpop.f32.mrf.mxu0
        %v9089 = vadd.f32 %v8981, %v9088
        %v9090 = vand.u32 %v8554, 4294901760
        %9091 = vmatmul.f32.gmra.mxu0 %v9090
        %v9092 = vpop.f32.mrf.mxu0
        %v9093 = vadd.f32 %v8987, %v9092
        %v9094 = vand.u32 %v8557, 4294901760
        %9095 = vmatmul.f32.gmra.mxu0 %v9094
        %v9096 = vpop.f32.mrf.mxu0
        %v9097 = vadd.f32 %v8993, %v9096
        %v9098 = vand.u32 %v8560, 4294901760
        %9099 = vmatmul.f32.gmra.mxu0 %v9098
        %v9100 = vpop.f32.mrf.mxu0
        %v9101 = vadd.f32 %v8999, %v9100
        %v9102 = vand.u32 %v8563, 4294901760
        %9103 = vmatmul.f32.gmra.mxu0 %v9102
        %v9104 = vpop.f32.mrf.mxu0
        %v9105 = vadd.f32 %v9005, %v9104
        %v9106 = vand.u32 %v8566, 4294901760
        %9107 = vmatmul.f32.gmra.mxu0 %v9106
        %v9108 = vpop.f32.mrf.mxu0
        %v9109 = vadd.f32 %v9011, %v9108
        %v9110 = vand.u32 %v8569, 4294901760
        %9111 = vmatmul.f32.gmra.mxu0 %v9110
        %v9112 = vpop.f32.mrf.mxu0
        %v9113 = vadd.f32 %v9017, %v9112
        %9114 = vdwg.mxu0
        %9115 = vmatpush.msra.mxu0 0.0
        %9116 = vmatpush.msra.mxu0 0.0
        %9117 = vmatpush.msra.mxu0 0.0
        %9118 = vmatpush.msra.mxu0 0.0
        %9119 = vmatpush.msra.mxu0 0.0
        %9120 = vmatpush.msra.mxu0 0.0
        %9121 = vmatpush.msra.mxu0 0.0
        %v9122 = vand.u32 %v7689, 4294901760
        %9123 = vmatpush.msra.mxu0 %v9122
        %v9124 = vand.u32 %v7688, 4294901760
        %9125 = vmatpush.msra.mxu0 %v9124
        %v9126 = vand.u32 %v7687, 4294901760
        %9127 = vmatpush.msra.mxu0 %v9126
        %v9128 = vand.u32 %v7686, 4294901760
        %9129 = vmatpush.msra.mxu0 %v9128
        %v9130 = vand.u32 %v7685, 4294901760
        %9131 = vmatpush.msra.mxu0 %v9130
        %v9132 = vand.u32 %v7684, 4294901760
        %9133 = vmatpush.msra.mxu0 %v9132
        %v9134 = vand.u32 %v7683, 4294901760
        %9135 = vmatpush.msra.mxu0 %v9134
        %v9136 = vand.u32 %v7682, 4294901760
        %9137 = vmatpush.msra.mxu0 %v9136
        %v9138 = vand.u32 %v7681, 4294901760
        %9139 = vmatpush.msra.mxu0 %v9138
        %v9140 = vand.u32 %v8533, 4294901760
        %9141 = vmatmul.f32.gmra.mxu0 %v9140
        %v9142 = vpop.f32.mrf.mxu0
        %v9143 = vadd.f32 %v9065, %v9142
        %v9144 = vand.u32 %v8536, 4294901760
        %9145 = vmatmul.f32.gmra.mxu0 %v9144
        %v9146 = vpop.f32.mrf.mxu0
        %v9147 = vadd.f32 %v9069, %v9146
        %v9148 = vand.u32 %v8539, 4294901760
        %9149 = vmatmul.f32.gmra.mxu0 %v9148
        %v9150 = vpop.f32.mrf.mxu0
        %v9151 = vadd.f32 %v9073, %v9150
        %v9152 = vand.u32 %v8542, 4294901760
        %9153 = vmatmul.f32.gmra.mxu0 %v9152
        %v9154 = vpop.f32.mrf.mxu0
        %v9155 = vadd.f32 %v9077, %v9154
        %v9156 = vand.u32 %v8545, 4294901760
        %9157 = vmatmul.f32.gmra.mxu0 %v9156
        %v9158 = vpop.f32.mrf.mxu0
        %v9159 = vadd.f32 %v9081, %v9158
        %v9160 = vand.u32 %v8548, 4294901760
        %9161 = vmatmul.f32.gmra.mxu0 %v9160
        %v9162 = vpop.f32.mrf.mxu0
        %v9163 = vadd.f32 %v9085, %v9162
        %v9164 = vand.u32 %v8551, 4294901760
        %9165 = vmatmul.f32.gmra.mxu0 %v9164
        %v9166 = vpop.f32.mrf.mxu0
        %v9167 = vadd.f32 %v9089, %v9166
        %v9168 = vand.u32 %v8554, 4294901760
        %9169 = vmatmul.f32.gmra.mxu0 %v9168
        %v9170 = vpop.f32.mrf.mxu0
        %v9171 = vadd.f32 %v9093, %v9170
        %v9172 = vand.u32 %v8557, 4294901760
        %9173 = vmatmul.f32.gmra.mxu0 %v9172
        %v9174 = vpop.f32.mrf.mxu0
        %v9175 = vadd.f32 %v9097, %v9174
        %v9176 = vand.u32 %v8560, 4294901760
        %9177 = vmatmul.f32.gmra.mxu0 %v9176
        %v9178 = vpop.f32.mrf.mxu0
        %v9179 = vadd.f32 %v9101, %v9178
        %v9180 = vand.u32 %v8563, 4294901760
        %9181 = vmatmul.f32.gmra.mxu0 %v9180
        %v9182 = vpop.f32.mrf.mxu0
        %v9183 = vadd.f32 %v9105, %v9182
        %v9184 = vand.u32 %v8566, 4294901760
        %9185 = vmatmul.f32.gmra.mxu0 %v9184
        %v9186 = vpop.f32.mrf.mxu0
        %v9187 = vadd.f32 %v9109, %v9186
        %v9188 = vand.u32 %v8569, 4294901760
        %9189 = vmatmul.f32.gmra.mxu0 %v9188
        %v9190 = vpop.f32.mrf.mxu0
        %v9191 = vadd.f32 %v9113, %v9190
        %9192 = vdwg.mxu0
        %v9193 = vmax.f32 %v9143, 0.0
        %v9194 = vmax.f32 %v9147, 0.0
        %v9195 = vmax.f32 %v9151, 0.0
        %v9196 = vmax.f32 %v9155, 0.0
        %v9197 = vmax.f32 %v9159, 0.0
        %v9198 = vmax.f32 %v9163, 0.0
        %v9199 = vmax.f32 %v9167, 0.0
        %v9200 = vmax.f32 %v9171, 0.0
        %v9201 = vmax.f32 %v9175, 0.0
        %v9202 = vmax.f32 %v9179, 0.0
        %v9203 = vmax.f32 %v9183, 0.0
        %v9204 = vmax.f32 %v9187, 0.0
        %v9205 = vmax.f32 %v9191, 0.0
        %9206 = vst.msk [vmem:[#allocation6] sm:$0xff] %vm5720, %v9193
        %9207 = vst.msk [vmem:[#allocation6 + $0x8] sm:$0xff] %vm5720, %v9194
        %9208 = vst.msk [vmem:[#allocation6 + $0x10] sm:$0xff] %vm5720, %v9195
        %9209 = vst.msk [vmem:[#allocation6 + $0x18] sm:$0xff] %vm5720, %v9196
        %9210 = vst.msk [vmem:[#allocation6 + $0x20] sm:$0xff] %vm5720, %v9197
        %9211 = vst.msk [vmem:[#allocation6 + $0x28] sm:$0xff] %vm5720, %v9198
        %9212 = vst.msk [vmem:[#allocation6 + $0x30] sm:$0xff] %vm5720, %v9199
        %9213 = vst.msk [vmem:[#allocation6 + $0x38] sm:$0xff] %vm5720, %v9200
        %9214 = vst.msk [vmem:[#allocation6 + $0x40] sm:$0xff] %vm5720, %v9201
        %9215 = vst.msk [vmem:[#allocation6 + $0x48] sm:$0xff] %vm5720, %v9202
        %9216 = vst.msk [vmem:[#allocation6 + $0x50] sm:$0xff] %vm5720, %v9203
        %9217 = vst.msk [vmem:[#allocation6 + $0x58] sm:$0xff] %vm5720, %v9204
        %9218 = vst.msk [vmem:[#allocation6 + $0x60] sm:$0xf] %vm5773, %v9205
        %9219 = vst.msk [vmem:[#allocation6 + $0x64] sm:$0xff] %vm5720, 0.0
        %9220 = vst.msk [vmem:[#allocation6 + $0x6c] sm:$0x3] %vm6079, 0.0
        %v9221 = vld [vmem:[#allocation6 + $0xa] sm:$0xff]
        %v9222 = vld [vmem:[#allocation6 + $0x12] sm:$0xff]
        %v9223 = vld [vmem:[#allocation6 + $0x1a] sm:$0xff]
        %v9224 = vld [vmem:[#allocation6 + $0x22] sm:$0xff]
        %v9225 = vld [vmem:[#allocation6 + $0x2a] sm:$0xff]
        %v9226 = vld [vmem:[#allocation6 + $0x32] sm:$0xff]
        %v9227 = vld [vmem:[#allocation6 + $0x3a] sm:$0xff]
        %v9228 = vld [vmem:[#allocation6 + $0x42] sm:$0xff]
        %v9229 = vld [vmem:[#allocation6 + $0x4a] sm:$0xff]
        %v9230 = vld [vmem:[#allocation6 + $0x52] sm:$0xff]
        %v9231 = vld [vmem:[#allocation6 + $0x5a] sm:$0xff]
        %v9232 = vld [vmem:[#allocation6 + $0x62] sm:$0xff]
        %v9233 = vld [vmem:[#allocation6 + $0x6a] sm:$0xf]
        %v9234 = vmax.f32 %v9193, %v9221
        %v9235 = vmax.f32 %v9194, %v9222
        %v9236 = vmax.f32 %v9195, %v9223
        %v9237 = vmax.f32 %v9196, %v9224
        %v9238 = vmax.f32 %v9197, %v9225
        %v9239 = vmax.f32 %v9198, %v9226
        %v9240 = vmax.f32 %v9199, %v9227
        %v9241 = vmax.f32 %v9200, %v9228
        %v9242 = vmax.f32 %v9201, %v9229
        %v9243 = vmax.f32 %v9202, %v9230
        %v9244 = vmax.f32 %v9203, %v9231
        %v9245 = vmax.f32 %v9204, %v9232
        %v9246 = vmax.f32 %v9205, %v9233
        %9247 = vst.msk [vmem:[#allocation6] sm:$0xff] %vm5720, %v9234
        %9248 = vst.msk [vmem:[#allocation6 + $0x8] sm:$0xff] %vm5720, %v9235
        %9249 = vst.msk [vmem:[#allocation6 + $0x10] sm:$0xff] %vm5720, %v9236
        %9250 = vst.msk [vmem:[#allocation6 + $0x18] sm:$0xff] %vm5720, %v9237
        %9251 = vst.msk [vmem:[#allocation6 + $0x20] sm:$0xff] %vm5720, %v9238
        %9252 = vst.msk [vmem:[#allocation6 + $0x28] sm:$0xff] %vm5720, %v9239
        %9253 = vst.msk [vmem:[#allocation6 + $0x30] sm:$0xff] %vm5720, %v9240
        %9254 = vst.msk [vmem:[#allocation6 + $0x38] sm:$0xff] %vm5720, %v9241
        %9255 = vst.msk [vmem:[#allocation6 + $0x40] sm:$0xff] %vm5720, %v9242
        %9256 = vst.msk [vmem:[#allocation6 + $0x48] sm:$0xff] %vm5720, %v9243
        %9257 = vst.msk [vmem:[#allocation6 + $0x50] sm:$0xff] %vm5720, %v9244
        %9258 = vst.msk [vmem:[#allocation6 + $0x58] sm:$0xff] %vm5720, %v9245
        %9259 = vst.msk [vmem:[#allocation6 + $0x60] sm:$0xf] %vm5773, %v9246
        %v9260 = vld [vmem:[#allocation6 + $0x1] sm:$0xff]
        %v9261 = vld [vmem:[#allocation6 + $0x9] sm:$0xff]
        %v9262 = vld [vmem:[#allocation6 + $0x11] sm:$0xff]
        %v9263 = vld [vmem:[#allocation6 + $0x19] sm:$0xff]
        %v9264 = vld [vmem:[#allocation6 + $0x21] sm:$0xff]
        %v9265 = vld [vmem:[#allocation6 + $0x29] sm:$0xff]
        %v9266 = vld [vmem:[#allocation6 + $0x31] sm:$0xff]
        %v9267 = vld [vmem:[#allocation6 + $0x39] sm:$0xff]
        %v9268 = vld [vmem:[#allocation6 + $0x41] sm:$0xff]
        %v9269 = vld [vmem:[#allocation6 + $0x49] sm:$0xff]
        %v9270 = vld [vmem:[#allocation6 + $0x51] sm:$0xff]
        %v9271 = vld [vmem:[#allocation6 + $0x59] sm:$0xff]
        %v9272 = vld [vmem:[#allocation6 + $0x61] sm:$0xf]
        %v9273 = vmax.f32 %v9234, %v9260
        %v9274 = vmax.f32 %v9235, %v9261
        %v9275 = vmax.f32 %v9236, %v9262
        %v9276 = vmax.f32 %v9237, %v9263
        %v9277 = vmax.f32 %v9238, %v9264
        %v9278 = vmax.f32 %v9239, %v9265
        %v9279 = vmax.f32 %v9240, %v9266
        %v9280 = vmax.f32 %v9241, %v9267
        %v9281 = vmax.f32 %v9242, %v9268
        %v9282 = vmax.f32 %v9243, %v9269
        %v9283 = vmax.f32 %v9244, %v9270
        %v9284 = vmax.f32 %v9245, %v9271
        %v9285 = vmax.f32 %v9246, %v9272
        %9286 = vst.msk [vmem:[#allocation6] sm:$0xff] %vm5720, %v9273
        %9287 = vst.msk [vmem:[#allocation6 + $0x8] sm:$0xff] %vm5720, %v9274
        %9288 = vst.msk [vmem:[#allocation6 + $0x10] sm:$0xff] %vm5720, %v9275
        %9289 = vst.msk [vmem:[#allocation6 + $0x18] sm:$0xff] %vm5720, %v9276
        %9290 = vst.msk [vmem:[#allocation6 + $0x20] sm:$0xff] %vm5720, %v9277
        %9291 = vst.msk [vmem:[#allocation6 + $0x28] sm:$0xff] %vm5720, %v9278
        %9292 = vst.msk [vmem:[#allocation6 + $0x30] sm:$0xff] %vm5720, %v9279
        %9293 = vst.msk [vmem:[#allocation6 + $0x38] sm:$0xff] %vm5720, %v9280
        %9294 = vst.msk [vmem:[#allocation6 + $0x40] sm:$0xff] %vm5720, %v9281
        %9295 = vst.msk [vmem:[#allocation6 + $0x48] sm:$0xff] %vm5720, %v9282
        %9296 = vst.msk [vmem:[#allocation6 + $0x50] sm:$0xff] %vm5720, %v9283
        %9297 = vst.msk [vmem:[#allocation6 + $0x58] sm:$0xff] %vm5720, %v9284
        %9298 = vst.msk [vmem:[#allocation6 + $0x60] sm:$0xf] %vm5773, %v9285
        %v9299 = vld [vmem:[#allocation6] ss:$2 sm:$0x1f]
        %vm9300 = vcmask 61440
        %9301 = vst.msk [vmem:[#allocation7] sm:$0x1f] %vm9300, %v9299
        %s9302 = scalar_lea.vmem [#allocation6], 20
        %v9303 = vld [vmem:[%s9302] ss:$2 sm:$0x1f]
        %9304 = vst.msk [vmem:[#allocation7 + $0x5] sm:$0x1f] %vm9300, %v9303
        %s9305 = scalar_lea.vmem [#allocation6], 40
        %v9306 = vld [vmem:[%s9305] ss:$2 sm:$0x1f]
        %9307 = vst.msk [vmem:[#allocation7 + $0xa] sm:$0x1f] %vm9300, %v9306
        %s9308 = scalar_lea.vmem [#allocation6], 60
        %v9309 = vld [vmem:[%s9308] ss:$2 sm:$0x1f]
        %9310 = vst.msk [vmem:[#allocation7 + $0xf] sm:$0x1f] %vm9300, %v9309
        %s9311 = scalar_lea.vmem [#allocation6], 80
        %v9312 = vld [vmem:[%s9311] ss:$2 sm:$0x1f]
        %9313 = vst.msk [vmem:[#allocation7 + $0x14] sm:$0x1f] %vm9300, %v9312
        %v9314 = vld [vmem:[#allocation7] sm:$0xff]
        %v9315 = vld [vmem:[#allocation7 + $0x8] sm:$0xff]
        %v9316 = vld [vmem:[#allocation7 + $0x10] sm:$0xff]
        %v9317 = vld [vmem:[#allocation7 + $0x18] sm:$0x1]
        %v9319 = vrot.slane %v9314, 1
        %9320 = vrot.lane.b32.xlu0 %v9319, 8
        %v9321 = vpop.permute.xlu0 %9320
        %v9323 = vrot.slane %v9314, 2
        %9324 = vrot.lane.b32.xlu0 %v9323, 16
        %v9325 = vpop.permute.xlu0 %9324
        %v9327 = vrot.slane %v9314, 3
        %9328 = vrot.lane.b32.xlu0 %v9327, 24
        %v9329 = vpop.permute.xlu0 %9328
        %v9331 = vrot.slane %v9314, 4
        %9332 = vrot.lane.b32.xlu0 %v9331, 32
        %v9333 = vpop.permute.xlu0 %9332
        %v9335 = vrot.slane %v9314, 5
        %9336 = vrot.lane.b32.xlu0 %v9335, 40
        %v9337 = vpop.permute.xlu0 %9336
        %v9339 = vrot.slane %v9314, 6
        %9340 = vrot.lane.b32.xlu0 %v9339, 48
        %v9341 = vpop.permute.xlu0 %9340
        %v9343 = vrot.slane %v9314, 7
        %9344 = vrot.lane.b32.xlu0 %v9343, 56
        %v9345 = vpop.permute.xlu0 %9344
        %9348 = vrot.lane.b32.xlu0 %v9315, 64
        %v9349 = vpop.permute.xlu0 %9348
        %v9351 = vrot.slane %v9315, 1
        %9352 = vrot.lane.b32.xlu0 %v9351, 72
        %v9353 = vpop.permute.xlu0 %9352
        %v9355 = vrot.slane %v9315, 2
        %9356 = vrot.lane.b32.xlu0 %v9355, 80
        %v9357 = vpop.permute.xlu0 %9356
        %v9359 = vrot.slane %v9315, 3
        %9360 = vrot.lane.b32.xlu0 %v9359, 88
        %v9361 = vpop.permute.xlu0 %9360
        %v9363 = vrot.slane %v9315, 4
        %9364 = vrot.lane.b32.xlu0 %v9363, 96
        %v9365 = vpop.permute.xlu0 %9364
        %v9367 = vrot.slane %v9315, 5
        %9368 = vrot.lane.b32.xlu0 %v9367, 104
        %v9369 = vpop.permute.xlu0 %9368
        %v9371 = vrot.slane %v9315, 6
        %9372 = vrot.lane.b32.xlu0 %v9371, 112
        %v9373 = vpop.permute.xlu0 %9372
        %v9375 = vrot.slane %v9315, 7
        %9376 = vrot.lane.b32.xlu0 %v9375, 120
        %v9377 = vpop.permute.xlu0 %9376
        %v9379 = vsel %vm5720, %v9314, %v9321
        %v9380 = vsel %vm6893, %v9379, %v9325
        %v9381 = vsel %vm3757, %v9380, %v9329
        %v9382 = vsel %vm6920, %v9381, %v9333
        %v9383 = vsel %vm6934, %v9382, %v9337
        %v9384 = vsel %vm6948, %v9383, %v9341
        %v9385 = vsel %vm6962, %v9384, %v9345
        %v9386 = vsel %vm6976, %v9385, %v9349
        %v9387 = vsel %vm6993, %v9386, %v9353
        %vm9388 = vcmask 654336
        %v9389 = vsel %vm9388, %v9387, %v9357
        %vm9390 = vcmask 719872
        %v9391 = vsel %vm9390, %v9389, %v9361
        %vm9392 = vcmask 785408
        %v9393 = vsel %vm9392, %v9391, %v9365
        %vm9394 = vcmask 850944
        %v9395 = vsel %vm9394, %v9393, %v9369
        %vm9396 = vcmask 916480
        %v9397 = vsel %vm9396, %v9395, %v9373
        %vm9398 = vcmask 982016
        %v9399 = vsel %vm9398, %v9397, %v9377
        %v9401 = vrot.slane %v9316, 1
        %9402 = vrot.lane.b32.xlu0 %v9401, 8
        %v9403 = vpop.permute.xlu0 %9402
        %v9405 = vrot.slane %v9316, 2
        %9406 = vrot.lane.b32.xlu0 %v9405, 16
        %v9407 = vpop.permute.xlu0 %9406
        %v9409 = vrot.slane %v9316, 3
        %9410 = vrot.lane.b32.xlu0 %v9409, 24
        %v9411 = vpop.permute.xlu0 %9410
        %v9413 = vrot.slane %v9316, 4
        %9414 = vrot.lane.b32.xlu0 %v9413, 32
        %v9415 = vpop.permute.xlu0 %9414
        %v9417 = vrot.slane %v9316, 5
        %9418 = vrot.lane.b32.xlu0 %v9417, 40
        %v9419 = vpop.permute.xlu0 %9418
        %v9421 = vrot.slane %v9316, 6
        %9422 = vrot.lane.b32.xlu0 %v9421, 48
        %v9423 = vpop.permute.xlu0 %9422
        %v9425 = vrot.slane %v9316, 7
        %9426 = vrot.lane.b32.xlu0 %v9425, 56
        %v9427 = vpop.permute.xlu0 %9426
        %9430 = vrot.lane.b32.xlu0 %v9317, 64
        %v9431 = vpop.permute.xlu0 %9430
        %v9433 = vsel %vm5720, %v9316, %v9403
        %v9434 = vsel %vm6893, %v9433, %v9407
        %v9435 = vsel %vm3757, %v9434, %v9411
        %v9436 = vsel %vm6920, %v9435, %v9415
        %v9437 = vsel %vm6934, %v9436, %v9419
        %v9438 = vsel %vm6948, %v9437, %v9423
        %v9439 = vsel %vm6962, %v9438, %v9427
        %v9440 = vsel %vm6976, %v9439, %v9431
        %v9441 = vld [vmem:[%s9] sm:$0xff]
        %v9442 = vld [vmem:[%s9 + $0x8] sm:$0xff]
        %v9443 = vld [vmem:[%s9 + $0x10] sm:$0xff]
        %v9444 = vld [vmem:[%s9 + $0x18] sm:$0xff]
        %v9445 = vld [vmem:[%s9 + $0x20] sm:$0xff]
        %v9446 = vld [vmem:[%s9 + $0x28] sm:$0xff]
        %v9447 = vld [vmem:[%s9 + $0x30] sm:$0xff]
        %v9448 = vld [vmem:[%s9 + $0x38] sm:$0xff]
        %v9449 = vld [vmem:[%s9 + $0x40] sm:$0xff]
        %v9450 = vld [vmem:[%s9 + $0x48] sm:$0xff]
        %v9451 = vld [vmem:[%s9 + $0x50] sm:$0xff]
        %v9452 = vld [vmem:[%s9 + $0x58] sm:$0xff]
        %v9453 = vld [vmem:[%s9 + $0x60] sm:$0xff]
        %v9454 = vld [vmem:[%s9 + $0x68] sm:$0xff]
        %v9455 = vld [vmem:[%s9 + $0x70] sm:$0xff]
        %v9456 = vld [vmem:[%s9 + $0x78] sm:$0xff]
        %v9457 = vld [vmem:[%s9 + $0x80] sm:$0xff]
        %v9458 = vld [vmem:[%s9 + $0x88] sm:$0xff]
        %v9459 = vld [vmem:[%s9 + $0x90] sm:$0xff]
        %v9460 = vld [vmem:[%s9 + $0x98] sm:$0xff]
        %v9461 = vld [vmem:[%s9 + $0xa0] sm:$0xff]
        %v9462 = vld [vmem:[%s9 + $0xa8] sm:$0xff]
        %v9463 = vld [vmem:[%s9 + $0xb0] sm:$0xff]
        %v9464 = vld [vmem:[%s9 + $0xb8] sm:$0xff]
        %v9465 = vld [vmem:[%s9 + $0xc0] sm:$0xff]
        %v9466 = vld [vmem:[%s10] sm:$0x1]
        %v9468 = vsel %vm6993, %v9440, 0
        %v9470 = vand.u32 %v9456, 4294901760
        %9471 = vmatpush.msra.mxu0 %v9470
        %v9472 = vand.u32 %v9455, 4294901760
        %9473 = vmatpush.msra.mxu0 %v9472
        %v9474 = vand.u32 %v9454, 4294901760
        %9475 = vmatpush.msra.mxu0 %v9474
        %v9476 = vand.u32 %v9453, 4294901760
        %9477 = vmatpush.msra.mxu0 %v9476
        %v9478 = vand.u32 %v9452, 4294901760
        %9479 = vmatpush.msra.mxu0 %v9478
        %v9480 = vand.u32 %v9451, 4294901760
        %9481 = vmatpush.msra.mxu0 %v9480
        %v9482 = vand.u32 %v9450, 4294901760
        %9483 = vmatpush.msra.mxu0 %v9482
        %v9484 = vand.u32 %v9449, 4294901760
        %9485 = vmatpush.msra.mxu0 %v9484
        %v9486 = vand.u32 %v9448, 4294901760
        %9487 = vmatpush.msra.mxu0 %v9486
        %v9488 = vand.u32 %v9447, 4294901760
        %9489 = vmatpush.msra.mxu0 %v9488
        %v9490 = vand.u32 %v9446, 4294901760
        %9491 = vmatpush.msra.mxu0 %v9490
        %v9492 = vand.u32 %v9445, 4294901760
        %9493 = vmatpush.msra.mxu0 %v9492
        %v9494 = vand.u32 %v9444, 4294901760
        %9495 = vmatpush.msra.mxu0 %v9494
        %v9496 = vand.u32 %v9443, 4294901760
        %9497 = vmatpush.msra.mxu0 %v9496
        %v9498 = vand.u32 %v9442, 4294901760
        %9499 = vmatpush.msra.mxu0 %v9498
        %v9500 = vand.u32 %v9441, 4294901760
        %9501 = vmatpush.msra.mxu0 %v9500
        %v9502 = vand.u32 %v9399, 4294901760
        %v9503 = vsub.f32 %v9399, %v9502
        %v9504 = vand.u32 %v9503, 4294901760
        %v9505 = vsub.f32 %v9503, %v9504
        %v9506 = vand.u32 %v9505, 4294901760
        %9507 = vmatmul.f32.gmra.mxu0 %v9506
        %v9508 = vpop.f32.mrf.mxu0
        %v9509 = vadd.f32 %v9466, %v9508
        %9510 = vdwg.mxu0
        %v9511 = vand.u32 %v9456, 4294901760
        %v9512 = vsub.f32 %v9456, %v9511
        %v9513 = vand.u32 %v9512, 4294901760
        %v9514 = vsub.f32 %v9512, %v9513
        %v9515 = vand.u32 %v9514, 4294901760
        %9516 = vmatpush.msra.mxu0 %v9515
        %v9517 = vand.u32 %v9455, 4294901760
        %v9518 = vsub.f32 %v9455, %v9517
        %v9519 = vand.u32 %v9518, 4294901760
        %v9520 = vsub.f32 %v9518, %v9519
        %v9521 = vand.u32 %v9520, 4294901760
        %9522 = vmatpush.msra.mxu0 %v9521
        %v9523 = vand.u32 %v9454, 4294901760
        %v9524 = vsub.f32 %v9454, %v9523
        %v9525 = vand.u32 %v9524, 4294901760
        %v9526 = vsub.f32 %v9524, %v9525
        %v9527 = vand.u32 %v9526, 4294901760
        %9528 = vmatpush.msra.mxu0 %v9527
        %v9529 = vand.u32 %v9453, 4294901760
        %v9530 = vsub.f32 %v9453, %v9529
        %v9531 = vand.u32 %v9530, 4294901760
        %v9532 = vsub.f32 %v9530, %v9531
        %v9533 = vand.u32 %v9532, 4294901760
        %9534 = vmatpush.msra.mxu0 %v9533
        %v9535 = vand.u32 %v9452, 4294901760
        %v9536 = vsub.f32 %v9452, %v9535
        %v9537 = vand.u32 %v9536, 4294901760
        %v9538 = vsub.f32 %v9536, %v9537
        %v9539 = vand.u32 %v9538, 4294901760
        %9540 = vmatpush.msra.mxu0 %v9539
        %v9541 = vand.u32 %v9451, 4294901760
        %v9542 = vsub.f32 %v9451, %v9541
        %v9543 = vand.u32 %v9542, 4294901760
        %v9544 = vsub.f32 %v9542, %v9543
        %v9545 = vand.u32 %v9544, 4294901760
        %9546 = vmatpush.msra.mxu0 %v9545
        %v9547 = vand.u32 %v9450, 4294901760
        %v9548 = vsub.f32 %v9450, %v9547
        %v9549 = vand.u32 %v9548, 4294901760
        %v9550 = vsub.f32 %v9548, %v9549
        %v9551 = vand.u32 %v9550, 4294901760
        %9552 = vmatpush.msra.mxu0 %v9551
        %v9553 = vand.u32 %v9449, 4294901760
        %v9554 = vsub.f32 %v9449, %v9553
        %v9555 = vand.u32 %v9554, 4294901760
        %v9556 = vsub.f32 %v9554, %v9555
        %v9557 = vand.u32 %v9556, 4294901760
        %9558 = vmatpush.msra.mxu0 %v9557
        %v9559 = vand.u32 %v9448, 4294901760
        %v9560 = vsub.f32 %v9448, %v9559
        %v9561 = vand.u32 %v9560, 4294901760
        %v9562 = vsub.f32 %v9560, %v9561
        %v9563 = vand.u32 %v9562, 4294901760
        %9564 = vmatpush.msra.mxu0 %v9563
        %v9565 = vand.u32 %v9447, 4294901760
        %v9566 = vsub.f32 %v9447, %v9565
        %v9567 = vand.u32 %v9566, 4294901760
        %v9568 = vsub.f32 %v9566, %v9567
        %v9569 = vand.u32 %v9568, 4294901760
        %9570 = vmatpush.msra.mxu0 %v9569
        %v9571 = vand.u32 %v9446, 4294901760
        %v9572 = vsub.f32 %v9446, %v9571
        %v9573 = vand.u32 %v9572, 4294901760
        %v9574 = vsub.f32 %v9572, %v9573
        %v9575 = vand.u32 %v9574, 4294901760
        %9576 = vmatpush.msra.mxu0 %v9575
        %v9577 = vand.u32 %v9445, 4294901760
        %v9578 = vsub.f32 %v9445, %v9577
        %v9579 = vand.u32 %v9578, 4294901760
        %v9580 = vsub.f32 %v9578, %v9579
        %v9581 = vand.u32 %v9580, 4294901760
        %9582 = vmatpush.msra.mxu0 %v9581
        %v9583 = vand.u32 %v9444, 4294901760
        %v9584 = vsub.f32 %v9444, %v9583
        %v9585 = vand.u32 %v9584, 4294901760
        %v9586 = vsub.f32 %v9584, %v9585
        %v9587 = vand.u32 %v9586, 4294901760
        %9588 = vmatpush.msra.mxu0 %v9587
        %v9589 = vand.u32 %v9443, 4294901760
        %v9590 = vsub.f32 %v9443, %v9589
        %v9591 = vand.u32 %v9590, 4294901760
        %v9592 = vsub.f32 %v9590, %v9591
        %v9593 = vand.u32 %v9592, 4294901760
        %9594 = vmatpush.msra.mxu0 %v9593
        %v9595 = vand.u32 %v9442, 4294901760
        %v9596 = vsub.f32 %v9442, %v9595
        %v9597 = vand.u32 %v9596, 4294901760
        %v9598 = vsub.f32 %v9596, %v9597
        %v9599 = vand.u32 %v9598, 4294901760
        %9600 = vmatpush.msra.mxu0 %v9599
        %v9601 = vand.u32 %v9441, 4294901760
        %v9602 = vsub.f32 %v9441, %v9601
        %v9603 = vand.u32 %v9602, 4294901760
        %v9604 = vsub.f32 %v9602, %v9603
        %v9605 = vand.u32 %v9604, 4294901760
        %9606 = vmatpush.msra.mxu0 %v9605
        %v9607 = vand.u32 %v9399, 4294901760
        %9608 = vmatmul.f32.gmra.mxu0 %v9607
        %v9609 = vpop.f32.mrf.mxu0
        %v9610 = vadd.f32 %v9509, %v9609
        %9611 = vdwg.mxu0
        %v9612 = vand.u32 %v9456, 4294901760
        %v9613 = vsub.f32 %v9456, %v9612
        %9614 = vmatpush.msra.mxu0 %v9613
        %v9615 = vand.u32 %v9455, 4294901760
        %v9616 = vsub.f32 %v9455, %v9615
        %9617 = vmatpush.msra.mxu0 %v9616
        %v9618 = vand.u32 %v9454, 4294901760
        %v9619 = vsub.f32 %v9454, %v9618
        %9620 = vmatpush.msra.mxu0 %v9619
        %v9621 = vand.u32 %v9453, 4294901760
        %v9622 = vsub.f32 %v9453, %v9621
        %9623 = vmatpush.msra.mxu0 %v9622
        %v9624 = vand.u32 %v9452, 4294901760
        %v9625 = vsub.f32 %v9452, %v9624
        %9626 = vmatpush.msra.mxu0 %v9625
        %v9627 = vand.u32 %v9451, 4294901760
        %v9628 = vsub.f32 %v9451, %v9627
        %9629 = vmatpush.msra.mxu0 %v9628
        %v9630 = vand.u32 %v9450, 4294901760
        %v9631 = vsub.f32 %v9450, %v9630
        %9632 = vmatpush.msra.mxu0 %v9631
        %v9633 = vand.u32 %v9449, 4294901760
        %v9634 = vsub.f32 %v9449, %v9633
        %9635 = vmatpush.msra.mxu0 %v9634
        %v9636 = vand.u32 %v9448, 4294901760
        %v9637 = vsub.f32 %v9448, %v9636
        %9638 = vmatpush.msra.mxu0 %v9637
        %v9639 = vand.u32 %v9447, 4294901760
        %v9640 = vsub.f32 %v9447, %v9639
        %9641 = vmatpush.msra.mxu0 %v9640
        %v9642 = vand.u32 %v9446, 4294901760
        %v9643 = vsub.f32 %v9446, %v9642
        %9644 = vmatpush.msra.mxu0 %v9643
        %v9645 = vand.u32 %v9445, 4294901760
        %v9646 = vsub.f32 %v9445, %v9645
        %9647 = vmatpush.msra.mxu0 %v9646
        %v9648 = vand.u32 %v9444, 4294901760
        %v9649 = vsub.f32 %v9444, %v9648
        %9650 = vmatpush.msra.mxu0 %v9649
        %v9651 = vand.u32 %v9443, 4294901760
        %v9652 = vsub.f32 %v9443, %v9651
        %9653 = vmatpush.msra.mxu0 %v9652
        %v9654 = vand.u32 %v9442, 4294901760
        %v9655 = vsub.f32 %v9442, %v9654
        %9656 = vmatpush.msra.mxu0 %v9655
        %v9657 = vand.u32 %v9441, 4294901760
        %v9658 = vsub.f32 %v9441, %v9657
        %9659 = vmatpush.msra.mxu0 %v9658
        %v9660 = vand.u32 %v9399, 4294901760
        %v9661 = vsub.f32 %v9399, %v9660
        %9662 = vmatmul.f32.gmra.mxu0 %v9661
        %v9663 = vpop.f32.mrf.mxu0
        %v9664 = vadd.f32 %v9610, %v9663
        %9665 = vdwg.mxu0
        %v9666 = vand.u32 %v9456, 4294901760
        %9667 = vmatpush.msra.mxu0 %v9666
        %v9668 = vand.u32 %v9455, 4294901760
        %9669 = vmatpush.msra.mxu0 %v9668
        %v9670 = vand.u32 %v9454, 4294901760
        %9671 = vmatpush.msra.mxu0 %v9670
        %v9672 = vand.u32 %v9453, 4294901760
        %9673 = vmatpush.msra.mxu0 %v9672
        %v9674 = vand.u32 %v9452, 4294901760
        %9675 = vmatpush.msra.mxu0 %v9674
        %v9676 = vand.u32 %v9451, 4294901760
        %9677 = vmatpush.msra.mxu0 %v9676
        %v9678 = vand.u32 %v9450, 4294901760
        %9679 = vmatpush.msra.mxu0 %v9678
        %v9680 = vand.u32 %v9449, 4294901760
        %9681 = vmatpush.msra.mxu0 %v9680
        %v9682 = vand.u32 %v9448, 4294901760
        %9683 = vmatpush.msra.mxu0 %v9682
        %v9684 = vand.u32 %v9447, 4294901760
        %9685 = vmatpush.msra.mxu0 %v9684
        %v9686 = vand.u32 %v9446, 4294901760
        %9687 = vmatpush.msra.mxu0 %v9686
        %v9688 = vand.u32 %v9445, 4294901760
        %9689 = vmatpush.msra.mxu0 %v9688
        %v9690 = vand.u32 %v9444, 4294901760
        %9691 = vmatpush.msra.mxu0 %v9690
        %v9692 = vand.u32 %v9443, 4294901760
        %9693 = vmatpush.msra.mxu0 %v9692
        %v9694 = vand.u32 %v9442, 4294901760
        %9695 = vmatpush.msra.mxu0 %v9694
        %v9696 = vand.u32 %v9441, 4294901760
        %9697 = vmatpush.msra.mxu0 %v9696
        %v9698 = vand.u32 %v9399, 4294901760
        %v9699 = vsub.f32 %v9399, %v9698
        %v9700 = vand.u32 %v9699, 4294901760
        %9701 = vmatmul.f32.gmra.mxu0 %v9700
        %v9702 = vpop.f32.mrf.mxu0
        %v9703 = vadd.f32 %v9664, %v9702
        %9704 = vdwg.mxu0
        %v9705 = vand.u32 %v9456, 4294901760
        %v9706 = vsub.f32 %v9456, %v9705
        %v9707 = vand.u32 %v9706, 4294901760
        %9708 = vmatpush.msra.mxu0 %v9707
        %v9709 = vand.u32 %v9455, 4294901760
        %v9710 = vsub.f32 %v9455, %v9709
        %v9711 = vand.u32 %v9710, 4294901760
        %9712 = vmatpush.msra.mxu0 %v9711
        %v9713 = vand.u32 %v9454, 4294901760
        %v9714 = vsub.f32 %v9454, %v9713
        %v9715 = vand.u32 %v9714, 4294901760
        %9716 = vmatpush.msra.mxu0 %v9715
        %v9717 = vand.u32 %v9453, 4294901760
        %v9718 = vsub.f32 %v9453, %v9717
        %v9719 = vand.u32 %v9718, 4294901760
        %9720 = vmatpush.msra.mxu0 %v9719
        %v9721 = vand.u32 %v9452, 4294901760
        %v9722 = vsub.f32 %v9452, %v9721
        %v9723 = vand.u32 %v9722, 4294901760
        %9724 = vmatpush.msra.mxu0 %v9723
        %v9725 = vand.u32 %v9451, 4294901760
        %v9726 = vsub.f32 %v9451, %v9725
        %v9727 = vand.u32 %v9726, 4294901760
        %9728 = vmatpush.msra.mxu0 %v9727
        %v9729 = vand.u32 %v9450, 4294901760
        %v9730 = vsub.f32 %v9450, %v9729
        %v9731 = vand.u32 %v9730, 4294901760
        %9732 = vmatpush.msra.mxu0 %v9731
        %v9733 = vand.u32 %v9449, 4294901760
        %v9734 = vsub.f32 %v9449, %v9733
        %v9735 = vand.u32 %v9734, 4294901760
        %9736 = vmatpush.msra.mxu0 %v9735
        %v9737 = vand.u32 %v9448, 4294901760
        %v9738 = vsub.f32 %v9448, %v9737
        %v9739 = vand.u32 %v9738, 4294901760
        %9740 = vmatpush.msra.mxu0 %v9739
        %v9741 = vand.u32 %v9447, 4294901760
        %v9742 = vsub.f32 %v9447, %v9741
        %v9743 = vand.u32 %v9742, 4294901760
        %9744 = vmatpush.msra.mxu0 %v9743
        %v9745 = vand.u32 %v9446, 4294901760
        %v9746 = vsub.f32 %v9446, %v9745
        %v9747 = vand.u32 %v9746, 4294901760
        %9748 = vmatpush.msra.mxu0 %v9747
        %v9749 = vand.u32 %v9445, 4294901760
        %v9750 = vsub.f32 %v9445, %v9749
        %v9751 = vand.u32 %v9750, 4294901760
        %9752 = vmatpush.msra.mxu0 %v9751
        %v9753 = vand.u32 %v9444, 4294901760
        %v9754 = vsub.f32 %v9444, %v9753
        %v9755 = vand.u32 %v9754, 4294901760
        %9756 = vmatpush.msra.mxu0 %v9755
        %v9757 = vand.u32 %v9443, 4294901760
        %v9758 = vsub.f32 %v9443, %v9757
        %v9759 = vand.u32 %v9758, 4294901760
        %9760 = vmatpush.msra.mxu0 %v9759
        %v9761 = vand.u32 %v9442, 4294901760
        %v9762 = vsub.f32 %v9442, %v9761
        %v9763 = vand.u32 %v9762, 4294901760
        %9764 = vmatpush.msra.mxu0 %v9763
        %v9765 = vand.u32 %v9441, 4294901760
        %v9766 = vsub.f32 %v9441, %v9765
        %v9767 = vand.u32 %v9766, 4294901760
        %9768 = vmatpush.msra.mxu0 %v9767
        %v9769 = vand.u32 %v9399, 4294901760
        %9770 = vmatmul.f32.gmra.mxu0 %v9769
        %v9771 = vpop.f32.mrf.mxu0
        %v9772 = vadd.f32 %v9703, %v9771
        %9773 = vdwg.mxu0
        %v9774 = vand.u32 %v9456, 4294901760
        %9775 = vmatpush.msra.mxu0 %v9774
        %v9776 = vand.u32 %v9455, 4294901760
        %9777 = vmatpush.msra.mxu0 %v9776
        %v9778 = vand.u32 %v9454, 4294901760
        %9779 = vmatpush.msra.mxu0 %v9778
        %v9780 = vand.u32 %v9453, 4294901760
        %9781 = vmatpush.msra.mxu0 %v9780
        %v9782 = vand.u32 %v9452, 4294901760
        %9783 = vmatpush.msra.mxu0 %v9782
        %v9784 = vand.u32 %v9451, 4294901760
        %9785 = vmatpush.msra.mxu0 %v9784
        %v9786 = vand.u32 %v9450, 4294901760
        %9787 = vmatpush.msra.mxu0 %v9786
        %v9788 = vand.u32 %v9449, 4294901760
        %9789 = vmatpush.msra.mxu0 %v9788
        %v9790 = vand.u32 %v9448, 4294901760
        %9791 = vmatpush.msra.mxu0 %v9790
        %v9792 = vand.u32 %v9447, 4294901760
        %9793 = vmatpush.msra.mxu0 %v9792
        %v9794 = vand.u32 %v9446, 4294901760
        %9795 = vmatpush.msra.mxu0 %v9794
        %v9796 = vand.u32 %v9445, 4294901760
        %9797 = vmatpush.msra.mxu0 %v9796
        %v9798 = vand.u32 %v9444, 4294901760
        %9799 = vmatpush.msra.mxu0 %v9798
        %v9800 = vand.u32 %v9443, 4294901760
        %9801 = vmatpush.msra.mxu0 %v9800
        %v9802 = vand.u32 %v9442, 4294901760
        %9803 = vmatpush.msra.mxu0 %v9802
        %v9804 = vand.u32 %v9441, 4294901760
        %9805 = vmatpush.msra.mxu0 %v9804
        %v9806 = vand.u32 %v9399, 4294901760
        %9807 = vmatmul.f32.gmra.mxu0 %v9806
        %v9808 = vpop.f32.mrf.mxu0
        %v9809 = vadd.f32 %v9772, %v9808
        %9810 = vdwg.mxu0
        %9811 = vmatpush.msra.mxu0 0.0
        %9812 = vmatpush.msra.mxu0 0.0
        %9813 = vmatpush.msra.mxu0 0.0
        %9814 = vmatpush.msra.mxu0 0.0
        %9815 = vmatpush.msra.mxu0 0.0
        %9816 = vmatpush.msra.mxu0 0.0
        %9817 = vmatpush.msra.mxu0 0.0
        %v9818 = vand.u32 %v9465, 4294901760
        %9819 = vmatpush.msra.mxu0 %v9818
        %v9820 = vand.u32 %v9464, 4294901760
        %9821 = vmatpush.msra.mxu0 %v9820
        %v9822 = vand.u32 %v9463, 4294901760
        %9823 = vmatpush.msra.mxu0 %v9822
        %v9824 = vand.u32 %v9462, 4294901760
        %9825 = vmatpush.msra.mxu0 %v9824
        %v9826 = vand.u32 %v9461, 4294901760
        %9827 = vmatpush.msra.mxu0 %v9826
        %v9828 = vand.u32 %v9460, 4294901760
        %9829 = vmatpush.msra.mxu0 %v9828
        %v9830 = vand.u32 %v9459, 4294901760
        %9831 = vmatpush.msra.mxu0 %v9830
        %v9832 = vand.u32 %v9458, 4294901760
        %9833 = vmatpush.msra.mxu0 %v9832
        %v9834 = vand.u32 %v9457, 4294901760
        %9835 = vmatpush.msra.mxu0 %v9834
        %v9836 = vand.u32 %v9468, 4294901760
        %v9837 = vsub.f32 %v9468, %v9836
        %v9838 = vand.u32 %v9837, 4294901760
        %v9839 = vsub.f32 %v9837, %v9838
        %v9840 = vand.u32 %v9839, 4294901760
        %9841 = vmatmul.f32.gmra.mxu0 %v9840
        %v9842 = vpop.f32.mrf.mxu0
        %v9843 = vadd.f32 %v9809, %v9842
        %9844 = vdwg.mxu0
        %9845 = vmatpush.msra.mxu0 0.0
        %9846 = vmatpush.msra.mxu0 0.0
        %9847 = vmatpush.msra.mxu0 0.0
        %9848 = vmatpush.msra.mxu0 0.0
        %9849 = vmatpush.msra.mxu0 0.0
        %9850 = vmatpush.msra.mxu0 0.0
        %9851 = vmatpush.msra.mxu0 0.0
        %v9852 = vand.u32 %v9465, 4294901760
        %v9853 = vsub.f32 %v9465, %v9852
        %v9854 = vand.u32 %v9853, 4294901760
        %v9855 = vsub.f32 %v9853, %v9854
        %v9856 = vand.u32 %v9855, 4294901760
        %9857 = vmatpush.msra.mxu0 %v9856
        %v9858 = vand.u32 %v9464, 4294901760
        %v9859 = vsub.f32 %v9464, %v9858
        %v9860 = vand.u32 %v9859, 4294901760
        %v9861 = vsub.f32 %v9859, %v9860
        %v9862 = vand.u32 %v9861, 4294901760
        %9863 = vmatpush.msra.mxu0 %v9862
        %v9864 = vand.u32 %v9463, 4294901760
        %v9865 = vsub.f32 %v9463, %v9864
        %v9866 = vand.u32 %v9865, 4294901760
        %v9867 = vsub.f32 %v9865, %v9866
        %v9868 = vand.u32 %v9867, 4294901760
        %9869 = vmatpush.msra.mxu0 %v9868
        %v9870 = vand.u32 %v9462, 4294901760
        %v9871 = vsub.f32 %v9462, %v9870
        %v9872 = vand.u32 %v9871, 4294901760
        %v9873 = vsub.f32 %v9871, %v9872
        %v9874 = vand.u32 %v9873, 4294901760
        %9875 = vmatpush.msra.mxu0 %v9874
        %v9876 = vand.u32 %v9461, 4294901760
        %v9877 = vsub.f32 %v9461, %v9876
        %v9878 = vand.u32 %v9877, 4294901760
        %v9879 = vsub.f32 %v9877, %v9878
        %v9880 = vand.u32 %v9879, 4294901760
        %9881 = vmatpush.msra.mxu0 %v9880
        %v9882 = vand.u32 %v9460, 4294901760
        %v9883 = vsub.f32 %v9460, %v9882
        %v9884 = vand.u32 %v9883, 4294901760
        %v9885 = vsub.f32 %v9883, %v9884
        %v9886 = vand.u32 %v9885, 4294901760
        %9887 = vmatpush.msra.mxu0 %v9886
        %v9888 = vand.u32 %v9459, 4294901760
        %v9889 = vsub.f32 %v9459, %v9888
        %v9890 = vand.u32 %v9889, 4294901760
        %v9891 = vsub.f32 %v9889, %v9890
        %v9892 = vand.u32 %v9891, 4294901760
        %9893 = vmatpush.msra.mxu0 %v9892
        %v9894 = vand.u32 %v9458, 4294901760
        %v9895 = vsub.f32 %v9458, %v9894
        %v9896 = vand.u32 %v9895, 4294901760
        %v9897 = vsub.f32 %v9895, %v9896
        %v9898 = vand.u32 %v9897, 4294901760
        %9899 = vmatpush.msra.mxu0 %v9898
        %v9900 = vand.u32 %v9457, 4294901760
        %v9901 = vsub.f32 %v9457, %v9900
        %v9902 = vand.u32 %v9901, 4294901760
        %v9903 = vsub.f32 %v9901, %v9902
        %v9904 = vand.u32 %v9903, 4294901760
        %9905 = vmatpush.msra.mxu0 %v9904
        %v9906 = vand.u32 %v9468, 4294901760
        %9907 = vmatmul.f32.gmra.mxu0 %v9906
        %v9908 = vpop.f32.mrf.mxu0
        %v9909 = vadd.f32 %v9843, %v9908
        %9910 = vdwg.mxu0
        %9911 = vmatpush.msra.mxu0 0.0
        %9912 = vmatpush.msra.mxu0 0.0
        %9913 = vmatpush.msra.mxu0 0.0
        %9914 = vmatpush.msra.mxu0 0.0
        %9915 = vmatpush.msra.mxu0 0.0
        %9916 = vmatpush.msra.mxu0 0.0
        %9917 = vmatpush.msra.mxu0 0.0
        %v9918 = vand.u32 %v9465, 4294901760
        %v9919 = vsub.f32 %v9465, %v9918
        %9920 = vmatpush.msra.mxu0 %v9919
        %v9921 = vand.u32 %v9464, 4294901760
        %v9922 = vsub.f32 %v9464, %v9921
        %9923 = vmatpush.msra.mxu0 %v9922
        %v9924 = vand.u32 %v9463, 4294901760
        %v9925 = vsub.f32 %v9463, %v9924
        %9926 = vmatpush.msra.mxu0 %v9925
        %v9927 = vand.u32 %v9462, 4294901760
        %v9928 = vsub.f32 %v9462, %v9927
        %9929 = vmatpush.msra.mxu0 %v9928
        %v9930 = vand.u32 %v9461, 4294901760
        %v9931 = vsub.f32 %v9461, %v9930
        %9932 = vmatpush.msra.mxu0 %v9931
        %v9933 = vand.u32 %v9460, 4294901760
        %v9934 = vsub.f32 %v9460, %v9933
        %9935 = vmatpush.msra.mxu0 %v9934
        %v9936 = vand.u32 %v9459, 4294901760
        %v9937 = vsub.f32 %v9459, %v9936
        %9938 = vmatpush.msra.mxu0 %v9937
        %v9939 = vand.u32 %v9458, 4294901760
        %v9940 = vsub.f32 %v9458, %v9939
        %9941 = vmatpush.msra.mxu0 %v9940
        %v9942 = vand.u32 %v9457, 4294901760
        %v9943 = vsub.f32 %v9457, %v9942
        %9944 = vmatpush.msra.mxu0 %v9943
        %v9945 = vand.u32 %v9468, 4294901760
        %v9946 = vsub.f32 %v9468, %v9945
        %9947 = vmatmul.f32.gmra.mxu0 %v9946
        %v9948 = vpop.f32.mrf.mxu0
        %v9949 = vadd.f32 %v9909, %v9948
        %9950 = vdwg.mxu0
        %9951 = vmatpush.msra.mxu0 0.0
        %9952 = vmatpush.msra.mxu0 0.0
        %9953 = vmatpush.msra.mxu0 0.0
        %9954 = vmatpush.msra.mxu0 0.0
        %9955 = vmatpush.msra.mxu0 0.0
        %9956 = vmatpush.msra.mxu0 0.0
        %9957 = vmatpush.msra.mxu0 0.0
        %v9958 = vand.u32 %v9465, 4294901760
        %9959 = vmatpush.msra.mxu0 %v9958
        %v9960 = vand.u32 %v9464, 4294901760
        %9961 = vmatpush.msra.mxu0 %v9960
        %v9962 = vand.u32 %v9463, 4294901760
        %9963 = vmatpush.msra.mxu0 %v9962
        %v9964 = vand.u32 %v9462, 4294901760
        %9965 = vmatpush.msra.mxu0 %v9964
        %v9966 = vand.u32 %v9461, 4294901760
        %9967 = vmatpush.msra.mxu0 %v9966
        %v9968 = vand.u32 %v9460, 4294901760
        %9969 = vmatpush.msra.mxu0 %v9968
        %v9970 = vand.u32 %v9459, 4294901760
        %9971 = vmatpush.msra.mxu0 %v9970
        %v9972 = vand.u32 %v9458, 4294901760
        %9973 = vmatpush.msra.mxu0 %v9972
        %v9974 = vand.u32 %v9457, 4294901760
        %9975 = vmatpush.msra.mxu0 %v9974
        %v9976 = vand.u32 %v9468, 4294901760
        %v9977 = vsub.f32 %v9468, %v9976
        %v9978 = vand.u32 %v9977, 4294901760
        %9979 = vmatmul.f32.gmra.mxu0 %v9978
        %v9980 = vpop.f32.mrf.mxu0
        %v9981 = vadd.f32 %v9949, %v9980
        %9982 = vdwg.mxu0
        %9983 = vmatpush.msra.mxu0 0.0
        %9984 = vmatpush.msra.mxu0 0.0
        %9985 = vmatpush.msra.mxu0 0.0
        %9986 = vmatpush.msra.mxu0 0.0
        %9987 = vmatpush.msra.mxu0 0.0
        %9988 = vmatpush.msra.mxu0 0.0
        %9989 = vmatpush.msra.mxu0 0.0
        %v9990 = vand.u32 %v9465, 4294901760
        %v9991 = vsub.f32 %v9465, %v9990
        %v9992 = vand.u32 %v9991, 4294901760
        %9993 = vmatpush.msra.mxu0 %v9992
        %v9994 = vand.u32 %v9464, 4294901760
        %v9995 = vsub.f32 %v9464, %v9994
        %v9996 = vand.u32 %v9995, 4294901760
        %9997 = vmatpush.msra.mxu0 %v9996
        %v9998 = vand.u32 %v9463, 4294901760
        %v9999 = vsub.f32 %v9463, %v9998
        %v10000 = vand.u32 %v9999, 4294901760
        %10001 = vmatpush.msra.mxu0 %v10000
        %v10002 = vand.u32 %v9462, 4294901760
        %v10003 = vsub.f32 %v9462, %v10002
        %v10004 = vand.u32 %v10003, 4294901760
        %10005 = vmatpush.msra.mxu0 %v10004
        %v10006 = vand.u32 %v9461, 4294901760
        %v10007 = vsub.f32 %v9461, %v10006
        %v10008 = vand.u32 %v10007, 4294901760
        %10009 = vmatpush.msra.mxu0 %v10008
        %v10010 = vand.u32 %v9460, 4294901760
        %v10011 = vsub.f32 %v9460, %v10010
        %v10012 = vand.u32 %v10011, 4294901760
        %10013 = vmatpush.msra.mxu0 %v10012
        %v10014 = vand.u32 %v9459, 4294901760
        %v10015 = vsub.f32 %v9459, %v10014
        %v10016 = vand.u32 %v10015, 4294901760
        %10017 = vmatpush.msra.mxu0 %v10016
        %v10018 = vand.u32 %v9458, 4294901760
        %v10019 = vsub.f32 %v9458, %v10018
        %v10020 = vand.u32 %v10019, 4294901760
        %10021 = vmatpush.msra.mxu0 %v10020
        %v10022 = vand.u32 %v9457, 4294901760
        %v10023 = vsub.f32 %v9457, %v10022
        %v10024 = vand.u32 %v10023, 4294901760
        %10025 = vmatpush.msra.mxu0 %v10024
        %v10026 = vand.u32 %v9468, 4294901760
        %10027 = vmatmul.f32.gmra.mxu0 %v10026
        %v10028 = vpop.f32.mrf.mxu0
        %v10029 = vadd.f32 %v9981, %v10028
        %10030 = vdwg.mxu0
        %10031 = vmatpush.msra.mxu0 0.0
        %10032 = vmatpush.msra.mxu0 0.0
        %10033 = vmatpush.msra.mxu0 0.0
        %10034 = vmatpush.msra.mxu0 0.0
        %10035 = vmatpush.msra.mxu0 0.0
        %10036 = vmatpush.msra.mxu0 0.0
        %10037 = vmatpush.msra.mxu0 0.0
        %v10038 = vand.u32 %v9465, 4294901760
        %10039 = vmatpush.msra.mxu0 %v10038
        %v10040 = vand.u32 %v9464, 4294901760
        %10041 = vmatpush.msra.mxu0 %v10040
        %v10042 = vand.u32 %v9463, 4294901760
        %10043 = vmatpush.msra.mxu0 %v10042
        %v10044 = vand.u32 %v9462, 4294901760
        %10045 = vmatpush.msra.mxu0 %v10044
        %v10046 = vand.u32 %v9461, 4294901760
        %10047 = vmatpush.msra.mxu0 %v10046
        %v10048 = vand.u32 %v9460, 4294901760
        %10049 = vmatpush.msra.mxu0 %v10048
        %v10050 = vand.u32 %v9459, 4294901760
        %10051 = vmatpush.msra.mxu0 %v10050
        %v10052 = vand.u32 %v9458, 4294901760
        %10053 = vmatpush.msra.mxu0 %v10052
        %v10054 = vand.u32 %v9457, 4294901760
        %10055 = vmatpush.msra.mxu0 %v10054
        %v10056 = vand.u32 %v9468, 4294901760
        %10057 = vmatmul.f32.gmra.mxu0 %v10056
        %v10058 = vpop.f32.mrf.mxu0
        %v10059 = vadd.f32 %v10029, %v10058
        %10060 = vdwg.mxu0
        %v10061 = vmax.f32 %v10059, 0.0
        %v10062 = vld [vmem:[%s11] sm:$0xff]
        %v10063 = vld [vmem:[%s11 + $0x8] sm:$0xff]
        %v10064 = vld [vmem:[%s11 + $0x10] sm:$0xff]
        %v10065 = vld [vmem:[%s11 + $0x18] sm:$0xff]
        %v10066 = vld [vmem:[%s12] sm:$0x1]
        %v10068 = vsel %vm6920, %v10061, 0
        %10070 = vmatpush.msra.mxu0 0.0
        %10071 = vmatpush.msra.mxu0 0.0
        %10072 = vmatpush.msra.mxu0 0.0
        %10073 = vmatpush.msra.mxu0 0.0
        %10074 = vmatpush.msra.mxu0 0.0
        %10075 = vmatpush.msra.mxu0 0.0
        %10076 = vmatpush.msra.mxu0 0.0
        %10077 = vmatpush.msra.mxu0 0.0
        %10078 = vmatpush.msra.mxu0 0.0
        %10079 = vmatpush.msra.mxu0 0.0
        %10080 = vmatpush.msra.mxu0 0.0
        %10081 = vmatpush.msra.mxu0 0.0
        %v10082 = vand.u32 %v10065, 4294901760
        %10083 = vmatpush.msra.mxu0 %v10082
        %v10084 = vand.u32 %v10064, 4294901760
        %10085 = vmatpush.msra.mxu0 %v10084
        %v10086 = vand.u32 %v10063, 4294901760
        %10087 = vmatpush.msra.mxu0 %v10086
        %v10088 = vand.u32 %v10062, 4294901760
        %10089 = vmatpush.msra.mxu0 %v10088
        %v10090 = vand.u32 %v10068, 4294901760
        %v10091 = vsub.f32 %v10068, %v10090
        %v10092 = vand.u32 %v10091, 4294901760
        %v10093 = vsub.f32 %v10091, %v10092
        %v10094 = vand.u32 %v10093, 4294901760
        %10095 = vmatmul.f32.gmra.mxu0 %v10094
        %v10096 = vpop.f32.mrf.mxu0
        %v10097 = vadd.f32 %v10066, %v10096
        %10098 = vdwg.mxu0
        %10099 = vmatpush.msra.mxu0 0.0
        %10100 = vmatpush.msra.mxu0 0.0
        %10101 = vmatpush.msra.mxu0 0.0
        %10102 = vmatpush.msra.mxu0 0.0
        %10103 = vmatpush.msra.mxu0 0.0
        %10104 = vmatpush.msra.mxu0 0.0
        %10105 = vmatpush.msra.mxu0 0.0
        %10106 = vmatpush.msra.mxu0 0.0
        %10107 = vmatpush.msra.mxu0 0.0
        %10108 = vmatpush.msra.mxu0 0.0
        %10109 = vmatpush.msra.mxu0 0.0
        %10110 = vmatpush.msra.mxu0 0.0
        %v10111 = vand.u32 %v10065, 4294901760
        %v10112 = vsub.f32 %v10065, %v10111
        %v10113 = vand.u32 %v10112, 4294901760
        %v10114 = vsub.f32 %v10112, %v10113
        %v10115 = vand.u32 %v10114, 4294901760
        %10116 = vmatpush.msra.mxu0 %v10115
        %v10117 = vand.u32 %v10064, 4294901760
        %v10118 = vsub.f32 %v10064, %v10117
        %v10119 = vand.u32 %v10118, 4294901760
        %v10120 = vsub.f32 %v10118, %v10119
        %v10121 = vand.u32 %v10120, 4294901760
        %10122 = vmatpush.msra.mxu0 %v10121
        %v10123 = vand.u32 %v10063, 4294901760
        %v10124 = vsub.f32 %v10063, %v10123
        %v10125 = vand.u32 %v10124, 4294901760
        %v10126 = vsub.f32 %v10124, %v10125
        %v10127 = vand.u32 %v10126, 4294901760
        %10128 = vmatpush.msra.mxu0 %v10127
        %v10129 = vand.u32 %v10062, 4294901760
        %v10130 = vsub.f32 %v10062, %v10129
        %v10131 = vand.u32 %v10130, 4294901760
        %v10132 = vsub.f32 %v10130, %v10131
        %v10133 = vand.u32 %v10132, 4294901760
        %10134 = vmatpush.msra.mxu0 %v10133
        %v10135 = vand.u32 %v10068, 4294901760
        %10136 = vmatmul.f32.gmra.mxu0 %v10135
        %v10137 = vpop.f32.mrf.mxu0
        %v10138 = vadd.f32 %v10097, %v10137
        %10139 = vdwg.mxu0
        %10140 = vmatpush.msra.mxu0 0.0
        %10141 = vmatpush.msra.mxu0 0.0
        %10142 = vmatpush.msra.mxu0 0.0
        %10143 = vmatpush.msra.mxu0 0.0
        %10144 = vmatpush.msra.mxu0 0.0
        %10145 = vmatpush.msra.mxu0 0.0
        %10146 = vmatpush.msra.mxu0 0.0
        %10147 = vmatpush.msra.mxu0 0.0
        %10148 = vmatpush.msra.mxu0 0.0
        %10149 = vmatpush.msra.mxu0 0.0
        %10150 = vmatpush.msra.mxu0 0.0
        %10151 = vmatpush.msra.mxu0 0.0
        %v10152 = vand.u32 %v10065, 4294901760
        %v10153 = vsub.f32 %v10065, %v10152
        %10154 = vmatpush.msra.mxu0 %v10153
        %v10155 = vand.u32 %v10064, 4294901760
        %v10156 = vsub.f32 %v10064, %v10155
        %10157 = vmatpush.msra.mxu0 %v10156
        %v10158 = vand.u32 %v10063, 4294901760
        %v10159 = vsub.f32 %v10063, %v10158
        %10160 = vmatpush.msra.mxu0 %v10159
        %v10161 = vand.u32 %v10062, 4294901760
        %v10162 = vsub.f32 %v10062, %v10161
        %10163 = vmatpush.msra.mxu0 %v10162
        %v10164 = vand.u32 %v10068, 4294901760
        %v10165 = vsub.f32 %v10068, %v10164
        %10166 = vmatmul.f32.gmra.mxu0 %v10165
        %v10167 = vpop.f32.mrf.mxu0
        %v10168 = vadd.f32 %v10138, %v10167
        %10169 = vdwg.mxu0
        %10170 = vmatpush.msra.mxu0 0.0
        %10171 = vmatpush.msra.mxu0 0.0
        %10172 = vmatpush.msra.mxu0 0.0
        %10173 = vmatpush.msra.mxu0 0.0
        %10174 = vmatpush.msra.mxu0 0.0
        %10175 = vmatpush.msra.mxu0 0.0
        %10176 = vmatpush.msra.mxu0 0.0
        %10177 = vmatpush.msra.mxu0 0.0
        %10178 = vmatpush.msra.mxu0 0.0
        %10179 = vmatpush.msra.mxu0 0.0
        %10180 = vmatpush.msra.mxu0 0.0
        %10181 = vmatpush.msra.mxu0 0.0
        %v10182 = vand.u32 %v10065, 4294901760
        %10183 = vmatpush.msra.mxu0 %v10182
        %v10184 = vand.u32 %v10064, 4294901760
        %10185 = vmatpush.msra.mxu0 %v10184
        %v10186 = vand.u32 %v10063, 4294901760
        %10187 = vmatpush.msra.mxu0 %v10186
        %v10188 = vand.u32 %v10062, 4294901760
        %10189 = vmatpush.msra.mxu0 %v10188
        %v10190 = vand.u32 %v10068, 4294901760
        %v10191 = vsub.f32 %v10068, %v10190
        %v10192 = vand.u32 %v10191, 4294901760
        %10193 = vmatmul.f32.gmra.mxu0 %v10192
        %v10194 = vpop.f32.mrf.mxu0
        %v10195 = vadd.f32 %v10168, %v10194
        %10196 = vdwg.mxu0
        %10197 = vmatpush.msra.mxu0 0.0
        %10198 = vmatpush.msra.mxu0 0.0
        %10199 = vmatpush.msra.mxu0 0.0
        %10200 = vmatpush.msra.mxu0 0.0
        %10201 = vmatpush.msra.mxu0 0.0
        %10202 = vmatpush.msra.mxu0 0.0
        %10203 = vmatpush.msra.mxu0 0.0
        %10204 = vmatpush.msra.mxu0 0.0
        %10205 = vmatpush.msra.mxu0 0.0
        %10206 = vmatpush.msra.mxu0 0.0
        %10207 = vmatpush.msra.mxu0 0.0
        %10208 = vmatpush.msra.mxu0 0.0
        %v10209 = vand.u32 %v10065, 4294901760
        %v10210 = vsub.f32 %v10065, %v10209
        %v10211 = vand.u32 %v10210, 4294901760
        %10212 = vmatpush.msra.mxu0 %v10211
        %v10213 = vand.u32 %v10064, 4294901760
        %v10214 = vsub.f32 %v10064, %v10213
        %v10215 = vand.u32 %v10214, 4294901760
        %10216 = vmatpush.msra.mxu0 %v10215
        %v10217 = vand.u32 %v10063, 4294901760
        %v10218 = vsub.f32 %v10063, %v10217
        %v10219 = vand.u32 %v10218, 4294901760
        %10220 = vmatpush.msra.mxu0 %v10219
        %v10221 = vand.u32 %v10062, 4294901760
        %v10222 = vsub.f32 %v10062, %v10221
        %v10223 = vand.u32 %v10222, 4294901760
        %10224 = vmatpush.msra.mxu0 %v10223
        %v10225 = vand.u32 %v10068, 4294901760
        %10226 = vmatmul.f32.gmra.mxu0 %v10225
        %v10227 = vpop.f32.mrf.mxu0
        %v10228 = vadd.f32 %v10195, %v10227
        %10229 = vdwg.mxu0
        %10230 = vmatpush.msra.mxu0 0.0
        %10231 = vmatpush.msra.mxu0 0.0
        %10232 = vmatpush.msra.mxu0 0.0
        %10233 = vmatpush.msra.mxu0 0.0
        %10234 = vmatpush.msra.mxu0 0.0
        %10235 = vmatpush.msra.mxu0 0.0
        %10236 = vmatpush.msra.mxu0 0.0
        %10237 = vmatpush.msra.mxu0 0.0
        %10238 = vmatpush.msra.mxu0 0.0
        %10239 = vmatpush.msra.mxu0 0.0
        %10240 = vmatpush.msra.mxu0 0.0
        %10241 = vmatpush.msra.mxu0 0.0
        %v10242 = vand.u32 %v10065, 4294901760
        %10243 = vmatpush.msra.mxu0 %v10242
        %v10244 = vand.u32 %v10064, 4294901760
        %10245 = vmatpush.msra.mxu0 %v10244
        %v10246 = vand.u32 %v10063, 4294901760
        %10247 = vmatpush.msra.mxu0 %v10246
        %v10248 = vand.u32 %v10062, 4294901760
        %10249 = vmatpush.msra.mxu0 %v10248
        %v10250 = vand.u32 %v10068, 4294901760
        %10251 = vmatmul.f32.gmra.mxu0 %v10250
        %v10252 = vpop.f32.mrf.mxu0
        %v10253 = vadd.f32 %v10228, %v10252
        %10254 = vdwg.mxu0
        %vm10255 = vcmask 32768
        %10256 = vst.msk [vmem:[%s432] sm:$0x1] %vm10255, %v10253
        %s10257 = sand.u32 %s313, 1
        %s10258 = scalar_lea.sflag [#allocation9], %s10257
        %s10259 = sand.u32 %s313, 1
        %s10260 = scalar_lea.vmem [#allocation8], %s10259
        // Predicated region
        $region73: #{gridworld_forward.1} parent=71 // pred_check
          %p10261 = pneg %p323
        $region74: #{gridworld_forward.1} parent=71 // pred_check_branch
          %10263 = sbr.rel (%p10261) target = $region76
        $region75: #{gridworld_forward.1} parent=71 // pred_region
          %10265 = vsyncadd %s10258, 0
          %s10266 = scalar_lea.hbm %s13, %s27
          %s10268 = sshll.u32 %s10260, 4
          %s10269 = int_to_ptr.vmem [resolvable:$true] %s10268
          %s10270 = sshll.u32 %s10266, 4
          %s10271 = int_to_ptr.hbm [resolvable:$true] %s10270
          %10273 = dma.vmem_to_hbm [thread:$0]  %s10269, 16, %s10271, %s10258
        $region76: #{gridworld_forward.1} parent=71 // pred_fallthru
          _
      $region72: #{gridworld_forward.1} parent=5 // pred_fallthru
        _
      %p10274 = scmp.le.s32.totalorder 2, %s22
      // Predicated region
      $region77: #{gridworld_forward.1} parent=5 // pred_check
        %p10275 = pneg %p10274
      $region78: #{gridworld_forward.1} parent=5 // pred_check_branch
        %10277 = sbr.rel (%p10275) target = $region80
      $region79: #{gridworld_forward.1} parent=5 // pred_region
        %s10278 = ssub.s32 %s22, 2
        // Predicated region
        $region81: #{gridworld_forward.1} parent=79 // pred_check
          %p10279 = pneg %p329
        $region82: #{gridworld_forward.1} parent=79 // pred_check_branch
          %10281 = sbr.rel (%p10279) target = $region84
        $region83: #{gridworld_forward.1} parent=79 // pred_region
          %s10282 = sand.u32 %s314, 1
          %s10283 = scalar_lea.sflag [#allocation9], %s10282
          %s10284 = sand.u32 %s314, 1
          %s10285 = scalar_lea.vmem [#allocation8], %s10284
          %10287 = dma.done %s10283, 16
        $region84: #{gridworld_forward.1} parent=79 // pred_fallthru
          _
      $region80: #{gridworld_forward.1} parent=5 // pred_fallthru
        _
    $region6: #{gridworld_forward.1} parent=1 // loop_footer
      %s26 = sadd.s32 1, %s22
    $region7: #{gridworld_forward.1} parent=1 // loop_footer_branch
      %21 = sbr.rel target = $region3
    $region8: #{gridworld_forward.1} parent=1 // loop_exit
      _
    %10288 = vsyncpa [#allocation9], 1
    %s10289 = scalar_lea.sflag [#allocation9], 1
    %10290 = vsyncpa %s10289, 1

</llo_original>
